<compile_context>
chip_gen: v5e
topology: v5e:2x2
jax: 0.10.0
libtpu: 0.0.40
codegen_flags: <defaults>
</compile_context>

<pallas_src>
import functools

import jax
import jax.numpy as jnp
from jax.experimental import pallas as pl
from jax.experimental.pallas import tpu as pltpu


# -----------------------------------------------------------------------------
# Model constants (atari cnn_type; hidden=32, action_dim=4, lookahead=1)
# -----------------------------------------------------------------------------
HIDDEN = 32
ACTION_DIM = 4
LOOKAHEAD = 1
NOISE_DIM = 128
CNN_NOISE_DIM = 8
IN_CH = 3
END_SIZE = 4

_AN_DIM = ACTION_DIM * LOOKAHEAD + NOISE_DIM          # 132  (action+noise for d0)
_H_PAD = 128                                          # lane-padded hidden/compressed
_AN_PAD = 256                                         # lane-padded action+noise


def _round_up(x, m):
    return ((x + m - 1) // m) * m


# -----------------------------------------------------------------------------
# Fused matmul + bias + activation Pallas kernels (bf16 inputs, f32 accumulate)
# -----------------------------------------------------------------------------
def _act(r, act):
    if act == "swish":
        # exp on EUP; approx reciprocal also on EUP -> keeps epilogue off the VALU
        return r * pl.reciprocal(1.0 + jnp.exp(-r), approx=True)
    if act == "tanh":
        return jnp.tanh(r)
    return r


def _mm_single_kernel(x_ref, w_ref, b_ref, o_ref, *, act):
    # nk == 1 fast path: no accumulator scratch, direct epilogue+store.
    r = jnp.dot(x_ref[...], w_ref[...], preferred_element_type=jnp.float32)
    r = r + b_ref[...]
    o_ref[...] = _act(r, act).astype(o_ref.dtype)


def _mm_multi_kernel(x_ref, w_ref, b_ref, o_ref, acc_ref, *, act, nk):
    @pl.when(pl.program_id(2) == 0)
    def _():
        acc_ref[...] = jnp.zeros_like(acc_ref)

    acc_ref[...] += jnp.dot(x_ref[...], w_ref[...],
                            preferred_element_type=jnp.float32)

    @pl.when(pl.program_id(2) == nk - 1)
    def _():
        r = acc_ref[...] + b_ref[...]
        o_ref[...] = _act(r, act).astype(o_ref.dtype)


def matmul_bias_act(x, w, b, act="none"):
    """act(x @ w + b).  x:(M,K), w:(K,N), b:(N,) -> (M,N) f32."""
    M, K = x.shape
    N = w.shape[1]
    tm = min(512, _round_up(M, 16))       # 16: bf16 sublane tile
    tn = min(256, _round_up(N, 128))
    tk = min(2048, _round_up(K, 128))
    Mp, Kp, Np = _round_up(M, tm), _round_up(K, tk), _round_up(N, tn)

    # pad with zeros first, then cast -> padded lanes stay exactly zero
    xp = jnp.pad(x, ((0, Mp - M), (0, Kp - K))).astype(jnp.bfloat16)
    wp = jnp.pad(w.astype(jnp.bfloat16), ((0, Kp - K), (0, Np - N)))
    bp = jnp.pad(b.astype(jnp.float32).reshape(1, -1), ((0, 0), (0, Np - N)))
    nk = Kp // tk

    if nk == 1:
        out = pl.pallas_call(
            functools.partial(_mm_single_kernel, act=act),
            out_shape=jax.ShapeDtypeStruct((Mp, Np), jnp.float32),
            grid_spec=pltpu.PrefetchScalarGridSpec(
                num_scalar_prefetch=0,
                grid=(Mp // tm, Np // tn),
                in_specs=[
                    pl.BlockSpec((tm, tk), lambda i, j: (i, 0)),
                    pl.BlockSpec((tk, tn), lambda i, j: (0, j)),
                    pl.BlockSpec((1, tn), lambda i, j: (0, j)),
                ],
                out_specs=pl.BlockSpec((tm, tn), lambda i, j: (i, j)),
            ),
            compiler_params=pltpu.CompilerParams(
                dimension_semantics=("parallel", "parallel")),
        )(xp, wp, bp)
    else:  # general fallback (not hit at these layer sizes)
        out = pl.pallas_call(
            functools.partial(_mm_multi_kernel, act=act, nk=nk),
            out_shape=jax.ShapeDtypeStruct((Mp, Np), jnp.float32),
            grid_spec=pltpu.PrefetchScalarGridSpec(
                num_scalar_prefetch=0,
                grid=(Mp // tm, Np // tn, nk),
                in_specs=[
                    pl.BlockSpec((tm, tk), lambda i, j, k: (i, k)),
                    pl.BlockSpec((tk, tn), lambda i, j, k: (k, j)),
                    pl.BlockSpec((1, tn), lambda i, j, k: (0, j)),
                ],
                out_specs=pl.BlockSpec((tm, tn), lambda i, j, k: (i, j)),
                scratch_shapes=[pltpu.VMEM((tm, tn), jnp.float32)],
            ),
            compiler_params=pltpu.CompilerParams(
                dimension_semantics=("parallel", "parallel", "arbitrary")),
        )(xp, wp, bp)
    return out[:M, :N]


# -----------------------------------------------------------------------------
# Fused "head" kernel: fc -> memory proxy -> reproj -> residual swish -> d0
# All dims pre-padded to multiples of 128 so every dot is lane-aligned.
# -----------------------------------------------------------------------------
def _head_kernel(flat_ref, an_ref, fcw_ref, fcb_ref, memw_ref, memb_ref,
                 repw_ref, repb_ref, d0we_ref, d0wan_ref, d0b_ref,
                 embed_ref, d0_ref):
    h = jnp.dot(flat_ref[...], fcw_ref[...],
                preferred_element_type=jnp.float32) + fcb_ref[...]
    # TODO(synk): HashingMemory (product-key memory) source is not provided;
    # a dense linear proxy (hidden -> compressed_dim=32) stands in for it.
    mem = jnp.dot(h, memw_ref[...],
                  preferred_element_type=jnp.float32) + memb_ref[...]
    y = jnp.dot(mem, repw_ref[...],
                preferred_element_type=jnp.float32) + repb_ref[...]
    embed = _act(h + y, "swish")                      # SkipHashingMemory + swish
    embed_ref[...] = embed.astype(embed_ref.dtype)
    z = (jnp.dot(embed, d0we_ref[...], preferred_element_type=jnp.float32)
         + jnp.dot(an_ref[...], d0wan_ref[...], preferred_element_type=jnp.float32)
         + d0b_ref[...])
    d0_ref[...] = _act(z, "swish").astype(d0_ref.dtype)


def fused_head(flat, an, pk):
    B = flat.shape[0]
    embed_full, d0 = pl.pallas_call(
        _head_kernel,
        out_shape=(jax.ShapeDtypeStruct((B, _H_PAD), jnp.float32),
                   jax.ShapeDtypeStruct((B, 32 * END_SIZE ** 2), jnp.float32)),
    )(flat, an, pk["fc_w"], pk["fc_b"], pk["mem_w"], pk["mem_b"],
      pk["rep_w"], pk["rep_b"], pk["d0_we"], pk["d0_wan"], pk["d0_b"])
    return embed_full[:, :HIDDEN], d0


# -----------------------------------------------------------------------------
# Conv / ConvTranspose layers built on the Pallas matmul kernel (NHWC)
# -----------------------------------------------------------------------------
def _im2col_nhwc(x, k, stride):
    # x: (B, H, W, C) -> (B*Ho*Wo, k*k*C) with feature order (kh, kw, C)
    B, H, W, C = x.shape
    Ho = (H - k) // stride + 1
    Wo = (W - k) // stride + 1
    cols = []
    for i in range(k):
        for j in range(k):
            cols.append(x[:, i:i + stride * (Ho - 1) + 1:stride,
                          j:j + stride * (Wo - 1) + 1:stride, :])
    p = jnp.concatenate(cols, axis=-1)               # (B, Ho, Wo, k*k*C)
    return p.reshape(B * Ho * Wo, k * k * C), Ho, Wo


def conv2d(x, wmat, b, k, stride, act="swish"):
    # x NHWC, wmat pre-packed (k*k*Cin, Cout) with (kh, kw, Cin) K-order
    B = x.shape[0]
    patches, Ho, Wo = _im2col_nhwc(x, k, stride)
    out = matmul_bias_act(patches, wmat, b, act)
    return out.reshape(B, Ho, Wo, wmat.shape[1])


def conv1x1(x, wmat, b, act):
    # 1x1 ConvTranspose (stride 1) == plain matmul on (B*H*W, Cin)
    B, H, W, C = x.shape
    out = matmul_bias_act(x.reshape(B * H * W, C), wmat, b, act)
    return out.reshape(B, H, W, wmat.shape[1])


def conv_transpose_s1(x, wmat, b, k, act="swish"):
    # stride-1 ConvTranspose == pad (k-1) + conv with pre-flipped kernel
    xp = jnp.pad(x, ((0, 0), (k - 1, k - 1), (k - 1, k - 1), (0, 0)))
    return conv2d(xp, wmat, b, k, 1, act)


def conv_transpose_subpixel(x, wmat, b_rep, s, t, cout, act="swish"):
    # stride-s ConvTranspose (k = s*t) via phase decomposition:
    #   pad (t-1), im2col(t, stride 1), one matmul K=t*t*Cin -> N=s*s*Cout,
    #   then pixel-shuffle the s*s phases into the output grid.
    B, H, W, _ = x.shape
    xp = jnp.pad(x, ((0, 0), (t - 1, t - 1), (t - 1, t - 1), (0, 0)))
    patches, Ho, Wo = _im2col_nhwc(xp, t, 1)          # Ho = H + t - 1
    out = matmul_bias_act(patches, wmat, b_rep, act)  # (B*Ho*Wo, s*s*cout)
    out = out.reshape(B, Ho, Wo, s, s, cout)
    out = out.transpose(0, 1, 3, 2, 4, 5).reshape(B, Ho * s, Wo * s, cout)
    return out


def _cat_action_noise(x, action_vec, key):
    B, H, W, _ = x.shape
    a = jnp.broadcast_to(action_vec[:, None, None, :],
                         (B, H, W, action_vec.shape[1]))
    n = jax.random.uniform(key, (B, H, W, CNN_NOISE_DIM), jnp.float32) * 2.0 - 1.0
    return jnp.concatenate([x, a, n], axis=-1)


# -----------------------------------------------------------------------------
# Parameters: torch-layout init + one-time packing into matmul layout
# -----------------------------------------------------------------------------
def init_params(key):
    def w(key, shape, fan_in):
        return jax.random.normal(key, shape, jnp.float32) / jnp.sqrt(fan_in)

    specs = {
        # encoder (atari: sizes [8,4,3], strides [4,2,1], filters [32,64,32])
        "e0_w": ((32, IN_CH, 8, 8), IN_CH * 64), "e0_b": ((32,), None),
        "e1_w": ((64, 32, 4, 4), 32 * 16),       "e1_b": ((64,), None),
        "e2_w": ((32, 64, 3, 3), 64 * 9),        "e2_b": ((32,), None),
        # Flatten -> Linear(32*4*4, hidden)
        "fc_w": ((HIDDEN, 32 * END_SIZE ** 2), 512), "fc_b": ((HIDDEN,), None),
        # SkipHashingMemory: memory proxy (hidden->32) + reproj (32->hidden)
        "mem_w": ((32, HIDDEN), HIDDEN),  "mem_b": ((32,), None),
        "rep_w": ((HIDDEN, 32), 32),      "rep_b": ((HIDDEN,), None),
        # decoder
        "d0_w": ((32 * END_SIZE ** 2, HIDDEN + _AN_DIM), HIDDEN + _AN_DIM),
        "d0_b": ((32 * END_SIZE ** 2,), None),
        "d1_w": ((64, 64, 3, 3), 64 * 9),  "d1_b": ((64,), None),   # ConvT(64->64,3,1)
        "d2_w": ((64 + ACTION_DIM * LOOKAHEAD + CNN_NOISE_DIM, 64, 1, 1), 76),
        "d2_b": ((64,), None),                                      # ConvT(76->64,1,1)
        "d3_w": ((128, 32, 4, 4), 128 * 16), "d3_b": ((32,), None), # ConvT(128->32,4,2)
        "d4_w": ((32 + ACTION_DIM * LOOKAHEAD + CNN_NOISE_DIM, 32, 1, 1), 44),
        "d4_b": ((32,), None),                                      # ConvT(44->32,1,1)
        "d5_w": ((64, 32, 8, 8), 64 * 64),  "d5_b": ((32,), None),  # ConvT(64->32,8,4)
        "d6_w": ((32, LOOKAHEAD * IN_CH, 1, 1), 32),
        "d6_b": ((LOOKAHEAD * IN_CH,), None),                       # ConvT(32->3,1,1)
    }
    params = {}
    keys = jax.random.split(key, len(specs))
    for (name, (shape, fan_in)), k in zip(specs.items(), keys):
        params[name] = (jnp.zeros(shape, jnp.float32) if fan_in is None
                        else w(k, shape, fan_in))
    return params


def pack_params(p):
    """One-time transform of torch-layout params into matmul layout (bf16 convs)."""
    f32, bf16 = jnp.float32, jnp.bfloat16

    def conv_w(W):  # (Cout,Cin,k,k) -> (k*k*Cin, Cout), K order (kh,kw,Cin)
        cout, cin, k, _ = W.shape
        return jnp.transpose(W, (2, 3, 1, 0)).reshape(k * k * cin, cout).astype(bf16)

    def convT_s1_w(Wt):  # (Cin,Cout,k,k) -> flipped (k*k*Cin, Cout)
        cin, cout, k, _ = Wt.shape
        W = jnp.transpose(Wt, (2, 3, 0, 1))[::-1, ::-1]
        return W.reshape(k * k * cin, cout).astype(bf16)

    def convT_sub_w(Wt, s):  # phase-split weights for stride-s ConvTranspose
        cin, cout, k, _ = Wt.shape
        t = k // s
        W = jnp.transpose(Wt, (2, 3, 0, 1)).reshape(t, s, t, s, cin, cout)
        W = W[::-1, :, ::-1, :, :, :]                       # flip tap index
        W = jnp.transpose(W, (0, 2, 4, 1, 3, 5))            # (jh,jw,cin, ph,pw,cout)
        return W.reshape(t * t * cin, s * s * cout).astype(bf16)

    def conv1x1_w(Wt):  # (Cin,Cout,1,1) -> (Cin,Cout)
        return Wt[:, :, 0, 0].astype(bf16)

    def pad2(a, rows, cols):
        return jnp.pad(a.astype(f32),
                       ((0, rows - a.shape[0]), (0, cols - a.shape[1])))

    pk = {}
    # encoder convs
    pk["e0_w"], pk["e0_b"] = conv_w(p["e0_w"]), p["e0_b"].astype(f32)
    pk["e1_w"], pk["e1_b"] = conv_w(p["e1_w"]), p["e1_b"].astype(f32)
    pk["e2_w"], pk["e2_b"] = conv_w(p["e2_w"]), p["e2_b"].astype(f32)

    # head (f32, lane-padded).  fc columns permuted (c,h,w)->(h,w,c) to match the
    # NHWC flatten order; d0 output permuted the same way so its reshape is NHWC.
    fcw = p["fc_w"].reshape(HIDDEN, 32, END_SIZE, END_SIZE)
    fcw = jnp.transpose(fcw, (0, 2, 3, 1)).reshape(HIDDEN, 32 * END_SIZE ** 2).T
    pk["fc_w"] = pad2(fcw, 32 * END_SIZE ** 2, _H_PAD)
    pk["fc_b"] = pad2(p["fc_b"].reshape(1, -1), 1, _H_PAD)
    pk["mem_w"] = pad2(p["mem_w"].T, _H_PAD, _H_PAD)
    pk["mem_b"] = pad2(p["mem_b"].reshape(1, -1), 1, _H_PAD)
    pk["rep_w"] = pad2(p["rep_w"].T, _H_PAD, _H_PAD)
    pk["rep_b"] = pad2(p["rep_b"].reshape(1, -1), 1, _H_PAD)

    d0w = p["d0_w"].T                                       # (164, 512)
    d0w = d0w.reshape(HIDDEN + _AN_DIM, 32, END_SIZE, END_SIZE)
    d0w = jnp.transpose(d0w, (0, 2, 3, 1)).reshape(HIDDEN + _AN_DIM, 32 * END_SIZE ** 2)
    pk["d0_we"] = pad2(d0w[:HIDDEN], _H_PAD, 32 * END_SIZE ** 2)
    pk["d0_wan"] = pad2(d0w[HIDDEN:], _AN_PAD, 32 * END_SIZE ** 2)
    d0b = p["d0_b"].reshape(32, END_SIZE, END_SIZE)
    pk["d0_b"] = jnp.transpose(d0b, (1, 2, 0)).reshape(1, 32 * END_SIZE ** 2).astype(f32)

    # decoder
    pk["d1_w"], pk["d1_b"] = convT_s1_w(p["d1_w"]), p["d1_b"].astype(f32)
    pk["d2_w"], pk["d2_b"] = conv1x1_w(p["d2_w"]), p["d2_b"].astype(f32)
    pk["d3_w"] = convT_sub_w(p["d3_w"], 2)
    pk["d3_b"] = jnp.tile(p["d3_b"], 4).astype(f32)         # (ph,pw,cout) order
    pk["d4_w"], pk["d4_b"] = conv1x1_w(p["d4_w"]), p["d4_b"].astype(f32)
    pk["d5_w"] = convT_sub_w(p["d5_w"], 4)
    pk["d5_b"] = jnp.tile(p["d5_b"], 16).astype(f32)
    pk["d6_w"], pk["d6_b"] = conv1x1_w(p["d6_w"]), p["d6_b"].astype(f32)
    return pk


# -----------------------------------------------------------------------------
# netG forward (inputs/outputs NCHW to match the torch module; NHWC inside)
# -----------------------------------------------------------------------------
def netg_forward(pk, state_pov, action_vec, key):
    B = state_pov.shape[0]
    x = jnp.transpose(state_pov, (0, 2, 3, 1))                 # NCHW -> NHWC

    # ---- encoder ----
    x0 = conv2d(x,  pk["e0_w"], pk["e0_b"], 8, 4, "swish")     # (B,14,14,32)
    x1 = conv2d(x0, pk["e1_w"], pk["e1_b"], 4, 2, "swish")     # (B, 6, 6,64)
    x2 = conv2d(x1, pk["e2_w"], pk["e2_b"], 3, 1, "swish")     # (B, 4, 4,32)
    flat = x2.reshape(B, 32 * END_SIZE ** 2)                   # (B,512) (h,w,c)

    k_noise, k2, k4 = jax.random.split(key, 3)
    noise = jax.random.uniform(k_noise, (B, NOISE_DIM), jnp.float32) * 2.0 - 1.0
    an = jnp.concatenate([action_vec, noise], axis=1)          # (B,132)
    an = jnp.pad(an, ((0, 0), (0, _AN_PAD - an.shape[1])))     # (B,256)

    # ---- fused head: fc -> memory proxy -> reproj -> residual swish -> d0 ----
    embed, d0 = fused_head(flat, an, pk)                       # (B,32), (B,512)
    xd = d0.reshape(B, END_SIZE, END_SIZE, 32)                 # (B,4,4,32) NHWC

    # ---- decoder ----
    # i=1: cat skip x2 -> ConvT(64->64, 3, s=1)
    xd = jnp.concatenate([xd, x2], axis=-1)                    # (B,4,4,64)
    xd = conv_transpose_s1(xd, pk["d1_w"], pk["d1_b"], 3, "swish")   # (B,6,6,64)

    # i=2: cat tiled action + cnn noise -> ConvT 1x1
    xd = _cat_action_noise(xd, action_vec, k2)                 # (B,6,6,76)
    xd = conv1x1(xd, pk["d2_w"], pk["d2_b"], "swish")          # (B,6,6,64)

    # i=3: cat skip x1 -> ConvT(128->32, 4, s=2) via sub-pixel phases
    xd = jnp.concatenate([xd, x1], axis=-1)                    # (B,6,6,128)
    xd = conv_transpose_subpixel(xd, pk["d3_w"], pk["d3_b"], 2, 2, 32, "swish")
    # (B,14,14,32)

    # i=4: cat tiled action + cnn noise -> ConvT 1x1
    xd = _cat_action_noise(xd, action_vec, k4)                 # (B,14,14,44)
    xd = conv1x1(xd, pk["d4_w"], pk["d4_b"], "swish")          # (B,14,14,32)

    # i=5: cat skip x0 -> ConvT(64->32, 8, s=4) via sub-pixel phases
    xd = jnp.concatenate([xd, x0], axis=-1)                    # (B,14,14,64)
    xd = conv_transpose_subpixel(xd, pk["d5_w"], pk["d5_b"], 4, 2, 32, "swish")
    # (B,60,60,32)

    # i=6: final 1x1 ConvT + tanh
    xd = conv1x1(xd, pk["d6_w"], pk["d6_b"], "tanh")           # (B,60,60,3)

    out = jnp.transpose(xd, (0, 3, 1, 2))                      # NHWC -> NCHW
    return out, embed


# -----------------------------------------------------------------------------
if __name__ == "__main__":
    key = jax.random.PRNGKey(0)
    pkey, xkey, akey, nkey = jax.random.split(key, 4)

    params = init_params(pkey)
    packed = pack_params(params)                               # one-time, outside jit

    B = 2  # args.er
    state_pov = jax.random.uniform(xkey, (B, IN_CH, 60, 60), jnp.float32)   # NCHW
    action_vec = jax.random.uniform(akey, (B, ACTION_DIM * LOOKAHEAD), jnp.float32)

    fwd = jax.jit(netg_forward)
    out, embed = fwd(packed, state_pov, action_vec, nkey)
    jax.block_until_ready(out)
    jax.block_until_ready(embed)

    assert out.shape == (B, LOOKAHEAD * IN_CH, 60, 60), out.shape
    assert embed.shape == (B, HIDDEN), embed.shape
    assert bool(jnp.all(jnp.isfinite(out))) and bool(jnp.all(jnp.isfinite(embed)))
    print("KERNEL_OK")
</pallas_src>

<mosaic_0001>
module attributes {stable_mosaic.version = 11 : i64} {
  func.func @_mm_single_kernel(%arg0: i32, %arg1: i32, %arg2: memref<400x256xbf16, #tpu.memory_space<vmem>>, %arg3: memref<256x128xbf16, #tpu.memory_space<vmem>>, %arg4: memref<1x128xf32, #tpu.memory_space<vmem>>, %arg5: memref<400x128xf32, #tpu.memory_space<vmem>>) attributes {dimension_semantics = [#tpu.dimension_semantics<parallel>, #tpu.dimension_semantics<parallel>], iteration_bounds = array<i64: 1, 1>, scalar_prefetch = 0 : i64, scratch_operands = 0 : i64, tpu.core_type = #tpu.core_type<tc>, window_params = [{transform_indices = @transform_0, window_bounds = array<i64: 400, 256>}, {transform_indices = @transform_1, window_bounds = array<i64: 256, 128>}, {transform_indices = @transform_2, window_bounds = array<i64: 1, 128>}, {transform_indices = @transform_3, window_bounds = array<i64: 400, 128>}]} {
    %c0 = arith.constant 0 : index
    %c0_0 = arith.constant 0 : index
    %0 = vector.load %arg2[%c0, %c0_0] : memref<400x256xbf16, #tpu.memory_space<vmem>>, vector<400x256xbf16>
    %c0_1 = arith.constant 0 : index
    %c0_2 = arith.constant 0 : index
    %1 = vector.load %arg3[%c0_1, %c0_2] : memref<256x128xbf16, #tpu.memory_space<vmem>>, vector<256x128xbf16>
    %cst = arith.constant dense<0.000000e+00> : vector<400x128xf32>
    %2 = tpu.matmul %0, %1, %cst {dimension_numbers = #tpu.dot_dimension_numbers<[1], [0], [0], [1], [0, 0, 1, 1], [], []>} : vector<400x256xbf16>, vector<256x128xbf16>, vector<400x128xf32> -> vector<400x128xf32>
    %c0_3 = arith.constant 0 : index
    %c0_4 = arith.constant 0 : index
    %3 = vector.load %arg4[%c0_3, %c0_4] : memref<1x128xf32, #tpu.memory_space<vmem>>, vector<1x128xf32>
    %4 = vector.broadcast %3 : vector<1x128xf32> to vector<400x128xf32>
    %5 = arith.addf %2, %4 : vector<400x128xf32>
    %cst_5 = arith.constant 0.000000e+00 : f32
    %6 = vector.broadcast %cst_5 : f32 to vector<400x128xf32>
    %7 = arith.subf %6, %5 : vector<400x128xf32>
    %8 = math.exp %7 : vector<400x128xf32>
    %cst_6 = arith.constant 1.000000e+00 : f32
    %9 = vector.broadcast %cst_6 : f32 to vector<400x128xf32>
    %10 = arith.addf %9, %8 : vector<400x128xf32>
    %11 = tpu.reciprocal %10 {approx = true} : vector<400x128xf32> -> vector<400x128xf32>
    %12 = arith.mulf %5, %11 : vector<400x128xf32>
    %c0_7 = arith.constant 0 : index
    %c0_8 = arith.constant 0 : index
    %13 = vector.load %arg5[%c0_7, %c0_8] : memref<400x128xf32, #tpu.memory_space<vmem>>, vector<400x128xf32>
    tpu.vector_store %arg5[%c0_7, %c0_8], %12 {strides = array<i32>} : memref<400x128xf32, #tpu.memory_space<vmem>>, vector<400x128xf32>,
    return
  }
  func.func @transform_0(%arg0: i32, %arg1: i32) -> (i32, i32) {
    %c0_i32 = arith.constant 0 : i32
    %c0_i32_0 = arith.constant 0 : i32
    return %arg0, %c0_i32 : i32, i32
  }
  func.func @transform_1(%arg0: i32, %arg1: i32) -> (i32, i32) {
    %c0_i32 = arith.constant 0 : i32
    %c0_i32_0 = arith.constant 0 : i32
    return %c0_i32, %arg1 : i32, i32
  }
  func.func @transform_2(%arg0: i32, %arg1: i32) -> (i32, i32) {
    %c0_i32 = arith.constant 0 : i32
    %c0_i32_0 = arith.constant 0 : i32
    return %c0_i32, %arg1 : i32, i32
  }
  func.func @transform_3(%arg0: i32, %arg1: i32) -> (i32, i32) {
    %c0_i32 = arith.constant 0 : i32
    return %arg0, %arg1 : i32, i32
  }
}

module attributes {stable_mosaic.version = 11 : i64} {
  func.func @_mm_single_kernel(%arg0: i32, %arg1: i32, %arg2: memref<80x512xbf16, #tpu.memory_space<vmem>>, %arg3: memref<512x128xbf16, #tpu.memory_space<vmem>>, %arg4: memref<1x128xf32, #tpu.memory_space<vmem>>, %arg5: memref<80x128xf32, #tpu.memory_space<vmem>>) attributes {dimension_semantics = [#tpu.dimension_semantics<parallel>, #tpu.dimension_semantics<parallel>], iteration_bounds = array<i64: 1, 1>, scalar_prefetch = 0 : i64, scratch_operands = 0 : i64, tpu.core_type = #tpu.core_type<tc>, window_params = [{transform_indices = @transform_0, window_bounds = array<i64: 80, 512>}, {transform_indices = @transform_1, window_bounds = array<i64: 512, 128>}, {transform_indices = @transform_2, window_bounds = array<i64: 1, 128>}, {transform_indices = @transform_3, window_bounds = array<i64: 80, 128>}]} {
    %c0 = arith.constant 0 : index
    %c0_0 = arith.constant 0 : index
    %0 = vector.load %arg2[%c0, %c0_0] : memref<80x512xbf16, #tpu.memory_space<vmem>>, vector<80x512xbf16>
    %c0_1 = arith.constant 0 : index
    %c0_2 = arith.constant 0 : index
    %1 = vector.load %arg3[%c0_1, %c0_2] : memref<512x128xbf16, #tpu.memory_space<vmem>>, vector<512x128xbf16>
    %cst = arith.constant dense<0.000000e+00> : vector<80x128xf32>
    %2 = tpu.matmul %0, %1, %cst {dimension_numbers = #tpu.dot_dimension_numbers<[1], [0], [0], [1], [0, 0, 1, 1], [], []>} : vector<80x512xbf16>, vector<512x128xbf16>, vector<80x128xf32> -> vector<80x128xf32>
    %c0_3 = arith.constant 0 : index
    %c0_4 = arith.constant 0 : index
    %3 = vector.load %arg4[%c0_3, %c0_4] : memref<1x128xf32, #tpu.memory_space<vmem>>, vector<1x128xf32>
    %4 = vector.broadcast %3 : vector<1x128xf32> to vector<80x128xf32>
    %5 = arith.addf %2, %4 : vector<80x128xf32>
    %cst_5 = arith.constant 0.000000e+00 : f32
    %6 = vector.broadcast %cst_5 : f32 to vector<80x128xf32>
    %7 = arith.subf %6, %5 : vector<80x128xf32>
    %8 = math.exp %7 : vector<80x128xf32>
    %cst_6 = arith.constant 1.000000e+00 : f32
    %9 = vector.broadcast %cst_6 : f32 to vector<80x128xf32>
    %10 = arith.addf %9, %8 : vector<80x128xf32>
    %11 = tpu.reciprocal %10 {approx = true} : vector<80x128xf32> -> vector<80x128xf32>
    %12 = arith.mulf %5, %11 : vector<80x128xf32>
    %c0_7 = arith.constant 0 : index
    %c0_8 = arith.constant 0 : index
    %13 = vector.load %arg5[%c0_7, %c0_8] : memref<80x128xf32, #tpu.memory_space<vmem>>, vector<80x128xf32>
    tpu.vector_store %arg5[%c0_7, %c0_8], %12 {strides = array<i32>} : memref<80x128xf32, #tpu.memory_space<vmem>>, vector<80x128xf32>,
    return
  }
  func.func @transform_0(%arg0: i32, %arg1: i32) -> (i32, i32) {
    %c0_i32 = arith.constant 0 : i32
    %c0_i32_0 = arith.constant 0 : i32
    return %arg0, %c0_i32 : i32, i32
  }
  func.func @transform_1(%arg0: i32, %arg1: i32) -> (i32, i32) {
    %c0_i32 = arith.constant 0 : i32
    %c0_i32_0 = arith.constant 0 : i32
    return %c0_i32, %arg1 : i32, i32
  }
  func.func @transform_2(%arg0: i32, %arg1: i32) -> (i32, i32) {
    %c0_i32 = arith.constant 0 : i32
    %c0_i32_0 = arith.constant 0 : i32
    return %c0_i32, %arg1 : i32, i32
  }
  func.func @transform_3(%arg0: i32, %arg1: i32) -> (i32, i32) {
    %c0_i32 = arith.constant 0 : i32
    return %arg0, %arg1 : i32, i32
  }
}

module attributes {stable_mosaic.version = 11 : i64} {
  func.func @_mm_single_kernel(%arg0: i32, %arg1: i32, %arg2: memref<32x640xbf16, #tpu.memory_space<vmem>>, %arg3: memref<640x128xbf16, #tpu.memory_space<vmem>>, %arg4: memref<1x128xf32, #tpu.memory_space<vmem>>, %arg5: memref<32x128xf32, #tpu.memory_space<vmem>>) attributes {dimension_semantics = [#tpu.dimension_semantics<parallel>, #tpu.dimension_semantics<parallel>], iteration_bounds = array<i64: 1, 1>, scalar_prefetch = 0 : i64, scratch_operands = 0 : i64, tpu.core_type = #tpu.core_type<tc>, window_params = [{transform_indices = @transform_0, window_bounds = array<i64: 32, 640>}, {transform_indices = @transform_1, window_bounds = array<i64: 640, 128>}, {transform_indices = @transform_2, window_bounds = array<i64: 1, 128>}, {transform_indices = @transform_3, window_bounds = array<i64: 32, 128>}]} {
    %c0 = arith.constant 0 : index
    %c0_0 = arith.constant 0 : index
    %0 = vector.load %arg2[%c0, %c0_0] : memref<32x640xbf16, #tpu.memory_space<vmem>>, vector<32x640xbf16>
    %c0_1 = arith.constant 0 : index
    %c0_2 = arith.constant 0 : index
    %1 = vector.load %arg3[%c0_1, %c0_2] : memref<640x128xbf16, #tpu.memory_space<vmem>>, vector<640x128xbf16>
    %cst = arith.constant dense<0.000000e+00> : vector<32x128xf32>
    %2 = tpu.matmul %0, %1, %cst {dimension_numbers = #tpu.dot_dimension_numbers<[1], [0], [0], [1], [0, 0, 1, 1], [], []>} : vector<32x640xbf16>, vector<640x128xbf16>, vector<32x128xf32> -> vector<32x128xf32>
    %c0_3 = arith.constant 0 : index
    %c0_4 = arith.constant 0 : index
    %3 = vector.load %arg4[%c0_3, %c0_4] : memref<1x128xf32, #tpu.memory_space<vmem>>, vector<1x128xf32>
    %4 = vector.broadcast %3 : vector<1x128xf32> to vector<32x128xf32>
    %5 = arith.addf %2, %4 : vector<32x128xf32>
    %cst_5 = arith.constant 0.000000e+00 : f32
    %6 = vector.broadcast %cst_5 : f32 to vector<32x128xf32>
    %7 = arith.subf %6, %5 : vector<32x128xf32>
    %8 = math.exp %7 : vector<32x128xf32>
    %cst_6 = arith.constant 1.000000e+00 : f32
    %9 = vector.broadcast %cst_6 : f32 to vector<32x128xf32>
    %10 = arith.addf %9, %8 : vector<32x128xf32>
    %11 = tpu.reciprocal %10 {approx = true} : vector<32x128xf32> -> vector<32x128xf32>
    %12 = arith.mulf %5, %11 : vector<32x128xf32>
    %c0_7 = arith.constant 0 : index
    %c0_8 = arith.constant 0 : index
    %13 = vector.load %arg5[%c0_7, %c0_8] : memref<32x128xf32, #tpu.memory_space<vmem>>, vector<32x128xf32>
    tpu.vector_store %arg5[%c0_7, %c0_8], %12 {strides = array<i32>} : memref<32x128xf32, #tpu.memory_space<vmem>>, vector<32x128xf32>,
    return
  }
  func.func @transform_0(%arg0: i32, %arg1: i32) -> (i32, i32) {
    %c0_i32 = arith.constant 0 : i32
    %c0_i32_0 = arith.constant 0 : i32
    return %arg0, %c0_i32 : i32, i32
  }
  func.func @transform_1(%arg0: i32, %arg1: i32) -> (i32, i32) {
    %c0_i32 = arith.constant 0 : i32
    %c0_i32_0 = arith.constant 0 : i32
    return %c0_i32, %arg1 : i32, i32
  }
  func.func @transform_2(%arg0: i32, %arg1: i32) -> (i32, i32) {
    %c0_i32 = arith.constant 0 : i32
    %c0_i32_0 = arith.constant 0 : i32
    return %c0_i32, %arg1 : i32, i32
  }
  func.func @transform_3(%arg0: i32, %arg1: i32) -> (i32, i32) {
    %c0_i32 = arith.constant 0 : i32
    return %arg0, %arg1 : i32, i32
  }
}

module attributes {stable_mosaic.version = 11 : i64} {
  func.func @_head_kernel(%arg0: memref<2x512xf32, #tpu.memory_space<vmem>>, %arg1: memref<2x256xf32, #tpu.memory_space<vmem>>, %arg2: memref<512x128xf32, #tpu.memory_space<vmem>>, %arg3: memref<1x128xf32, #tpu.memory_space<vmem>>, %arg4: memref<128x128xf32, #tpu.memory_space<vmem>>, %arg5: memref<1x128xf32, #tpu.memory_space<vmem>>, %arg6: memref<128x128xf32, #tpu.memory_space<vmem>>, %arg7: memref<1x128xf32, #tpu.memory_space<vmem>>, %arg8: memref<128x512xf32, #tpu.memory_space<vmem>>, %arg9: memref<256x512xf32, #tpu.memory_space<vmem>>, %arg10: memref<1x512xf32, #tpu.memory_space<vmem>>, %arg11: memref<2x128xf32, #tpu.memory_space<vmem>>, %arg12: memref<2x512xf32, #tpu.memory_space<vmem>>) attributes {dimension_semantics = [], scalar_prefetch = 0 : i64, scratch_operands = 0 : i64, tpu.core_type = #tpu.core_type<tc>} {
    %c0 = arith.constant 0 : index
    %c0_0 = arith.constant 0 : index
    %0 = vector.load %arg0[%c0, %c0_0] : memref<2x512xf32, #tpu.memory_space<vmem>>, vector<2x512xf32>
    %c0_1 = arith.constant 0 : index
    %c0_2 = arith.constant 0 : index
    %1 = vector.load %arg2[%c0_1, %c0_2] : memref<512x128xf32, #tpu.memory_space<vmem>>, vector<512x128xf32>
    %cst = arith.constant dense<0.000000e+00> : vector<2x128xf32>
    %2 = tpu.matmul %0, %1, %cst {dimension_numbers = #tpu.dot_dimension_numbers<[1], [0], [0], [1], [0, 0, 1, 1], [], []>} : vector<2x512xf32>, vector<512x128xf32>, vector<2x128xf32> -> vector<2x128xf32>
    %c0_3 = arith.constant 0 : index
    %c0_4 = arith.constant 0 : index
    %3 = vector.load %arg3[%c0_3, %c0_4] : memref<1x128xf32, #tpu.memory_space<vmem>>, vector<1x128xf32>
    %4 = vector.broadcast %3 : vector<1x128xf32> to vector<2x128xf32>
    %5 = arith.addf %2, %4 : vector<2x128xf32>
    %c0_5 = arith.constant 0 : index
    %c0_6 = arith.constant 0 : index
    %6 = vector.load %arg4[%c0_5, %c0_6] : memref<128x128xf32, #tpu.memory_space<vmem>>, vector<128x128xf32>
    %cst_7 = arith.constant dense<0.000000e+00> : vector<2x128xf32>
    %7 = tpu.matmul %5, %6, %cst_7 {dimension_numbers = #tpu.dot_dimension_numbers<[1], [0], [0], [1], [0, 0, 1, 1], [], []>} : vector<2x128xf32>, vector<128x128xf32>, vector<2x128xf32> -> vector<2x128xf32>
    %c0_8 = arith.constant 0 : index
    %c0_9 = arith.constant 0 : index
    %8 = vector.load %arg5[%c0_8, %c0_9] : memref<1x128xf32, #tpu.memory_space<vmem>>, vector<1x128xf32>
    %9 = vector.broadcast %8 : vector<1x128xf32> to vector<2x128xf32>
    %10 = arith.addf %7, %9 : vector<2x128xf32>
    %c0_10 = arith.constant 0 : index
    %c0_11 = arith.constant 0 : index
    %11 = vector.load %arg6[%c0_10, %c0_11] : memref<128x128xf32, #tpu.memory_space<vmem>>, vector<128x128xf32>
    %cst_12 = arith.constant dense<0.000000e+00> : vector<2x128xf32>
    %12 = tpu.matmul %10, %11, %cst_12 {dimension_numbers = #tpu.dot_dimension_numbers<[1], [0], [0], [1], [0, 0, 1, 1], [], []>} : vector<2x128xf32>, vector<128x128xf32>, vector<2x128xf32> -> vector<2x128xf32>
    %c0_13 = arith.constant 0 : index
    %c0_14 = arith.constant 0 : index
    %13 = vector.load %arg7[%c0_13, %c0_14] : memref<1x128xf32, #tpu.memory_space<vmem>>, vector<1x128xf32>
    %14 = vector.broadcast %13 : vector<1x128xf32> to vector<2x128xf32>
    %15 = arith.addf %12, %14 : vector<2x128xf32>
    %16 = arith.addf %5, %15 : vector<2x128xf32>
    %cst_15 = arith.constant 0.000000e+00 : f32
    %17 = vector.broadcast %cst_15 : f32 to vector<2x128xf32>
    %18 = arith.subf %17, %16 : vector<2x128xf32>
    %19 = math.exp %18 : vector<2x128xf32>
    %cst_16 = arith.constant 1.000000e+00 : f32
    %20 = vector.broadcast %cst_16 : f32 to vector<2x128xf32>
    %21 = arith.addf %20, %19 : vector<2x128xf32>
    %22 = tpu.reciprocal %21 {approx = true} : vector<2x128xf32> -> vector<2x128xf32>
    %23 = arith.mulf %16, %22 : vector<2x128xf32>
    %c0_17 = arith.constant 0 : index
    %c0_18 = arith.constant 0 : index
    %24 = vector.load %arg11[%c0_17, %c0_18] : memref<2x128xf32, #tpu.memory_space<vmem>>, vector<2x128xf32>
    tpu.vector_store %arg11[%c0_17, %c0_18], %23 {strides = array<i32>} : memref<2x128xf32, #tpu.memory_space<vmem>>, vector<2x128xf32>,
    %c0_19 = arith.constant 0 : index
    %c0_20 = arith.constant 0 : index
    %25 = vector.load %arg8[%c0_19, %c0_20] : memref<128x512xf32, #tpu.memory_space<vmem>>, vector<128x512xf32>
    %cst_21 = arith.constant dense<0.000000e+00> : vector<2x512xf32>
    %26 = tpu.matmul %23, %25, %cst_21 {dimension_numbers = #tpu.dot_dimension_numbers<[1], [0], [0], [1], [0, 0, 1, 1], [], []>} : vector<2x128xf32>, vector<128x512xf32>, vector<2x512xf32> -> vector<2x512xf32>
    %c0_22 = arith.constant 0 : index
    %c0_23 = arith.constant 0 : index
    %27 = vector.load %arg1[%c0_22, %c0_23] : memref<2x256xf32, #tpu.memory_space<vmem>>, vector<2x256xf32>
    %c0_24 = arith.constant 0 : index
    %c0_25 = arith.constant 0 : index
    %28 = vector.load %arg9[%c0_24, %c0_25] : memref<256x512xf32, #tpu.memory_space<vmem>>, vector<256x512xf32>
    %cst_26 = arith.constant dense<0.000000e+00> : vector<2x512xf32>
    %29 = tpu.matmul %27, %28, %cst_26 {dimension_numbers = #tpu.dot_dimension_numbers<[1], [0], [0], [1], [0, 0, 1, 1], [], []>} : vector<2x256xf32>, vector<256x512xf32>, vector<2x512xf32> -> vector<2x512xf32>
    %30 = arith.addf %26, %29 : vector<2x512xf32>
    %c0_27 = arith.constant 0 : index
    %c0_28 = arith.constant 0 : index
    %31 = vector.load %arg10[%c0_27, %c0_28] : memref<1x512xf32, #tpu.memory_space<vmem>>, vector<1x512xf32>
    %32 = vector.broadcast %31 : vector<1x512xf32> to vector<2x512xf32>
    %33 = arith.addf %30, %32 : vector<2x512xf32>
    %cst_29 = arith.constant 0.000000e+00 : f32
    %34 = vector.broadcast %cst_29 : f32 to vector<2x512xf32>
    %35 = arith.subf %34, %33 : vector<2x512xf32>
    %36 = math.exp %35 : vector<2x512xf32>
    %cst_30 = arith.constant 1.000000e+00 : f32
    %37 = vector.broadcast %cst_30 : f32 to vector<2x512xf32>
    %38 = arith.addf %37, %36 : vector<2x512xf32>
    %39 = tpu.reciprocal %38 {approx = true} : vector<2x512xf32> -> vector<2x512xf32>
    %40 = arith.mulf %33, %39 : vector<2x512xf32>
    %c0_31 = arith.constant 0 : index
    %c0_32 = arith.constant 0 : index
    %41 = vector.load %arg12[%c0_31, %c0_32] : memref<2x512xf32, #tpu.memory_space<vmem>>, vector<2x512xf32>
    tpu.vector_store %arg12[%c0_31, %c0_32], %40 {strides = array<i32>} : memref<2x512xf32, #tpu.memory_space<vmem>>, vector<2x512xf32>,
    return
  }
}

module attributes {stable_mosaic.version = 11 : i64} {
  func.func @_mm_single_kernel(%arg0: i32, %arg1: i32, %arg2: memref<80x640xbf16, #tpu.memory_space<vmem>>, %arg3: memref<640x128xbf16, #tpu.memory_space<vmem>>, %arg4: memref<1x128xf32, #tpu.memory_space<vmem>>, %arg5: memref<80x128xf32, #tpu.memory_space<vmem>>) attributes {dimension_semantics = [#tpu.dimension_semantics<parallel>, #tpu.dimension_semantics<parallel>], iteration_bounds = array<i64: 1, 1>, scalar_prefetch = 0 : i64, scratch_operands = 0 : i64, tpu.core_type = #tpu.core_type<tc>, window_params = [{transform_indices = @transform_0, window_bounds = array<i64: 80, 640>}, {transform_indices = @transform_1, window_bounds = array<i64: 640, 128>}, {transform_indices = @transform_2, window_bounds = array<i64: 1, 128>}, {transform_indices = @transform_3, window_bounds = array<i64: 80, 128>}]} {
    %c0 = arith.constant 0 : index
    %c0_0 = arith.constant 0 : index
    %0 = vector.load %arg2[%c0, %c0_0] : memref<80x640xbf16, #tpu.memory_space<vmem>>, vector<80x640xbf16>
    %c0_1 = arith.constant 0 : index
    %c0_2 = arith.constant 0 : index
    %1 = vector.load %arg3[%c0_1, %c0_2] : memref<640x128xbf16, #tpu.memory_space<vmem>>, vector<640x128xbf16>
    %cst = arith.constant dense<0.000000e+00> : vector<80x128xf32>
    %2 = tpu.matmul %0, %1, %cst {dimension_numbers = #tpu.dot_dimension_numbers<[1], [0], [0], [1], [0, 0, 1, 1], [], []>} : vector<80x640xbf16>, vector<640x128xbf16>, vector<80x128xf32> -> vector<80x128xf32>
    %c0_3 = arith.constant 0 : index
    %c0_4 = arith.constant 0 : index
    %3 = vector.load %arg4[%c0_3, %c0_4] : memref<1x128xf32, #tpu.memory_space<vmem>>, vector<1x128xf32>
    %4 = vector.broadcast %3 : vector<1x128xf32> to vector<80x128xf32>
    %5 = arith.addf %2, %4 : vector<80x128xf32>
    %cst_5 = arith.constant 0.000000e+00 : f32
    %6 = vector.broadcast %cst_5 : f32 to vector<80x128xf32>
    %7 = arith.subf %6, %5 : vector<80x128xf32>
    %8 = math.exp %7 : vector<80x128xf32>
    %cst_6 = arith.constant 1.000000e+00 : f32
    %9 = vector.broadcast %cst_6 : f32 to vector<80x128xf32>
    %10 = arith.addf %9, %8 : vector<80x128xf32>
    %11 = tpu.reciprocal %10 {approx = true} : vector<80x128xf32> -> vector<80x128xf32>
    %12 = arith.mulf %5, %11 : vector<80x128xf32>
    %c0_7 = arith.constant 0 : index
    %c0_8 = arith.constant 0 : index
    %13 = vector.load %arg5[%c0_7, %c0_8] : memref<80x128xf32, #tpu.memory_space<vmem>>, vector<80x128xf32>
    tpu.vector_store %arg5[%c0_7, %c0_8], %12 {strides = array<i32>} : memref<80x128xf32, #tpu.memory_space<vmem>>, vector<80x128xf32>,
    return
  }
  func.func @transform_0(%arg0: i32, %arg1: i32) -> (i32, i32) {
    %c0_i32 = arith.constant 0 : i32
    %c0_i32_0 = arith.constant 0 : i32
    return %arg0, %c0_i32 : i32, i32
  }
  func.func @transform_1(%arg0: i32, %arg1: i32) -> (i32, i32) {
    %c0_i32 = arith.constant 0 : i32
    %c0_i32_0 = arith.constant 0 : i32
    return %c0_i32, %arg1 : i32, i32
  }
  func.func @transform_2(%arg0: i32, %arg1: i32) -> (i32, i32) {
    %c0_i32 = arith.constant 0 : i32
    %c0_i32_0 = arith.constant 0 : i32
    return %c0_i32, %arg1 : i32, i32
  }
  func.func @transform_3(%arg0: i32, %arg1: i32) -> (i32, i32) {
    %c0_i32 = arith.constant 0 : i32
    return %arg0, %arg1 : i32, i32
  }
}

module attributes {stable_mosaic.version = 11 : i64} {
  func.func @_mm_single_kernel(%arg0: i32, %arg1: i32, %arg2: memref<80x128xbf16, #tpu.memory_space<vmem>>, %arg3: memref<128x128xbf16, #tpu.memory_space<vmem>>, %arg4: memref<1x128xf32, #tpu.memory_space<vmem>>, %arg5: memref<80x128xf32, #tpu.memory_space<vmem>>) attributes {dimension_semantics = [#tpu.dimension_semantics<parallel>, #tpu.dimension_semantics<parallel>], iteration_bounds = array<i64: 1, 1>, scalar_prefetch = 0 : i64, scratch_operands = 0 : i64, tpu.core_type = #tpu.core_type<tc>, window_params = [{transform_indices = @transform_0, window_bounds = array<i64: 80, 128>}, {transform_indices = @transform_1, window_bounds = array<i64: 128, 128>}, {transform_indices = @transform_2, window_bounds = array<i64: 1, 128>}, {transform_indices = @transform_3, window_bounds = array<i64: 80, 128>}]} {
    %c0 = arith.constant 0 : index
    %c0_0 = arith.constant 0 : index
    %0 = vector.load %arg2[%c0, %c0_0] : memref<80x128xbf16, #tpu.memory_space<vmem>>, vector<80x128xbf16>
    %c0_1 = arith.constant 0 : index
    %c0_2 = arith.constant 0 : index
    %1 = vector.load %arg3[%c0_1, %c0_2] : memref<128x128xbf16, #tpu.memory_space<vmem>>, vector<128x128xbf16>
    %cst = arith.constant dense<0.000000e+00> : vector<80x128xf32>
    %2 = tpu.matmul %0, %1, %cst {dimension_numbers = #tpu.dot_dimension_numbers<[1], [0], [0], [1], [0, 0, 1, 1], [], []>} : vector<80x128xbf16>, vector<128x128xbf16>, vector<80x128xf32> -> vector<80x128xf32>
    %c0_3 = arith.constant 0 : index
    %c0_4 = arith.constant 0 : index
    %3 = vector.load %arg4[%c0_3, %c0_4] : memref<1x128xf32, #tpu.memory_space<vmem>>, vector<1x128xf32>
    %4 = vector.broadcast %3 : vector<1x128xf32> to vector<80x128xf32>
    %5 = arith.addf %2, %4 : vector<80x128xf32>
    %cst_5 = arith.constant 0.000000e+00 : f32
    %6 = vector.broadcast %cst_5 : f32 to vector<80x128xf32>
    %7 = arith.subf %6, %5 : vector<80x128xf32>
    %8 = math.exp %7 : vector<80x128xf32>
    %cst_6 = arith.constant 1.000000e+00 : f32
    %9 = vector.broadcast %cst_6 : f32 to vector<80x128xf32>
    %10 = arith.addf %9, %8 : vector<80x128xf32>
    %11 = tpu.reciprocal %10 {approx = true} : vector<80x128xf32> -> vector<80x128xf32>
    %12 = arith.mulf %5, %11 : vector<80x128xf32>
    %c0_7 = arith.constant 0 : index
    %c0_8 = arith.constant 0 : index
    %13 = vector.load %arg5[%c0_7, %c0_8] : memref<80x128xf32, #tpu.memory_space<vmem>>, vector<80x128xf32>
    tpu.vector_store %arg5[%c0_7, %c0_8], %12 {strides = array<i32>} : memref<80x128xf32, #tpu.memory_space<vmem>>, vector<80x128xf32>,
    return
  }
  func.func @transform_0(%arg0: i32, %arg1: i32) -> (i32, i32) {
    %c0_i32 = arith.constant 0 : i32
    %c0_i32_0 = arith.constant 0 : i32
    return %arg0, %c0_i32 : i32, i32
  }
  func.func @transform_1(%arg0: i32, %arg1: i32) -> (i32, i32) {
    %c0_i32 = arith.constant 0 : i32
    %c0_i32_0 = arith.constant 0 : i32
    return %c0_i32, %arg1 : i32, i32
  }
  func.func @transform_2(%arg0: i32, %arg1: i32) -> (i32, i32) {
    %c0_i32 = arith.constant 0 : i32
    %c0_i32_0 = arith.constant 0 : i32
    return %c0_i32, %arg1 : i32, i32
  }
  func.func @transform_3(%arg0: i32, %arg1: i32) -> (i32, i32) {
    %c0_i32 = arith.constant 0 : i32
    return %arg0, %arg1 : i32, i32
  }
}

module attributes {stable_mosaic.version = 11 : i64} {
  func.func @_mm_single_kernel(%arg0: i32, %arg1: i32, %arg2: memref<112x512xbf16, #tpu.memory_space<vmem>>, %arg3: memref<512x128xbf16, #tpu.memory_space<vmem>>, %arg4: memref<1x128xf32, #tpu.memory_space<vmem>>, %arg5: memref<112x128xf32, #tpu.memory_space<vmem>>) attributes {dimension_semantics = [#tpu.dimension_semantics<parallel>, #tpu.dimension_semantics<parallel>], iteration_bounds = array<i64: 1, 1>, scalar_prefetch = 0 : i64, scratch_operands = 0 : i64, tpu.core_type = #tpu.core_type<tc>, window_params = [{transform_indices = @transform_0, window_bounds = array<i64: 112, 512>}, {transform_indices = @transform_1, window_bounds = array<i64: 512, 128>}, {transform_indices = @transform_2, window_bounds = array<i64: 1, 128>}, {transform_indices = @transform_3, window_bounds = array<i64: 112, 128>}]} {
    %c0 = arith.constant 0 : index
    %c0_0 = arith.constant 0 : index
    %0 = vector.load %arg2[%c0, %c0_0] : memref<112x512xbf16, #tpu.memory_space<vmem>>, vector<112x512xbf16>
    %c0_1 = arith.constant 0 : index
    %c0_2 = arith.constant 0 : index
    %1 = vector.load %arg3[%c0_1, %c0_2] : memref<512x128xbf16, #tpu.memory_space<vmem>>, vector<512x128xbf16>
    %cst = arith.constant dense<0.000000e+00> : vector<112x128xf32>
    %2 = tpu.matmul %0, %1, %cst {dimension_numbers = #tpu.dot_dimension_numbers<[1], [0], [0], [1], [0, 0, 1, 1], [], []>} : vector<112x512xbf16>, vector<512x128xbf16>, vector<112x128xf32> -> vector<112x128xf32>
    %c0_3 = arith.constant 0 : index
    %c0_4 = arith.constant 0 : index
    %3 = vector.load %arg4[%c0_3, %c0_4] : memref<1x128xf32, #tpu.memory_space<vmem>>, vector<1x128xf32>
    %4 = vector.broadcast %3 : vector<1x128xf32> to vector<112x128xf32>
    %5 = arith.addf %2, %4 : vector<112x128xf32>
    %cst_5 = arith.constant 0.000000e+00 : f32
    %6 = vector.broadcast %cst_5 : f32 to vector<112x128xf32>
    %7 = arith.subf %6, %5 : vector<112x128xf32>
    %8 = math.exp %7 : vector<112x128xf32>
    %cst_6 = arith.constant 1.000000e+00 : f32
    %9 = vector.broadcast %cst_6 : f32 to vector<112x128xf32>
    %10 = arith.addf %9, %8 : vector<112x128xf32>
    %11 = tpu.reciprocal %10 {approx = true} : vector<112x128xf32> -> vector<112x128xf32>
    %12 = arith.mulf %5, %11 : vector<112x128xf32>
    %c0_7 = arith.constant 0 : index
    %c0_8 = arith.constant 0 : index
    %13 = vector.load %arg5[%c0_7, %c0_8] : memref<112x128xf32, #tpu.memory_space<vmem>>, vector<112x128xf32>
    tpu.vector_store %arg5[%c0_7, %c0_8], %12 {strides = array<i32>} : memref<112x128xf32, #tpu.memory_space<vmem>>, vector<112x128xf32>,
    return
  }
  func.func @transform_0(%arg0: i32, %arg1: i32) -> (i32, i32) {
    %c0_i32 = arith.constant 0 : i32
    %c0_i32_0 = arith.constant 0 : i32
    return %arg0, %c0_i32 : i32, i32
  }
  func.func @transform_1(%arg0: i32, %arg1: i32) -> (i32, i32) {
    %c0_i32 = arith.constant 0 : i32
    %c0_i32_0 = arith.constant 0 : i32
    return %c0_i32, %arg1 : i32, i32
  }
  func.func @transform_2(%arg0: i32, %arg1: i32) -> (i32, i32) {
    %c0_i32 = arith.constant 0 : i32
    %c0_i32_0 = arith.constant 0 : i32
    return %c0_i32, %arg1 : i32, i32
  }
  func.func @transform_3(%arg0: i32, %arg1: i32) -> (i32, i32) {
    %c0_i32 = arith.constant 0 : i32
    return %arg0, %arg1 : i32, i32
  }
}

module attributes {stable_mosaic.version = 11 : i64} {
  func.func @_mm_single_kernel(%arg0: i32, %arg1: i32, %arg2: memref<400x128xbf16, #tpu.memory_space<vmem>>, %arg3: memref<128x128xbf16, #tpu.memory_space<vmem>>, %arg4: memref<1x128xf32, #tpu.memory_space<vmem>>, %arg5: memref<400x128xf32, #tpu.memory_space<vmem>>) attributes {dimension_semantics = [#tpu.dimension_semantics<parallel>, #tpu.dimension_semantics<parallel>], iteration_bounds = array<i64: 1, 1>, scalar_prefetch = 0 : i64, scratch_operands = 0 : i64, tpu.core_type = #tpu.core_type<tc>, window_params = [{transform_indices = @transform_0, window_bounds = array<i64: 400, 128>}, {transform_indices = @transform_1, window_bounds = array<i64: 128, 128>}, {transform_indices = @transform_2, window_bounds = array<i64: 1, 128>}, {transform_indices = @transform_3, window_bounds = array<i64: 400, 128>}]} {
    %c0 = arith.constant 0 : index
    %c0_0 = arith.constant 0 : index
    %0 = vector.load %arg2[%c0, %c0_0] : memref<400x128xbf16, #tpu.memory_space<vmem>>, vector<400x128xbf16>
    %c0_1 = arith.constant 0 : index
    %c0_2 = arith.constant 0 : index
    %1 = vector.load %arg3[%c0_1, %c0_2] : memref<128x128xbf16, #tpu.memory_space<vmem>>, vector<128x128xbf16>
    %cst = arith.constant dense<0.000000e+00> : vector<400x128xf32>
    %2 = tpu.matmul %0, %1, %cst {dimension_numbers = #tpu.dot_dimension_numbers<[1], [0], [0], [1], [0, 0, 1, 1], [], []>} : vector<400x128xbf16>, vector<128x128xbf16>, vector<400x128xf32> -> vector<400x128xf32>
    %c0_3 = arith.constant 0 : index
    %c0_4 = arith.constant 0 : index
    %3 = vector.load %arg4[%c0_3, %c0_4] : memref<1x128xf32, #tpu.memory_space<vmem>>, vector<1x128xf32>
    %4 = vector.broadcast %3 : vector<1x128xf32> to vector<400x128xf32>
    %5 = arith.addf %2, %4 : vector<400x128xf32>
    %cst_5 = arith.constant 0.000000e+00 : f32
    %6 = vector.broadcast %cst_5 : f32 to vector<400x128xf32>
    %7 = arith.subf %6, %5 : vector<400x128xf32>
    %8 = math.exp %7 : vector<400x128xf32>
    %cst_6 = arith.constant 1.000000e+00 : f32
    %9 = vector.broadcast %cst_6 : f32 to vector<400x128xf32>
    %10 = arith.addf %9, %8 : vector<400x128xf32>
    %11 = tpu.reciprocal %10 {approx = true} : vector<400x128xf32> -> vector<400x128xf32>
    %12 = arith.mulf %5, %11 : vector<400x128xf32>
    %c0_7 = arith.constant 0 : index
    %c0_8 = arith.constant 0 : index
    %13 = vector.load %arg5[%c0_7, %c0_8] : memref<400x128xf32, #tpu.memory_space<vmem>>, vector<400x128xf32>
    tpu.vector_store %arg5[%c0_7, %c0_8], %12 {strides = array<i32>} : memref<400x128xf32, #tpu.memory_space<vmem>>, vector<400x128xf32>,
    return
  }
  func.func @transform_0(%arg0: i32, %arg1: i32) -> (i32, i32) {
    %c0_i32 = arith.constant 0 : i32
    %c0_i32_0 = arith.constant 0 : i32
    return %arg0, %c0_i32 : i32, i32
  }
  func.func @transform_1(%arg0: i32, %arg1: i32) -> (i32, i32) {
    %c0_i32 = arith.constant 0 : i32
    %c0_i32_0 = arith.constant 0 : i32
    return %c0_i32, %arg1 : i32, i32
  }
  func.func @transform_2(%arg0: i32, %arg1: i32) -> (i32, i32) {
    %c0_i32 = arith.constant 0 : i32
    %c0_i32_0 = arith.constant 0 : i32
    return %c0_i32, %arg1 : i32, i32
  }
  func.func @transform_3(%arg0: i32, %arg1: i32) -> (i32, i32) {
    %c0_i32 = arith.constant 0 : i32
    return %arg0, %arg1 : i32, i32
  }
}

module attributes {stable_mosaic.version = 11 : i64} {
  func.func @_mm_single_kernel(%arg0: i32, %arg1: i32, %arg2: memref<464x256xbf16, #tpu.memory_space<vmem>>, %arg3: memref<256x256xbf16, #tpu.memory_space<vmem>>, %arg4: memref<1x256xf32, #tpu.memory_space<vmem>>, %arg5: memref<464x256xf32, #tpu.memory_space<vmem>>) attributes {dimension_semantics = [#tpu.dimension_semantics<parallel>, #tpu.dimension_semantics<parallel>], iteration_bounds = array<i64: 1, 2>, scalar_prefetch = 0 : i64, scratch_operands = 0 : i64, tpu.core_type = #tpu.core_type<tc>, window_params = [{transform_indices = @transform_0, window_bounds = array<i64: 464, 256>}, {transform_indices = @transform_1, window_bounds = array<i64: 256, 256>}, {transform_indices = @transform_2, window_bounds = array<i64: 1, 256>}, {transform_indices = @transform_3, window_bounds = array<i64: 464, 256>}]} {
    %c0 = arith.constant 0 : index
    %c0_0 = arith.constant 0 : index
    %0 = vector.load %arg2[%c0, %c0_0] : memref<464x256xbf16, #tpu.memory_space<vmem>>, vector<464x256xbf16>
    %c0_1 = arith.constant 0 : index
    %c0_2 = arith.constant 0 : index
    %1 = vector.load %arg3[%c0_1, %c0_2] : memref<256x256xbf16, #tpu.memory_space<vmem>>, vector<256x256xbf16>
    %cst = arith.constant dense<0.000000e+00> : vector<464x256xf32>
    %2 = tpu.matmul %0, %1, %cst {dimension_numbers = #tpu.dot_dimension_numbers<[1], [0], [0], [1], [0, 0, 1, 1], [], []>} : vector<464x256xbf16>, vector<256x256xbf16>, vector<464x256xf32> -> vector<464x256xf32>
    %c0_3 = arith.constant 0 : index
    %c0_4 = arith.constant 0 : index
    %3 = vector.load %arg4[%c0_3, %c0_4] : memref<1x256xf32, #tpu.memory_space<vmem>>, vector<1x256xf32>
    %4 = vector.broadcast %3 : vector<1x256xf32> to vector<464x256xf32>
    %5 = arith.addf %2, %4 : vector<464x256xf32>
    %cst_5 = arith.constant 0.000000e+00 : f32
    %6 = vector.broadcast %cst_5 : f32 to vector<464x256xf32>
    %7 = arith.subf %6, %5 : vector<464x256xf32>
    %8 = math.exp %7 : vector<464x256xf32>
    %cst_6 = arith.constant 1.000000e+00 : f32
    %9 = vector.broadcast %cst_6 : f32 to vector<464x256xf32>
    %10 = arith.addf %9, %8 : vector<464x256xf32>
    %11 = tpu.reciprocal %10 {approx = true} : vector<464x256xf32> -> vector<464x256xf32>
    %12 = arith.mulf %5, %11 : vector<464x256xf32>
    %c0_7 = arith.constant 0 : index
    %c0_8 = arith.constant 0 : index
    %13 = vector.load %arg5[%c0_7, %c0_8] : memref<464x256xf32, #tpu.memory_space<vmem>>, vector<464x256xf32>
    tpu.vector_store %arg5[%c0_7, %c0_8], %12 {strides = array<i32>} : memref<464x256xf32, #tpu.memory_space<vmem>>, vector<464x256xf32>,
    return
  }
  func.func @transform_0(%arg0: i32, %arg1: i32) -> (i32, i32) {
    %c0_i32 = arith.constant 0 : i32
    %c0_i32_0 = arith.constant 0 : i32
    return %arg0, %c0_i32 : i32, i32
  }
  func.func @transform_1(%arg0: i32, %arg1: i32) -> (i32, i32) {
    %c0_i32 = arith.constant 0 : i32
    %c0_i32_0 = arith.constant 0 : i32
    return %c0_i32, %arg1 : i32, i32
  }
  func.func @transform_2(%arg0: i32, %arg1: i32) -> (i32, i32) {
    %c0_i32 = arith.constant 0 : i32
    %c0_i32_0 = arith.constant 0 : i32
    return %c0_i32, %arg1 : i32, i32
  }
  func.func @transform_3(%arg0: i32, %arg1: i32) -> (i32, i32) {
    %c0_i32 = arith.constant 0 : i32
    return %arg0, %arg1 : i32, i32
  }
}

module attributes {stable_mosaic.version = 11 : i64} {
  func.func @_mm_single_kernel(%arg0: i32, %arg1: i32, %arg2: memref<512x128xbf16, #tpu.memory_space<vmem>>, %arg3: memref<128x128xbf16, #tpu.memory_space<vmem>>, %arg4: memref<1x128xf32, #tpu.memory_space<vmem>>, %arg5: memref<512x128xf32, #tpu.memory_space<vmem>>) attributes {dimension_semantics = [#tpu.dimension_semantics<parallel>, #tpu.dimension_semantics<parallel>], iteration_bounds = array<i64: 15, 1>, scalar_prefetch = 0 : i64, scratch_operands = 0 : i64, tpu.core_type = #tpu.core_type<tc>, window_params = [{transform_indices = @transform_0, window_bounds = array<i64: 512, 128>}, {transform_indices = @transform_1, window_bounds = array<i64: 128, 128>}, {transform_indices = @transform_2, window_bounds = array<i64: 1, 128>}, {transform_indices = @transform_3, window_bounds = array<i64: 512, 128>}]} {
    %c0 = arith.constant 0 : index
    %c0_0 = arith.constant 0 : index
    %0 = vector.load %arg2[%c0, %c0_0] : memref<512x128xbf16, #tpu.memory_space<vmem>>, vector<512x128xbf16>
    %c0_1 = arith.constant 0 : index
    %c0_2 = arith.constant 0 : index
    %1 = vector.load %arg3[%c0_1, %c0_2] : memref<128x128xbf16, #tpu.memory_space<vmem>>, vector<128x128xbf16>
    %cst = arith.constant dense<0.000000e+00> : vector<512x128xf32>
    %2 = tpu.matmul %0, %1, %cst {dimension_numbers = #tpu.dot_dimension_numbers<[1], [0], [0], [1], [0, 0, 1, 1], [], []>} : vector<512x128xbf16>, vector<128x128xbf16>, vector<512x128xf32> -> vector<512x128xf32>
    %c0_3 = arith.constant 0 : index
    %c0_4 = arith.constant 0 : index
    %3 = vector.load %arg4[%c0_3, %c0_4] : memref<1x128xf32, #tpu.memory_space<vmem>>, vector<1x128xf32>
    %4 = vector.broadcast %3 : vector<1x128xf32> to vector<512x128xf32>
    %5 = arith.addf %2, %4 : vector<512x128xf32>
    %6 = math.tanh %5 : vector<512x128xf32>
    %c0_5 = arith.constant 0 : index
    %c0_6 = arith.constant 0 : index
    %7 = vector.load %arg5[%c0_5, %c0_6] : memref<512x128xf32, #tpu.memory_space<vmem>>, vector<512x128xf32>
    tpu.vector_store %arg5[%c0_5, %c0_6], %6 {strides = array<i32>} : memref<512x128xf32, #tpu.memory_space<vmem>>, vector<512x128xf32>,
    return
  }
  func.func @transform_0(%arg0: i32, %arg1: i32) -> (i32, i32) {
    %c0_i32 = arith.constant 0 : i32
    %c0_i32_0 = arith.constant 0 : i32
    return %arg0, %c0_i32 : i32, i32
  }
  func.func @transform_1(%arg0: i32, %arg1: i32) -> (i32, i32) {
    %c0_i32 = arith.constant 0 : i32
    %c0_i32_0 = arith.constant 0 : i32
    return %c0_i32, %arg1 : i32, i32
  }
  func.func @transform_2(%arg0: i32, %arg1: i32) -> (i32, i32) {
    %c0_i32 = arith.constant 0 : i32
    %c0_i32_0 = arith.constant 0 : i32
    return %c0_i32, %arg1 : i32, i32
  }
  func.func @transform_3(%arg0: i32, %arg1: i32) -> (i32, i32) {
    %c0_i32 = arith.constant 0 : i32
    return %arg0, %arg1 : i32, i32
  }
}

</mosaic_0001>

<llo_original>
// kernel: netg_forward.12
$region0: #{netg_forward.12}
  #allocation0 [shape = 'u32[]', space=smem, size = 0x4, offset = 0x4, fixed_abs, tag = 'smem constant byte address 0x4 - core index']
  #allocation1 [shape = 'u32[72,128]{1,0:T(1,128)}', space=vmem, size = 0x9000, scoped, tag = 'internal scratch']
  %s0 = inlined_call_operand.vmem [shape: bf16[400,256], index: 0, kind: input, shape index: {}]
  %s1 = inlined_call_operand.vmem [shape: bf16[256,128], index: 1, kind: input, shape index: {}]
  %s2 = inlined_call_operand.vmem [shape: f32[1,128], index: 2, kind: input, shape index: {}]
  %s3 = inlined_call_operand.vmem [shape: f32[400,128], index: 3, kind: output, shape index: {}]
  %s4 = sld [smem:[#allocation0]]
  $region22: #{netg_forward.12} parent=0
    _
  %s6 = ssub.s32 1, %s4
  %s7 = scalar_select 0, %s6, %s4
  // Predicated region
  $region2: #{netg_forward.12} parent=0 // pred_check
    _
  $region3: #{netg_forward.12} parent=0 // pred_check_branch
    %9 = sbr.rel (0) target = $region5
  $region4: #{netg_forward.12} parent=0 // pred_region
    _
  $region5: #{netg_forward.12} parent=0 // pred_fallthru
    _
  // Predicated region
  $region6: #{netg_forward.12} parent=0 // pred_check
    _
  $region7: #{netg_forward.12} parent=0 // pred_check_branch
    %11 = sbr.rel (0) target = $region9
  $region8: #{netg_forward.12} parent=0 // pred_region
    _
  $region9: #{netg_forward.12} parent=0 // pred_fallthru
    _
  // Predicated region
  $region10: #{netg_forward.12} parent=0 // pred_check
    _
  $region11: #{netg_forward.12} parent=0 // pred_check_branch
    %13 = sbr.rel (0) target = $region13
  $region12: #{netg_forward.12} parent=0 // pred_region
    _
  $region13: #{netg_forward.12} parent=0 // pred_fallthru
    _
  %v14 = vld [vmem:[%s0] sm:$0xff]
  %v15 = vld [vmem:[%s0 + $0x8] sm:$0xff]
  %v16 = vld [vmem:[%s0 + $0x10] sm:$0xff]
  %v17 = vld [vmem:[%s0 + $0x18] sm:$0xff]
  %v18 = vld [vmem:[%s0 + $0x20] sm:$0xff]
  %v19 = vld [vmem:[%s0 + $0x28] sm:$0xff]
  %v20 = vld [vmem:[%s0 + $0x30] sm:$0xff]
  %v21 = vld [vmem:[%s0 + $0x38] sm:$0xff]
  %v22 = vld [vmem:[%s0 + $0x40] sm:$0xff]
  %v23 = vld [vmem:[%s0 + $0x48] sm:$0xff]
  %v24 = vld [vmem:[%s0 + $0x50] sm:$0xff]
  %v25 = vld [vmem:[%s0 + $0x58] sm:$0xff]
  %v26 = vld [vmem:[%s0 + $0x60] sm:$0xff]
  %v27 = vld [vmem:[%s0 + $0x68] sm:$0xff]
  %v28 = vld [vmem:[%s0 + $0x70] sm:$0xff]
  %v29 = vld [vmem:[%s0 + $0x78] sm:$0xff]
  %v30 = vld [vmem:[%s0 + $0x80] sm:$0xff]
  %v31 = vld [vmem:[%s0 + $0x88] sm:$0xff]
  %v32 = vld [vmem:[%s0 + $0x90] sm:$0xff]
  %v33 = vld [vmem:[%s0 + $0x98] sm:$0xff]
  %v34 = vld [vmem:[%s0 + $0xa0] sm:$0xff]
  %v35 = vld [vmem:[%s0 + $0xa8] sm:$0xff]
  %v36 = vld [vmem:[%s0 + $0xb0] sm:$0xff]
  %v37 = vld [vmem:[%s0 + $0xb8] sm:$0xff]
  %v38 = vld [vmem:[%s0 + $0xc0] sm:$0xff]
  %v39 = vld [vmem:[%s0 + $0xc8] sm:$0xff]
  %v40 = vld [vmem:[%s0 + $0xd0] sm:$0xff]
  %v41 = vld [vmem:[%s0 + $0xd8] sm:$0xff]
  %v42 = vld [vmem:[%s0 + $0xe0] sm:$0xff]
  %v43 = vld [vmem:[%s0 + $0xe8] sm:$0xff]
  %v44 = vld [vmem:[%s0 + $0xf0] sm:$0xff]
  %v45 = vld [vmem:[%s0 + $0xf8] sm:$0xff]
  %v46 = vld [vmem:[%s0 + $0x100] sm:$0xff]
  %v47 = vld [vmem:[%s0 + $0x108] sm:$0xff]
  %v48 = vld [vmem:[%s0 + $0x110] sm:$0xff]
  %v49 = vld [vmem:[%s0 + $0x118] sm:$0xff]
  %v50 = vld [vmem:[%s0 + $0x120] sm:$0xff]
  %v51 = vld [vmem:[%s0 + $0x128] sm:$0xff]
  %v52 = vld [vmem:[%s0 + $0x130] sm:$0xff]
  %v53 = vld [vmem:[%s0 + $0x138] sm:$0xff]
  %v54 = vld [vmem:[%s0 + $0x140] sm:$0xff]
  %v55 = vld [vmem:[%s0 + $0x148] sm:$0xff]
  %v56 = vld [vmem:[%s0 + $0x150] sm:$0xff]
  %v57 = vld [vmem:[%s0 + $0x158] sm:$0xff]
  %v58 = vld [vmem:[%s0 + $0x160] sm:$0xff]
  %v59 = vld [vmem:[%s0 + $0x168] sm:$0xff]
  %v60 = vld [vmem:[%s0 + $0x170] sm:$0xff]
  %v61 = vld [vmem:[%s0 + $0x178] sm:$0xff]
  %v62 = vld [vmem:[%s0 + $0x180] sm:$0xff]
  %v63 = vld [vmem:[%s0 + $0x188] sm:$0xff]
  %v64 = vld [vmem:[%s1] sm:$0xf]
  %v65 = vld [vmem:[%s1 + $0x4] sm:$0xf]
  %v66 = vld [vmem:[%s1 + $0x8] sm:$0xf]
  %v67 = vld [vmem:[%s1 + $0xc] sm:$0xf]
  %v68 = vld [vmem:[%s1 + $0x10] sm:$0xf]
  %v69 = vld [vmem:[%s1 + $0x14] sm:$0xf]
  %v70 = vld [vmem:[%s1 + $0x18] sm:$0xf]
  %v71 = vld [vmem:[%s1 + $0x1c] sm:$0xf]
  %v72 = vld [vmem:[%s1 + $0x20] sm:$0xf]
  %v73 = vld [vmem:[%s1 + $0x24] sm:$0xf]
  %v74 = vld [vmem:[%s1 + $0x28] sm:$0xf]
  %v75 = vld [vmem:[%s1 + $0x2c] sm:$0xf]
  %v76 = vld [vmem:[%s1 + $0x30] sm:$0xf]
  %v77 = vld [vmem:[%s1 + $0x34] sm:$0xf]
  %v78 = vld [vmem:[%s1 + $0x38] sm:$0xf]
  %v79 = vld [vmem:[%s1 + $0x3c] sm:$0xf]
  %v80 = vld [vmem:[%s1 + $0x40] sm:$0xf]
  %v81 = vld [vmem:[%s1 + $0x44] sm:$0xf]
  %v82 = vld [vmem:[%s1 + $0x48] sm:$0xf]
  %v83 = vld [vmem:[%s1 + $0x4c] sm:$0xf]
  %v84 = vld [vmem:[%s1 + $0x50] sm:$0xf]
  %v85 = vld [vmem:[%s1 + $0x54] sm:$0xf]
  %v86 = vld [vmem:[%s1 + $0x58] sm:$0xf]
  %v87 = vld [vmem:[%s1 + $0x5c] sm:$0xf]
  %v88 = vld [vmem:[%s1 + $0x60] sm:$0xf]
  %v89 = vld [vmem:[%s1 + $0x64] sm:$0xf]
  %v90 = vld [vmem:[%s1 + $0x68] sm:$0xf]
  %v91 = vld [vmem:[%s1 + $0x6c] sm:$0xf]
  %v92 = vld [vmem:[%s1 + $0x70] sm:$0xf]
  %v93 = vld [vmem:[%s1 + $0x74] sm:$0xf]
  %v94 = vld [vmem:[%s1 + $0x78] sm:$0xf]
  %v95 = vld [vmem:[%s1 + $0x7c] sm:$0xf]
  %v96 = vld [vmem:[%s2] sm:$0x1]
  %v98 = vperm.slane %v96, 0
  %v150 = vunpack.c.l.b16 %v14
  %v151 = vunpack.c.h.b16 %v14
  %v152 = vunpack.c.l.b16 %v15
  %v153 = vunpack.c.h.b16 %v15
  %v154 = vunpack.c.l.b16 %v16
  %v155 = vunpack.c.h.b16 %v16
  %v156 = vunpack.c.l.b16 %v17
  %v157 = vunpack.c.h.b16 %v17
  %v158 = vunpack.c.l.b16 %v18
  %v159 = vunpack.c.h.b16 %v18
  %v160 = vunpack.c.l.b16 %v19
  %v161 = vunpack.c.h.b16 %v19
  %v162 = vunpack.c.l.b16 %v20
  %v163 = vunpack.c.h.b16 %v20
  %v164 = vunpack.c.l.b16 %v21
  %v165 = vunpack.c.h.b16 %v21
  %v166 = vunpack.c.l.b16 %v22
  %v167 = vunpack.c.h.b16 %v22
  %v168 = vunpack.c.l.b16 %v23
  %v169 = vunpack.c.h.b16 %v23
  %v170 = vunpack.c.l.b16 %v24
  %v171 = vunpack.c.h.b16 %v24
  %v172 = vunpack.c.l.b16 %v25
  %v173 = vunpack.c.h.b16 %v25
  %v174 = vunpack.c.l.b16 %v26
  %v175 = vunpack.c.h.b16 %v26
  %v176 = vunpack.c.l.b16 %v27
  %v177 = vunpack.c.h.b16 %v27
  %v178 = vunpack.c.l.b16 %v28
  %v179 = vunpack.c.h.b16 %v28
  %v180 = vunpack.c.l.b16 %v29
  %v181 = vunpack.c.h.b16 %v29
  %v182 = vunpack.c.l.b16 %v30
  %v183 = vunpack.c.h.b16 %v30
  %v184 = vunpack.c.l.b16 %v31
  %v185 = vunpack.c.h.b16 %v31
  %v186 = vunpack.c.l.b16 %v32
  %v187 = vunpack.c.h.b16 %v32
  %v188 = vunpack.c.l.b16 %v33
  %v189 = vunpack.c.h.b16 %v33
  %v190 = vunpack.c.l.b16 %v34
  %v191 = vunpack.c.h.b16 %v34
  %v192 = vunpack.c.l.b16 %v35
  %v193 = vunpack.c.h.b16 %v35
  %v194 = vunpack.c.l.b16 %v36
  %v195 = vunpack.c.h.b16 %v36
  %v196 = vunpack.c.l.b16 %v37
  %v197 = vunpack.c.h.b16 %v37
  %v198 = vunpack.c.l.b16 %v38
  %v199 = vunpack.c.h.b16 %v38
  %v200 = vunpack.c.l.b16 %v39
  %v201 = vunpack.c.h.b16 %v39
  %v202 = vunpack.c.l.b16 %v40
  %v203 = vunpack.c.h.b16 %v40
  %v204 = vunpack.c.l.b16 %v41
  %v205 = vunpack.c.h.b16 %v41
  %v206 = vunpack.c.l.b16 %v42
  %v207 = vunpack.c.h.b16 %v42
  %v208 = vunpack.c.l.b16 %v43
  %v209 = vunpack.c.h.b16 %v43
  %v210 = vunpack.c.l.b16 %v44
  %v211 = vunpack.c.h.b16 %v44
  %v212 = vunpack.c.l.b16 %v45
  %v213 = vunpack.c.h.b16 %v45
  %v214 = vunpack.c.l.b16 %v46
  %v215 = vunpack.c.h.b16 %v46
  %v216 = vunpack.c.l.b16 %v47
  %v217 = vunpack.c.h.b16 %v47
  %v218 = vunpack.c.l.b16 %v48
  %v219 = vunpack.c.h.b16 %v48
  %v220 = vunpack.c.l.b16 %v49
  %v221 = vunpack.c.h.b16 %v49
  %v222 = vunpack.c.l.b16 %v50
  %v223 = vunpack.c.h.b16 %v50
  %v224 = vunpack.c.l.b16 %v51
  %v225 = vunpack.c.h.b16 %v51
  %v226 = vunpack.c.l.b16 %v52
  %v227 = vunpack.c.h.b16 %v52
  %v228 = vunpack.c.l.b16 %v53
  %v229 = vunpack.c.h.b16 %v53
  %v230 = vunpack.c.l.b16 %v54
  %v231 = vunpack.c.h.b16 %v54
  %v232 = vunpack.c.l.b16 %v55
  %v233 = vunpack.c.h.b16 %v55
  %v234 = vunpack.c.l.b16 %v56
  %v235 = vunpack.c.h.b16 %v56
  %v236 = vunpack.c.l.b16 %v57
  %v237 = vunpack.c.h.b16 %v57
  %v238 = vunpack.c.l.b16 %v58
  %v239 = vunpack.c.h.b16 %v58
  %v240 = vunpack.c.l.b16 %v59
  %v241 = vunpack.c.h.b16 %v59
  %v242 = vunpack.c.l.b16 %v60
  %v243 = vunpack.c.h.b16 %v60
  %v244 = vunpack.c.l.b16 %v61
  %v245 = vunpack.c.h.b16 %v61
  %v246 = vunpack.c.l.b16 %v62
  %v247 = vunpack.c.h.b16 %v62
  %v248 = vunpack.c.l.b16 %v63
  %v249 = vunpack.c.h.b16 %v63
  %v250 = vpack.c.b16 %v152, %v150
  %v251 = vpack.c.b16 %v153, %v151
  %v252 = vpack.c.b16 %v156, %v154
  %v253 = vpack.c.b16 %v157, %v155
  %v254 = vpack.c.b16 %v160, %v158
  %v255 = vpack.c.b16 %v161, %v159
  %v256 = vpack.c.b16 %v164, %v162
  %v257 = vpack.c.b16 %v165, %v163
  %v258 = vpack.c.b16 %v168, %v166
  %v259 = vpack.c.b16 %v169, %v167
  %v260 = vpack.c.b16 %v172, %v170
  %v261 = vpack.c.b16 %v173, %v171
  %v262 = vpack.c.b16 %v176, %v174
  %v263 = vpack.c.b16 %v177, %v175
  %v264 = vpack.c.b16 %v180, %v178
  %v265 = vpack.c.b16 %v181, %v179
  %v266 = vpack.c.b16 %v184, %v182
  %v267 = vpack.c.b16 %v185, %v183
  %v268 = vpack.c.b16 %v188, %v186
  %v269 = vpack.c.b16 %v189, %v187
  %v270 = vpack.c.b16 %v192, %v190
  %v271 = vpack.c.b16 %v193, %v191
  %v272 = vpack.c.b16 %v196, %v194
  %v273 = vpack.c.b16 %v197, %v195
  %v274 = vpack.c.b16 %v200, %v198
  %v275 = vpack.c.b16 %v201, %v199
  %v276 = vpack.c.b16 %v204, %v202
  %v277 = vpack.c.b16 %v205, %v203
  %v278 = vpack.c.b16 %v208, %v206
  %v279 = vpack.c.b16 %v209, %v207
  %v280 = vpack.c.b16 %v212, %v210
  %v281 = vpack.c.b16 %v213, %v211
  %v282 = vpack.c.b16 %v216, %v214
  %v283 = vpack.c.b16 %v217, %v215
  %v284 = vpack.c.b16 %v220, %v218
  %v285 = vpack.c.b16 %v221, %v219
  %v286 = vpack.c.b16 %v224, %v222
  %v287 = vpack.c.b16 %v225, %v223
  %v288 = vpack.c.b16 %v228, %v226
  %v289 = vpack.c.b16 %v229, %v227
  %v290 = vpack.c.b16 %v232, %v230
  %v291 = vpack.c.b16 %v233, %v231
  %v292 = vpack.c.b16 %v236, %v234
  %v293 = vpack.c.b16 %v237, %v235
  %v294 = vpack.c.b16 %v240, %v238
  %v295 = vpack.c.b16 %v241, %v239
  %v296 = vpack.c.b16 %v244, %v242
  %v297 = vpack.c.b16 %v245, %v243
  %v298 = vpack.c.b16 %v248, %v246
  %v299 = vpack.c.b16 %v249, %v247
  %v382 = vunpack.c.l.b16 %v64
  %v383 = vunpack.c.l.b16 %v65
  %v384 = vunpack.c.l.b16 %v66
  %v385 = vunpack.c.l.b16 %v67
  %v386 = vunpack.c.l.b16 %v68
  %v387 = vunpack.c.l.b16 %v69
  %v388 = vunpack.c.l.b16 %v70
  %v389 = vunpack.c.l.b16 %v71
  %v390 = vunpack.c.l.b16 %v72
  %v391 = vunpack.c.l.b16 %v73
  %v392 = vunpack.c.l.b16 %v74
  %v393 = vunpack.c.l.b16 %v75
  %v394 = vunpack.c.l.b16 %v76
  %v395 = vunpack.c.l.b16 %v77
  %v396 = vunpack.c.l.b16 %v78
  %v397 = vunpack.c.l.b16 %v79
  %v398 = vunpack.c.l.b16 %v80
  %v399 = vunpack.c.l.b16 %v81
  %v400 = vunpack.c.l.b16 %v82
  %v401 = vunpack.c.l.b16 %v83
  %v402 = vunpack.c.l.b16 %v84
  %v403 = vunpack.c.l.b16 %v85
  %v404 = vunpack.c.l.b16 %v86
  %v405 = vunpack.c.l.b16 %v87
  %v406 = vunpack.c.l.b16 %v88
  %v407 = vunpack.c.l.b16 %v89
  %v408 = vunpack.c.l.b16 %v90
  %v409 = vunpack.c.l.b16 %v91
  %v410 = vunpack.c.l.b16 %v92
  %v411 = vunpack.c.l.b16 %v93
  %v412 = vunpack.c.l.b16 %v94
  %v413 = vunpack.c.l.b16 %v95
  %v414 = vpack.c.b16 %v383, %v382
  %v415 = vpack.c.b16 %v385, %v384
  %v416 = vpack.c.b16 %v387, %v386
  %v417 = vpack.c.b16 %v389, %v388
  %v418 = vpack.c.b16 %v391, %v390
  %v419 = vpack.c.b16 %v393, %v392
  %v420 = vpack.c.b16 %v395, %v394
  %v421 = vpack.c.b16 %v397, %v396
  %v422 = vpack.c.b16 %v399, %v398
  %v423 = vpack.c.b16 %v401, %v400
  %v424 = vpack.c.b16 %v403, %v402
  %v425 = vpack.c.b16 %v405, %v404
  %v426 = vpack.c.b16 %v407, %v406
  %v427 = vpack.c.b16 %v409, %v408
  %v428 = vpack.c.b16 %v411, %v410
  %v429 = vpack.c.b16 %v413, %v412
  %446 = vmatpush.bf16.msra.mxu0 %v421
  %447 = vmatpush.bf16.msra.mxu0 %v420
  %448 = vmatpush.bf16.msra.mxu0 %v419
  %449 = vmatpush.bf16.msra.mxu0 %v418
  %450 = vmatpush.bf16.msra.mxu0 %v417
  %451 = vmatpush.bf16.msra.mxu0 %v416
  %452 = vmatpush.bf16.msra.mxu0 %v415
  %453 = vmatpush.bf16.msra.mxu0 %v414
  %454 = vmatmul.bf16.gmra.mxu0 %v250
  %v455 = vpop.f32.mrf.mxu0
  %v456 = vadd.f32 %v98, %v455
  %v457 = vpop.f32.mrf.mxu0
  %v458 = vadd.f32 %v98, %v457
  %459 = vmatmul.bf16.gmra.mxu0 %v252
  %v460 = vpop.f32.mrf.mxu0
  %v461 = vadd.f32 %v98, %v460
  %v462 = vpop.f32.mrf.mxu0
  %v463 = vadd.f32 %v98, %v462
  %464 = vmatmul.bf16.gmra.mxu0 %v254
  %v465 = vpop.f32.mrf.mxu0
  %v466 = vadd.f32 %v98, %v465
  %v467 = vpop.f32.mrf.mxu0
  %v468 = vadd.f32 %v98, %v467
  %469 = vmatmul.bf16.gmra.mxu0 %v256
  %v470 = vpop.f32.mrf.mxu0
  %v471 = vadd.f32 %v98, %v470
  %v472 = vpop.f32.mrf.mxu0
  %v473 = vadd.f32 %v98, %v472
  %474 = vmatmul.bf16.gmra.mxu0 %v258
  %v475 = vpop.f32.mrf.mxu0
  %v476 = vadd.f32 %v98, %v475
  %v477 = vpop.f32.mrf.mxu0
  %v478 = vadd.f32 %v98, %v477
  %479 = vmatmul.bf16.gmra.mxu0 %v260
  %v480 = vpop.f32.mrf.mxu0
  %v481 = vadd.f32 %v98, %v480
  %v482 = vpop.f32.mrf.mxu0
  %v483 = vadd.f32 %v98, %v482
  %484 = vmatmul.bf16.gmra.mxu0 %v262
  %v485 = vpop.f32.mrf.mxu0
  %v486 = vadd.f32 %v98, %v485
  %v487 = vpop.f32.mrf.mxu0
  %v488 = vadd.f32 %v98, %v487
  %489 = vmatmul.bf16.gmra.mxu0 %v264
  %v490 = vpop.f32.mrf.mxu0
  %v491 = vadd.f32 %v98, %v490
  %v492 = vpop.f32.mrf.mxu0
  %v493 = vadd.f32 %v98, %v492
  %494 = vmatmul.bf16.gmra.mxu0 %v266
  %v495 = vpop.f32.mrf.mxu0
  %v496 = vadd.f32 %v98, %v495
  %v497 = vpop.f32.mrf.mxu0
  %v498 = vadd.f32 %v98, %v497
  %499 = vmatmul.bf16.gmra.mxu0 %v268
  %v500 = vpop.f32.mrf.mxu0
  %v501 = vadd.f32 %v98, %v500
  %v502 = vpop.f32.mrf.mxu0
  %v503 = vadd.f32 %v98, %v502
  %504 = vmatmul.bf16.gmra.mxu0 %v270
  %v505 = vpop.f32.mrf.mxu0
  %v506 = vadd.f32 %v98, %v505
  %v507 = vpop.f32.mrf.mxu0
  %v508 = vadd.f32 %v98, %v507
  %509 = vmatmul.bf16.gmra.mxu0 %v272
  %v510 = vpop.f32.mrf.mxu0
  %v511 = vadd.f32 %v98, %v510
  %v512 = vpop.f32.mrf.mxu0
  %v513 = vadd.f32 %v98, %v512
  %514 = vmatmul.bf16.gmra.mxu0 %v274
  %v515 = vpop.f32.mrf.mxu0
  %v516 = vadd.f32 %v98, %v515
  %v517 = vpop.f32.mrf.mxu0
  %v518 = vadd.f32 %v98, %v517
  %519 = vmatmul.bf16.gmra.mxu0 %v276
  %v520 = vpop.f32.mrf.mxu0
  %v521 = vadd.f32 %v98, %v520
  %v522 = vpop.f32.mrf.mxu0
  %v523 = vadd.f32 %v98, %v522
  %524 = vmatmul.bf16.gmra.mxu0 %v278
  %v525 = vpop.f32.mrf.mxu0
  %v526 = vadd.f32 %v98, %v525
  %v527 = vpop.f32.mrf.mxu0
  %v528 = vadd.f32 %v98, %v527
  %529 = vmatmul.bf16.gmra.mxu0 %v280
  %v530 = vpop.f32.mrf.mxu0
  %v531 = vadd.f32 %v98, %v530
  %v532 = vpop.f32.mrf.mxu0
  %v533 = vadd.f32 %v98, %v532
  %534 = vmatmul.bf16.gmra.mxu0 %v282
  %v535 = vpop.f32.mrf.mxu0
  %v536 = vadd.f32 %v98, %v535
  %v537 = vpop.f32.mrf.mxu0
  %v538 = vadd.f32 %v98, %v537
  %539 = vmatmul.bf16.gmra.mxu0 %v284
  %v540 = vpop.f32.mrf.mxu0
  %v541 = vadd.f32 %v98, %v540
  %v542 = vpop.f32.mrf.mxu0
  %v543 = vadd.f32 %v98, %v542
  %544 = vmatmul.bf16.gmra.mxu0 %v286
  %v545 = vpop.f32.mrf.mxu0
  %v546 = vadd.f32 %v98, %v545
  %v547 = vpop.f32.mrf.mxu0
  %v548 = vadd.f32 %v98, %v547
  %549 = vmatmul.bf16.gmra.mxu0 %v288
  %v550 = vpop.f32.mrf.mxu0
  %v551 = vadd.f32 %v98, %v550
  %v552 = vpop.f32.mrf.mxu0
  %v553 = vadd.f32 %v98, %v552
  %554 = vmatmul.bf16.gmra.mxu0 %v290
  %v555 = vpop.f32.mrf.mxu0
  %v556 = vadd.f32 %v98, %v555
  %v557 = vpop.f32.mrf.mxu0
  %v558 = vadd.f32 %v98, %v557
  %559 = vmatmul.bf16.gmra.mxu0 %v292
  %v560 = vpop.f32.mrf.mxu0
  %v561 = vadd.f32 %v98, %v560
  %v562 = vpop.f32.mrf.mxu0
  %v563 = vadd.f32 %v98, %v562
  %564 = vmatmul.bf16.gmra.mxu0 %v294
  %v565 = vpop.f32.mrf.mxu0
  %v566 = vadd.f32 %v98, %v565
  %v567 = vpop.f32.mrf.mxu0
  %v568 = vadd.f32 %v98, %v567
  %569 = vmatmul.bf16.gmra.mxu0 %v296
  %v570 = vpop.f32.mrf.mxu0
  %v571 = vadd.f32 %v98, %v570
  %v572 = vpop.f32.mrf.mxu0
  %v573 = vadd.f32 %v98, %v572
  %574 = vmatmul.bf16.gmra.mxu0 %v298
  %v575 = vpop.f32.mrf.mxu0
  %v576 = vadd.f32 %v98, %v575
  %v577 = vpop.f32.mrf.mxu0
  %v578 = vadd.f32 %v98, %v577
  %579 = vdwg.mxu0
  %580 = vmatpush.bf16.msra.mxu0 %v429
  %581 = vmatpush.bf16.msra.mxu0 %v428
  %582 = vmatpush.bf16.msra.mxu0 %v427
  %583 = vmatpush.bf16.msra.mxu0 %v426
  %584 = vmatpush.bf16.msra.mxu0 %v425
  %585 = vmatpush.bf16.msra.mxu0 %v424
  %586 = vmatpush.bf16.msra.mxu0 %v423
  %587 = vmatpush.bf16.msra.mxu0 %v422
  %588 = vmatmul.bf16.gmra.mxu0 %v251
  %v589 = vpop.f32.mrf.mxu0
  %v590 = vadd.f32 %v456, %v589
  %v591 = vpop.f32.mrf.mxu0
  %v592 = vadd.f32 %v458, %v591
  %593 = vmatmul.bf16.gmra.mxu0 %v253
  %v594 = vpop.f32.mrf.mxu0
  %v595 = vadd.f32 %v461, %v594
  %v596 = vpop.f32.mrf.mxu0
  %v597 = vadd.f32 %v463, %v596
  %598 = vmatmul.bf16.gmra.mxu0 %v255
  %v599 = vpop.f32.mrf.mxu0
  %v600 = vadd.f32 %v466, %v599
  %v601 = vpop.f32.mrf.mxu0
  %v602 = vadd.f32 %v468, %v601
  %603 = vmatmul.bf16.gmra.mxu0 %v257
  %v604 = vpop.f32.mrf.mxu0
  %v605 = vadd.f32 %v471, %v604
  %v606 = vpop.f32.mrf.mxu0
  %v607 = vadd.f32 %v473, %v606
  %608 = vmatmul.bf16.gmra.mxu0 %v259
  %v609 = vpop.f32.mrf.mxu0
  %v610 = vadd.f32 %v476, %v609
  %v611 = vpop.f32.mrf.mxu0
  %v612 = vadd.f32 %v478, %v611
  %613 = vmatmul.bf16.gmra.mxu0 %v261
  %v614 = vpop.f32.mrf.mxu0
  %v615 = vadd.f32 %v481, %v614
  %v616 = vpop.f32.mrf.mxu0
  %v617 = vadd.f32 %v483, %v616
  %618 = vmatmul.bf16.gmra.mxu0 %v263
  %v619 = vpop.f32.mrf.mxu0
  %v620 = vadd.f32 %v486, %v619
  %v621 = vpop.f32.mrf.mxu0
  %v622 = vadd.f32 %v488, %v621
  %623 = vmatmul.bf16.gmra.mxu0 %v265
  %v624 = vpop.f32.mrf.mxu0
  %v625 = vadd.f32 %v491, %v624
  %v626 = vpop.f32.mrf.mxu0
  %v627 = vadd.f32 %v493, %v626
  %628 = vmatmul.bf16.gmra.mxu0 %v267
  %v629 = vpop.f32.mrf.mxu0
  %v630 = vadd.f32 %v496, %v629
  %v631 = vpop.f32.mrf.mxu0
  %v632 = vadd.f32 %v498, %v631
  %633 = vmatmul.bf16.gmra.mxu0 %v269
  %v634 = vpop.f32.mrf.mxu0
  %v635 = vadd.f32 %v501, %v634
  %v636 = vpop.f32.mrf.mxu0
  %v637 = vadd.f32 %v503, %v636
  %638 = vmatmul.bf16.gmra.mxu0 %v271
  %v639 = vpop.f32.mrf.mxu0
  %v640 = vadd.f32 %v506, %v639
  %v641 = vpop.f32.mrf.mxu0
  %v642 = vadd.f32 %v508, %v641
  %643 = vmatmul.bf16.gmra.mxu0 %v273
  %v644 = vpop.f32.mrf.mxu0
  %v645 = vadd.f32 %v511, %v644
  %v646 = vpop.f32.mrf.mxu0
  %v647 = vadd.f32 %v513, %v646
  %648 = vmatmul.bf16.gmra.mxu0 %v275
  %v649 = vpop.f32.mrf.mxu0
  %v650 = vadd.f32 %v516, %v649
  %v651 = vpop.f32.mrf.mxu0
  %v652 = vadd.f32 %v518, %v651
  %653 = vmatmul.bf16.gmra.mxu0 %v277
  %v654 = vpop.f32.mrf.mxu0
  %v655 = vadd.f32 %v521, %v654
  %v656 = vpop.f32.mrf.mxu0
  %v657 = vadd.f32 %v523, %v656
  %658 = vmatmul.bf16.gmra.mxu0 %v279
  %v659 = vpop.f32.mrf.mxu0
  %v660 = vadd.f32 %v526, %v659
  %v661 = vpop.f32.mrf.mxu0
  %v662 = vadd.f32 %v528, %v661
  %663 = vmatmul.bf16.gmra.mxu0 %v281
  %v664 = vpop.f32.mrf.mxu0
  %v665 = vadd.f32 %v531, %v664
  %v666 = vpop.f32.mrf.mxu0
  %v667 = vadd.f32 %v533, %v666
  %668 = vmatmul.bf16.gmra.mxu0 %v283
  %v669 = vpop.f32.mrf.mxu0
  %v670 = vadd.f32 %v536, %v669
  %v671 = vpop.f32.mrf.mxu0
  %v672 = vadd.f32 %v538, %v671
  %673 = vmatmul.bf16.gmra.mxu0 %v285
  %v674 = vpop.f32.mrf.mxu0
  %v675 = vadd.f32 %v541, %v674
  %v676 = vpop.f32.mrf.mxu0
  %v677 = vadd.f32 %v543, %v676
  %678 = vmatmul.bf16.gmra.mxu0 %v287
  %v679 = vpop.f32.mrf.mxu0
  %v680 = vadd.f32 %v546, %v679
  %v681 = vpop.f32.mrf.mxu0
  %v682 = vadd.f32 %v548, %v681
  %683 = vmatmul.bf16.gmra.mxu0 %v289
  %v684 = vpop.f32.mrf.mxu0
  %v685 = vadd.f32 %v551, %v684
  %v686 = vpop.f32.mrf.mxu0
  %v687 = vadd.f32 %v553, %v686
  %688 = vmatmul.bf16.gmra.mxu0 %v291
  %v689 = vpop.f32.mrf.mxu0
  %v690 = vadd.f32 %v556, %v689
  %v691 = vpop.f32.mrf.mxu0
  %v692 = vadd.f32 %v558, %v691
  %693 = vmatmul.bf16.gmra.mxu0 %v293
  %v694 = vpop.f32.mrf.mxu0
  %v695 = vadd.f32 %v561, %v694
  %v696 = vpop.f32.mrf.mxu0
  %v697 = vadd.f32 %v563, %v696
  %698 = vmatmul.bf16.gmra.mxu0 %v295
  %v699 = vpop.f32.mrf.mxu0
  %v700 = vadd.f32 %v566, %v699
  %v701 = vpop.f32.mrf.mxu0
  %v702 = vadd.f32 %v568, %v701
  %703 = vmatmul.bf16.gmra.mxu0 %v297
  %v704 = vpop.f32.mrf.mxu0
  %v705 = vadd.f32 %v571, %v704
  %v706 = vpop.f32.mrf.mxu0
  %v707 = vadd.f32 %v573, %v706
  %708 = vmatmul.bf16.gmra.mxu0 %v299
  %v709 = vpop.f32.mrf.mxu0
  %v710 = vadd.f32 %v576, %v709
  %v711 = vpop.f32.mrf.mxu0
  %v712 = vadd.f32 %v578, %v711
  %713 = vdwg.mxu0
  %v714 = vsub.f32 0.0, %v590
  %v715 = vsub.f32 0.0, %v592
  %v716 = vsub.f32 0.0, %v595
  %v717 = vsub.f32 0.0, %v597
  %v718 = vsub.f32 0.0, %v600
  %v719 = vsub.f32 0.0, %v602
  %v720 = vsub.f32 0.0, %v605
  %v721 = vsub.f32 0.0, %v607
  %v722 = vsub.f32 0.0, %v610
  %v723 = vsub.f32 0.0, %v612
  %v724 = vsub.f32 0.0, %v615
  %v725 = vsub.f32 0.0, %v617
  %v726 = vsub.f32 0.0, %v620
  %v727 = vsub.f32 0.0, %v622
  %v728 = vsub.f32 0.0, %v625
  %v729 = vsub.f32 0.0, %v627
  %v730 = vsub.f32 0.0, %v630
  %v731 = vsub.f32 0.0, %v632
  %v732 = vsub.f32 0.0, %v635
  %v733 = vsub.f32 0.0, %v637
  %v734 = vsub.f32 0.0, %v640
  %v735 = vsub.f32 0.0, %v642
  %v736 = vsub.f32 0.0, %v645
  %v737 = vsub.f32 0.0, %v647
  %v738 = vsub.f32 0.0, %v650
  %v739 = vsub.f32 0.0, %v652
  %v740 = vsub.f32 0.0, %v655
  %v741 = vsub.f32 0.0, %v657
  %v742 = vsub.f32 0.0, %v660
  %v743 = vsub.f32 0.0, %v662
  %v744 = vsub.f32 0.0, %v665
  %v745 = vsub.f32 0.0, %v667
  %v746 = vsub.f32 0.0, %v670
  %v747 = vsub.f32 0.0, %v672
  %v748 = vsub.f32 0.0, %v675
  %v749 = vsub.f32 0.0, %v677
  %v750 = vsub.f32 0.0, %v680
  %v751 = vsub.f32 0.0, %v682
  %v752 = vsub.f32 0.0, %v685
  %v753 = vsub.f32 0.0, %v687
  %v754 = vsub.f32 0.0, %v690
  %v755 = vsub.f32 0.0, %v692
  %v756 = vsub.f32 0.0, %v695
  %v757 = vsub.f32 0.0, %v697
  %v758 = vsub.f32 0.0, %v700
  %v759 = vsub.f32 0.0, %v702
  %v760 = vsub.f32 0.0, %v705
  %v761 = vsub.f32 0.0, %v707
  %v762 = vsub.f32 0.0, %v710
  %v763 = vsub.f32 0.0, %v712
  %v764 = vmul.f32 %v714, 1.442695
  %v765 = vpow.pop %v764
  %v766 = vmul.f32 %v715, 1.442695
  %v767 = vpow.pop %v766
  %v768 = vmul.f32 %v716, 1.442695
  %v769 = vpow.pop %v768
  %v770 = vmul.f32 %v717, 1.442695
  %v771 = vpow.pop %v770
  %v772 = vmul.f32 %v718, 1.442695
  %v773 = vpow.pop %v772
  %v774 = vmul.f32 %v719, 1.442695
  %v775 = vpow.pop %v774
  %v776 = vmul.f32 %v720, 1.442695
  %v777 = vpow.pop %v776
  %v778 = vmul.f32 %v721, 1.442695
  %v779 = vpow.pop %v778
  %v780 = vmul.f32 %v722, 1.442695
  %v781 = vpow.pop %v780
  %v782 = vmul.f32 %v723, 1.442695
  %v783 = vpow.pop %v782
  %v784 = vmul.f32 %v724, 1.442695
  %v785 = vpow.pop %v784
  %v786 = vmul.f32 %v725, 1.442695
  %v787 = vpow.pop %v786
  %v788 = vmul.f32 %v726, 1.442695
  %v789 = vpow.pop %v788
  %v790 = vmul.f32 %v727, 1.442695
  %v791 = vpow.pop %v790
  %v792 = vmul.f32 %v728, 1.442695
  %v793 = vpow.pop %v792
  %v794 = vmul.f32 %v729, 1.442695
  %v795 = vpow.pop %v794
  %v796 = vmul.f32 %v730, 1.442695
  %v797 = vpow.pop %v796
  %v798 = vmul.f32 %v731, 1.442695
  %v799 = vpow.pop %v798
  %v800 = vmul.f32 %v732, 1.442695
  %v801 = vpow.pop %v800
  %v802 = vmul.f32 %v733, 1.442695
  %v803 = vpow.pop %v802
  %v804 = vmul.f32 %v734, 1.442695
  %v805 = vpow.pop %v804
  %v806 = vmul.f32 %v735, 1.442695
  %v807 = vpow.pop %v806
  %v808 = vmul.f32 %v736, 1.442695
  %v809 = vpow.pop %v808
  %v810 = vmul.f32 %v737, 1.442695
  %v811 = vpow.pop %v810
  %v812 = vmul.f32 %v738, 1.442695
  %v813 = vpow.pop %v812
  %v814 = vmul.f32 %v739, 1.442695
  %v815 = vpow.pop %v814
  %v816 = vmul.f32 %v740, 1.442695
  %v817 = vpow.pop %v816
  %v818 = vmul.f32 %v741, 1.442695
  %v819 = vpow.pop %v818
  %v820 = vmul.f32 %v742, 1.442695
  %v821 = vpow.pop %v820
  %v822 = vmul.f32 %v743, 1.442695
  %v823 = vpow.pop %v822
  %v824 = vmul.f32 %v744, 1.442695
  %v825 = vpow.pop %v824
  %v826 = vmul.f32 %v745, 1.442695
  %v827 = vpow.pop %v826
  %v828 = vmul.f32 %v746, 1.442695
  %v829 = vpow.pop %v828
  %v830 = vmul.f32 %v747, 1.442695
  %v831 = vpow.pop %v830
  %v832 = vmul.f32 %v748, 1.442695
  %v833 = vpow.pop %v832
  %v834 = vmul.f32 %v749, 1.442695
  %v835 = vpow.pop %v834
  %v836 = vmul.f32 %v750, 1.442695
  %v837 = vpow.pop %v836
  %v838 = vmul.f32 %v751, 1.442695
  %v839 = vpow.pop %v838
  %v840 = vmul.f32 %v752, 1.442695
  %v841 = vpow.pop %v840
  %v842 = vmul.f32 %v753, 1.442695
  %v843 = vpow.pop %v842
  %v844 = vmul.f32 %v754, 1.442695
  %v845 = vpow.pop %v844
  %v846 = vmul.f32 %v755, 1.442695
  %v847 = vpow.pop %v846
  %v848 = vmul.f32 %v756, 1.442695
  %v849 = vpow.pop %v848
  %v850 = vmul.f32 %v757, 1.442695
  %v851 = vpow.pop %v850
  %v852 = vmul.f32 %v758, 1.442695
  %v853 = vpow.pop %v852
  %v854 = vmul.f32 %v759, 1.442695
  %v855 = vpow.pop %v854
  %v856 = vmul.f32 %v760, 1.442695
  %v857 = vpow.pop %v856
  %v858 = vmul.f32 %v761, 1.442695
  %v859 = vpow.pop %v858
  %v860 = vmul.f32 %v762, 1.442695
  %v861 = vpow.pop %v860
  %v862 = vmul.f32 %v763, 1.442695
  %v863 = vpow.pop %v862
  %v864 = vadd.f32 %v765, 1.0
  %v865 = vadd.f32 %v767, 1.0
  %v866 = vadd.f32 %v769, 1.0
  %v867 = vadd.f32 %v771, 1.0
  %v868 = vadd.f32 %v773, 1.0
  %v869 = vadd.f32 %v775, 1.0
  %v870 = vadd.f32 %v777, 1.0
  %v871 = vadd.f32 %v779, 1.0
  %v872 = vadd.f32 %v781, 1.0
  %v873 = vadd.f32 %v783, 1.0
  %v874 = vadd.f32 %v785, 1.0
  %v875 = vadd.f32 %v787, 1.0
  %v876 = vadd.f32 %v789, 1.0
  %v877 = vadd.f32 %v791, 1.0
  %v878 = vadd.f32 %v793, 1.0
  %v879 = vadd.f32 %v795, 1.0
  %v880 = vadd.f32 %v797, 1.0
  %v881 = vadd.f32 %v799, 1.0
  %v882 = vadd.f32 %v801, 1.0
  %v883 = vadd.f32 %v803, 1.0
  %v884 = vadd.f32 %v805, 1.0
  %v885 = vadd.f32 %v807, 1.0
  %v886 = vadd.f32 %v809, 1.0
  %v887 = vadd.f32 %v811, 1.0
  %v888 = vadd.f32 %v813, 1.0
  %v889 = vadd.f32 %v815, 1.0
  %v890 = vadd.f32 %v817, 1.0
  %v891 = vadd.f32 %v819, 1.0
  %v892 = vadd.f32 %v821, 1.0
  %v893 = vadd.f32 %v823, 1.0
  %v894 = vadd.f32 %v825, 1.0
  %v895 = vadd.f32 %v827, 1.0
  %v896 = vadd.f32 %v829, 1.0
  %v897 = vadd.f32 %v831, 1.0
  %v898 = vadd.f32 %v833, 1.0
  %v899 = vadd.f32 %v835, 1.0
  %v900 = vadd.f32 %v837, 1.0
  %v901 = vadd.f32 %v839, 1.0
  %v902 = vadd.f32 %v841, 1.0
  %v903 = vadd.f32 %v843, 1.0
  %v904 = vadd.f32 %v845, 1.0
  %v905 = vadd.f32 %v847, 1.0
  %v906 = vadd.f32 %v849, 1.0
  %v907 = vadd.f32 %v851, 1.0
  %v908 = vadd.f32 %v853, 1.0
  %v909 = vadd.f32 %v855, 1.0
  %v910 = vadd.f32 %v857, 1.0
  %v911 = vadd.f32 %v859, 1.0
  %v912 = vadd.f32 %v861, 1.0
  %v913 = vadd.f32 %v863, 1.0
  %v914 = vrcp.pop %v864
  %v915 = vrcp.pop %v865
  %v916 = vrcp.pop %v866
  %v917 = vrcp.pop %v867
  %v918 = vrcp.pop %v868
  %v919 = vrcp.pop %v869
  %v920 = vrcp.pop %v870
  %v921 = vrcp.pop %v871
  %v922 = vrcp.pop %v872
  %v923 = vrcp.pop %v873
  %v924 = vrcp.pop %v874
  %v925 = vrcp.pop %v875
  %v926 = vrcp.pop %v876
  %v927 = vrcp.pop %v877
  %v928 = vrcp.pop %v878
  %v929 = vrcp.pop %v879
  %v930 = vrcp.pop %v880
  %v931 = vrcp.pop %v881
  %v932 = vrcp.pop %v882
  %v933 = vrcp.pop %v883
  %v934 = vrcp.pop %v884
  %v935 = vrcp.pop %v885
  %v936 = vrcp.pop %v886
  %v937 = vrcp.pop %v887
  %v938 = vrcp.pop %v888
  %v939 = vrcp.pop %v889
  %v940 = vrcp.pop %v890
  %v941 = vrcp.pop %v891
  %v942 = vrcp.pop %v892
  %v943 = vrcp.pop %v893
  %v944 = vrcp.pop %v894
  %v945 = vrcp.pop %v895
  %v946 = vrcp.pop %v896
  %v947 = vrcp.pop %v897
  %v948 = vrcp.pop %v898
  %v949 = vrcp.pop %v899
  %v950 = vrcp.pop %v900
  %v951 = vrcp.pop %v901
  %v952 = vrcp.pop %v902
  %v953 = vrcp.pop %v903
  %v954 = vrcp.pop %v904
  %v955 = vrcp.pop %v905
  %v956 = vrcp.pop %v906
  %v957 = vrcp.pop %v907
  %v958 = vrcp.pop %v908
  %v959 = vrcp.pop %v909
  %v960 = vrcp.pop %v910
  %v961 = vrcp.pop %v911
  %v962 = vrcp.pop %v912
  %v963 = vrcp.pop %v913
  %v964 = vmul.f32 %v590, %v914
  %v965 = vmul.f32 %v592, %v915
  %v966 = vmul.f32 %v595, %v916
  %v967 = vmul.f32 %v597, %v917
  %v968 = vmul.f32 %v600, %v918
  %v969 = vmul.f32 %v602, %v919
  %v970 = vmul.f32 %v605, %v920
  %v971 = vmul.f32 %v607, %v921
  %v972 = vmul.f32 %v610, %v922
  %v973 = vmul.f32 %v612, %v923
  %v974 = vmul.f32 %v615, %v924
  %v975 = vmul.f32 %v617, %v925
  %v976 = vmul.f32 %v620, %v926
  %v977 = vmul.f32 %v622, %v927
  %v978 = vmul.f32 %v625, %v928
  %v979 = vmul.f32 %v627, %v929
  %v980 = vmul.f32 %v630, %v930
  %v981 = vmul.f32 %v632, %v931
  %v982 = vmul.f32 %v635, %v932
  %v983 = vmul.f32 %v637, %v933
  %v984 = vmul.f32 %v640, %v934
  %v985 = vmul.f32 %v642, %v935
  %v986 = vmul.f32 %v645, %v936
  %v987 = vmul.f32 %v647, %v937
  %v988 = vmul.f32 %v650, %v938
  %v989 = vmul.f32 %v652, %v939
  %v990 = vmul.f32 %v655, %v940
  %v991 = vmul.f32 %v657, %v941
  %v992 = vmul.f32 %v660, %v942
  %v993 = vmul.f32 %v662, %v943
  %v994 = vmul.f32 %v665, %v944
  %v995 = vmul.f32 %v667, %v945
  %v996 = vmul.f32 %v670, %v946
  %v997 = vmul.f32 %v672, %v947
  %v998 = vmul.f32 %v675, %v948
  %v999 = vmul.f32 %v677, %v949
  %v1000 = vmul.f32 %v680, %v950
  %v1001 = vmul.f32 %v682, %v951
  %v1002 = vmul.f32 %v685, %v952
  %v1003 = vmul.f32 %v687, %v953
  %v1004 = vmul.f32 %v690, %v954
  %v1005 = vmul.f32 %v692, %v955
  %v1006 = vmul.f32 %v695, %v956
  %v1007 = vmul.f32 %v697, %v957
  %v1008 = vmul.f32 %v700, %v958
  %v1009 = vmul.f32 %v702, %v959
  %v1010 = vmul.f32 %v705, %v960
  %v1011 = vmul.f32 %v707, %v961
  %v1012 = vmul.f32 %v710, %v962
  %v1013 = vmul.f32 %v712, %v963
  %1014 = vst [vmem:[%s3] sm:$0xff] %v964
  %1015 = vst [vmem:[%s3 + $0x8] sm:$0xff] %v965
  %1016 = vst [vmem:[%s3 + $0x10] sm:$0xff] %v966
  %1017 = vst [vmem:[%s3 + $0x18] sm:$0xff] %v967
  %1018 = vst [vmem:[%s3 + $0x20] sm:$0xff] %v968
  %1019 = vst [vmem:[%s3 + $0x28] sm:$0xff] %v969
  %1020 = vst [vmem:[%s3 + $0x30] sm:$0xff] %v970
  %1021 = vst [vmem:[%s3 + $0x38] sm:$0xff] %v971
  %1022 = vst [vmem:[%s3 + $0x40] sm:$0xff] %v972
  %1023 = vst [vmem:[%s3 + $0x48] sm:$0xff] %v973
  %1024 = vst [vmem:[%s3 + $0x50] sm:$0xff] %v974
  %1025 = vst [vmem:[%s3 + $0x58] sm:$0xff] %v975
  %1026 = vst [vmem:[%s3 + $0x60] sm:$0xff] %v976
  %1027 = vst [vmem:[%s3 + $0x68] sm:$0xff] %v977
  %1028 = vst [vmem:[%s3 + $0x70] sm:$0xff] %v978
  %1029 = vst [vmem:[%s3 + $0x78] sm:$0xff] %v979
  %1030 = vst [vmem:[%s3 + $0x80] sm:$0xff] %v980
  %1031 = vst [vmem:[%s3 + $0x88] sm:$0xff] %v981
  %1032 = vst [vmem:[%s3 + $0x90] sm:$0xff] %v982
  %1033 = vst [vmem:[%s3 + $0x98] sm:$0xff] %v983
  %1034 = vst [vmem:[%s3 + $0xa0] sm:$0xff] %v984
  %1035 = vst [vmem:[%s3 + $0xa8] sm:$0xff] %v985
  %1036 = vst [vmem:[%s3 + $0xb0] sm:$0xff] %v986
  %1037 = vst [vmem:[%s3 + $0xb8] sm:$0xff] %v987
  %1038 = vst [vmem:[%s3 + $0xc0] sm:$0xff] %v988
  %1039 = vst [vmem:[%s3 + $0xc8] sm:$0xff] %v989
  %1040 = vst [vmem:[%s3 + $0xd0] sm:$0xff] %v990
  %1041 = vst [vmem:[%s3 + $0xd8] sm:$0xff] %v991
  %1042 = vst [vmem:[%s3 + $0xe0] sm:$0xff] %v992
  %1043 = vst [vmem:[%s3 + $0xe8] sm:$0xff] %v993
  %1044 = vst [vmem:[%s3 + $0xf0] sm:$0xff] %v994
  %1045 = vst [vmem:[%s3 + $0xf8] sm:$0xff] %v995
  %1046 = vst [vmem:[%s3 + $0x100] sm:$0xff] %v996
  %1047 = vst [vmem:[%s3 + $0x108] sm:$0xff] %v997
  %1048 = vst [vmem:[%s3 + $0x110] sm:$0xff] %v998
  %1049 = vst [vmem:[%s3 + $0x118] sm:$0xff] %v999
  %1050 = vst [vmem:[%s3 + $0x120] sm:$0xff] %v1000
  %1051 = vst [vmem:[%s3 + $0x128] sm:$0xff] %v1001
  %1052 = vst [vmem:[%s3 + $0x130] sm:$0xff] %v1002
  %1053 = vst [vmem:[%s3 + $0x138] sm:$0xff] %v1003
  %1054 = vst [vmem:[%s3 + $0x140] sm:$0xff] %v1004
  %1055 = vst [vmem:[%s3 + $0x148] sm:$0xff] %v1005
  %1056 = vst [vmem:[%s3 + $0x150] sm:$0xff] %v1006
  %1057 = vst [vmem:[%s3 + $0x158] sm:$0xff] %v1007
  %1058 = vst [vmem:[%s3 + $0x160] sm:$0xff] %v1008
  %1059 = vst [vmem:[%s3 + $0x168] sm:$0xff] %v1009
  %1060 = vst [vmem:[%s3 + $0x170] sm:$0xff] %v1010
  %1061 = vst [vmem:[%s3 + $0x178] sm:$0xff] %v1011
  %1062 = vst [vmem:[%s3 + $0x180] sm:$0xff] %v1012
  %1063 = vst [vmem:[%s3 + $0x188] sm:$0xff] %v1013
  // Predicated region
  $region14: #{netg_forward.12} parent=0 // pred_check
    _
  $region15: #{netg_forward.12} parent=0 // pred_check_branch
    %1065 = sbr.rel (0) target = $region17
  $region16: #{netg_forward.12} parent=0 // pred_region
    _
  $region17: #{netg_forward.12} parent=0 // pred_fallthru
    _
  // Predicated region
  $region18: #{netg_forward.12} parent=0 // pred_check
    _
  $region19: #{netg_forward.12} parent=0 // pred_check_branch
    %1067 = sbr.rel (0) target = $region21
  $region20: #{netg_forward.12} parent=0 // pred_region
    _
  $region21: #{netg_forward.12} parent=0 // pred_fallthru
    _

// kernel: netg_forward.13
$region0: #{netg_forward.13}
  #allocation0 [shape = 'u32[]', space=smem, size = 0x4, offset = 0x4, fixed_abs, tag = 'smem constant byte address 0x4 - core index']
  #allocation1 [shape = 'u32[72,128]{1,0:T(1,128)}', space=vmem, size = 0x9000, scoped, tag = 'internal scratch']
  %s0 = inlined_call_operand.vmem [shape: bf16[80,512], index: 0, kind: input, shape index: {}]
  %s1 = inlined_call_operand.vmem [shape: bf16[512,128], index: 1, kind: input, shape index: {}]
  %s2 = inlined_call_operand.vmem [shape: f32[1,128], index: 2, kind: input, shape index: {}]
  %s3 = inlined_call_operand.vmem [shape: f32[80,128], index: 3, kind: output, shape index: {}]
  %s4 = sld [smem:[#allocation0]]
  $region22: #{netg_forward.13} parent=0
    _
  %s6 = ssub.s32 1, %s4
  %s7 = scalar_select 0, %s6, %s4
  // Predicated region
  $region2: #{netg_forward.13} parent=0 // pred_check
    _
  $region3: #{netg_forward.13} parent=0 // pred_check_branch
    %9 = sbr.rel (0) target = $region5
  $region4: #{netg_forward.13} parent=0 // pred_region
    _
  $region5: #{netg_forward.13} parent=0 // pred_fallthru
    _
  // Predicated region
  $region6: #{netg_forward.13} parent=0 // pred_check
    _
  $region7: #{netg_forward.13} parent=0 // pred_check_branch
    %11 = sbr.rel (0) target = $region9
  $region8: #{netg_forward.13} parent=0 // pred_region
    _
  $region9: #{netg_forward.13} parent=0 // pred_fallthru
    _
  // Predicated region
  $region10: #{netg_forward.13} parent=0 // pred_check
    _
  $region11: #{netg_forward.13} parent=0 // pred_check_branch
    %13 = sbr.rel (0) target = $region13
  $region12: #{netg_forward.13} parent=0 // pred_region
    _
  $region13: #{netg_forward.13} parent=0 // pred_fallthru
    _
  %v14 = vld [vmem:[%s0] sm:$0xff]
  %v15 = vld [vmem:[%s0 + $0x8] sm:$0xff]
  %v16 = vld [vmem:[%s0 + $0x10] sm:$0xff]
  %v17 = vld [vmem:[%s0 + $0x18] sm:$0xff]
  %v18 = vld [vmem:[%s0 + $0x20] sm:$0xff]
  %v19 = vld [vmem:[%s0 + $0x28] sm:$0xff]
  %v20 = vld [vmem:[%s0 + $0x30] sm:$0xff]
  %v21 = vld [vmem:[%s0 + $0x38] sm:$0xff]
  %v22 = vld [vmem:[%s0 + $0x40] sm:$0xff]
  %v23 = vld [vmem:[%s0 + $0x48] sm:$0xff]
  %v24 = vld [vmem:[%s0 + $0x50] sm:$0xff]
  %v25 = vld [vmem:[%s0 + $0x58] sm:$0xff]
  %v26 = vld [vmem:[%s0 + $0x60] sm:$0xff]
  %v27 = vld [vmem:[%s0 + $0x68] sm:$0xff]
  %v28 = vld [vmem:[%s0 + $0x70] sm:$0xff]
  %v29 = vld [vmem:[%s0 + $0x78] sm:$0xff]
  %v30 = vld [vmem:[%s0 + $0x80] sm:$0xff]
  %v31 = vld [vmem:[%s0 + $0x88] sm:$0xff]
  %v32 = vld [vmem:[%s0 + $0x90] sm:$0xff]
  %v33 = vld [vmem:[%s0 + $0x98] sm:$0xff]
  %v34 = vld [vmem:[%s1] sm:$0xf]
  %v35 = vld [vmem:[%s1 + $0x4] sm:$0xf]
  %v36 = vld [vmem:[%s1 + $0x8] sm:$0xf]
  %v37 = vld [vmem:[%s1 + $0xc] sm:$0xf]
  %v38 = vld [vmem:[%s1 + $0x10] sm:$0xf]
  %v39 = vld [vmem:[%s1 + $0x14] sm:$0xf]
  %v40 = vld [vmem:[%s1 + $0x18] sm:$0xf]
  %v41 = vld [vmem:[%s1 + $0x1c] sm:$0xf]
  %v42 = vld [vmem:[%s1 + $0x20] sm:$0xf]
  %v43 = vld [vmem:[%s1 + $0x24] sm:$0xf]
  %v44 = vld [vmem:[%s1 + $0x28] sm:$0xf]
  %v45 = vld [vmem:[%s1 + $0x2c] sm:$0xf]
  %v46 = vld [vmem:[%s1 + $0x30] sm:$0xf]
  %v47 = vld [vmem:[%s1 + $0x34] sm:$0xf]
  %v48 = vld [vmem:[%s1 + $0x38] sm:$0xf]
  %v49 = vld [vmem:[%s1 + $0x3c] sm:$0xf]
  %v50 = vld [vmem:[%s1 + $0x40] sm:$0xf]
  %v51 = vld [vmem:[%s1 + $0x44] sm:$0xf]
  %v52 = vld [vmem:[%s1 + $0x48] sm:$0xf]
  %v53 = vld [vmem:[%s1 + $0x4c] sm:$0xf]
  %v54 = vld [vmem:[%s1 + $0x50] sm:$0xf]
  %v55 = vld [vmem:[%s1 + $0x54] sm:$0xf]
  %v56 = vld [vmem:[%s1 + $0x58] sm:$0xf]
  %v57 = vld [vmem:[%s1 + $0x5c] sm:$0xf]
  %v58 = vld [vmem:[%s1 + $0x60] sm:$0xf]
  %v59 = vld [vmem:[%s1 + $0x64] sm:$0xf]
  %v60 = vld [vmem:[%s1 + $0x68] sm:$0xf]
  %v61 = vld [vmem:[%s1 + $0x6c] sm:$0xf]
  %v62 = vld [vmem:[%s1 + $0x70] sm:$0xf]
  %v63 = vld [vmem:[%s1 + $0x74] sm:$0xf]
  %v64 = vld [vmem:[%s1 + $0x78] sm:$0xf]
  %v65 = vld [vmem:[%s1 + $0x7c] sm:$0xf]
  %v66 = vld [vmem:[%s1 + $0x80] sm:$0xf]
  %v67 = vld [vmem:[%s1 + $0x84] sm:$0xf]
  %v68 = vld [vmem:[%s1 + $0x88] sm:$0xf]
  %v69 = vld [vmem:[%s1 + $0x8c] sm:$0xf]
  %v70 = vld [vmem:[%s1 + $0x90] sm:$0xf]
  %v71 = vld [vmem:[%s1 + $0x94] sm:$0xf]
  %v72 = vld [vmem:[%s1 + $0x98] sm:$0xf]
  %v73 = vld [vmem:[%s1 + $0x9c] sm:$0xf]
  %v74 = vld [vmem:[%s1 + $0xa0] sm:$0xf]
  %v75 = vld [vmem:[%s1 + $0xa4] sm:$0xf]
  %v76 = vld [vmem:[%s1 + $0xa8] sm:$0xf]
  %v77 = vld [vmem:[%s1 + $0xac] sm:$0xf]
  %v78 = vld [vmem:[%s1 + $0xb0] sm:$0xf]
  %v79 = vld [vmem:[%s1 + $0xb4] sm:$0xf]
  %v80 = vld [vmem:[%s1 + $0xb8] sm:$0xf]
  %v81 = vld [vmem:[%s1 + $0xbc] sm:$0xf]
  %v82 = vld [vmem:[%s1 + $0xc0] sm:$0xf]
  %v83 = vld [vmem:[%s1 + $0xc4] sm:$0xf]
  %v84 = vld [vmem:[%s1 + $0xc8] sm:$0xf]
  %v85 = vld [vmem:[%s1 + $0xcc] sm:$0xf]
  %v86 = vld [vmem:[%s1 + $0xd0] sm:$0xf]
  %v87 = vld [vmem:[%s1 + $0xd4] sm:$0xf]
  %v88 = vld [vmem:[%s1 + $0xd8] sm:$0xf]
  %v89 = vld [vmem:[%s1 + $0xdc] sm:$0xf]
  %v90 = vld [vmem:[%s1 + $0xe0] sm:$0xf]
  %v91 = vld [vmem:[%s1 + $0xe4] sm:$0xf]
  %v92 = vld [vmem:[%s1 + $0xe8] sm:$0xf]
  %v93 = vld [vmem:[%s1 + $0xec] sm:$0xf]
  %v94 = vld [vmem:[%s1 + $0xf0] sm:$0xf]
  %v95 = vld [vmem:[%s1 + $0xf4] sm:$0xf]
  %v96 = vld [vmem:[%s1 + $0xf8] sm:$0xf]
  %v97 = vld [vmem:[%s1 + $0xfc] sm:$0xf]
  %v98 = vld [vmem:[%s2] sm:$0x1]
  %v100 = vperm.slane %v98, 0
  %v122 = vunpack.c.l.b16 %v14
  %v123 = vunpack.c.h.b16 %v14
  %v124 = vunpack.c.l.b16 %v15
  %v125 = vunpack.c.h.b16 %v15
  %v126 = vunpack.c.l.b16 %v16
  %v127 = vunpack.c.h.b16 %v16
  %v128 = vunpack.c.l.b16 %v17
  %v129 = vunpack.c.h.b16 %v17
  %v130 = vunpack.c.l.b16 %v18
  %v131 = vunpack.c.h.b16 %v18
  %v132 = vunpack.c.l.b16 %v19
  %v133 = vunpack.c.h.b16 %v19
  %v134 = vunpack.c.l.b16 %v20
  %v135 = vunpack.c.h.b16 %v20
  %v136 = vunpack.c.l.b16 %v21
  %v137 = vunpack.c.h.b16 %v21
  %v138 = vunpack.c.l.b16 %v22
  %v139 = vunpack.c.h.b16 %v22
  %v140 = vunpack.c.l.b16 %v23
  %v141 = vunpack.c.h.b16 %v23
  %v142 = vunpack.c.l.b16 %v24
  %v143 = vunpack.c.h.b16 %v24
  %v144 = vunpack.c.l.b16 %v25
  %v145 = vunpack.c.h.b16 %v25
  %v146 = vunpack.c.l.b16 %v26
  %v147 = vunpack.c.h.b16 %v26
  %v148 = vunpack.c.l.b16 %v27
  %v149 = vunpack.c.h.b16 %v27
  %v150 = vunpack.c.l.b16 %v28
  %v151 = vunpack.c.h.b16 %v28
  %v152 = vunpack.c.l.b16 %v29
  %v153 = vunpack.c.h.b16 %v29
  %v154 = vunpack.c.l.b16 %v30
  %v155 = vunpack.c.h.b16 %v30
  %v156 = vunpack.c.l.b16 %v31
  %v157 = vunpack.c.h.b16 %v31
  %v158 = vunpack.c.l.b16 %v32
  %v159 = vunpack.c.h.b16 %v32
  %v160 = vunpack.c.l.b16 %v33
  %v161 = vunpack.c.h.b16 %v33
  %v162 = vpack.c.b16 %v126, %v122
  %v163 = vpack.c.b16 %v127, %v123
  %v164 = vpack.c.b16 %v128, %v124
  %v165 = vpack.c.b16 %v129, %v125
  %v166 = vpack.c.b16 %v134, %v130
  %v167 = vpack.c.b16 %v135, %v131
  %v168 = vpack.c.b16 %v136, %v132
  %v169 = vpack.c.b16 %v137, %v133
  %v170 = vpack.c.b16 %v142, %v138
  %v171 = vpack.c.b16 %v143, %v139
  %v172 = vpack.c.b16 %v144, %v140
  %v173 = vpack.c.b16 %v145, %v141
  %v174 = vpack.c.b16 %v150, %v146
  %v175 = vpack.c.b16 %v151, %v147
  %v176 = vpack.c.b16 %v152, %v148
  %v177 = vpack.c.b16 %v153, %v149
  %v178 = vpack.c.b16 %v158, %v154
  %v179 = vpack.c.b16 %v159, %v155
  %v180 = vpack.c.b16 %v160, %v156
  %v181 = vpack.c.b16 %v161, %v157
  %v266 = vunpack.c.l.b16 %v34
  %v267 = vunpack.c.l.b16 %v35
  %v268 = vunpack.c.l.b16 %v36
  %v269 = vunpack.c.l.b16 %v37
  %v270 = vunpack.c.l.b16 %v38
  %v271 = vunpack.c.l.b16 %v39
  %v272 = vunpack.c.l.b16 %v40
  %v273 = vunpack.c.l.b16 %v41
  %v274 = vunpack.c.l.b16 %v42
  %v275 = vunpack.c.l.b16 %v43
  %v276 = vunpack.c.l.b16 %v44
  %v277 = vunpack.c.l.b16 %v45
  %v278 = vunpack.c.l.b16 %v46
  %v279 = vunpack.c.l.b16 %v47
  %v280 = vunpack.c.l.b16 %v48
  %v281 = vunpack.c.l.b16 %v49
  %v282 = vunpack.c.l.b16 %v50
  %v283 = vunpack.c.l.b16 %v51
  %v284 = vunpack.c.l.b16 %v52
  %v285 = vunpack.c.l.b16 %v53
  %v286 = vunpack.c.l.b16 %v54
  %v287 = vunpack.c.l.b16 %v55
  %v288 = vunpack.c.l.b16 %v56
  %v289 = vunpack.c.l.b16 %v57
  %v290 = vunpack.c.l.b16 %v58
  %v291 = vunpack.c.l.b16 %v59
  %v292 = vunpack.c.l.b16 %v60
  %v293 = vunpack.c.l.b16 %v61
  %v294 = vunpack.c.l.b16 %v62
  %v295 = vunpack.c.l.b16 %v63
  %v296 = vunpack.c.l.b16 %v64
  %v297 = vunpack.c.l.b16 %v65
  %v298 = vunpack.c.l.b16 %v66
  %v299 = vunpack.c.l.b16 %v67
  %v300 = vunpack.c.l.b16 %v68
  %v301 = vunpack.c.l.b16 %v69
  %v302 = vunpack.c.l.b16 %v70
  %v303 = vunpack.c.l.b16 %v71
  %v304 = vunpack.c.l.b16 %v72
  %v305 = vunpack.c.l.b16 %v73
  %v306 = vunpack.c.l.b16 %v74
  %v307 = vunpack.c.l.b16 %v75
  %v308 = vunpack.c.l.b16 %v76
  %v309 = vunpack.c.l.b16 %v77
  %v310 = vunpack.c.l.b16 %v78
  %v311 = vunpack.c.l.b16 %v79
  %v312 = vunpack.c.l.b16 %v80
  %v313 = vunpack.c.l.b16 %v81
  %v314 = vunpack.c.l.b16 %v82
  %v315 = vunpack.c.l.b16 %v83
  %v316 = vunpack.c.l.b16 %v84
  %v317 = vunpack.c.l.b16 %v85
  %v318 = vunpack.c.l.b16 %v86
  %v319 = vunpack.c.l.b16 %v87
  %v320 = vunpack.c.l.b16 %v88
  %v321 = vunpack.c.l.b16 %v89
  %v322 = vunpack.c.l.b16 %v90
  %v323 = vunpack.c.l.b16 %v91
  %v324 = vunpack.c.l.b16 %v92
  %v325 = vunpack.c.l.b16 %v93
  %v326 = vunpack.c.l.b16 %v94
  %v327 = vunpack.c.l.b16 %v95
  %v328 = vunpack.c.l.b16 %v96
  %v329 = vunpack.c.l.b16 %v97
  %v330 = vpack.c.b16 %v267, %v266
  %v331 = vpack.c.b16 %v269, %v268
  %v332 = vpack.c.b16 %v271, %v270
  %v333 = vpack.c.b16 %v273, %v272
  %v334 = vpack.c.b16 %v275, %v274
  %v335 = vpack.c.b16 %v277, %v276
  %v336 = vpack.c.b16 %v279, %v278
  %v337 = vpack.c.b16 %v281, %v280
  %v338 = vpack.c.b16 %v283, %v282
  %v339 = vpack.c.b16 %v285, %v284
  %v340 = vpack.c.b16 %v287, %v286
  %v341 = vpack.c.b16 %v289, %v288
  %v342 = vpack.c.b16 %v291, %v290
  %v343 = vpack.c.b16 %v293, %v292
  %v344 = vpack.c.b16 %v295, %v294
  %v345 = vpack.c.b16 %v297, %v296
  %v346 = vpack.c.b16 %v299, %v298
  %v347 = vpack.c.b16 %v301, %v300
  %v348 = vpack.c.b16 %v303, %v302
  %v349 = vpack.c.b16 %v305, %v304
  %v350 = vpack.c.b16 %v307, %v306
  %v351 = vpack.c.b16 %v309, %v308
  %v352 = vpack.c.b16 %v311, %v310
  %v353 = vpack.c.b16 %v313, %v312
  %v354 = vpack.c.b16 %v315, %v314
  %v355 = vpack.c.b16 %v317, %v316
  %v356 = vpack.c.b16 %v319, %v318
  %v357 = vpack.c.b16 %v321, %v320
  %v358 = vpack.c.b16 %v323, %v322
  %v359 = vpack.c.b16 %v325, %v324
  %v360 = vpack.c.b16 %v327, %v326
  %v361 = vpack.c.b16 %v329, %v328
  %394 = vmatpush.bf16.msra.mxu0 %v337
  %395 = vmatpush.bf16.msra.mxu0 %v336
  %396 = vmatpush.bf16.msra.mxu0 %v335
  %397 = vmatpush.bf16.msra.mxu0 %v334
  %398 = vmatpush.bf16.msra.mxu0 %v333
  %399 = vmatpush.bf16.msra.mxu0 %v332
  %400 = vmatpush.bf16.msra.mxu0 %v331
  %401 = vmatpush.bf16.msra.mxu0 %v330
  %402 = vmatmul.bf16.gmra.mxu0 %v162
  %v403 = vpop.f32.mrf.mxu0
  %v404 = vadd.f32 %v100, %v403
  %v405 = vpop.f32.mrf.mxu0
  %v406 = vadd.f32 %v100, %v405
  %407 = vmatmul.bf16.gmra.mxu0 %v166
  %v408 = vpop.f32.mrf.mxu0
  %v409 = vadd.f32 %v100, %v408
  %v410 = vpop.f32.mrf.mxu0
  %v411 = vadd.f32 %v100, %v410
  %412 = vmatmul.bf16.gmra.mxu0 %v170
  %v413 = vpop.f32.mrf.mxu0
  %v414 = vadd.f32 %v100, %v413
  %v415 = vpop.f32.mrf.mxu0
  %v416 = vadd.f32 %v100, %v415
  %417 = vmatmul.bf16.gmra.mxu0 %v174
  %v418 = vpop.f32.mrf.mxu0
  %v419 = vadd.f32 %v100, %v418
  %v420 = vpop.f32.mrf.mxu0
  %v421 = vadd.f32 %v100, %v420
  %422 = vmatmul.bf16.gmra.mxu0 %v178
  %v423 = vpop.f32.mrf.mxu0
  %v424 = vadd.f32 %v100, %v423
  %v425 = vpop.f32.mrf.mxu0
  %v426 = vadd.f32 %v100, %v425
  %427 = vdwg.mxu0
  %428 = vmatpush.bf16.msra.mxu0 %v345
  %429 = vmatpush.bf16.msra.mxu0 %v344
  %430 = vmatpush.bf16.msra.mxu0 %v343
  %431 = vmatpush.bf16.msra.mxu0 %v342
  %432 = vmatpush.bf16.msra.mxu0 %v341
  %433 = vmatpush.bf16.msra.mxu0 %v340
  %434 = vmatpush.bf16.msra.mxu0 %v339
  %435 = vmatpush.bf16.msra.mxu0 %v338
  %436 = vmatmul.bf16.gmra.mxu0 %v163
  %v437 = vpop.f32.mrf.mxu0
  %v438 = vadd.f32 %v404, %v437
  %v439 = vpop.f32.mrf.mxu0
  %v440 = vadd.f32 %v406, %v439
  %441 = vmatmul.bf16.gmra.mxu0 %v167
  %v442 = vpop.f32.mrf.mxu0
  %v443 = vadd.f32 %v409, %v442
  %v444 = vpop.f32.mrf.mxu0
  %v445 = vadd.f32 %v411, %v444
  %446 = vmatmul.bf16.gmra.mxu0 %v171
  %v447 = vpop.f32.mrf.mxu0
  %v448 = vadd.f32 %v414, %v447
  %v449 = vpop.f32.mrf.mxu0
  %v450 = vadd.f32 %v416, %v449
  %451 = vmatmul.bf16.gmra.mxu0 %v175
  %v452 = vpop.f32.mrf.mxu0
  %v453 = vadd.f32 %v419, %v452
  %v454 = vpop.f32.mrf.mxu0
  %v455 = vadd.f32 %v421, %v454
  %456 = vmatmul.bf16.gmra.mxu0 %v179
  %v457 = vpop.f32.mrf.mxu0
  %v458 = vadd.f32 %v424, %v457
  %v459 = vpop.f32.mrf.mxu0
  %v460 = vadd.f32 %v426, %v459
  %461 = vdwg.mxu0
  %462 = vmatpush.bf16.msra.mxu0 %v353
  %463 = vmatpush.bf16.msra.mxu0 %v352
  %464 = vmatpush.bf16.msra.mxu0 %v351
  %465 = vmatpush.bf16.msra.mxu0 %v350
  %466 = vmatpush.bf16.msra.mxu0 %v349
  %467 = vmatpush.bf16.msra.mxu0 %v348
  %468 = vmatpush.bf16.msra.mxu0 %v347
  %469 = vmatpush.bf16.msra.mxu0 %v346
  %470 = vmatmul.bf16.gmra.mxu0 %v164
  %v471 = vpop.f32.mrf.mxu0
  %v472 = vadd.f32 %v438, %v471
  %v473 = vpop.f32.mrf.mxu0
  %v474 = vadd.f32 %v440, %v473
  %475 = vmatmul.bf16.gmra.mxu0 %v168
  %v476 = vpop.f32.mrf.mxu0
  %v477 = vadd.f32 %v443, %v476
  %v478 = vpop.f32.mrf.mxu0
  %v479 = vadd.f32 %v445, %v478
  %480 = vmatmul.bf16.gmra.mxu0 %v172
  %v481 = vpop.f32.mrf.mxu0
  %v482 = vadd.f32 %v448, %v481
  %v483 = vpop.f32.mrf.mxu0
  %v484 = vadd.f32 %v450, %v483
  %485 = vmatmul.bf16.gmra.mxu0 %v176
  %v486 = vpop.f32.mrf.mxu0
  %v487 = vadd.f32 %v453, %v486
  %v488 = vpop.f32.mrf.mxu0
  %v489 = vadd.f32 %v455, %v488
  %490 = vmatmul.bf16.gmra.mxu0 %v180
  %v491 = vpop.f32.mrf.mxu0
  %v492 = vadd.f32 %v458, %v491
  %v493 = vpop.f32.mrf.mxu0
  %v494 = vadd.f32 %v460, %v493
  %495 = vdwg.mxu0
  %496 = vmatpush.bf16.msra.mxu0 %v361
  %497 = vmatpush.bf16.msra.mxu0 %v360
  %498 = vmatpush.bf16.msra.mxu0 %v359
  %499 = vmatpush.bf16.msra.mxu0 %v358
  %500 = vmatpush.bf16.msra.mxu0 %v357
  %501 = vmatpush.bf16.msra.mxu0 %v356
  %502 = vmatpush.bf16.msra.mxu0 %v355
  %503 = vmatpush.bf16.msra.mxu0 %v354
  %504 = vmatmul.bf16.gmra.mxu0 %v165
  %v505 = vpop.f32.mrf.mxu0
  %v506 = vadd.f32 %v472, %v505
  %v507 = vpop.f32.mrf.mxu0
  %v508 = vadd.f32 %v474, %v507
  %509 = vmatmul.bf16.gmra.mxu0 %v169
  %v510 = vpop.f32.mrf.mxu0
  %v511 = vadd.f32 %v477, %v510
  %v512 = vpop.f32.mrf.mxu0
  %v513 = vadd.f32 %v479, %v512
  %514 = vmatmul.bf16.gmra.mxu0 %v173
  %v515 = vpop.f32.mrf.mxu0
  %v516 = vadd.f32 %v482, %v515
  %v517 = vpop.f32.mrf.mxu0
  %v518 = vadd.f32 %v484, %v517
  %519 = vmatmul.bf16.gmra.mxu0 %v177
  %v520 = vpop.f32.mrf.mxu0
  %v521 = vadd.f32 %v487, %v520
  %v522 = vpop.f32.mrf.mxu0
  %v523 = vadd.f32 %v489, %v522
  %524 = vmatmul.bf16.gmra.mxu0 %v181
  %v525 = vpop.f32.mrf.mxu0
  %v526 = vadd.f32 %v492, %v525
  %v527 = vpop.f32.mrf.mxu0
  %v528 = vadd.f32 %v494, %v527
  %529 = vdwg.mxu0
  %v530 = vsub.f32 0.0, %v506
  %v531 = vsub.f32 0.0, %v508
  %v532 = vsub.f32 0.0, %v511
  %v533 = vsub.f32 0.0, %v513
  %v534 = vsub.f32 0.0, %v516
  %v535 = vsub.f32 0.0, %v518
  %v536 = vsub.f32 0.0, %v521
  %v537 = vsub.f32 0.0, %v523
  %v538 = vsub.f32 0.0, %v526
  %v539 = vsub.f32 0.0, %v528
  %v540 = vmul.f32 %v530, 1.442695
  %v541 = vpow.pop %v540
  %v542 = vmul.f32 %v531, 1.442695
  %v543 = vpow.pop %v542
  %v544 = vmul.f32 %v532, 1.442695
  %v545 = vpow.pop %v544
  %v546 = vmul.f32 %v533, 1.442695
  %v547 = vpow.pop %v546
  %v548 = vmul.f32 %v534, 1.442695
  %v549 = vpow.pop %v548
  %v550 = vmul.f32 %v535, 1.442695
  %v551 = vpow.pop %v550
  %v552 = vmul.f32 %v536, 1.442695
  %v553 = vpow.pop %v552
  %v554 = vmul.f32 %v537, 1.442695
  %v555 = vpow.pop %v554
  %v556 = vmul.f32 %v538, 1.442695
  %v557 = vpow.pop %v556
  %v558 = vmul.f32 %v539, 1.442695
  %v559 = vpow.pop %v558
  %v560 = vadd.f32 %v541, 1.0
  %v561 = vadd.f32 %v543, 1.0
  %v562 = vadd.f32 %v545, 1.0
  %v563 = vadd.f32 %v547, 1.0
  %v564 = vadd.f32 %v549, 1.0
  %v565 = vadd.f32 %v551, 1.0
  %v566 = vadd.f32 %v553, 1.0
  %v567 = vadd.f32 %v555, 1.0
  %v568 = vadd.f32 %v557, 1.0
  %v569 = vadd.f32 %v559, 1.0
  %v570 = vrcp.pop %v560
  %v571 = vrcp.pop %v561
  %v572 = vrcp.pop %v562
  %v573 = vrcp.pop %v563
  %v574 = vrcp.pop %v564
  %v575 = vrcp.pop %v565
  %v576 = vrcp.pop %v566
  %v577 = vrcp.pop %v567
  %v578 = vrcp.pop %v568
  %v579 = vrcp.pop %v569
  %v580 = vmul.f32 %v506, %v570
  %v581 = vmul.f32 %v508, %v571
  %v582 = vmul.f32 %v511, %v572
  %v583 = vmul.f32 %v513, %v573
  %v584 = vmul.f32 %v516, %v574
  %v585 = vmul.f32 %v518, %v575
  %v586 = vmul.f32 %v521, %v576
  %v587 = vmul.f32 %v523, %v577
  %v588 = vmul.f32 %v526, %v578
  %v589 = vmul.f32 %v528, %v579
  %590 = vst [vmem:[%s3] sm:$0xff] %v580
  %591 = vst [vmem:[%s3 + $0x8] sm:$0xff] %v581
  %592 = vst [vmem:[%s3 + $0x10] sm:$0xff] %v582
  %593 = vst [vmem:[%s3 + $0x18] sm:$0xff] %v583
  %594 = vst [vmem:[%s3 + $0x20] sm:$0xff] %v584
  %595 = vst [vmem:[%s3 + $0x28] sm:$0xff] %v585
  %596 = vst [vmem:[%s3 + $0x30] sm:$0xff] %v586
  %597 = vst [vmem:[%s3 + $0x38] sm:$0xff] %v587
  %598 = vst [vmem:[%s3 + $0x40] sm:$0xff] %v588
  %599 = vst [vmem:[%s3 + $0x48] sm:$0xff] %v589
  // Predicated region
  $region14: #{netg_forward.13} parent=0 // pred_check
    _
  $region15: #{netg_forward.13} parent=0 // pred_check_branch
    %601 = sbr.rel (0) target = $region17
  $region16: #{netg_forward.13} parent=0 // pred_region
    _
  $region17: #{netg_forward.13} parent=0 // pred_fallthru
    _
  // Predicated region
  $region18: #{netg_forward.13} parent=0 // pred_check
    _
  $region19: #{netg_forward.13} parent=0 // pred_check_branch
    %603 = sbr.rel (0) target = $region21
  $region20: #{netg_forward.13} parent=0 // pred_region
    _
  $region21: #{netg_forward.13} parent=0 // pred_fallthru
    _

// kernel: netg_forward.14
$region0: #{netg_forward.14}
  #allocation0 [shape = 'u32[]', space=smem, size = 0x4, offset = 0x4, fixed_abs, tag = 'smem constant byte address 0x4 - core index']
  #allocation1 [shape = 'u32[72,128]{1,0:T(1,128)}', space=vmem, size = 0x9000, scoped, tag = 'internal scratch']
  %s0 = inlined_call_operand.vmem [shape: bf16[32,640], index: 0, kind: input, shape index: {}]
  %s1 = inlined_call_operand.vmem [shape: bf16[640,128], index: 1, kind: input, shape index: {}]
  %s2 = inlined_call_operand.vmem [shape: f32[1,128], index: 2, kind: input, shape index: {}]
  %s3 = inlined_call_operand.vmem [shape: f32[32,128], index: 3, kind: output, shape index: {}]
  %s4 = sld [smem:[#allocation0]]
  $region22: #{netg_forward.14} parent=0
    _
  %s6 = ssub.s32 1, %s4
  %s7 = scalar_select 0, %s6, %s4
  // Predicated region
  $region2: #{netg_forward.14} parent=0 // pred_check
    _
  $region3: #{netg_forward.14} parent=0 // pred_check_branch
    %9 = sbr.rel (0) target = $region5
  $region4: #{netg_forward.14} parent=0 // pred_region
    _
  $region5: #{netg_forward.14} parent=0 // pred_fallthru
    _
  // Predicated region
  $region6: #{netg_forward.14} parent=0 // pred_check
    _
  $region7: #{netg_forward.14} parent=0 // pred_check_branch
    %11 = sbr.rel (0) target = $region9
  $region8: #{netg_forward.14} parent=0 // pred_region
    _
  $region9: #{netg_forward.14} parent=0 // pred_fallthru
    _
  // Predicated region
  $region10: #{netg_forward.14} parent=0 // pred_check
    _
  $region11: #{netg_forward.14} parent=0 // pred_check_branch
    %13 = sbr.rel (0) target = $region13
  $region12: #{netg_forward.14} parent=0 // pred_region
    _
  $region13: #{netg_forward.14} parent=0 // pred_fallthru
    _
  %v14 = vld [vmem:[%s0] sm:$0xff]
  %v15 = vld [vmem:[%s0 + $0x8] sm:$0xff]
  %v16 = vld [vmem:[%s0 + $0x10] sm:$0xf]
  %v17 = vld [vmem:[%s0 + $0x14] sm:$0xff]
  %v18 = vld [vmem:[%s0 + $0x1c] sm:$0xff]
  %v19 = vld [vmem:[%s0 + $0x24] sm:$0xf]
  %v20 = vld [vmem:[%s0 + $0x28] sm:$0xff]
  %v21 = vld [vmem:[%s0 + $0x30] sm:$0xff]
  %v22 = vld [vmem:[%s0 + $0x38] sm:$0xf]
  %v23 = vld [vmem:[%s0 + $0x3c] sm:$0xff]
  %v24 = vld [vmem:[%s0 + $0x44] sm:$0xff]
  %v25 = vld [vmem:[%s0 + $0x4c] sm:$0xf]
  %v26 = vld [vmem:[%s1] sm:$0xf]
  %v27 = vld [vmem:[%s1 + $0x4] sm:$0xf]
  %v28 = vld [vmem:[%s1 + $0x8] sm:$0xf]
  %v29 = vld [vmem:[%s1 + $0xc] sm:$0xf]
  %v30 = vld [vmem:[%s1 + $0x10] sm:$0xf]
  %v31 = vld [vmem:[%s1 + $0x14] sm:$0xf]
  %v32 = vld [vmem:[%s1 + $0x18] sm:$0xf]
  %v33 = vld [vmem:[%s1 + $0x1c] sm:$0xf]
  %v34 = vld [vmem:[%s1 + $0x20] sm:$0xf]
  %v35 = vld [vmem:[%s1 + $0x24] sm:$0xf]
  %v36 = vld [vmem:[%s1 + $0x28] sm:$0xf]
  %v37 = vld [vmem:[%s1 + $0x2c] sm:$0xf]
  %v38 = vld [vmem:[%s1 + $0x30] sm:$0xf]
  %v39 = vld [vmem:[%s1 + $0x34] sm:$0xf]
  %v40 = vld [vmem:[%s1 + $0x38] sm:$0xf]
  %v41 = vld [vmem:[%s1 + $0x3c] sm:$0xf]
  %v42 = vld [vmem:[%s1 + $0x40] sm:$0xf]
  %v43 = vld [vmem:[%s1 + $0x44] sm:$0xf]
  %v44 = vld [vmem:[%s1 + $0x48] sm:$0xf]
  %v45 = vld [vmem:[%s1 + $0x4c] sm:$0xf]
  %v46 = vld [vmem:[%s1 + $0x50] sm:$0xf]
  %v47 = vld [vmem:[%s1 + $0x54] sm:$0xf]
  %v48 = vld [vmem:[%s1 + $0x58] sm:$0xf]
  %v49 = vld [vmem:[%s1 + $0x5c] sm:$0xf]
  %v50 = vld [vmem:[%s1 + $0x60] sm:$0xf]
  %v51 = vld [vmem:[%s1 + $0x64] sm:$0xf]
  %v52 = vld [vmem:[%s1 + $0x68] sm:$0xf]
  %v53 = vld [vmem:[%s1 + $0x6c] sm:$0xf]
  %v54 = vld [vmem:[%s1 + $0x70] sm:$0xf]
  %v55 = vld [vmem:[%s1 + $0x74] sm:$0xf]
  %v56 = vld [vmem:[%s1 + $0x78] sm:$0xf]
  %v57 = vld [vmem:[%s1 + $0x7c] sm:$0xf]
  %v58 = vld [vmem:[%s1 + $0x80] sm:$0xf]
  %v59 = vld [vmem:[%s1 + $0x84] sm:$0xf]
  %v60 = vld [vmem:[%s1 + $0x88] sm:$0xf]
  %v61 = vld [vmem:[%s1 + $0x8c] sm:$0xf]
  %v62 = vld [vmem:[%s1 + $0x90] sm:$0xf]
  %v63 = vld [vmem:[%s1 + $0x94] sm:$0xf]
  %v64 = vld [vmem:[%s1 + $0x98] sm:$0xf]
  %v65 = vld [vmem:[%s1 + $0x9c] sm:$0xf]
  %v66 = vld [vmem:[%s1 + $0xa0] sm:$0xf]
  %v67 = vld [vmem:[%s1 + $0xa4] sm:$0xf]
  %v68 = vld [vmem:[%s1 + $0xa8] sm:$0xf]
  %v69 = vld [vmem:[%s1 + $0xac] sm:$0xf]
  %v70 = vld [vmem:[%s1 + $0xb0] sm:$0xf]
  %v71 = vld [vmem:[%s1 + $0xb4] sm:$0xf]
  %v72 = vld [vmem:[%s1 + $0xb8] sm:$0xf]
  %v73 = vld [vmem:[%s1 + $0xbc] sm:$0xf]
  %v74 = vld [vmem:[%s1 + $0xc0] sm:$0xf]
  %v75 = vld [vmem:[%s1 + $0xc4] sm:$0xf]
  %v76 = vld [vmem:[%s1 + $0xc8] sm:$0xf]
  %v77 = vld [vmem:[%s1 + $0xcc] sm:$0xf]
  %v78 = vld [vmem:[%s1 + $0xd0] sm:$0xf]
  %v79 = vld [vmem:[%s1 + $0xd4] sm:$0xf]
  %v80 = vld [vmem:[%s1 + $0xd8] sm:$0xf]
  %v81 = vld [vmem:[%s1 + $0xdc] sm:$0xf]
  %v82 = vld [vmem:[%s1 + $0xe0] sm:$0xf]
  %v83 = vld [vmem:[%s1 + $0xe4] sm:$0xf]
  %v84 = vld [vmem:[%s1 + $0xe8] sm:$0xf]
  %v85 = vld [vmem:[%s1 + $0xec] sm:$0xf]
  %v86 = vld [vmem:[%s1 + $0xf0] sm:$0xf]
  %v87 = vld [vmem:[%s1 + $0xf4] sm:$0xf]
  %v88 = vld [vmem:[%s1 + $0xf8] sm:$0xf]
  %v89 = vld [vmem:[%s1 + $0xfc] sm:$0xf]
  %v90 = vld [vmem:[%s1 + $0x100] sm:$0xf]
  %v91 = vld [vmem:[%s1 + $0x104] sm:$0xf]
  %v92 = vld [vmem:[%s1 + $0x108] sm:$0xf]
  %v93 = vld [vmem:[%s1 + $0x10c] sm:$0xf]
  %v94 = vld [vmem:[%s1 + $0x110] sm:$0xf]
  %v95 = vld [vmem:[%s1 + $0x114] sm:$0xf]
  %v96 = vld [vmem:[%s1 + $0x118] sm:$0xf]
  %v97 = vld [vmem:[%s1 + $0x11c] sm:$0xf]
  %v98 = vld [vmem:[%s1 + $0x120] sm:$0xf]
  %v99 = vld [vmem:[%s1 + $0x124] sm:$0xf]
  %v100 = vld [vmem:[%s1 + $0x128] sm:$0xf]
  %v101 = vld [vmem:[%s1 + $0x12c] sm:$0xf]
  %v102 = vld [vmem:[%s1 + $0x130] sm:$0xf]
  %v103 = vld [vmem:[%s1 + $0x134] sm:$0xf]
  %v104 = vld [vmem:[%s1 + $0x138] sm:$0xf]
  %v105 = vld [vmem:[%s1 + $0x13c] sm:$0xf]
  %v106 = vld [vmem:[%s2] sm:$0x1]
  %v108 = vperm.slane %v106, 0
  %v122 = vunpack.c.l.b16 %v14
  %v123 = vunpack.c.h.b16 %v14
  %v124 = vunpack.c.l.b16 %v15
  %v125 = vunpack.c.h.b16 %v15
  %v126 = vunpack.c.l.b16 %v16
  %v127 = vunpack.c.l.b16 %v17
  %v128 = vunpack.c.h.b16 %v17
  %v129 = vunpack.c.l.b16 %v18
  %v130 = vunpack.c.h.b16 %v18
  %v131 = vunpack.c.l.b16 %v19
  %v132 = vunpack.c.l.b16 %v20
  %v133 = vunpack.c.h.b16 %v20
  %v134 = vunpack.c.l.b16 %v21
  %v135 = vunpack.c.h.b16 %v21
  %v136 = vunpack.c.l.b16 %v22
  %v137 = vunpack.c.l.b16 %v23
  %v138 = vunpack.c.h.b16 %v23
  %v139 = vunpack.c.l.b16 %v24
  %v140 = vunpack.c.h.b16 %v24
  %v141 = vunpack.c.l.b16 %v25
  %v142 = vpack.c.b16 %v127, %v122
  %v143 = vpack.c.b16 %v128, %v123
  %v144 = vpack.c.b16 %v129, %v124
  %v145 = vpack.c.b16 %v130, %v125
  %v146 = vpack.c.b16 %v131, %v126
  %v147 = vpack.c.b16 %v137, %v132
  %v148 = vpack.c.b16 %v138, %v133
  %v149 = vpack.c.b16 %v139, %v134
  %v150 = vpack.c.b16 %v140, %v135
  %v151 = vpack.c.b16 %v141, %v136
  %v242 = vunpack.c.l.b16 %v26
  %v243 = vunpack.c.l.b16 %v27
  %v244 = vunpack.c.l.b16 %v28
  %v245 = vunpack.c.l.b16 %v29
  %v246 = vunpack.c.l.b16 %v30
  %v247 = vunpack.c.l.b16 %v31
  %v248 = vunpack.c.l.b16 %v32
  %v249 = vunpack.c.l.b16 %v33
  %v250 = vunpack.c.l.b16 %v34
  %v251 = vunpack.c.l.b16 %v35
  %v252 = vunpack.c.l.b16 %v36
  %v253 = vunpack.c.l.b16 %v37
  %v254 = vunpack.c.l.b16 %v38
  %v255 = vunpack.c.l.b16 %v39
  %v256 = vunpack.c.l.b16 %v40
  %v257 = vunpack.c.l.b16 %v41
  %v258 = vunpack.c.l.b16 %v42
  %v259 = vunpack.c.l.b16 %v43
  %v260 = vunpack.c.l.b16 %v44
  %v261 = vunpack.c.l.b16 %v45
  %v262 = vunpack.c.l.b16 %v46
  %v263 = vunpack.c.l.b16 %v47
  %v264 = vunpack.c.l.b16 %v48
  %v265 = vunpack.c.l.b16 %v49
  %v266 = vunpack.c.l.b16 %v50
  %v267 = vunpack.c.l.b16 %v51
  %v268 = vunpack.c.l.b16 %v52
  %v269 = vunpack.c.l.b16 %v53
  %v270 = vunpack.c.l.b16 %v54
  %v271 = vunpack.c.l.b16 %v55
  %v272 = vunpack.c.l.b16 %v56
  %v273 = vunpack.c.l.b16 %v57
  %v274 = vunpack.c.l.b16 %v58
  %v275 = vunpack.c.l.b16 %v59
  %v276 = vunpack.c.l.b16 %v60
  %v277 = vunpack.c.l.b16 %v61
  %v278 = vunpack.c.l.b16 %v62
  %v279 = vunpack.c.l.b16 %v63
  %v280 = vunpack.c.l.b16 %v64
  %v281 = vunpack.c.l.b16 %v65
  %v282 = vunpack.c.l.b16 %v66
  %v283 = vunpack.c.l.b16 %v67
  %v284 = vunpack.c.l.b16 %v68
  %v285 = vunpack.c.l.b16 %v69
  %v286 = vunpack.c.l.b16 %v70
  %v287 = vunpack.c.l.b16 %v71
  %v288 = vunpack.c.l.b16 %v72
  %v289 = vunpack.c.l.b16 %v73
  %v290 = vunpack.c.l.b16 %v74
  %v291 = vunpack.c.l.b16 %v75
  %v292 = vunpack.c.l.b16 %v76
  %v293 = vunpack.c.l.b16 %v77
  %v294 = vunpack.c.l.b16 %v78
  %v295 = vunpack.c.l.b16 %v79
  %v296 = vunpack.c.l.b16 %v80
  %v297 = vunpack.c.l.b16 %v81
  %v298 = vunpack.c.l.b16 %v82
  %v299 = vunpack.c.l.b16 %v83
  %v300 = vunpack.c.l.b16 %v84
  %v301 = vunpack.c.l.b16 %v85
  %v302 = vunpack.c.l.b16 %v86
  %v303 = vunpack.c.l.b16 %v87
  %v304 = vunpack.c.l.b16 %v88
  %v305 = vunpack.c.l.b16 %v89
  %v306 = vunpack.c.l.b16 %v90
  %v307 = vunpack.c.l.b16 %v91
  %v308 = vunpack.c.l.b16 %v92
  %v309 = vunpack.c.l.b16 %v93
  %v310 = vunpack.c.l.b16 %v94
  %v311 = vunpack.c.l.b16 %v95
  %v312 = vunpack.c.l.b16 %v96
  %v313 = vunpack.c.l.b16 %v97
  %v314 = vunpack.c.l.b16 %v98
  %v315 = vunpack.c.l.b16 %v99
  %v316 = vunpack.c.l.b16 %v100
  %v317 = vunpack.c.l.b16 %v101
  %v318 = vunpack.c.l.b16 %v102
  %v319 = vunpack.c.l.b16 %v103
  %v320 = vunpack.c.l.b16 %v104
  %v321 = vunpack.c.l.b16 %v105
  %v322 = vpack.c.b16 %v243, %v242
  %v323 = vpack.c.b16 %v245, %v244
  %v324 = vpack.c.b16 %v247, %v246
  %v325 = vpack.c.b16 %v249, %v248
  %v326 = vpack.c.b16 %v251, %v250
  %v327 = vpack.c.b16 %v253, %v252
  %v328 = vpack.c.b16 %v255, %v254
  %v329 = vpack.c.b16 %v257, %v256
  %v330 = vpack.c.b16 %v259, %v258
  %v331 = vpack.c.b16 %v261, %v260
  %v332 = vpack.c.b16 %v263, %v262
  %v333 = vpack.c.b16 %v265, %v264
  %v334 = vpack.c.b16 %v267, %v266
  %v335 = vpack.c.b16 %v269, %v268
  %v336 = vpack.c.b16 %v271, %v270
  %v337 = vpack.c.b16 %v273, %v272
  %v338 = vpack.c.b16 %v275, %v274
  %v339 = vpack.c.b16 %v277, %v276
  %v340 = vpack.c.b16 %v279, %v278
  %v341 = vpack.c.b16 %v281, %v280
  %v342 = vpack.c.b16 %v283, %v282
  %v343 = vpack.c.b16 %v285, %v284
  %v344 = vpack.c.b16 %v287, %v286
  %v345 = vpack.c.b16 %v289, %v288
  %v346 = vpack.c.b16 %v291, %v290
  %v347 = vpack.c.b16 %v293, %v292
  %v348 = vpack.c.b16 %v295, %v294
  %v349 = vpack.c.b16 %v297, %v296
  %v350 = vpack.c.b16 %v299, %v298
  %v351 = vpack.c.b16 %v301, %v300
  %v352 = vpack.c.b16 %v303, %v302
  %v353 = vpack.c.b16 %v305, %v304
  %v354 = vpack.c.b16 %v307, %v306
  %v355 = vpack.c.b16 %v309, %v308
  %v356 = vpack.c.b16 %v311, %v310
  %v357 = vpack.c.b16 %v313, %v312
  %v358 = vpack.c.b16 %v315, %v314
  %v359 = vpack.c.b16 %v317, %v316
  %v360 = vpack.c.b16 %v319, %v318
  %v361 = vpack.c.b16 %v321, %v320
  %402 = vmatpush.bf16.msra.mxu0 %v329
  %403 = vmatpush.bf16.msra.mxu0 %v328
  %404 = vmatpush.bf16.msra.mxu0 %v327
  %405 = vmatpush.bf16.msra.mxu0 %v326
  %406 = vmatpush.bf16.msra.mxu0 %v325
  %407 = vmatpush.bf16.msra.mxu0 %v324
  %408 = vmatpush.bf16.msra.mxu0 %v323
  %409 = vmatpush.bf16.msra.mxu0 %v322
  %410 = vmatmul.bf16.gmra.mxu0 %v142
  %v411 = vpop.f32.mrf.mxu0
  %v412 = vadd.f32 %v108, %v411
  %v413 = vpop.f32.mrf.mxu0
  %v414 = vadd.f32 %v108, %v413
  %415 = vmatmul.bf16.gmra.mxu0 %v147
  %v416 = vpop.f32.mrf.mxu0
  %v417 = vadd.f32 %v108, %v416
  %v418 = vpop.f32.mrf.mxu0
  %v419 = vadd.f32 %v108, %v418
  %420 = vdwg.mxu0
  %421 = vmatpush.bf16.msra.mxu0 %v337
  %422 = vmatpush.bf16.msra.mxu0 %v336
  %423 = vmatpush.bf16.msra.mxu0 %v335
  %424 = vmatpush.bf16.msra.mxu0 %v334
  %425 = vmatpush.bf16.msra.mxu0 %v333
  %426 = vmatpush.bf16.msra.mxu0 %v332
  %427 = vmatpush.bf16.msra.mxu0 %v331
  %428 = vmatpush.bf16.msra.mxu0 %v330
  %429 = vmatmul.bf16.gmra.mxu0 %v143
  %v430 = vpop.f32.mrf.mxu0
  %v431 = vadd.f32 %v412, %v430
  %v432 = vpop.f32.mrf.mxu0
  %v433 = vadd.f32 %v414, %v432
  %434 = vmatmul.bf16.gmra.mxu0 %v148
  %v435 = vpop.f32.mrf.mxu0
  %v436 = vadd.f32 %v417, %v435
  %v437 = vpop.f32.mrf.mxu0
  %v438 = vadd.f32 %v419, %v437
  %439 = vdwg.mxu0
  %440 = vmatpush.bf16.msra.mxu0 %v345
  %441 = vmatpush.bf16.msra.mxu0 %v344
  %442 = vmatpush.bf16.msra.mxu0 %v343
  %443 = vmatpush.bf16.msra.mxu0 %v342
  %444 = vmatpush.bf16.msra.mxu0 %v341
  %445 = vmatpush.bf16.msra.mxu0 %v340
  %446 = vmatpush.bf16.msra.mxu0 %v339
  %447 = vmatpush.bf16.msra.mxu0 %v338
  %448 = vmatmul.bf16.gmra.mxu0 %v144
  %v449 = vpop.f32.mrf.mxu0
  %v450 = vadd.f32 %v431, %v449
  %v451 = vpop.f32.mrf.mxu0
  %v452 = vadd.f32 %v433, %v451
  %453 = vmatmul.bf16.gmra.mxu0 %v149
  %v454 = vpop.f32.mrf.mxu0
  %v455 = vadd.f32 %v436, %v454
  %v456 = vpop.f32.mrf.mxu0
  %v457 = vadd.f32 %v438, %v456
  %458 = vdwg.mxu0
  %459 = vmatpush.bf16.msra.mxu0 %v353
  %460 = vmatpush.bf16.msra.mxu0 %v352
  %461 = vmatpush.bf16.msra.mxu0 %v351
  %462 = vmatpush.bf16.msra.mxu0 %v350
  %463 = vmatpush.bf16.msra.mxu0 %v349
  %464 = vmatpush.bf16.msra.mxu0 %v348
  %465 = vmatpush.bf16.msra.mxu0 %v347
  %466 = vmatpush.bf16.msra.mxu0 %v346
  %467 = vmatmul.bf16.gmra.mxu0 %v145
  %v468 = vpop.f32.mrf.mxu0
  %v469 = vadd.f32 %v450, %v468
  %v470 = vpop.f32.mrf.mxu0
  %v471 = vadd.f32 %v452, %v470
  %472 = vmatmul.bf16.gmra.mxu0 %v150
  %v473 = vpop.f32.mrf.mxu0
  %v474 = vadd.f32 %v455, %v473
  %v475 = vpop.f32.mrf.mxu0
  %v476 = vadd.f32 %v457, %v475
  %477 = vdwg.mxu0
  %478 = vmatpush.bf16.msra.mxu0 %v361
  %479 = vmatpush.bf16.msra.mxu0 %v360
  %480 = vmatpush.bf16.msra.mxu0 %v359
  %481 = vmatpush.bf16.msra.mxu0 %v358
  %482 = vmatpush.bf16.msra.mxu0 %v357
  %483 = vmatpush.bf16.msra.mxu0 %v356
  %484 = vmatpush.bf16.msra.mxu0 %v355
  %485 = vmatpush.bf16.msra.mxu0 %v354
  %486 = vmatmul.bf16.gmra.mxu0 %v146
  %v487 = vpop.f32.mrf.mxu0
  %v488 = vadd.f32 %v469, %v487
  %v489 = vpop.f32.mrf.mxu0
  %v490 = vadd.f32 %v471, %v489
  %491 = vmatmul.bf16.gmra.mxu0 %v151
  %v492 = vpop.f32.mrf.mxu0
  %v493 = vadd.f32 %v474, %v492
  %v494 = vpop.f32.mrf.mxu0
  %v495 = vadd.f32 %v476, %v494
  %496 = vdwg.mxu0
  %v497 = vsub.f32 0.0, %v488
  %v498 = vsub.f32 0.0, %v490
  %v499 = vsub.f32 0.0, %v493
  %v500 = vsub.f32 0.0, %v495
  %v501 = vmul.f32 %v497, 1.442695
  %v502 = vpow.pop %v501
  %v503 = vmul.f32 %v498, 1.442695
  %v504 = vpow.pop %v503
  %v505 = vmul.f32 %v499, 1.442695
  %v506 = vpow.pop %v505
  %v507 = vmul.f32 %v500, 1.442695
  %v508 = vpow.pop %v507
  %v509 = vadd.f32 %v502, 1.0
  %v510 = vadd.f32 %v504, 1.0
  %v511 = vadd.f32 %v506, 1.0
  %v512 = vadd.f32 %v508, 1.0
  %v513 = vrcp.pop %v509
  %v514 = vrcp.pop %v510
  %v515 = vrcp.pop %v511
  %v516 = vrcp.pop %v512
  %v517 = vmul.f32 %v488, %v513
  %v518 = vmul.f32 %v490, %v514
  %v519 = vmul.f32 %v493, %v515
  %v520 = vmul.f32 %v495, %v516
  %521 = vst [vmem:[%s3] sm:$0xff] %v517
  %522 = vst [vmem:[%s3 + $0x8] sm:$0xff] %v518
  %523 = vst [vmem:[%s3 + $0x10] sm:$0xff] %v519
  %524 = vst [vmem:[%s3 + $0x18] sm:$0xff] %v520
  // Predicated region
  $region14: #{netg_forward.14} parent=0 // pred_check
    _
  $region15: #{netg_forward.14} parent=0 // pred_check_branch
    %526 = sbr.rel (0) target = $region17
  $region16: #{netg_forward.14} parent=0 // pred_region
    _
  $region17: #{netg_forward.14} parent=0 // pred_fallthru
    _
  // Predicated region
  $region18: #{netg_forward.14} parent=0 // pred_check
    _
  $region19: #{netg_forward.14} parent=0 // pred_check_branch
    %528 = sbr.rel (0) target = $region21
  $region20: #{netg_forward.14} parent=0 // pred_region
    _
  $region21: #{netg_forward.14} parent=0 // pred_fallthru
    _

// kernel: netg_forward.15
$region0: #{netg_forward.15}
  #allocation0 [shape = 'u32[]', space=smem, size = 0x4, offset = 0x4, fixed_abs, tag = 'smem constant byte address 0x4 - core index']
  #allocation1 [shape = 'u32[72,128]{1,0:T(1,128)}', space=vmem, size = 0x9000, scoped, tag = 'internal scratch']
  %s0 = inlined_call_operand.vmem [shape: f32[2,512], index: 0, kind: input, shape index: {}]
  %s1 = inlined_call_operand.vmem [shape: f32[2,256], index: 1, kind: input, shape index: {}]
  %s2 = inlined_call_operand.vmem [shape: f32[512,128], index: 2, kind: input, shape index: {}]
  %s3 = inlined_call_operand.vmem [shape: f32[1,128], index: 3, kind: input, shape index: {}]
  %s4 = inlined_call_operand.vmem [shape: f32[128,128], index: 4, kind: input, shape index: {}]
  %s5 = inlined_call_operand.vmem [shape: f32[1,128], index: 5, kind: input, shape index: {}]
  %s6 = inlined_call_operand.vmem [shape: f32[128,128], index: 6, kind: input, shape index: {}]
  %s7 = inlined_call_operand.vmem [shape: f32[1,128], index: 7, kind: input, shape index: {}]
  %s8 = inlined_call_operand.vmem [shape: f32[128,512], index: 8, kind: input, shape index: {}]
  %s9 = inlined_call_operand.vmem [shape: f32[256,512], index: 9, kind: input, shape index: {}]
  %s10 = inlined_call_operand.vmem [shape: f32[1,512], index: 10, kind: input, shape index: {}]
  %s11 = inlined_call_operand.hbm [shape: f32[2,128], index: 11, kind: output, shape index: {0}]
  %s12 = inlined_call_operand.vmem [shape: f32[2,512], index: 12, kind: output, shape index: {1}]
  %13 = xla_tuple %s11, %s12
  %s14 = sld [smem:[#allocation0]]
  $region62: #{netg_forward.15} parent=0
    _
  %s16 = ssub.s32 1, %s14
  %s17 = scalar_select 0, %s16, %s14
  $region1: #{netg_forward.15} parent=0
    #allocation2 [shape = 'u8[1024]{0}', space=vmem, size = 0x400, scoped, tag = 'output window, operand 0, single buffered']
    #allocation3 [shape = 's32[1]{0}', space=sflag, size = 0x4, scoped, tag = 'scoped memory for netg_forward.15']
    %18 = vsyncpa [#allocation3], 0
    // Predicated region
    $region2: #{netg_forward.15} parent=1 // pred_check
      _
    $region3: #{netg_forward.15} parent=1 // pred_check_branch
      %20 = sbr.rel (0) target = $region5
    $region4: #{netg_forward.15} parent=1 // pred_region
      _
    $region5: #{netg_forward.15} parent=1 // pred_fallthru
      _
    // Predicated region
    $region6: #{netg_forward.15} parent=1 // pred_check
      _
    $region7: #{netg_forward.15} parent=1 // pred_check_branch
      %22 = sbr.rel (0) target = $region9
    $region8: #{netg_forward.15} parent=1 // pred_region
      _
    $region9: #{netg_forward.15} parent=1 // pred_fallthru
      _
    // Predicated region
    $region10: #{netg_forward.15} parent=1 // pred_check
      _
    $region11: #{netg_forward.15} parent=1 // pred_check_branch
      %24 = sbr.rel (0) target = $region13
    $region12: #{netg_forward.15} parent=1 // pred_region
      _
    $region13: #{netg_forward.15} parent=1 // pred_fallthru
      _
    // Predicated region
    $region14: #{netg_forward.15} parent=1 // pred_check
      _
    $region15: #{netg_forward.15} parent=1 // pred_check_branch
      %26 = sbr.rel (0) target = $region17
    $region16: #{netg_forward.15} parent=1 // pred_region
      _
    $region17: #{netg_forward.15} parent=1 // pred_fallthru
      _
    // Predicated region
    $region18: #{netg_forward.15} parent=1 // pred_check
      _
    $region19: #{netg_forward.15} parent=1 // pred_check_branch
      %28 = sbr.rel (0) target = $region21
    $region20: #{netg_forward.15} parent=1 // pred_region
      _
    $region21: #{netg_forward.15} parent=1 // pred_fallthru
      _
    // Predicated region
    $region22: #{netg_forward.15} parent=1 // pred_check
      _
    $region23: #{netg_forward.15} parent=1 // pred_check_branch
      %30 = sbr.rel (0) target = $region25
    $region24: #{netg_forward.15} parent=1 // pred_region
      _
    $region25: #{netg_forward.15} parent=1 // pred_fallthru
      _
    // Predicated region
    $region26: #{netg_forward.15} parent=1 // pred_check
      _
    $region27: #{netg_forward.15} parent=1 // pred_check_branch
      %32 = sbr.rel (0) target = $region29
    $region28: #{netg_forward.15} parent=1 // pred_region
      _
    $region29: #{netg_forward.15} parent=1 // pred_fallthru
      _
    // Predicated region
    $region30: #{netg_forward.15} parent=1 // pred_check
      _
    $region31: #{netg_forward.15} parent=1 // pred_check_branch
      %34 = sbr.rel (0) target = $region33
    $region32: #{netg_forward.15} parent=1 // pred_region
      _
    $region33: #{netg_forward.15} parent=1 // pred_fallthru
      _
    // Predicated region
    $region34: #{netg_forward.15} parent=1 // pred_check
      _
    $region35: #{netg_forward.15} parent=1 // pred_check_branch
      %36 = sbr.rel (0) target = $region37
    $region36: #{netg_forward.15} parent=1 // pred_region
      _
    $region37: #{netg_forward.15} parent=1 // pred_fallthru
      _
    // Predicated region
    $region38: #{netg_forward.15} parent=1 // pred_check
      _
    $region39: #{netg_forward.15} parent=1 // pred_check_branch
      %38 = sbr.rel (0) target = $region41
    $region40: #{netg_forward.15} parent=1 // pred_region
      _
    $region41: #{netg_forward.15} parent=1 // pred_fallthru
      _
    // Predicated region
    $region42: #{netg_forward.15} parent=1 // pred_check
      _
    $region43: #{netg_forward.15} parent=1 // pred_check_branch
      %40 = sbr.rel (0) target = $region45
    $region44: #{netg_forward.15} parent=1 // pred_region
      _
    $region45: #{netg_forward.15} parent=1 // pred_fallthru
      _
    %v41 = vld [vmem:[%s0] sm:$0xff]
    %v42 = vld [vmem:[%s2] sm:$0xff]
    %v43 = vld [vmem:[%s2 + $0x8] sm:$0xff]
    %v44 = vld [vmem:[%s2 + $0x10] sm:$0xff]
    %v45 = vld [vmem:[%s2 + $0x18] sm:$0xff]
    %v46 = vld [vmem:[%s2 + $0x20] sm:$0xff]
    %v47 = vld [vmem:[%s2 + $0x28] sm:$0xff]
    %v48 = vld [vmem:[%s2 + $0x30] sm:$0xff]
    %v49 = vld [vmem:[%s2 + $0x38] sm:$0xff]
    %v50 = vld [vmem:[%s2 + $0x40] sm:$0xff]
    %v51 = vld [vmem:[%s2 + $0x48] sm:$0xff]
    %v52 = vld [vmem:[%s2 + $0x50] sm:$0xff]
    %v53 = vld [vmem:[%s2 + $0x58] sm:$0xff]
    %v54 = vld [vmem:[%s2 + $0x60] sm:$0xff]
    %v55 = vld [vmem:[%s2 + $0x68] sm:$0xff]
    %v56 = vld [vmem:[%s2 + $0x70] sm:$0xff]
    %v57 = vld [vmem:[%s2 + $0x78] sm:$0xff]
    %v58 = vld [vmem:[%s2 + $0x80] sm:$0xff]
    %v59 = vld [vmem:[%s2 + $0x88] sm:$0xff]
    %v60 = vld [vmem:[%s2 + $0x90] sm:$0xff]
    %v61 = vld [vmem:[%s2 + $0x98] sm:$0xff]
    %v62 = vld [vmem:[%s2 + $0xa0] sm:$0xff]
    %v63 = vld [vmem:[%s2 + $0xa8] sm:$0xff]
    %v64 = vld [vmem:[%s2 + $0xb0] sm:$0xff]
    %v65 = vld [vmem:[%s2 + $0xb8] sm:$0xff]
    %v66 = vld [vmem:[%s2 + $0xc0] sm:$0xff]
    %v67 = vld [vmem:[%s2 + $0xc8] sm:$0xff]
    %v68 = vld [vmem:[%s2 + $0xd0] sm:$0xff]
    %v69 = vld [vmem:[%s2 + $0xd8] sm:$0xff]
    %v70 = vld [vmem:[%s2 + $0xe0] sm:$0xff]
    %v71 = vld [vmem:[%s2 + $0xe8] sm:$0xff]
    %v72 = vld [vmem:[%s2 + $0xf0] sm:$0xff]
    %v73 = vld [vmem:[%s2 + $0xf8] sm:$0xff]
    %v74 = vld [vmem:[%s2 + $0x100] sm:$0xff]
    %v75 = vld [vmem:[%s2 + $0x108] sm:$0xff]
    %v76 = vld [vmem:[%s2 + $0x110] sm:$0xff]
    %v77 = vld [vmem:[%s2 + $0x118] sm:$0xff]
    %v78 = vld [vmem:[%s2 + $0x120] sm:$0xff]
    %v79 = vld [vmem:[%s2 + $0x128] sm:$0xff]
    %v80 = vld [vmem:[%s2 + $0x130] sm:$0xff]
    %v81 = vld [vmem:[%s2 + $0x138] sm:$0xff]
    %v82 = vld [vmem:[%s2 + $0x140] sm:$0xff]
    %v83 = vld [vmem:[%s2 + $0x148] sm:$0xff]
    %v84 = vld [vmem:[%s2 + $0x150] sm:$0xff]
    %v85 = vld [vmem:[%s2 + $0x158] sm:$0xff]
    %v86 = vld [vmem:[%s2 + $0x160] sm:$0xff]
    %v87 = vld [vmem:[%s2 + $0x168] sm:$0xff]
    %v88 = vld [vmem:[%s2 + $0x170] sm:$0xff]
    %v89 = vld [vmem:[%s2 + $0x178] sm:$0xff]
    %v90 = vld [vmem:[%s2 + $0x180] sm:$0xff]
    %v91 = vld [vmem:[%s2 + $0x188] sm:$0xff]
    %v92 = vld [vmem:[%s2 + $0x190] sm:$0xff]
    %v93 = vld [vmem:[%s2 + $0x198] sm:$0xff]
    %v94 = vld [vmem:[%s2 + $0x1a0] sm:$0xff]
    %v95 = vld [vmem:[%s2 + $0x1a8] sm:$0xff]
    %v96 = vld [vmem:[%s2 + $0x1b0] sm:$0xff]
    %v97 = vld [vmem:[%s2 + $0x1b8] sm:$0xff]
    %v98 = vld [vmem:[%s2 + $0x1c0] sm:$0xff]
    %v99 = vld [vmem:[%s2 + $0x1c8] sm:$0xff]
    %v100 = vld [vmem:[%s2 + $0x1d0] sm:$0xff]
    %v101 = vld [vmem:[%s2 + $0x1d8] sm:$0xff]
    %v102 = vld [vmem:[%s2 + $0x1e0] sm:$0xff]
    %v103 = vld [vmem:[%s2 + $0x1e8] sm:$0xff]
    %v104 = vld [vmem:[%s2 + $0x1f0] sm:$0xff]
    %v105 = vld [vmem:[%s2 + $0x1f8] sm:$0xff]
    %v106 = vld [vmem:[%s3] sm:$0x1]
    %v108 = vperm.slane %v106, 0
    %111 = vst [vmem:[#allocation1] ss:$4 sm:$0xff] %v41
    %v112 = vld.sshfl [vmem:[#allocation1] sm:$0xff pattern:$0x73625140]
    %v113 = vld.sshfl [vmem:[#allocation1 + $0x8] sm:$0xff pattern:$0x73625140]
    %v114 = vld.sshfl [vmem:[#allocation1 + $0x10] sm:$0xff pattern:$0x73625140]
    %v115 = vld.sshfl [vmem:[#allocation1 + $0x18] sm:$0xff pattern:$0x73625140]
    %120 = vmatpush.msra.mxu0 %v57
    %121 = vmatpush.msra.mxu0 %v56
    %122 = vmatpush.msra.mxu0 %v55
    %123 = vmatpush.msra.mxu0 %v54
    %124 = vmatpush.msra.mxu0 %v53
    %125 = vmatpush.msra.mxu0 %v52
    %126 = vmatpush.msra.mxu0 %v51
    %127 = vmatpush.msra.mxu0 %v50
    %128 = vmatpush.msra.mxu0 %v49
    %129 = vmatpush.msra.mxu0 %v48
    %130 = vmatpush.msra.mxu0 %v47
    %131 = vmatpush.msra.mxu0 %v46
    %132 = vmatpush.msra.mxu0 %v45
    %133 = vmatpush.msra.mxu0 %v44
    %134 = vmatpush.msra.mxu0 %v43
    %135 = vmatpush.msra.mxu0 %v42
    %136 = vmatmul.f32.gmra.mxu0 %v112
    %v137 = vpop.f32.mrf.mxu0
    %v138 = vadd.f32 %v108, %v137
    %139 = vdwg.mxu0
    %140 = vmatpush.msra.mxu0 %v73
    %141 = vmatpush.msra.mxu0 %v72
    %142 = vmatpush.msra.mxu0 %v71
    %143 = vmatpush.msra.mxu0 %v70
    %144 = vmatpush.msra.mxu0 %v69
    %145 = vmatpush.msra.mxu0 %v68
    %146 = vmatpush.msra.mxu0 %v67
    %147 = vmatpush.msra.mxu0 %v66
    %148 = vmatpush.msra.mxu0 %v65
    %149 = vmatpush.msra.mxu0 %v64
    %150 = vmatpush.msra.mxu0 %v63
    %151 = vmatpush.msra.mxu0 %v62
    %152 = vmatpush.msra.mxu0 %v61
    %153 = vmatpush.msra.mxu0 %v60
    %154 = vmatpush.msra.mxu0 %v59
    %155 = vmatpush.msra.mxu0 %v58
    %156 = vmatmul.f32.gmra.mxu0 %v113
    %v157 = vpop.f32.mrf.mxu0
    %v158 = vadd.f32 %v138, %v157
    %159 = vdwg.mxu0
    %160 = vmatpush.msra.mxu0 %v89
    %161 = vmatpush.msra.mxu0 %v88
    %162 = vmatpush.msra.mxu0 %v87
    %163 = vmatpush.msra.mxu0 %v86
    %164 = vmatpush.msra.mxu0 %v85
    %165 = vmatpush.msra.mxu0 %v84
    %166 = vmatpush.msra.mxu0 %v83
    %167 = vmatpush.msra.mxu0 %v82
    %168 = vmatpush.msra.mxu0 %v81
    %169 = vmatpush.msra.mxu0 %v80
    %170 = vmatpush.msra.mxu0 %v79
    %171 = vmatpush.msra.mxu0 %v78
    %172 = vmatpush.msra.mxu0 %v77
    %173 = vmatpush.msra.mxu0 %v76
    %174 = vmatpush.msra.mxu0 %v75
    %175 = vmatpush.msra.mxu0 %v74
    %176 = vmatmul.f32.gmra.mxu0 %v114
    %v177 = vpop.f32.mrf.mxu0
    %v178 = vadd.f32 %v158, %v177
    %179 = vdwg.mxu0
    %180 = vmatpush.msra.mxu0 %v105
    %181 = vmatpush.msra.mxu0 %v104
    %182 = vmatpush.msra.mxu0 %v103
    %183 = vmatpush.msra.mxu0 %v102
    %184 = vmatpush.msra.mxu0 %v101
    %185 = vmatpush.msra.mxu0 %v100
    %186 = vmatpush.msra.mxu0 %v99
    %187 = vmatpush.msra.mxu0 %v98
    %188 = vmatpush.msra.mxu0 %v97
    %189 = vmatpush.msra.mxu0 %v96
    %190 = vmatpush.msra.mxu0 %v95
    %191 = vmatpush.msra.mxu0 %v94
    %192 = vmatpush.msra.mxu0 %v93
    %193 = vmatpush.msra.mxu0 %v92
    %194 = vmatpush.msra.mxu0 %v91
    %195 = vmatpush.msra.mxu0 %v90
    %196 = vmatmul.f32.gmra.mxu0 %v115
    %v197 = vpop.f32.mrf.mxu0
    %v198 = vadd.f32 %v178, %v197
    %199 = vdwg.mxu0
    %v200 = vld [vmem:[%s4] sm:$0xff]
    %v201 = vld [vmem:[%s4 + $0x8] sm:$0xff]
    %v202 = vld [vmem:[%s4 + $0x10] sm:$0xff]
    %v203 = vld [vmem:[%s4 + $0x18] sm:$0xff]
    %v204 = vld [vmem:[%s4 + $0x20] sm:$0xff]
    %v205 = vld [vmem:[%s4 + $0x28] sm:$0xff]
    %v206 = vld [vmem:[%s4 + $0x30] sm:$0xff]
    %v207 = vld [vmem:[%s4 + $0x38] sm:$0xff]
    %v208 = vld [vmem:[%s4 + $0x40] sm:$0xff]
    %v209 = vld [vmem:[%s4 + $0x48] sm:$0xff]
    %v210 = vld [vmem:[%s4 + $0x50] sm:$0xff]
    %v211 = vld [vmem:[%s4 + $0x58] sm:$0xff]
    %v212 = vld [vmem:[%s4 + $0x60] sm:$0xff]
    %v213 = vld [vmem:[%s4 + $0x68] sm:$0xff]
    %v214 = vld [vmem:[%s4 + $0x70] sm:$0xff]
    %v215 = vld [vmem:[%s4 + $0x78] sm:$0xff]
    %v216 = vld [vmem:[%s5] sm:$0x1]
    %v218 = vperm.slane %v216, 0
    %220 = vmatpush.msra.mxu0 %v215
    %221 = vmatpush.msra.mxu0 %v214
    %222 = vmatpush.msra.mxu0 %v213
    %223 = vmatpush.msra.mxu0 %v212
    %224 = vmatpush.msra.mxu0 %v211
    %225 = vmatpush.msra.mxu0 %v210
    %226 = vmatpush.msra.mxu0 %v209
    %227 = vmatpush.msra.mxu0 %v208
    %228 = vmatpush.msra.mxu0 %v207
    %229 = vmatpush.msra.mxu0 %v206
    %230 = vmatpush.msra.mxu0 %v205
    %231 = vmatpush.msra.mxu0 %v204
    %232 = vmatpush.msra.mxu0 %v203
    %233 = vmatpush.msra.mxu0 %v202
    %234 = vmatpush.msra.mxu0 %v201
    %235 = vmatpush.msra.mxu0 %v200
    %236 = vmatmul.f32.gmra.mxu0 %v198
    %v237 = vpop.f32.mrf.mxu0
    %v238 = vadd.f32 %v218, %v237
    %239 = vdwg.mxu0
    %v240 = vld [vmem:[%s6] sm:$0xff]
    %v241 = vld [vmem:[%s6 + $0x8] sm:$0xff]
    %v242 = vld [vmem:[%s6 + $0x10] sm:$0xff]
    %v243 = vld [vmem:[%s6 + $0x18] sm:$0xff]
    %v244 = vld [vmem:[%s6 + $0x20] sm:$0xff]
    %v245 = vld [vmem:[%s6 + $0x28] sm:$0xff]
    %v246 = vld [vmem:[%s6 + $0x30] sm:$0xff]
    %v247 = vld [vmem:[%s6 + $0x38] sm:$0xff]
    %v248 = vld [vmem:[%s6 + $0x40] sm:$0xff]
    %v249 = vld [vmem:[%s6 + $0x48] sm:$0xff]
    %v250 = vld [vmem:[%s6 + $0x50] sm:$0xff]
    %v251 = vld [vmem:[%s6 + $0x58] sm:$0xff]
    %v252 = vld [vmem:[%s6 + $0x60] sm:$0xff]
    %v253 = vld [vmem:[%s6 + $0x68] sm:$0xff]
    %v254 = vld [vmem:[%s6 + $0x70] sm:$0xff]
    %v255 = vld [vmem:[%s6 + $0x78] sm:$0xff]
    %v256 = vld [vmem:[%s7] sm:$0x1]
    %v258 = vperm.slane %v256, 0
    %260 = vmatpush.msra.mxu0 %v255
    %261 = vmatpush.msra.mxu0 %v254
    %262 = vmatpush.msra.mxu0 %v253
    %263 = vmatpush.msra.mxu0 %v252
    %264 = vmatpush.msra.mxu0 %v251
    %265 = vmatpush.msra.mxu0 %v250
    %266 = vmatpush.msra.mxu0 %v249
    %267 = vmatpush.msra.mxu0 %v248
    %268 = vmatpush.msra.mxu0 %v247
    %269 = vmatpush.msra.mxu0 %v246
    %270 = vmatpush.msra.mxu0 %v245
    %271 = vmatpush.msra.mxu0 %v244
    %272 = vmatpush.msra.mxu0 %v243
    %273 = vmatpush.msra.mxu0 %v242
    %274 = vmatpush.msra.mxu0 %v241
    %275 = vmatpush.msra.mxu0 %v240
    %276 = vmatmul.f32.gmra.mxu0 %v238
    %v277 = vpop.f32.mrf.mxu0
    %v278 = vadd.f32 %v258, %v277
    %279 = vdwg.mxu0
    %v280 = vadd.f32 %v198, %v278
    %v281 = vsub.f32 0.0, %v280
    %v282 = vmul.f32 %v281, 1.442695
    %v283 = vpow.pop %v282
    %v284 = vadd.f32 %v283, 1.0
    %v285 = vrcp.pop %v284
    %v286 = vmul.f32 %v280, %v285
    %287 = vst [vmem:[#allocation2] sm:$0x3] %v286
    %v288 = vld [vmem:[%s8] sm:$0xff]
    %v289 = vld [vmem:[%s8 + $0x8] sm:$0xff]
    %v290 = vld [vmem:[%s8 + $0x10] sm:$0xff]
    %v291 = vld [vmem:[%s8 + $0x18] sm:$0xff]
    %v292 = vld [vmem:[%s8 + $0x20] sm:$0xff]
    %v293 = vld [vmem:[%s8 + $0x28] sm:$0xff]
    %v294 = vld [vmem:[%s8 + $0x30] sm:$0xff]
    %v295 = vld [vmem:[%s8 + $0x38] sm:$0xff]
    %v296 = vld [vmem:[%s8 + $0x40] sm:$0xff]
    %v297 = vld [vmem:[%s8 + $0x48] sm:$0xff]
    %v298 = vld [vmem:[%s8 + $0x50] sm:$0xff]
    %v299 = vld [vmem:[%s8 + $0x58] sm:$0xff]
    %v300 = vld [vmem:[%s8 + $0x60] sm:$0xff]
    %v301 = vld [vmem:[%s8 + $0x68] sm:$0xff]
    %v302 = vld [vmem:[%s8 + $0x70] sm:$0xff]
    %v303 = vld [vmem:[%s8 + $0x78] sm:$0xff]
    %v304 = vld [vmem:[%s8 + $0x80] sm:$0xff]
    %v305 = vld [vmem:[%s8 + $0x88] sm:$0xff]
    %v306 = vld [vmem:[%s8 + $0x90] sm:$0xff]
    %v307 = vld [vmem:[%s8 + $0x98] sm:$0xff]
    %v308 = vld [vmem:[%s8 + $0xa0] sm:$0xff]
    %v309 = vld [vmem:[%s8 + $0xa8] sm:$0xff]
    %v310 = vld [vmem:[%s8 + $0xb0] sm:$0xff]
    %v311 = vld [vmem:[%s8 + $0xb8] sm:$0xff]
    %v312 = vld [vmem:[%s8 + $0xc0] sm:$0xff]
    %v313 = vld [vmem:[%s8 + $0xc8] sm:$0xff]
    %v314 = vld [vmem:[%s8 + $0xd0] sm:$0xff]
    %v315 = vld [vmem:[%s8 + $0xd8] sm:$0xff]
    %v316 = vld [vmem:[%s8 + $0xe0] sm:$0xff]
    %v317 = vld [vmem:[%s8 + $0xe8] sm:$0xff]
    %v318 = vld [vmem:[%s8 + $0xf0] sm:$0xff]
    %v319 = vld [vmem:[%s8 + $0xf8] sm:$0xff]
    %v320 = vld [vmem:[%s8 + $0x100] sm:$0xff]
    %v321 = vld [vmem:[%s8 + $0x108] sm:$0xff]
    %v322 = vld [vmem:[%s8 + $0x110] sm:$0xff]
    %v323 = vld [vmem:[%s8 + $0x118] sm:$0xff]
    %v324 = vld [vmem:[%s8 + $0x120] sm:$0xff]
    %v325 = vld [vmem:[%s8 + $0x128] sm:$0xff]
    %v326 = vld [vmem:[%s8 + $0x130] sm:$0xff]
    %v327 = vld [vmem:[%s8 + $0x138] sm:$0xff]
    %v328 = vld [vmem:[%s8 + $0x140] sm:$0xff]
    %v329 = vld [vmem:[%s8 + $0x148] sm:$0xff]
    %v330 = vld [vmem:[%s8 + $0x150] sm:$0xff]
    %v331 = vld [vmem:[%s8 + $0x158] sm:$0xff]
    %v332 = vld [vmem:[%s8 + $0x160] sm:$0xff]
    %v333 = vld [vmem:[%s8 + $0x168] sm:$0xff]
    %v334 = vld [vmem:[%s8 + $0x170] sm:$0xff]
    %v335 = vld [vmem:[%s8 + $0x178] sm:$0xff]
    %v336 = vld [vmem:[%s8 + $0x180] sm:$0xff]
    %v337 = vld [vmem:[%s8 + $0x188] sm:$0xff]
    %v338 = vld [vmem:[%s8 + $0x190] sm:$0xff]
    %v339 = vld [vmem:[%s8 + $0x198] sm:$0xff]
    %v340 = vld [vmem:[%s8 + $0x1a0] sm:$0xff]
    %v341 = vld [vmem:[%s8 + $0x1a8] sm:$0xff]
    %v342 = vld [vmem:[%s8 + $0x1b0] sm:$0xff]
    %v343 = vld [vmem:[%s8 + $0x1b8] sm:$0xff]
    %v344 = vld [vmem:[%s8 + $0x1c0] sm:$0xff]
    %v345 = vld [vmem:[%s8 + $0x1c8] sm:$0xff]
    %v346 = vld [vmem:[%s8 + $0x1d0] sm:$0xff]
    %v347 = vld [vmem:[%s8 + $0x1d8] sm:$0xff]
    %v348 = vld [vmem:[%s8 + $0x1e0] sm:$0xff]
    %v349 = vld [vmem:[%s8 + $0x1e8] sm:$0xff]
    %v350 = vld [vmem:[%s8 + $0x1f0] sm:$0xff]
    %v351 = vld [vmem:[%s8 + $0x1f8] sm:$0xff]
    %v352 = vld [vmem:[%s1] sm:$0xf]
    %v353 = vld [vmem:[%s9] sm:$0xff]
    %v354 = vld [vmem:[%s9 + $0x8] sm:$0xff]
    %v355 = vld [vmem:[%s9 + $0x10] sm:$0xff]
    %v356 = vld [vmem:[%s9 + $0x18] sm:$0xff]
    %v357 = vld [vmem:[%s9 + $0x20] sm:$0xff]
    %v358 = vld [vmem:[%s9 + $0x28] sm:$0xff]
    %v359 = vld [vmem:[%s9 + $0x30] sm:$0xff]
    %v360 = vld [vmem:[%s9 + $0x38] sm:$0xff]
    %v361 = vld [vmem:[%s9 + $0x40] sm:$0xff]
    %v362 = vld [vmem:[%s9 + $0x48] sm:$0xff]
    %v363 = vld [vmem:[%s9 + $0x50] sm:$0xff]
    %v364 = vld [vmem:[%s9 + $0x58] sm:$0xff]
    %v365 = vld [vmem:[%s9 + $0x60] sm:$0xff]
    %v366 = vld [vmem:[%s9 + $0x68] sm:$0xff]
    %v367 = vld [vmem:[%s9 + $0x70] sm:$0xff]
    %v368 = vld [vmem:[%s9 + $0x78] sm:$0xff]
    %v369 = vld [vmem:[%s9 + $0x80] sm:$0xff]
    %v370 = vld [vmem:[%s9 + $0x88] sm:$0xff]
    %v371 = vld [vmem:[%s9 + $0x90] sm:$0xff]
    %v372 = vld [vmem:[%s9 + $0x98] sm:$0xff]
    %v373 = vld [vmem:[%s9 + $0xa0] sm:$0xff]
    %v374 = vld [vmem:[%s9 + $0xa8] sm:$0xff]
    %v375 = vld [vmem:[%s9 + $0xb0] sm:$0xff]
    %v376 = vld [vmem:[%s9 + $0xb8] sm:$0xff]
    %v377 = vld [vmem:[%s9 + $0xc0] sm:$0xff]
    %v378 = vld [vmem:[%s9 + $0xc8] sm:$0xff]
    %v379 = vld [vmem:[%s9 + $0xd0] sm:$0xff]
    %v380 = vld [vmem:[%s9 + $0xd8] sm:$0xff]
    %v381 = vld [vmem:[%s9 + $0xe0] sm:$0xff]
    %v382 = vld [vmem:[%s9 + $0xe8] sm:$0xff]
    %v383 = vld [vmem:[%s9 + $0xf0] sm:$0xff]
    %v384 = vld [vmem:[%s9 + $0xf8] sm:$0xff]
    %v385 = vld [vmem:[%s9 + $0x100] sm:$0xff]
    %v386 = vld [vmem:[%s9 + $0x108] sm:$0xff]
    %v387 = vld [vmem:[%s9 + $0x110] sm:$0xff]
    %v388 = vld [vmem:[%s9 + $0x118] sm:$0xff]
    %v389 = vld [vmem:[%s9 + $0x120] sm:$0xff]
    %v390 = vld [vmem:[%s9 + $0x128] sm:$0xff]
    %v391 = vld [vmem:[%s9 + $0x130] sm:$0xff]
    %v392 = vld [vmem:[%s9 + $0x138] sm:$0xff]
    %v393 = vld [vmem:[%s9 + $0x140] sm:$0xff]
    %v394 = vld [vmem:[%s9 + $0x148] sm:$0xff]
    %v395 = vld [vmem:[%s9 + $0x150] sm:$0xff]
    %v396 = vld [vmem:[%s9 + $0x158] sm:$0xff]
    %v397 = vld [vmem:[%s9 + $0x160] sm:$0xff]
    %v398 = vld [vmem:[%s9 + $0x168] sm:$0xff]
    %v399 = vld [vmem:[%s9 + $0x170] sm:$0xff]
    %v400 = vld [vmem:[%s9 + $0x178] sm:$0xff]
    %v401 = vld [vmem:[%s9 + $0x180] sm:$0xff]
    %v402 = vld [vmem:[%s9 + $0x188] sm:$0xff]
    %v403 = vld [vmem:[%s9 + $0x190] sm:$0xff]
    %v404 = vld [vmem:[%s9 + $0x198] sm:$0xff]
    %v405 = vld [vmem:[%s9 + $0x1a0] sm:$0xff]
    %v406 = vld [vmem:[%s9 + $0x1a8] sm:$0xff]
    %v407 = vld [vmem:[%s9 + $0x1b0] sm:$0xff]
    %v408 = vld [vmem:[%s9 + $0x1b8] sm:$0xff]
    %v409 = vld [vmem:[%s9 + $0x1c0] sm:$0xff]
    %v410 = vld [vmem:[%s9 + $0x1c8] sm:$0xff]
    %v411 = vld [vmem:[%s9 + $0x1d0] sm:$0xff]
    %v412 = vld [vmem:[%s9 + $0x1d8] sm:$0xff]
    %v413 = vld [vmem:[%s9 + $0x1e0] sm:$0xff]
    %v414 = vld [vmem:[%s9 + $0x1e8] sm:$0xff]
    %v415 = vld [vmem:[%s9 + $0x1f0] sm:$0xff]
    %v416 = vld [vmem:[%s9 + $0x1f8] sm:$0xff]
    %v417 = vld [vmem:[%s9 + $0x200] sm:$0xff]
    %v418 = vld [vmem:[%s9 + $0x208] sm:$0xff]
    %v419 = vld [vmem:[%s9 + $0x210] sm:$0xff]
    %v420 = vld [vmem:[%s9 + $0x218] sm:$0xff]
    %v421 = vld [vmem:[%s9 + $0x220] sm:$0xff]
    %v422 = vld [vmem:[%s9 + $0x228] sm:$0xff]
    %v423 = vld [vmem:[%s9 + $0x230] sm:$0xff]
    %v424 = vld [vmem:[%s9 + $0x238] sm:$0xff]
    %v425 = vld [vmem:[%s9 + $0x240] sm:$0xff]
    %v426 = vld [vmem:[%s9 + $0x248] sm:$0xff]
    %v427 = vld [vmem:[%s9 + $0x250] sm:$0xff]
    %v428 = vld [vmem:[%s9 + $0x258] sm:$0xff]
    %v429 = vld [vmem:[%s9 + $0x260] sm:$0xff]
    %v430 = vld [vmem:[%s9 + $0x268] sm:$0xff]
    %v431 = vld [vmem:[%s9 + $0x270] sm:$0xff]
    %v432 = vld [vmem:[%s9 + $0x278] sm:$0xff]
    %v433 = vld [vmem:[%s9 + $0x280] sm:$0xff]
    %v434 = vld [vmem:[%s9 + $0x288] sm:$0xff]
    %v435 = vld [vmem:[%s9 + $0x290] sm:$0xff]
    %v436 = vld [vmem:[%s9 + $0x298] sm:$0xff]
    %v437 = vld [vmem:[%s9 + $0x2a0] sm:$0xff]
    %v438 = vld [vmem:[%s9 + $0x2a8] sm:$0xff]
    %v439 = vld [vmem:[%s9 + $0x2b0] sm:$0xff]
    %v440 = vld [vmem:[%s9 + $0x2b8] sm:$0xff]
    %v441 = vld [vmem:[%s9 + $0x2c0] sm:$0xff]
    %v442 = vld [vmem:[%s9 + $0x2c8] sm:$0xff]
    %v443 = vld [vmem:[%s9 + $0x2d0] sm:$0xff]
    %v444 = vld [vmem:[%s9 + $0x2d8] sm:$0xff]
    %v445 = vld [vmem:[%s9 + $0x2e0] sm:$0xff]
    %v446 = vld [vmem:[%s9 + $0x2e8] sm:$0xff]
    %v447 = vld [vmem:[%s9 + $0x2f0] sm:$0xff]
    %v448 = vld [vmem:[%s9 + $0x2f8] sm:$0xff]
    %v449 = vld [vmem:[%s9 + $0x300] sm:$0xff]
    %v450 = vld [vmem:[%s9 + $0x308] sm:$0xff]
    %v451 = vld [vmem:[%s9 + $0x310] sm:$0xff]
    %v452 = vld [vmem:[%s9 + $0x318] sm:$0xff]
    %v453 = vld [vmem:[%s9 + $0x320] sm:$0xff]
    %v454 = vld [vmem:[%s9 + $0x328] sm:$0xff]
    %v455 = vld [vmem:[%s9 + $0x330] sm:$0xff]
    %v456 = vld [vmem:[%s9 + $0x338] sm:$0xff]
    %v457 = vld [vmem:[%s9 + $0x340] sm:$0xff]
    %v458 = vld [vmem:[%s9 + $0x348] sm:$0xff]
    %v459 = vld [vmem:[%s9 + $0x350] sm:$0xff]
    %v460 = vld [vmem:[%s9 + $0x358] sm:$0xff]
    %v461 = vld [vmem:[%s9 + $0x360] sm:$0xff]
    %v462 = vld [vmem:[%s9 + $0x368] sm:$0xff]
    %v463 = vld [vmem:[%s9 + $0x370] sm:$0xff]
    %v464 = vld [vmem:[%s9 + $0x378] sm:$0xff]
    %v465 = vld [vmem:[%s9 + $0x380] sm:$0xff]
    %v466 = vld [vmem:[%s9 + $0x388] sm:$0xff]
    %v467 = vld [vmem:[%s9 + $0x390] sm:$0xff]
    %v468 = vld [vmem:[%s9 + $0x398] sm:$0xff]
    %v469 = vld [vmem:[%s9 + $0x3a0] sm:$0xff]
    %v470 = vld [vmem:[%s9 + $0x3a8] sm:$0xff]
    %v471 = vld [vmem:[%s9 + $0x3b0] sm:$0xff]
    %v472 = vld [vmem:[%s9 + $0x3b8] sm:$0xff]
    %v473 = vld [vmem:[%s9 + $0x3c0] sm:$0xff]
    %v474 = vld [vmem:[%s9 + $0x3c8] sm:$0xff]
    %v475 = vld [vmem:[%s9 + $0x3d0] sm:$0xff]
    %v476 = vld [vmem:[%s9 + $0x3d8] sm:$0xff]
    %v477 = vld [vmem:[%s9 + $0x3e0] sm:$0xff]
    %v478 = vld [vmem:[%s9 + $0x3e8] sm:$0xff]
    %v479 = vld [vmem:[%s9 + $0x3f0] sm:$0xff]
    %v480 = vld [vmem:[%s9 + $0x3f8] sm:$0xff]
    %482 = vst [vmem:[#allocation1] ss:$4 sm:$0xff] %v352
    %v483 = vld.sshfl [vmem:[#allocation1] sm:$0xff pattern:$0x73625140]
    %v484 = vld.sshfl [vmem:[#allocation1 + $0x8] sm:$0xff pattern:$0x73625140]
    %487 = vmatpush.msra.mxu0 %v413
    %488 = vmatpush.msra.mxu0 %v409
    %489 = vmatpush.msra.mxu0 %v405
    %490 = vmatpush.msra.mxu0 %v401
    %491 = vmatpush.msra.mxu0 %v397
    %492 = vmatpush.msra.mxu0 %v393
    %493 = vmatpush.msra.mxu0 %v389
    %494 = vmatpush.msra.mxu0 %v385
    %495 = vmatpush.msra.mxu0 %v381
    %496 = vmatpush.msra.mxu0 %v377
    %497 = vmatpush.msra.mxu0 %v373
    %498 = vmatpush.msra.mxu0 %v369
    %499 = vmatpush.msra.mxu0 %v365
    %500 = vmatpush.msra.mxu0 %v361
    %501 = vmatpush.msra.mxu0 %v357
    %502 = vmatpush.msra.mxu0 %v353
    %503 = vmatmul.f32.gmra.mxu0 %v483
    %v504 = vpop.f32.mrf.mxu0
    %v505 = vadd.f32 0.0, %v504
    %506 = vdwg.mxu0
    %507 = vmatpush.msra.mxu0 %v477
    %508 = vmatpush.msra.mxu0 %v473
    %509 = vmatpush.msra.mxu0 %v469
    %510 = vmatpush.msra.mxu0 %v465
    %511 = vmatpush.msra.mxu0 %v461
    %512 = vmatpush.msra.mxu0 %v457
    %513 = vmatpush.msra.mxu0 %v453
    %514 = vmatpush.msra.mxu0 %v449
    %515 = vmatpush.msra.mxu0 %v445
    %516 = vmatpush.msra.mxu0 %v441
    %517 = vmatpush.msra.mxu0 %v437
    %518 = vmatpush.msra.mxu0 %v433
    %519 = vmatpush.msra.mxu0 %v429
    %520 = vmatpush.msra.mxu0 %v425
    %521 = vmatpush.msra.mxu0 %v421
    %522 = vmatpush.msra.mxu0 %v417
    %523 = vmatmul.f32.gmra.mxu0 %v484
    %v524 = vpop.f32.mrf.mxu0
    %v525 = vadd.f32 %v505, %v524
    %526 = vdwg.mxu0
    %527 = vmatpush.msra.mxu0 %v414
    %528 = vmatpush.msra.mxu0 %v410
    %529 = vmatpush.msra.mxu0 %v406
    %530 = vmatpush.msra.mxu0 %v402
    %531 = vmatpush.msra.mxu0 %v398
    %532 = vmatpush.msra.mxu0 %v394
    %533 = vmatpush.msra.mxu0 %v390
    %534 = vmatpush.msra.mxu0 %v386
    %535 = vmatpush.msra.mxu0 %v382
    %536 = vmatpush.msra.mxu0 %v378
    %537 = vmatpush.msra.mxu0 %v374
    %538 = vmatpush.msra.mxu0 %v370
    %539 = vmatpush.msra.mxu0 %v366
    %540 = vmatpush.msra.mxu0 %v362
    %541 = vmatpush.msra.mxu0 %v358
    %542 = vmatpush.msra.mxu0 %v354
    %543 = vmatmul.f32.gmra.mxu0 %v483
    %v544 = vpop.f32.mrf.mxu0
    %v545 = vadd.f32 0.0, %v544
    %546 = vdwg.mxu0
    %547 = vmatpush.msra.mxu0 %v478
    %548 = vmatpush.msra.mxu0 %v474
    %549 = vmatpush.msra.mxu0 %v470
    %550 = vmatpush.msra.mxu0 %v466
    %551 = vmatpush.msra.mxu0 %v462
    %552 = vmatpush.msra.mxu0 %v458
    %553 = vmatpush.msra.mxu0 %v454
    %554 = vmatpush.msra.mxu0 %v450
    %555 = vmatpush.msra.mxu0 %v446
    %556 = vmatpush.msra.mxu0 %v442
    %557 = vmatpush.msra.mxu0 %v438
    %558 = vmatpush.msra.mxu0 %v434
    %559 = vmatpush.msra.mxu0 %v430
    %560 = vmatpush.msra.mxu0 %v426
    %561 = vmatpush.msra.mxu0 %v422
    %562 = vmatpush.msra.mxu0 %v418
    %563 = vmatmul.f32.gmra.mxu0 %v484
    %v564 = vpop.f32.mrf.mxu0
    %v565 = vadd.f32 %v545, %v564
    %566 = vdwg.mxu0
    %567 = vmatpush.msra.mxu0 %v415
    %568 = vmatpush.msra.mxu0 %v411
    %569 = vmatpush.msra.mxu0 %v407
    %570 = vmatpush.msra.mxu0 %v403
    %571 = vmatpush.msra.mxu0 %v399
    %572 = vmatpush.msra.mxu0 %v395
    %573 = vmatpush.msra.mxu0 %v391
    %574 = vmatpush.msra.mxu0 %v387
    %575 = vmatpush.msra.mxu0 %v383
    %576 = vmatpush.msra.mxu0 %v379
    %577 = vmatpush.msra.mxu0 %v375
    %578 = vmatpush.msra.mxu0 %v371
    %579 = vmatpush.msra.mxu0 %v367
    %580 = vmatpush.msra.mxu0 %v363
    %581 = vmatpush.msra.mxu0 %v359
    %582 = vmatpush.msra.mxu0 %v355
    %583 = vmatmul.f32.gmra.mxu0 %v483
    %v584 = vpop.f32.mrf.mxu0
    %v585 = vadd.f32 0.0, %v584
    %586 = vdwg.mxu0
    %587 = vmatpush.msra.mxu0 %v479
    %588 = vmatpush.msra.mxu0 %v475
    %589 = vmatpush.msra.mxu0 %v471
    %590 = vmatpush.msra.mxu0 %v467
    %591 = vmatpush.msra.mxu0 %v463
    %592 = vmatpush.msra.mxu0 %v459
    %593 = vmatpush.msra.mxu0 %v455
    %594 = vmatpush.msra.mxu0 %v451
    %595 = vmatpush.msra.mxu0 %v447
    %596 = vmatpush.msra.mxu0 %v443
    %597 = vmatpush.msra.mxu0 %v439
    %598 = vmatpush.msra.mxu0 %v435
    %599 = vmatpush.msra.mxu0 %v431
    %600 = vmatpush.msra.mxu0 %v427
    %601 = vmatpush.msra.mxu0 %v423
    %602 = vmatpush.msra.mxu0 %v419
    %603 = vmatmul.f32.gmra.mxu0 %v484
    %v604 = vpop.f32.mrf.mxu0
    %v605 = vadd.f32 %v585, %v604
    %606 = vdwg.mxu0
    %607 = vmatpush.msra.mxu0 %v416
    %608 = vmatpush.msra.mxu0 %v412
    %609 = vmatpush.msra.mxu0 %v408
    %610 = vmatpush.msra.mxu0 %v404
    %611 = vmatpush.msra.mxu0 %v400
    %612 = vmatpush.msra.mxu0 %v396
    %613 = vmatpush.msra.mxu0 %v392
    %614 = vmatpush.msra.mxu0 %v388
    %615 = vmatpush.msra.mxu0 %v384
    %616 = vmatpush.msra.mxu0 %v380
    %617 = vmatpush.msra.mxu0 %v376
    %618 = vmatpush.msra.mxu0 %v372
    %619 = vmatpush.msra.mxu0 %v368
    %620 = vmatpush.msra.mxu0 %v364
    %621 = vmatpush.msra.mxu0 %v360
    %622 = vmatpush.msra.mxu0 %v356
    %623 = vmatmul.f32.gmra.mxu0 %v483
    %v624 = vpop.f32.mrf.mxu0
    %v625 = vadd.f32 0.0, %v624
    %626 = vdwg.mxu0
    %627 = vmatpush.msra.mxu0 %v480
    %628 = vmatpush.msra.mxu0 %v476
    %629 = vmatpush.msra.mxu0 %v472
    %630 = vmatpush.msra.mxu0 %v468
    %631 = vmatpush.msra.mxu0 %v464
    %632 = vmatpush.msra.mxu0 %v460
    %633 = vmatpush.msra.mxu0 %v456
    %634 = vmatpush.msra.mxu0 %v452
    %635 = vmatpush.msra.mxu0 %v448
    %636 = vmatpush.msra.mxu0 %v444
    %637 = vmatpush.msra.mxu0 %v440
    %638 = vmatpush.msra.mxu0 %v436
    %639 = vmatpush.msra.mxu0 %v432
    %640 = vmatpush.msra.mxu0 %v428
    %641 = vmatpush.msra.mxu0 %v424
    %642 = vmatpush.msra.mxu0 %v420
    %643 = vmatmul.f32.gmra.mxu0 %v484
    %v644 = vpop.f32.mrf.mxu0
    %v645 = vadd.f32 %v625, %v644
    %646 = vdwg.mxu0
    %647 = vmatpush.msra.mxu0 %v348
    %648 = vmatpush.msra.mxu0 %v344
    %649 = vmatpush.msra.mxu0 %v340
    %650 = vmatpush.msra.mxu0 %v336
    %651 = vmatpush.msra.mxu0 %v332
    %652 = vmatpush.msra.mxu0 %v328
    %653 = vmatpush.msra.mxu0 %v324
    %654 = vmatpush.msra.mxu0 %v320
    %655 = vmatpush.msra.mxu0 %v316
    %656 = vmatpush.msra.mxu0 %v312
    %657 = vmatpush.msra.mxu0 %v308
    %658 = vmatpush.msra.mxu0 %v304
    %659 = vmatpush.msra.mxu0 %v300
    %660 = vmatpush.msra.mxu0 %v296
    %661 = vmatpush.msra.mxu0 %v292
    %662 = vmatpush.msra.mxu0 %v288
    %663 = vmatmul.f32.gmra.mxu0 %v286
    %v664 = vpop.f32.mrf.mxu0
    %v665 = vadd.f32 %v525, %v664
    %666 = vdwg.mxu0
    %667 = vmatpush.msra.mxu0 %v349
    %668 = vmatpush.msra.mxu0 %v345
    %669 = vmatpush.msra.mxu0 %v341
    %670 = vmatpush.msra.mxu0 %v337
    %671 = vmatpush.msra.mxu0 %v333
    %672 = vmatpush.msra.mxu0 %v329
    %673 = vmatpush.msra.mxu0 %v325
    %674 = vmatpush.msra.mxu0 %v321
    %675 = vmatpush.msra.mxu0 %v317
    %676 = vmatpush.msra.mxu0 %v313
    %677 = vmatpush.msra.mxu0 %v309
    %678 = vmatpush.msra.mxu0 %v305
    %679 = vmatpush.msra.mxu0 %v301
    %680 = vmatpush.msra.mxu0 %v297
    %681 = vmatpush.msra.mxu0 %v293
    %682 = vmatpush.msra.mxu0 %v289
    %683 = vmatmul.f32.gmra.mxu0 %v286
    %v684 = vpop.f32.mrf.mxu0
    %v685 = vadd.f32 %v565, %v684
    %686 = vdwg.mxu0
    %687 = vmatpush.msra.mxu0 %v350
    %688 = vmatpush.msra.mxu0 %v346
    %689 = vmatpush.msra.mxu0 %v342
    %690 = vmatpush.msra.mxu0 %v338
    %691 = vmatpush.msra.mxu0 %v334
    %692 = vmatpush.msra.mxu0 %v330
    %693 = vmatpush.msra.mxu0 %v326
    %694 = vmatpush.msra.mxu0 %v322
    %695 = vmatpush.msra.mxu0 %v318
    %696 = vmatpush.msra.mxu0 %v314
    %697 = vmatpush.msra.mxu0 %v310
    %698 = vmatpush.msra.mxu0 %v306
    %699 = vmatpush.msra.mxu0 %v302
    %700 = vmatpush.msra.mxu0 %v298
    %701 = vmatpush.msra.mxu0 %v294
    %702 = vmatpush.msra.mxu0 %v290
    %703 = vmatmul.f32.gmra.mxu0 %v286
    %v704 = vpop.f32.mrf.mxu0
    %v705 = vadd.f32 %v605, %v704
    %706 = vdwg.mxu0
    %707 = vmatpush.msra.mxu0 %v351
    %708 = vmatpush.msra.mxu0 %v347
    %709 = vmatpush.msra.mxu0 %v343
    %710 = vmatpush.msra.mxu0 %v339
    %711 = vmatpush.msra.mxu0 %v335
    %712 = vmatpush.msra.mxu0 %v331
    %713 = vmatpush.msra.mxu0 %v327
    %714 = vmatpush.msra.mxu0 %v323
    %715 = vmatpush.msra.mxu0 %v319
    %716 = vmatpush.msra.mxu0 %v315
    %717 = vmatpush.msra.mxu0 %v311
    %718 = vmatpush.msra.mxu0 %v307
    %719 = vmatpush.msra.mxu0 %v303
    %720 = vmatpush.msra.mxu0 %v299
    %721 = vmatpush.msra.mxu0 %v295
    %722 = vmatpush.msra.mxu0 %v291
    %723 = vmatmul.f32.gmra.mxu0 %v286
    %v724 = vpop.f32.mrf.mxu0
    %v725 = vadd.f32 %v645, %v724
    %726 = vdwg.mxu0
    %v727 = vld [vmem:[%s10] sm:$0xf]
    %v729 = vperm.slane %v727, 0
    %v730 = vperm.slane %v727, 1
    %v731 = vperm.slane %v727, 2
    %v732 = vperm.slane %v727, 3
    %v737 = vadd.f32 %v665, %v729
    %v738 = vadd.f32 %v685, %v730
    %v739 = vadd.f32 %v705, %v731
    %v740 = vadd.f32 %v725, %v732
    %v741 = vsub.f32 0.0, %v737
    %v742 = vsub.f32 0.0, %v738
    %v743 = vsub.f32 0.0, %v739
    %v744 = vsub.f32 0.0, %v740
    %v745 = vmul.f32 %v741, 1.442695
    %v746 = vpow.pop %v745
    %v747 = vmul.f32 %v742, 1.442695
    %v748 = vpow.pop %v747
    %v749 = vmul.f32 %v743, 1.442695
    %v750 = vpow.pop %v749
    %v751 = vmul.f32 %v744, 1.442695
    %v752 = vpow.pop %v751
    %v753 = vadd.f32 %v746, 1.0
    %v754 = vadd.f32 %v748, 1.0
    %v755 = vadd.f32 %v750, 1.0
    %v756 = vadd.f32 %v752, 1.0
    %v757 = vrcp.pop %v753
    %v758 = vrcp.pop %v754
    %v759 = vrcp.pop %v755
    %v760 = vrcp.pop %v756
    %v761 = vmul.f32 %v737, %v757
    %v762 = vmul.f32 %v738, %v758
    %v763 = vmul.f32 %v739, %v759
    %v764 = vmul.f32 %v740, %v760
    %v769 = vrot.slane %v762, 6
    %v770 = vrot.slane %v763, 4
    %v771 = vrot.slane %v764, 2
    %vm772 = vcmask 1041408
    %v773 = vsel %vm772, %v761, %v769
    %vm774 = vcmask 1045508
    %v775 = vsel %vm774, %v770, %v771
    %vm776 = vcmask 1043456
    %v777 = vsel %vm776, %v773, %v775
    %779 = vst [vmem:[%s12] sm:$0xff] %v777
    // Predicated region
    $region46: #{netg_forward.15} parent=1 // pred_check
      _
    $region47: #{netg_forward.15} parent=1 // pred_check_branch
      %781 = sbr.rel (0) target = $region49
    $region48: #{netg_forward.15} parent=1 // pred_region
      %783 = vsyncadd [#allocation3], 0
      %s785 = sshll.u32 [#allocation2], 4
      %s786 = int_to_ptr.vmem [resolvable:$true] %s785
      %s787 = sshll.u32 %s11, 4
      %s788 = int_to_ptr.hbm [resolvable:$true] %s787
      %790 = dma.vmem_to_hbm [thread:$0]  %s786, 32, %s788, [#allocation3]
    $region49: #{netg_forward.15} parent=1 // pred_fallthru
      _
    // Predicated region
    $region50: #{netg_forward.15} parent=1 // pred_check
      _
    $region51: #{netg_forward.15} parent=1 // pred_check_branch
      %792 = sbr.rel (0) target = $region53
    $region52: #{netg_forward.15} parent=1 // pred_region
      _
    $region53: #{netg_forward.15} parent=1 // pred_fallthru
      _
    // Predicated region
    $region54: #{netg_forward.15} parent=1 // pred_check
      _
    $region55: #{netg_forward.15} parent=1 // pred_check_branch
      %794 = sbr.rel (0) target = $region57
    $region56: #{netg_forward.15} parent=1 // pred_region
      %796 = dma.done [#allocation3], 32
    $region57: #{netg_forward.15} parent=1 // pred_fallthru
      _
    // Predicated region
    $region58: #{netg_forward.15} parent=1 // pred_check
      _
    $region59: #{netg_forward.15} parent=1 // pred_check_branch
      %798 = sbr.rel (0) target = $region61
    $region60: #{netg_forward.15} parent=1 // pred_region
      _
    $region61: #{netg_forward.15} parent=1 // pred_fallthru
      _
    %799 = vsyncpa [#allocation3], 1

// kernel: netg_forward.16
$region0: #{netg_forward.16}
  #allocation0 [shape = 'u32[]', space=smem, size = 0x4, offset = 0x4, fixed_abs, tag = 'smem constant byte address 0x4 - core index']
  #allocation1 [shape = 'u32[72,128]{1,0:T(1,128)}', space=vmem, size = 0x9000, scoped, tag = 'internal scratch']
  %s0 = inlined_call_operand.vmem [shape: bf16[80,640], index: 0, kind: input, shape index: {}]
  %s1 = inlined_call_operand.vmem [shape: bf16[640,128], index: 1, kind: input, shape index: {}]
  %s2 = inlined_call_operand.vmem [shape: f32[1,128], index: 2, kind: input, shape index: {}]
  %s3 = inlined_call_operand.vmem [shape: f32[80,128], index: 3, kind: output, shape index: {}]
  %s4 = sld [smem:[#allocation0]]
  $region22: #{netg_forward.16} parent=0
    _
  %s6 = ssub.s32 1, %s4
  %s7 = scalar_select 0, %s6, %s4
  // Predicated region
  $region2: #{netg_forward.16} parent=0 // pred_check
    _
  $region3: #{netg_forward.16} parent=0 // pred_check_branch
    %9 = sbr.rel (0) target = $region5
  $region4: #{netg_forward.16} parent=0 // pred_region
    _
  $region5: #{netg_forward.16} parent=0 // pred_fallthru
    _
  // Predicated region
  $region6: #{netg_forward.16} parent=0 // pred_check
    _
  $region7: #{netg_forward.16} parent=0 // pred_check_branch
    %11 = sbr.rel (0) target = $region9
  $region8: #{netg_forward.16} parent=0 // pred_region
    _
  $region9: #{netg_forward.16} parent=0 // pred_fallthru
    _
  // Predicated region
  $region10: #{netg_forward.16} parent=0 // pred_check
    _
  $region11: #{netg_forward.16} parent=0 // pred_check_branch
    %13 = sbr.rel (0) target = $region13
  $region12: #{netg_forward.16} parent=0 // pred_region
    _
  $region13: #{netg_forward.16} parent=0 // pred_fallthru
    _
  %v14 = vld [vmem:[%s0] sm:$0xff]
  %v15 = vld [vmem:[%s0 + $0x8] sm:$0xff]
  %v16 = vld [vmem:[%s0 + $0x10] sm:$0xf]
  %v17 = vld [vmem:[%s0 + $0x14] sm:$0xff]
  %v18 = vld [vmem:[%s0 + $0x1c] sm:$0xff]
  %v19 = vld [vmem:[%s0 + $0x24] sm:$0xf]
  %v20 = vld [vmem:[%s0 + $0x28] sm:$0xff]
  %v21 = vld [vmem:[%s0 + $0x30] sm:$0xff]
  %v22 = vld [vmem:[%s0 + $0x38] sm:$0xf]
  %v23 = vld [vmem:[%s0 + $0x3c] sm:$0xff]
  %v24 = vld [vmem:[%s0 + $0x44] sm:$0xff]
  %v25 = vld [vmem:[%s0 + $0x4c] sm:$0xf]
  %v26 = vld [vmem:[%s0 + $0x50] sm:$0xff]
  %v27 = vld [vmem:[%s0 + $0x58] sm:$0xff]
  %v28 = vld [vmem:[%s0 + $0x60] sm:$0xf]
  %v29 = vld [vmem:[%s0 + $0x64] sm:$0xff]
  %v30 = vld [vmem:[%s0 + $0x6c] sm:$0xff]
  %v31 = vld [vmem:[%s0 + $0x74] sm:$0xf]
  %v32 = vld [vmem:[%s0 + $0x78] sm:$0xff]
  %v33 = vld [vmem:[%s0 + $0x80] sm:$0xff]
  %v34 = vld [vmem:[%s0 + $0x88] sm:$0xf]
  %v35 = vld [vmem:[%s0 + $0x8c] sm:$0xff]
  %v36 = vld [vmem:[%s0 + $0x94] sm:$0xff]
  %v37 = vld [vmem:[%s0 + $0x9c] sm:$0xf]
  %v38 = vld [vmem:[%s0 + $0xa0] sm:$0xff]
  %v39 = vld [vmem:[%s0 + $0xa8] sm:$0xff]
  %v40 = vld [vmem:[%s0 + $0xb0] sm:$0xf]
  %v41 = vld [vmem:[%s0 + $0xb4] sm:$0xff]
  %v42 = vld [vmem:[%s0 + $0xbc] sm:$0xff]
  %v43 = vld [vmem:[%s0 + $0xc4] sm:$0xf]
  %v44 = vld [vmem:[%s1] sm:$0xf]
  %v45 = vld [vmem:[%s1 + $0x4] sm:$0xf]
  %v46 = vld [vmem:[%s1 + $0x8] sm:$0xf]
  %v47 = vld [vmem:[%s1 + $0xc] sm:$0xf]
  %v48 = vld [vmem:[%s1 + $0x10] sm:$0xf]
  %v49 = vld [vmem:[%s1 + $0x14] sm:$0xf]
  %v50 = vld [vmem:[%s1 + $0x18] sm:$0xf]
  %v51 = vld [vmem:[%s1 + $0x1c] sm:$0xf]
  %v52 = vld [vmem:[%s1 + $0x20] sm:$0xf]
  %v53 = vld [vmem:[%s1 + $0x24] sm:$0xf]
  %v54 = vld [vmem:[%s1 + $0x28] sm:$0xf]
  %v55 = vld [vmem:[%s1 + $0x2c] sm:$0xf]
  %v56 = vld [vmem:[%s1 + $0x30] sm:$0xf]
  %v57 = vld [vmem:[%s1 + $0x34] sm:$0xf]
  %v58 = vld [vmem:[%s1 + $0x38] sm:$0xf]
  %v59 = vld [vmem:[%s1 + $0x3c] sm:$0xf]
  %v60 = vld [vmem:[%s1 + $0x40] sm:$0xf]
  %v61 = vld [vmem:[%s1 + $0x44] sm:$0xf]
  %v62 = vld [vmem:[%s1 + $0x48] sm:$0xf]
  %v63 = vld [vmem:[%s1 + $0x4c] sm:$0xf]
  %v64 = vld [vmem:[%s1 + $0x50] sm:$0xf]
  %v65 = vld [vmem:[%s1 + $0x54] sm:$0xf]
  %v66 = vld [vmem:[%s1 + $0x58] sm:$0xf]
  %v67 = vld [vmem:[%s1 + $0x5c] sm:$0xf]
  %v68 = vld [vmem:[%s1 + $0x60] sm:$0xf]
  %v69 = vld [vmem:[%s1 + $0x64] sm:$0xf]
  %v70 = vld [vmem:[%s1 + $0x68] sm:$0xf]
  %v71 = vld [vmem:[%s1 + $0x6c] sm:$0xf]
  %v72 = vld [vmem:[%s1 + $0x70] sm:$0xf]
  %v73 = vld [vmem:[%s1 + $0x74] sm:$0xf]
  %v74 = vld [vmem:[%s1 + $0x78] sm:$0xf]
  %v75 = vld [vmem:[%s1 + $0x7c] sm:$0xf]
  %v76 = vld [vmem:[%s1 + $0x80] sm:$0xf]
  %v77 = vld [vmem:[%s1 + $0x84] sm:$0xf]
  %v78 = vld [vmem:[%s1 + $0x88] sm:$0xf]
  %v79 = vld [vmem:[%s1 + $0x8c] sm:$0xf]
  %v80 = vld [vmem:[%s1 + $0x90] sm:$0xf]
  %v81 = vld [vmem:[%s1 + $0x94] sm:$0xf]
  %v82 = vld [vmem:[%s1 + $0x98] sm:$0xf]
  %v83 = vld [vmem:[%s1 + $0x9c] sm:$0xf]
  %v84 = vld [vmem:[%s1 + $0xa0] sm:$0xf]
  %v85 = vld [vmem:[%s1 + $0xa4] sm:$0xf]
  %v86 = vld [vmem:[%s1 + $0xa8] sm:$0xf]
  %v87 = vld [vmem:[%s1 + $0xac] sm:$0xf]
  %v88 = vld [vmem:[%s1 + $0xb0] sm:$0xf]
  %v89 = vld [vmem:[%s1 + $0xb4] sm:$0xf]
  %v90 = vld [vmem:[%s1 + $0xb8] sm:$0xf]
  %v91 = vld [vmem:[%s1 + $0xbc] sm:$0xf]
  %v92 = vld [vmem:[%s1 + $0xc0] sm:$0xf]
  %v93 = vld [vmem:[%s1 + $0xc4] sm:$0xf]
  %v94 = vld [vmem:[%s1 + $0xc8] sm:$0xf]
  %v95 = vld [vmem:[%s1 + $0xcc] sm:$0xf]
  %v96 = vld [vmem:[%s1 + $0xd0] sm:$0xf]
  %v97 = vld [vmem:[%s1 + $0xd4] sm:$0xf]
  %v98 = vld [vmem:[%s1 + $0xd8] sm:$0xf]
  %v99 = vld [vmem:[%s1 + $0xdc] sm:$0xf]
  %v100 = vld [vmem:[%s1 + $0xe0] sm:$0xf]
  %v101 = vld [vmem:[%s1 + $0xe4] sm:$0xf]
  %v102 = vld [vmem:[%s1 + $0xe8] sm:$0xf]
  %v103 = vld [vmem:[%s1 + $0xec] sm:$0xf]
  %v104 = vld [vmem:[%s1 + $0xf0] sm:$0xf]
  %v105 = vld [vmem:[%s1 + $0xf4] sm:$0xf]
  %v106 = vld [vmem:[%s1 + $0xf8] sm:$0xf]
  %v107 = vld [vmem:[%s1 + $0xfc] sm:$0xf]
  %v108 = vld [vmem:[%s1 + $0x100] sm:$0xf]
  %v109 = vld [vmem:[%s1 + $0x104] sm:$0xf]
  %v110 = vld [vmem:[%s1 + $0x108] sm:$0xf]
  %v111 = vld [vmem:[%s1 + $0x10c] sm:$0xf]
  %v112 = vld [vmem:[%s1 + $0x110] sm:$0xf]
  %v113 = vld [vmem:[%s1 + $0x114] sm:$0xf]
  %v114 = vld [vmem:[%s1 + $0x118] sm:$0xf]
  %v115 = vld [vmem:[%s1 + $0x11c] sm:$0xf]
  %v116 = vld [vmem:[%s1 + $0x120] sm:$0xf]
  %v117 = vld [vmem:[%s1 + $0x124] sm:$0xf]
  %v118 = vld [vmem:[%s1 + $0x128] sm:$0xf]
  %v119 = vld [vmem:[%s1 + $0x12c] sm:$0xf]
  %v120 = vld [vmem:[%s1 + $0x130] sm:$0xf]
  %v121 = vld [vmem:[%s1 + $0x134] sm:$0xf]
  %v122 = vld [vmem:[%s1 + $0x138] sm:$0xf]
  %v123 = vld [vmem:[%s1 + $0x13c] sm:$0xf]
  %v124 = vld [vmem:[%s2] sm:$0x1]
  %v126 = vperm.slane %v124, 0
  %v158 = vunpack.c.l.b16 %v14
  %v159 = vunpack.c.h.b16 %v14
  %v160 = vunpack.c.l.b16 %v15
  %v161 = vunpack.c.h.b16 %v15
  %v162 = vunpack.c.l.b16 %v16
  %v163 = vunpack.c.l.b16 %v17
  %v164 = vunpack.c.h.b16 %v17
  %v165 = vunpack.c.l.b16 %v18
  %v166 = vunpack.c.h.b16 %v18
  %v167 = vunpack.c.l.b16 %v19
  %v168 = vunpack.c.l.b16 %v20
  %v169 = vunpack.c.h.b16 %v20
  %v170 = vunpack.c.l.b16 %v21
  %v171 = vunpack.c.h.b16 %v21
  %v172 = vunpack.c.l.b16 %v22
  %v173 = vunpack.c.l.b16 %v23
  %v174 = vunpack.c.h.b16 %v23
  %v175 = vunpack.c.l.b16 %v24
  %v176 = vunpack.c.h.b16 %v24
  %v177 = vunpack.c.l.b16 %v25
  %v178 = vunpack.c.l.b16 %v26
  %v179 = vunpack.c.h.b16 %v26
  %v180 = vunpack.c.l.b16 %v27
  %v181 = vunpack.c.h.b16 %v27
  %v182 = vunpack.c.l.b16 %v28
  %v183 = vunpack.c.l.b16 %v29
  %v184 = vunpack.c.h.b16 %v29
  %v185 = vunpack.c.l.b16 %v30
  %v186 = vunpack.c.h.b16 %v30
  %v187 = vunpack.c.l.b16 %v31
  %v188 = vunpack.c.l.b16 %v32
  %v189 = vunpack.c.h.b16 %v32
  %v190 = vunpack.c.l.b16 %v33
  %v191 = vunpack.c.h.b16 %v33
  %v192 = vunpack.c.l.b16 %v34
  %v193 = vunpack.c.l.b16 %v35
  %v194 = vunpack.c.h.b16 %v35
  %v195 = vunpack.c.l.b16 %v36
  %v196 = vunpack.c.h.b16 %v36
  %v197 = vunpack.c.l.b16 %v37
  %v198 = vunpack.c.l.b16 %v38
  %v199 = vunpack.c.h.b16 %v38
  %v200 = vunpack.c.l.b16 %v39
  %v201 = vunpack.c.h.b16 %v39
  %v202 = vunpack.c.l.b16 %v40
  %v203 = vunpack.c.l.b16 %v41
  %v204 = vunpack.c.h.b16 %v41
  %v205 = vunpack.c.l.b16 %v42
  %v206 = vunpack.c.h.b16 %v42
  %v207 = vunpack.c.l.b16 %v43
  %v208 = vpack.c.b16 %v163, %v158
  %v209 = vpack.c.b16 %v164, %v159
  %v210 = vpack.c.b16 %v165, %v160
  %v211 = vpack.c.b16 %v166, %v161
  %v212 = vpack.c.b16 %v167, %v162
  %v213 = vpack.c.b16 %v173, %v168
  %v214 = vpack.c.b16 %v174, %v169
  %v215 = vpack.c.b16 %v175, %v170
  %v216 = vpack.c.b16 %v176, %v171
  %v217 = vpack.c.b16 %v177, %v172
  %v218 = vpack.c.b16 %v183, %v178
  %v219 = vpack.c.b16 %v184, %v179
  %v220 = vpack.c.b16 %v185, %v180
  %v221 = vpack.c.b16 %v186, %v181
  %v222 = vpack.c.b16 %v187, %v182
  %v223 = vpack.c.b16 %v193, %v188
  %v224 = vpack.c.b16 %v194, %v189
  %v225 = vpack.c.b16 %v195, %v190
  %v226 = vpack.c.b16 %v196, %v191
  %v227 = vpack.c.b16 %v197, %v192
  %v228 = vpack.c.b16 %v203, %v198
  %v229 = vpack.c.b16 %v204, %v199
  %v230 = vpack.c.b16 %v205, %v200
  %v231 = vpack.c.b16 %v206, %v201
  %v232 = vpack.c.b16 %v207, %v202
  %v338 = vunpack.c.l.b16 %v44
  %v339 = vunpack.c.l.b16 %v45
  %v340 = vunpack.c.l.b16 %v46
  %v341 = vunpack.c.l.b16 %v47
  %v342 = vunpack.c.l.b16 %v48
  %v343 = vunpack.c.l.b16 %v49
  %v344 = vunpack.c.l.b16 %v50
  %v345 = vunpack.c.l.b16 %v51
  %v346 = vunpack.c.l.b16 %v52
  %v347 = vunpack.c.l.b16 %v53
  %v348 = vunpack.c.l.b16 %v54
  %v349 = vunpack.c.l.b16 %v55
  %v350 = vunpack.c.l.b16 %v56
  %v351 = vunpack.c.l.b16 %v57
  %v352 = vunpack.c.l.b16 %v58
  %v353 = vunpack.c.l.b16 %v59
  %v354 = vunpack.c.l.b16 %v60
  %v355 = vunpack.c.l.b16 %v61
  %v356 = vunpack.c.l.b16 %v62
  %v357 = vunpack.c.l.b16 %v63
  %v358 = vunpack.c.l.b16 %v64
  %v359 = vunpack.c.l.b16 %v65
  %v360 = vunpack.c.l.b16 %v66
  %v361 = vunpack.c.l.b16 %v67
  %v362 = vunpack.c.l.b16 %v68
  %v363 = vunpack.c.l.b16 %v69
  %v364 = vunpack.c.l.b16 %v70
  %v365 = vunpack.c.l.b16 %v71
  %v366 = vunpack.c.l.b16 %v72
  %v367 = vunpack.c.l.b16 %v73
  %v368 = vunpack.c.l.b16 %v74
  %v369 = vunpack.c.l.b16 %v75
  %v370 = vunpack.c.l.b16 %v76
  %v371 = vunpack.c.l.b16 %v77
  %v372 = vunpack.c.l.b16 %v78
  %v373 = vunpack.c.l.b16 %v79
  %v374 = vunpack.c.l.b16 %v80
  %v375 = vunpack.c.l.b16 %v81
  %v376 = vunpack.c.l.b16 %v82
  %v377 = vunpack.c.l.b16 %v83
  %v378 = vunpack.c.l.b16 %v84
  %v379 = vunpack.c.l.b16 %v85
  %v380 = vunpack.c.l.b16 %v86
  %v381 = vunpack.c.l.b16 %v87
  %v382 = vunpack.c.l.b16 %v88
  %v383 = vunpack.c.l.b16 %v89
  %v384 = vunpack.c.l.b16 %v90
  %v385 = vunpack.c.l.b16 %v91
  %v386 = vunpack.c.l.b16 %v92
  %v387 = vunpack.c.l.b16 %v93
  %v388 = vunpack.c.l.b16 %v94
  %v389 = vunpack.c.l.b16 %v95
  %v390 = vunpack.c.l.b16 %v96
  %v391 = vunpack.c.l.b16 %v97
  %v392 = vunpack.c.l.b16 %v98
  %v393 = vunpack.c.l.b16 %v99
  %v394 = vunpack.c.l.b16 %v100
  %v395 = vunpack.c.l.b16 %v101
  %v396 = vunpack.c.l.b16 %v102
  %v397 = vunpack.c.l.b16 %v103
  %v398 = vunpack.c.l.b16 %v104
  %v399 = vunpack.c.l.b16 %v105
  %v400 = vunpack.c.l.b16 %v106
  %v401 = vunpack.c.l.b16 %v107
  %v402 = vunpack.c.l.b16 %v108
  %v403 = vunpack.c.l.b16 %v109
  %v404 = vunpack.c.l.b16 %v110
  %v405 = vunpack.c.l.b16 %v111
  %v406 = vunpack.c.l.b16 %v112
  %v407 = vunpack.c.l.b16 %v113
  %v408 = vunpack.c.l.b16 %v114
  %v409 = vunpack.c.l.b16 %v115
  %v410 = vunpack.c.l.b16 %v116
  %v411 = vunpack.c.l.b16 %v117
  %v412 = vunpack.c.l.b16 %v118
  %v413 = vunpack.c.l.b16 %v119
  %v414 = vunpack.c.l.b16 %v120
  %v415 = vunpack.c.l.b16 %v121
  %v416 = vunpack.c.l.b16 %v122
  %v417 = vunpack.c.l.b16 %v123
  %v418 = vpack.c.b16 %v339, %v338
  %v419 = vpack.c.b16 %v341, %v340
  %v420 = vpack.c.b16 %v343, %v342
  %v421 = vpack.c.b16 %v345, %v344
  %v422 = vpack.c.b16 %v347, %v346
  %v423 = vpack.c.b16 %v349, %v348
  %v424 = vpack.c.b16 %v351, %v350
  %v425 = vpack.c.b16 %v353, %v352
  %v426 = vpack.c.b16 %v355, %v354
  %v427 = vpack.c.b16 %v357, %v356
  %v428 = vpack.c.b16 %v359, %v358
  %v429 = vpack.c.b16 %v361, %v360
  %v430 = vpack.c.b16 %v363, %v362
  %v431 = vpack.c.b16 %v365, %v364
  %v432 = vpack.c.b16 %v367, %v366
  %v433 = vpack.c.b16 %v369, %v368
  %v434 = vpack.c.b16 %v371, %v370
  %v435 = vpack.c.b16 %v373, %v372
  %v436 = vpack.c.b16 %v375, %v374
  %v437 = vpack.c.b16 %v377, %v376
  %v438 = vpack.c.b16 %v379, %v378
  %v439 = vpack.c.b16 %v381, %v380
  %v440 = vpack.c.b16 %v383, %v382
  %v441 = vpack.c.b16 %v385, %v384
  %v442 = vpack.c.b16 %v387, %v386
  %v443 = vpack.c.b16 %v389, %v388
  %v444 = vpack.c.b16 %v391, %v390
  %v445 = vpack.c.b16 %v393, %v392
  %v446 = vpack.c.b16 %v395, %v394
  %v447 = vpack.c.b16 %v397, %v396
  %v448 = vpack.c.b16 %v399, %v398
  %v449 = vpack.c.b16 %v401, %v400
  %v450 = vpack.c.b16 %v403, %v402
  %v451 = vpack.c.b16 %v405, %v404
  %v452 = vpack.c.b16 %v407, %v406
  %v453 = vpack.c.b16 %v409, %v408
  %v454 = vpack.c.b16 %v411, %v410
  %v455 = vpack.c.b16 %v413, %v412
  %v456 = vpack.c.b16 %v415, %v414
  %v457 = vpack.c.b16 %v417, %v416
  %498 = vmatpush.bf16.msra.mxu0 %v425
  %499 = vmatpush.bf16.msra.mxu0 %v424
  %500 = vmatpush.bf16.msra.mxu0 %v423
  %501 = vmatpush.bf16.msra.mxu0 %v422
  %502 = vmatpush.bf16.msra.mxu0 %v421
  %503 = vmatpush.bf16.msra.mxu0 %v420
  %504 = vmatpush.bf16.msra.mxu0 %v419
  %505 = vmatpush.bf16.msra.mxu0 %v418
  %506 = vmatmul.bf16.gmra.mxu0 %v208
  %v507 = vpop.f32.mrf.mxu0
  %v508 = vadd.f32 %v126, %v507
  %v509 = vpop.f32.mrf.mxu0
  %v510 = vadd.f32 %v126, %v509
  %511 = vmatmul.bf16.gmra.mxu0 %v213
  %v512 = vpop.f32.mrf.mxu0
  %v513 = vadd.f32 %v126, %v512
  %v514 = vpop.f32.mrf.mxu0
  %v515 = vadd.f32 %v126, %v514
  %516 = vmatmul.bf16.gmra.mxu0 %v218
  %v517 = vpop.f32.mrf.mxu0
  %v518 = vadd.f32 %v126, %v517
  %v519 = vpop.f32.mrf.mxu0
  %v520 = vadd.f32 %v126, %v519
  %521 = vmatmul.bf16.gmra.mxu0 %v223
  %v522 = vpop.f32.mrf.mxu0
  %v523 = vadd.f32 %v126, %v522
  %v524 = vpop.f32.mrf.mxu0
  %v525 = vadd.f32 %v126, %v524
  %526 = vmatmul.bf16.gmra.mxu0 %v228
  %v527 = vpop.f32.mrf.mxu0
  %v528 = vadd.f32 %v126, %v527
  %v529 = vpop.f32.mrf.mxu0
  %v530 = vadd.f32 %v126, %v529
  %531 = vdwg.mxu0
  %532 = vmatpush.bf16.msra.mxu0 %v433
  %533 = vmatpush.bf16.msra.mxu0 %v432
  %534 = vmatpush.bf16.msra.mxu0 %v431
  %535 = vmatpush.bf16.msra.mxu0 %v430
  %536 = vmatpush.bf16.msra.mxu0 %v429
  %537 = vmatpush.bf16.msra.mxu0 %v428
  %538 = vmatpush.bf16.msra.mxu0 %v427
  %539 = vmatpush.bf16.msra.mxu0 %v426
  %540 = vmatmul.bf16.gmra.mxu0 %v209
  %v541 = vpop.f32.mrf.mxu0
  %v542 = vadd.f32 %v508, %v541
  %v543 = vpop.f32.mrf.mxu0
  %v544 = vadd.f32 %v510, %v543
  %545 = vmatmul.bf16.gmra.mxu0 %v214
  %v546 = vpop.f32.mrf.mxu0
  %v547 = vadd.f32 %v513, %v546
  %v548 = vpop.f32.mrf.mxu0
  %v549 = vadd.f32 %v515, %v548
  %550 = vmatmul.bf16.gmra.mxu0 %v219
  %v551 = vpop.f32.mrf.mxu0
  %v552 = vadd.f32 %v518, %v551
  %v553 = vpop.f32.mrf.mxu0
  %v554 = vadd.f32 %v520, %v553
  %555 = vmatmul.bf16.gmra.mxu0 %v224
  %v556 = vpop.f32.mrf.mxu0
  %v557 = vadd.f32 %v523, %v556
  %v558 = vpop.f32.mrf.mxu0
  %v559 = vadd.f32 %v525, %v558
  %560 = vmatmul.bf16.gmra.mxu0 %v229
  %v561 = vpop.f32.mrf.mxu0
  %v562 = vadd.f32 %v528, %v561
  %v563 = vpop.f32.mrf.mxu0
  %v564 = vadd.f32 %v530, %v563
  %565 = vdwg.mxu0
  %566 = vmatpush.bf16.msra.mxu0 %v441
  %567 = vmatpush.bf16.msra.mxu0 %v440
  %568 = vmatpush.bf16.msra.mxu0 %v439
  %569 = vmatpush.bf16.msra.mxu0 %v438
  %570 = vmatpush.bf16.msra.mxu0 %v437
  %571 = vmatpush.bf16.msra.mxu0 %v436
  %572 = vmatpush.bf16.msra.mxu0 %v435
  %573 = vmatpush.bf16.msra.mxu0 %v434
  %574 = vmatmul.bf16.gmra.mxu0 %v210
  %v575 = vpop.f32.mrf.mxu0
  %v576 = vadd.f32 %v542, %v575
  %v577 = vpop.f32.mrf.mxu0
  %v578 = vadd.f32 %v544, %v577
  %579 = vmatmul.bf16.gmra.mxu0 %v215
  %v580 = vpop.f32.mrf.mxu0
  %v581 = vadd.f32 %v547, %v580
  %v582 = vpop.f32.mrf.mxu0
  %v583 = vadd.f32 %v549, %v582
  %584 = vmatmul.bf16.gmra.mxu0 %v220
  %v585 = vpop.f32.mrf.mxu0
  %v586 = vadd.f32 %v552, %v585
  %v587 = vpop.f32.mrf.mxu0
  %v588 = vadd.f32 %v554, %v587
  %589 = vmatmul.bf16.gmra.mxu0 %v225
  %v590 = vpop.f32.mrf.mxu0
  %v591 = vadd.f32 %v557, %v590
  %v592 = vpop.f32.mrf.mxu0
  %v593 = vadd.f32 %v559, %v592
  %594 = vmatmul.bf16.gmra.mxu0 %v230
  %v595 = vpop.f32.mrf.mxu0
  %v596 = vadd.f32 %v562, %v595
  %v597 = vpop.f32.mrf.mxu0
  %v598 = vadd.f32 %v564, %v597
  %599 = vdwg.mxu0
  %600 = vmatpush.bf16.msra.mxu0 %v449
  %601 = vmatpush.bf16.msra.mxu0 %v448
  %602 = vmatpush.bf16.msra.mxu0 %v447
  %603 = vmatpush.bf16.msra.mxu0 %v446
  %604 = vmatpush.bf16.msra.mxu0 %v445
  %605 = vmatpush.bf16.msra.mxu0 %v444
  %606 = vmatpush.bf16.msra.mxu0 %v443
  %607 = vmatpush.bf16.msra.mxu0 %v442
  %608 = vmatmul.bf16.gmra.mxu0 %v211
  %v609 = vpop.f32.mrf.mxu0
  %v610 = vadd.f32 %v576, %v609
  %v611 = vpop.f32.mrf.mxu0
  %v612 = vadd.f32 %v578, %v611
  %613 = vmatmul.bf16.gmra.mxu0 %v216
  %v614 = vpop.f32.mrf.mxu0
  %v615 = vadd.f32 %v581, %v614
  %v616 = vpop.f32.mrf.mxu0
  %v617 = vadd.f32 %v583, %v616
  %618 = vmatmul.bf16.gmra.mxu0 %v221
  %v619 = vpop.f32.mrf.mxu0
  %v620 = vadd.f32 %v586, %v619
  %v621 = vpop.f32.mrf.mxu0
  %v622 = vadd.f32 %v588, %v621
  %623 = vmatmul.bf16.gmra.mxu0 %v226
  %v624 = vpop.f32.mrf.mxu0
  %v625 = vadd.f32 %v591, %v624
  %v626 = vpop.f32.mrf.mxu0
  %v627 = vadd.f32 %v593, %v626
  %628 = vmatmul.bf16.gmra.mxu0 %v231
  %v629 = vpop.f32.mrf.mxu0
  %v630 = vadd.f32 %v596, %v629
  %v631 = vpop.f32.mrf.mxu0
  %v632 = vadd.f32 %v598, %v631
  %633 = vdwg.mxu0
  %634 = vmatpush.bf16.msra.mxu0 %v457
  %635 = vmatpush.bf16.msra.mxu0 %v456
  %636 = vmatpush.bf16.msra.mxu0 %v455
  %637 = vmatpush.bf16.msra.mxu0 %v454
  %638 = vmatpush.bf16.msra.mxu0 %v453
  %639 = vmatpush.bf16.msra.mxu0 %v452
  %640 = vmatpush.bf16.msra.mxu0 %v451
  %641 = vmatpush.bf16.msra.mxu0 %v450
  %642 = vmatmul.bf16.gmra.mxu0 %v212
  %v643 = vpop.f32.mrf.mxu0
  %v644 = vadd.f32 %v610, %v643
  %v645 = vpop.f32.mrf.mxu0
  %v646 = vadd.f32 %v612, %v645
  %647 = vmatmul.bf16.gmra.mxu0 %v217
  %v648 = vpop.f32.mrf.mxu0
  %v649 = vadd.f32 %v615, %v648
  %v650 = vpop.f32.mrf.mxu0
  %v651 = vadd.f32 %v617, %v650
  %652 = vmatmul.bf16.gmra.mxu0 %v222
  %v653 = vpop.f32.mrf.mxu0
  %v654 = vadd.f32 %v620, %v653
  %v655 = vpop.f32.mrf.mxu0
  %v656 = vadd.f32 %v622, %v655
  %657 = vmatmul.bf16.gmra.mxu0 %v227
  %v658 = vpop.f32.mrf.mxu0
  %v659 = vadd.f32 %v625, %v658
  %v660 = vpop.f32.mrf.mxu0
  %v661 = vadd.f32 %v627, %v660
  %662 = vmatmul.bf16.gmra.mxu0 %v232
  %v663 = vpop.f32.mrf.mxu0
  %v664 = vadd.f32 %v630, %v663
  %v665 = vpop.f32.mrf.mxu0
  %v666 = vadd.f32 %v632, %v665
  %667 = vdwg.mxu0
  %v668 = vsub.f32 0.0, %v644
  %v669 = vsub.f32 0.0, %v646
  %v670 = vsub.f32 0.0, %v649
  %v671 = vsub.f32 0.0, %v651
  %v672 = vsub.f32 0.0, %v654
  %v673 = vsub.f32 0.0, %v656
  %v674 = vsub.f32 0.0, %v659
  %v675 = vsub.f32 0.0, %v661
  %v676 = vsub.f32 0.0, %v664
  %v677 = vsub.f32 0.0, %v666
  %v678 = vmul.f32 %v668, 1.442695
  %v679 = vpow.pop %v678
  %v680 = vmul.f32 %v669, 1.442695
  %v681 = vpow.pop %v680
  %v682 = vmul.f32 %v670, 1.442695
  %v683 = vpow.pop %v682
  %v684 = vmul.f32 %v671, 1.442695
  %v685 = vpow.pop %v684
  %v686 = vmul.f32 %v672, 1.442695
  %v687 = vpow.pop %v686
  %v688 = vmul.f32 %v673, 1.442695
  %v689 = vpow.pop %v688
  %v690 = vmul.f32 %v674, 1.442695
  %v691 = vpow.pop %v690
  %v692 = vmul.f32 %v675, 1.442695
  %v693 = vpow.pop %v692
  %v694 = vmul.f32 %v676, 1.442695
  %v695 = vpow.pop %v694
  %v696 = vmul.f32 %v677, 1.442695
  %v697 = vpow.pop %v696
  %v698 = vadd.f32 %v679, 1.0
  %v699 = vadd.f32 %v681, 1.0
  %v700 = vadd.f32 %v683, 1.0
  %v701 = vadd.f32 %v685, 1.0
  %v702 = vadd.f32 %v687, 1.0
  %v703 = vadd.f32 %v689, 1.0
  %v704 = vadd.f32 %v691, 1.0
  %v705 = vadd.f32 %v693, 1.0
  %v706 = vadd.f32 %v695, 1.0
  %v707 = vadd.f32 %v697, 1.0
  %v708 = vrcp.pop %v698
  %v709 = vrcp.pop %v699
  %v710 = vrcp.pop %v700
  %v711 = vrcp.pop %v701
  %v712 = vrcp.pop %v702
  %v713 = vrcp.pop %v703
  %v714 = vrcp.pop %v704
  %v715 = vrcp.pop %v705
  %v716 = vrcp.pop %v706
  %v717 = vrcp.pop %v707
  %v718 = vmul.f32 %v644, %v708
  %v719 = vmul.f32 %v646, %v709
  %v720 = vmul.f32 %v649, %v710
  %v721 = vmul.f32 %v651, %v711
  %v722 = vmul.f32 %v654, %v712
  %v723 = vmul.f32 %v656, %v713
  %v724 = vmul.f32 %v659, %v714
  %v725 = vmul.f32 %v661, %v715
  %v726 = vmul.f32 %v664, %v716
  %v727 = vmul.f32 %v666, %v717
  %728 = vst [vmem:[%s3] sm:$0xff] %v718
  %729 = vst [vmem:[%s3 + $0x8] sm:$0xff] %v719
  %730 = vst [vmem:[%s3 + $0x10] sm:$0xff] %v720
  %731 = vst [vmem:[%s3 + $0x18] sm:$0xff] %v721
  %732 = vst [vmem:[%s3 + $0x20] sm:$0xff] %v722
  %733 = vst [vmem:[%s3 + $0x28] sm:$0xff] %v723
  %734 = vst [vmem:[%s3 + $0x30] sm:$0xff] %v724
  %735 = vst [vmem:[%s3 + $0x38] sm:$0xff] %v725
  %736 = vst [vmem:[%s3 + $0x40] sm:$0xff] %v726
  %737 = vst [vmem:[%s3 + $0x48] sm:$0xff] %v727
  // Predicated region
  $region14: #{netg_forward.16} parent=0 // pred_check
    _
  $region15: #{netg_forward.16} parent=0 // pred_check_branch
    %739 = sbr.rel (0) target = $region17
  $region16: #{netg_forward.16} parent=0 // pred_region
    _
  $region17: #{netg_forward.16} parent=0 // pred_fallthru
    _
  // Predicated region
  $region18: #{netg_forward.16} parent=0 // pred_check
    _
  $region19: #{netg_forward.16} parent=0 // pred_check_branch
    %741 = sbr.rel (0) target = $region21
  $region20: #{netg_forward.16} parent=0 // pred_region
    _
  $region21: #{netg_forward.16} parent=0 // pred_fallthru
    _

// kernel: netg_forward.17
$region0: #{netg_forward.17}
  #allocation0 [shape = 'u32[]', space=smem, size = 0x4, offset = 0x4, fixed_abs, tag = 'smem constant byte address 0x4 - core index']
  #allocation1 [shape = 'u32[72,128]{1,0:T(1,128)}', space=vmem, size = 0x9000, scoped, tag = 'internal scratch']
  %s0 = inlined_call_operand.vmem [shape: bf16[80,128], index: 0, kind: input, shape index: {}]
  %s1 = inlined_call_operand.vmem [shape: bf16[128,128], index: 1, kind: input, shape index: {}]
  %s2 = inlined_call_operand.vmem [shape: f32[1,128], index: 2, kind: input, shape index: {}]
  %s3 = inlined_call_operand.vmem [shape: f32[80,128], index: 3, kind: output, shape index: {}]
  %s4 = sld [smem:[#allocation0]]
  $region22: #{netg_forward.17} parent=0
    _
  %s6 = ssub.s32 1, %s4
  %s7 = scalar_select 0, %s6, %s4
  // Predicated region
  $region2: #{netg_forward.17} parent=0 // pred_check
    _
  $region3: #{netg_forward.17} parent=0 // pred_check_branch
    %9 = sbr.rel (0) target = $region5
  $region4: #{netg_forward.17} parent=0 // pred_region
    _
  $region5: #{netg_forward.17} parent=0 // pred_fallthru
    _
  // Predicated region
  $region6: #{netg_forward.17} parent=0 // pred_check
    _
  $region7: #{netg_forward.17} parent=0 // pred_check_branch
    %11 = sbr.rel (0) target = $region9
  $region8: #{netg_forward.17} parent=0 // pred_region
    _
  $region9: #{netg_forward.17} parent=0 // pred_fallthru
    _
  // Predicated region
  $region10: #{netg_forward.17} parent=0 // pred_check
    _
  $region11: #{netg_forward.17} parent=0 // pred_check_branch
    %13 = sbr.rel (0) target = $region13
  $region12: #{netg_forward.17} parent=0 // pred_region
    _
  $region13: #{netg_forward.17} parent=0 // pred_fallthru
    _
  %v14 = vld [vmem:[%s0] sm:$0xf]
  %v15 = vld [vmem:[%s0 + $0x4] sm:$0xf]
  %v16 = vld [vmem:[%s0 + $0x8] sm:$0xf]
  %v17 = vld [vmem:[%s0 + $0xc] sm:$0xf]
  %v18 = vld [vmem:[%s0 + $0x10] sm:$0xf]
  %v19 = vld [vmem:[%s0 + $0x14] sm:$0xf]
  %v20 = vld [vmem:[%s0 + $0x18] sm:$0xf]
  %v21 = vld [vmem:[%s0 + $0x1c] sm:$0xf]
  %v22 = vld [vmem:[%s0 + $0x20] sm:$0xf]
  %v23 = vld [vmem:[%s0 + $0x24] sm:$0xf]
  %v24 = vld [vmem:[%s1] sm:$0xf]
  %v25 = vld [vmem:[%s1 + $0x4] sm:$0xf]
  %v26 = vld [vmem:[%s1 + $0x8] sm:$0xf]
  %v27 = vld [vmem:[%s1 + $0xc] sm:$0xf]
  %v28 = vld [vmem:[%s1 + $0x10] sm:$0xf]
  %v29 = vld [vmem:[%s1 + $0x14] sm:$0xf]
  %v30 = vld [vmem:[%s1 + $0x18] sm:$0xf]
  %v31 = vld [vmem:[%s1 + $0x1c] sm:$0xf]
  %v32 = vld [vmem:[%s1 + $0x20] sm:$0xf]
  %v33 = vld [vmem:[%s1 + $0x24] sm:$0xf]
  %v34 = vld [vmem:[%s1 + $0x28] sm:$0xf]
  %v35 = vld [vmem:[%s1 + $0x2c] sm:$0xf]
  %v36 = vld [vmem:[%s1 + $0x30] sm:$0xf]
  %v37 = vld [vmem:[%s1 + $0x34] sm:$0xf]
  %v38 = vld [vmem:[%s1 + $0x38] sm:$0xf]
  %v39 = vld [vmem:[%s1 + $0x3c] sm:$0xf]
  %v40 = vld [vmem:[%s2] sm:$0x1]
  %v42 = vperm.slane %v40, 0
  %v54 = vunpack.c.l.b16 %v14
  %v55 = vunpack.c.l.b16 %v15
  %v56 = vunpack.c.l.b16 %v16
  %v57 = vunpack.c.l.b16 %v17
  %v58 = vunpack.c.l.b16 %v18
  %v59 = vunpack.c.l.b16 %v19
  %v60 = vunpack.c.l.b16 %v20
  %v61 = vunpack.c.l.b16 %v21
  %v62 = vunpack.c.l.b16 %v22
  %v63 = vunpack.c.l.b16 %v23
  %v64 = vpack.c.b16 %v55, %v54
  %v65 = vpack.c.b16 %v57, %v56
  %v66 = vpack.c.b16 %v59, %v58
  %v67 = vpack.c.b16 %v61, %v60
  %v68 = vpack.c.b16 %v63, %v62
  %v90 = vunpack.c.l.b16 %v24
  %v91 = vunpack.c.l.b16 %v25
  %v92 = vunpack.c.l.b16 %v26
  %v93 = vunpack.c.l.b16 %v27
  %v94 = vunpack.c.l.b16 %v28
  %v95 = vunpack.c.l.b16 %v29
  %v96 = vunpack.c.l.b16 %v30
  %v97 = vunpack.c.l.b16 %v31
  %v98 = vunpack.c.l.b16 %v32
  %v99 = vunpack.c.l.b16 %v33
  %v100 = vunpack.c.l.b16 %v34
  %v101 = vunpack.c.l.b16 %v35
  %v102 = vunpack.c.l.b16 %v36
  %v103 = vunpack.c.l.b16 %v37
  %v104 = vunpack.c.l.b16 %v38
  %v105 = vunpack.c.l.b16 %v39
  %v106 = vpack.c.b16 %v91, %v90
  %v107 = vpack.c.b16 %v93, %v92
  %v108 = vpack.c.b16 %v95, %v94
  %v109 = vpack.c.b16 %v97, %v96
  %v110 = vpack.c.b16 %v99, %v98
  %v111 = vpack.c.b16 %v101, %v100
  %v112 = vpack.c.b16 %v103, %v102
  %v113 = vpack.c.b16 %v105, %v104
  %122 = vmatpush.bf16.msra.mxu0 %v113
  %123 = vmatpush.bf16.msra.mxu0 %v112
  %124 = vmatpush.bf16.msra.mxu0 %v111
  %125 = vmatpush.bf16.msra.mxu0 %v110
  %126 = vmatpush.bf16.msra.mxu0 %v109
  %127 = vmatpush.bf16.msra.mxu0 %v108
  %128 = vmatpush.bf16.msra.mxu0 %v107
  %129 = vmatpush.bf16.msra.mxu0 %v106
  %130 = vmatmul.bf16.gmra.mxu0 %v64
  %v131 = vpop.f32.mrf.mxu0
  %v132 = vadd.f32 %v42, %v131
  %v133 = vpop.f32.mrf.mxu0
  %v134 = vadd.f32 %v42, %v133
  %135 = vmatmul.bf16.gmra.mxu0 %v65
  %v136 = vpop.f32.mrf.mxu0
  %v137 = vadd.f32 %v42, %v136
  %v138 = vpop.f32.mrf.mxu0
  %v139 = vadd.f32 %v42, %v138
  %140 = vmatmul.bf16.gmra.mxu0 %v66
  %v141 = vpop.f32.mrf.mxu0
  %v142 = vadd.f32 %v42, %v141
  %v143 = vpop.f32.mrf.mxu0
  %v144 = vadd.f32 %v42, %v143
  %145 = vmatmul.bf16.gmra.mxu0 %v67
  %v146 = vpop.f32.mrf.mxu0
  %v147 = vadd.f32 %v42, %v146
  %v148 = vpop.f32.mrf.mxu0
  %v149 = vadd.f32 %v42, %v148
  %150 = vmatmul.bf16.gmra.mxu0 %v68
  %v151 = vpop.f32.mrf.mxu0
  %v152 = vadd.f32 %v42, %v151
  %v153 = vpop.f32.mrf.mxu0
  %v154 = vadd.f32 %v42, %v153
  %155 = vdwg.mxu0
  %v156 = vsub.f32 0.0, %v132
  %v157 = vsub.f32 0.0, %v134
  %v158 = vsub.f32 0.0, %v137
  %v159 = vsub.f32 0.0, %v139
  %v160 = vsub.f32 0.0, %v142
  %v161 = vsub.f32 0.0, %v144
  %v162 = vsub.f32 0.0, %v147
  %v163 = vsub.f32 0.0, %v149
  %v164 = vsub.f32 0.0, %v152
  %v165 = vsub.f32 0.0, %v154
  %v166 = vmul.f32 %v156, 1.442695
  %v167 = vpow.pop %v166
  %v168 = vmul.f32 %v157, 1.442695
  %v169 = vpow.pop %v168
  %v170 = vmul.f32 %v158, 1.442695
  %v171 = vpow.pop %v170
  %v172 = vmul.f32 %v159, 1.442695
  %v173 = vpow.pop %v172
  %v174 = vmul.f32 %v160, 1.442695
  %v175 = vpow.pop %v174
  %v176 = vmul.f32 %v161, 1.442695
  %v177 = vpow.pop %v176
  %v178 = vmul.f32 %v162, 1.442695
  %v179 = vpow.pop %v178
  %v180 = vmul.f32 %v163, 1.442695
  %v181 = vpow.pop %v180
  %v182 = vmul.f32 %v164, 1.442695
  %v183 = vpow.pop %v182
  %v184 = vmul.f32 %v165, 1.442695
  %v185 = vpow.pop %v184
  %v186 = vadd.f32 %v167, 1.0
  %v187 = vadd.f32 %v169, 1.0
  %v188 = vadd.f32 %v171, 1.0
  %v189 = vadd.f32 %v173, 1.0
  %v190 = vadd.f32 %v175, 1.0
  %v191 = vadd.f32 %v177, 1.0
  %v192 = vadd.f32 %v179, 1.0
  %v193 = vadd.f32 %v181, 1.0
  %v194 = vadd.f32 %v183, 1.0
  %v195 = vadd.f32 %v185, 1.0
  %v196 = vrcp.pop %v186
  %v197 = vrcp.pop %v187
  %v198 = vrcp.pop %v188
  %v199 = vrcp.pop %v189
  %v200 = vrcp.pop %v190
  %v201 = vrcp.pop %v191
  %v202 = vrcp.pop %v192
  %v203 = vrcp.pop %v193
  %v204 = vrcp.pop %v194
  %v205 = vrcp.pop %v195
  %v206 = vmul.f32 %v132, %v196
  %v207 = vmul.f32 %v134, %v197
  %v208 = vmul.f32 %v137, %v198
  %v209 = vmul.f32 %v139, %v199
  %v210 = vmul.f32 %v142, %v200
  %v211 = vmul.f32 %v144, %v201
  %v212 = vmul.f32 %v147, %v202
  %v213 = vmul.f32 %v149, %v203
  %v214 = vmul.f32 %v152, %v204
  %v215 = vmul.f32 %v154, %v205
  %216 = vst [vmem:[%s3] sm:$0xff] %v206
  %217 = vst [vmem:[%s3 + $0x8] sm:$0xff] %v207
  %218 = vst [vmem:[%s3 + $0x10] sm:$0xff] %v208
  %219 = vst [vmem:[%s3 + $0x18] sm:$0xff] %v209
  %220 = vst [vmem:[%s3 + $0x20] sm:$0xff] %v210
  %221 = vst [vmem:[%s3 + $0x28] sm:$0xff] %v211
  %222 = vst [vmem:[%s3 + $0x30] sm:$0xff] %v212
  %223 = vst [vmem:[%s3 + $0x38] sm:$0xff] %v213
  %224 = vst [vmem:[%s3 + $0x40] sm:$0xff] %v214
  %225 = vst [vmem:[%s3 + $0x48] sm:$0xff] %v215
  // Predicated region
  $region14: #{netg_forward.17} parent=0 // pred_check
    _
  $region15: #{netg_forward.17} parent=0 // pred_check_branch
    %227 = sbr.rel (0) target = $region17
  $region16: #{netg_forward.17} parent=0 // pred_region
    _
  $region17: #{netg_forward.17} parent=0 // pred_fallthru
    _
  // Predicated region
  $region18: #{netg_forward.17} parent=0 // pred_check
    _
  $region19: #{netg_forward.17} parent=0 // pred_check_branch
    %229 = sbr.rel (0) target = $region21
  $region20: #{netg_forward.17} parent=0 // pred_region
    _
  $region21: #{netg_forward.17} parent=0 // pred_fallthru
    _

// kernel: netg_forward.18
$region0: #{netg_forward.18}
  #allocation0 [shape = 'u32[]', space=smem, size = 0x4, offset = 0x4, fixed_abs, tag = 'smem constant byte address 0x4 - core index']
  #allocation1 [shape = 'u32[72,128]{1,0:T(1,128)}', space=vmem, size = 0x9000, scoped, tag = 'internal scratch']
  %s0 = inlined_call_operand.vmem [shape: bf16[112,512], index: 0, kind: input, shape index: {}]
  %s1 = inlined_call_operand.vmem [shape: bf16[512,128], index: 1, kind: input, shape index: {}]
  %s2 = inlined_call_operand.vmem [shape: f32[1,128], index: 2, kind: input, shape index: {}]
  %s3 = inlined_call_operand.vmem [shape: f32[112,128], index: 3, kind: output, shape index: {}]
  %s4 = sld [smem:[#allocation0]]
  $region22: #{netg_forward.18} parent=0
    _
  %s6 = ssub.s32 1, %s4
  %s7 = scalar_select 0, %s6, %s4
  // Predicated region
  $region2: #{netg_forward.18} parent=0 // pred_check
    _
  $region3: #{netg_forward.18} parent=0 // pred_check_branch
    %9 = sbr.rel (0) target = $region5
  $region4: #{netg_forward.18} parent=0 // pred_region
    _
  $region5: #{netg_forward.18} parent=0 // pred_fallthru
    _
  // Predicated region
  $region6: #{netg_forward.18} parent=0 // pred_check
    _
  $region7: #{netg_forward.18} parent=0 // pred_check_branch
    %11 = sbr.rel (0) target = $region9
  $region8: #{netg_forward.18} parent=0 // pred_region
    _
  $region9: #{netg_forward.18} parent=0 // pred_fallthru
    _
  // Predicated region
  $region10: #{netg_forward.18} parent=0 // pred_check
    _
  $region11: #{netg_forward.18} parent=0 // pred_check_branch
    %13 = sbr.rel (0) target = $region13
  $region12: #{netg_forward.18} parent=0 // pred_region
    _
  $region13: #{netg_forward.18} parent=0 // pred_fallthru
    _
  %v14 = vld [vmem:[%s0] sm:$0xff]
  %v15 = vld [vmem:[%s0 + $0x8] sm:$0xff]
  %v16 = vld [vmem:[%s0 + $0x10] sm:$0xff]
  %v17 = vld [vmem:[%s0 + $0x18] sm:$0xff]
  %v18 = vld [vmem:[%s0 + $0x20] sm:$0xff]
  %v19 = vld [vmem:[%s0 + $0x28] sm:$0xff]
  %v20 = vld [vmem:[%s0 + $0x30] sm:$0xff]
  %v21 = vld [vmem:[%s0 + $0x38] sm:$0xff]
  %v22 = vld [vmem:[%s0 + $0x40] sm:$0xff]
  %v23 = vld [vmem:[%s0 + $0x48] sm:$0xff]
  %v24 = vld [vmem:[%s0 + $0x50] sm:$0xff]
  %v25 = vld [vmem:[%s0 + $0x58] sm:$0xff]
  %v26 = vld [vmem:[%s0 + $0x60] sm:$0xff]
  %v27 = vld [vmem:[%s0 + $0x68] sm:$0xff]
  %v28 = vld [vmem:[%s0 + $0x70] sm:$0xff]
  %v29 = vld [vmem:[%s0 + $0x78] sm:$0xff]
  %v30 = vld [vmem:[%s0 + $0x80] sm:$0xff]
  %v31 = vld [vmem:[%s0 + $0x88] sm:$0xff]
  %v32 = vld [vmem:[%s0 + $0x90] sm:$0xff]
  %v33 = vld [vmem:[%s0 + $0x98] sm:$0xff]
  %v34 = vld [vmem:[%s0 + $0xa0] sm:$0xff]
  %v35 = vld [vmem:[%s0 + $0xa8] sm:$0xff]
  %v36 = vld [vmem:[%s0 + $0xb0] sm:$0xff]
  %v37 = vld [vmem:[%s0 + $0xb8] sm:$0xff]
  %v38 = vld [vmem:[%s0 + $0xc0] sm:$0xff]
  %v39 = vld [vmem:[%s0 + $0xc8] sm:$0xff]
  %v40 = vld [vmem:[%s0 + $0xd0] sm:$0xff]
  %v41 = vld [vmem:[%s0 + $0xd8] sm:$0xff]
  %v42 = vld [vmem:[%s1] sm:$0xf]
  %v43 = vld [vmem:[%s1 + $0x4] sm:$0xf]
  %v44 = vld [vmem:[%s1 + $0x8] sm:$0xf]
  %v45 = vld [vmem:[%s1 + $0xc] sm:$0xf]
  %v46 = vld [vmem:[%s1 + $0x10] sm:$0xf]
  %v47 = vld [vmem:[%s1 + $0x14] sm:$0xf]
  %v48 = vld [vmem:[%s1 + $0x18] sm:$0xf]
  %v49 = vld [vmem:[%s1 + $0x1c] sm:$0xf]
  %v50 = vld [vmem:[%s1 + $0x20] sm:$0xf]
  %v51 = vld [vmem:[%s1 + $0x24] sm:$0xf]
  %v52 = vld [vmem:[%s1 + $0x28] sm:$0xf]
  %v53 = vld [vmem:[%s1 + $0x2c] sm:$0xf]
  %v54 = vld [vmem:[%s1 + $0x30] sm:$0xf]
  %v55 = vld [vmem:[%s1 + $0x34] sm:$0xf]
  %v56 = vld [vmem:[%s1 + $0x38] sm:$0xf]
  %v57 = vld [vmem:[%s1 + $0x3c] sm:$0xf]
  %v58 = vld [vmem:[%s1 + $0x40] sm:$0xf]
  %v59 = vld [vmem:[%s1 + $0x44] sm:$0xf]
  %v60 = vld [vmem:[%s1 + $0x48] sm:$0xf]
  %v61 = vld [vmem:[%s1 + $0x4c] sm:$0xf]
  %v62 = vld [vmem:[%s1 + $0x50] sm:$0xf]
  %v63 = vld [vmem:[%s1 + $0x54] sm:$0xf]
  %v64 = vld [vmem:[%s1 + $0x58] sm:$0xf]
  %v65 = vld [vmem:[%s1 + $0x5c] sm:$0xf]
  %v66 = vld [vmem:[%s1 + $0x60] sm:$0xf]
  %v67 = vld [vmem:[%s1 + $0x64] sm:$0xf]
  %v68 = vld [vmem:[%s1 + $0x68] sm:$0xf]
  %v69 = vld [vmem:[%s1 + $0x6c] sm:$0xf]
  %v70 = vld [vmem:[%s1 + $0x70] sm:$0xf]
  %v71 = vld [vmem:[%s1 + $0x74] sm:$0xf]
  %v72 = vld [vmem:[%s1 + $0x78] sm:$0xf]
  %v73 = vld [vmem:[%s1 + $0x7c] sm:$0xf]
  %v74 = vld [vmem:[%s1 + $0x80] sm:$0xf]
  %v75 = vld [vmem:[%s1 + $0x84] sm:$0xf]
  %v76 = vld [vmem:[%s1 + $0x88] sm:$0xf]
  %v77 = vld [vmem:[%s1 + $0x8c] sm:$0xf]
  %v78 = vld [vmem:[%s1 + $0x90] sm:$0xf]
  %v79 = vld [vmem:[%s1 + $0x94] sm:$0xf]
  %v80 = vld [vmem:[%s1 + $0x98] sm:$0xf]
  %v81 = vld [vmem:[%s1 + $0x9c] sm:$0xf]
  %v82 = vld [vmem:[%s1 + $0xa0] sm:$0xf]
  %v83 = vld [vmem:[%s1 + $0xa4] sm:$0xf]
  %v84 = vld [vmem:[%s1 + $0xa8] sm:$0xf]
  %v85 = vld [vmem:[%s1 + $0xac] sm:$0xf]
  %v86 = vld [vmem:[%s1 + $0xb0] sm:$0xf]
  %v87 = vld [vmem:[%s1 + $0xb4] sm:$0xf]
  %v88 = vld [vmem:[%s1 + $0xb8] sm:$0xf]
  %v89 = vld [vmem:[%s1 + $0xbc] sm:$0xf]
  %v90 = vld [vmem:[%s1 + $0xc0] sm:$0xf]
  %v91 = vld [vmem:[%s1 + $0xc4] sm:$0xf]
  %v92 = vld [vmem:[%s1 + $0xc8] sm:$0xf]
  %v93 = vld [vmem:[%s1 + $0xcc] sm:$0xf]
  %v94 = vld [vmem:[%s1 + $0xd0] sm:$0xf]
  %v95 = vld [vmem:[%s1 + $0xd4] sm:$0xf]
  %v96 = vld [vmem:[%s1 + $0xd8] sm:$0xf]
  %v97 = vld [vmem:[%s1 + $0xdc] sm:$0xf]
  %v98 = vld [vmem:[%s1 + $0xe0] sm:$0xf]
  %v99 = vld [vmem:[%s1 + $0xe4] sm:$0xf]
  %v100 = vld [vmem:[%s1 + $0xe8] sm:$0xf]
  %v101 = vld [vmem:[%s1 + $0xec] sm:$0xf]
  %v102 = vld [vmem:[%s1 + $0xf0] sm:$0xf]
  %v103 = vld [vmem:[%s1 + $0xf4] sm:$0xf]
  %v104 = vld [vmem:[%s1 + $0xf8] sm:$0xf]
  %v105 = vld [vmem:[%s1 + $0xfc] sm:$0xf]
  %v106 = vld [vmem:[%s2] sm:$0x1]
  %v108 = vperm.slane %v106, 0
  %v138 = vunpack.c.l.b16 %v14
  %v139 = vunpack.c.h.b16 %v14
  %v140 = vunpack.c.l.b16 %v15
  %v141 = vunpack.c.h.b16 %v15
  %v142 = vunpack.c.l.b16 %v16
  %v143 = vunpack.c.h.b16 %v16
  %v144 = vunpack.c.l.b16 %v17
  %v145 = vunpack.c.h.b16 %v17
  %v146 = vunpack.c.l.b16 %v18
  %v147 = vunpack.c.h.b16 %v18
  %v148 = vunpack.c.l.b16 %v19
  %v149 = vunpack.c.h.b16 %v19
  %v150 = vunpack.c.l.b16 %v20
  %v151 = vunpack.c.h.b16 %v20
  %v152 = vunpack.c.l.b16 %v21
  %v153 = vunpack.c.h.b16 %v21
  %v154 = vunpack.c.l.b16 %v22
  %v155 = vunpack.c.h.b16 %v22
  %v156 = vunpack.c.l.b16 %v23
  %v157 = vunpack.c.h.b16 %v23
  %v158 = vunpack.c.l.b16 %v24
  %v159 = vunpack.c.h.b16 %v24
  %v160 = vunpack.c.l.b16 %v25
  %v161 = vunpack.c.h.b16 %v25
  %v162 = vunpack.c.l.b16 %v26
  %v163 = vunpack.c.h.b16 %v26
  %v164 = vunpack.c.l.b16 %v27
  %v165 = vunpack.c.h.b16 %v27
  %v166 = vunpack.c.l.b16 %v28
  %v167 = vunpack.c.h.b16 %v28
  %v168 = vunpack.c.l.b16 %v29
  %v169 = vunpack.c.h.b16 %v29
  %v170 = vunpack.c.l.b16 %v30
  %v171 = vunpack.c.h.b16 %v30
  %v172 = vunpack.c.l.b16 %v31
  %v173 = vunpack.c.h.b16 %v31
  %v174 = vunpack.c.l.b16 %v32
  %v175 = vunpack.c.h.b16 %v32
  %v176 = vunpack.c.l.b16 %v33
  %v177 = vunpack.c.h.b16 %v33
  %v178 = vunpack.c.l.b16 %v34
  %v179 = vunpack.c.h.b16 %v34
  %v180 = vunpack.c.l.b16 %v35
  %v181 = vunpack.c.h.b16 %v35
  %v182 = vunpack.c.l.b16 %v36
  %v183 = vunpack.c.h.b16 %v36
  %v184 = vunpack.c.l.b16 %v37
  %v185 = vunpack.c.h.b16 %v37
  %v186 = vunpack.c.l.b16 %v38
  %v187 = vunpack.c.h.b16 %v38
  %v188 = vunpack.c.l.b16 %v39
  %v189 = vunpack.c.h.b16 %v39
  %v190 = vunpack.c.l.b16 %v40
  %v191 = vunpack.c.h.b16 %v40
  %v192 = vunpack.c.l.b16 %v41
  %v193 = vunpack.c.h.b16 %v41
  %v194 = vpack.c.b16 %v142, %v138
  %v195 = vpack.c.b16 %v143, %v139
  %v196 = vpack.c.b16 %v144, %v140
  %v197 = vpack.c.b16 %v145, %v141
  %v198 = vpack.c.b16 %v150, %v146
  %v199 = vpack.c.b16 %v151, %v147
  %v200 = vpack.c.b16 %v152, %v148
  %v201 = vpack.c.b16 %v153, %v149
  %v202 = vpack.c.b16 %v158, %v154
  %v203 = vpack.c.b16 %v159, %v155
  %v204 = vpack.c.b16 %v160, %v156
  %v205 = vpack.c.b16 %v161, %v157
  %v206 = vpack.c.b16 %v166, %v162
  %v207 = vpack.c.b16 %v167, %v163
  %v208 = vpack.c.b16 %v168, %v164
  %v209 = vpack.c.b16 %v169, %v165
  %v210 = vpack.c.b16 %v174, %v170
  %v211 = vpack.c.b16 %v175, %v171
  %v212 = vpack.c.b16 %v176, %v172
  %v213 = vpack.c.b16 %v177, %v173
  %v214 = vpack.c.b16 %v182, %v178
  %v215 = vpack.c.b16 %v183, %v179
  %v216 = vpack.c.b16 %v184, %v180
  %v217 = vpack.c.b16 %v185, %v181
  %v218 = vpack.c.b16 %v190, %v186
  %v219 = vpack.c.b16 %v191, %v187
  %v220 = vpack.c.b16 %v192, %v188
  %v221 = vpack.c.b16 %v193, %v189
  %v314 = vunpack.c.l.b16 %v42
  %v315 = vunpack.c.l.b16 %v43
  %v316 = vunpack.c.l.b16 %v44
  %v317 = vunpack.c.l.b16 %v45
  %v318 = vunpack.c.l.b16 %v46
  %v319 = vunpack.c.l.b16 %v47
  %v320 = vunpack.c.l.b16 %v48
  %v321 = vunpack.c.l.b16 %v49
  %v322 = vunpack.c.l.b16 %v50
  %v323 = vunpack.c.l.b16 %v51
  %v324 = vunpack.c.l.b16 %v52
  %v325 = vunpack.c.l.b16 %v53
  %v326 = vunpack.c.l.b16 %v54
  %v327 = vunpack.c.l.b16 %v55
  %v328 = vunpack.c.l.b16 %v56
  %v329 = vunpack.c.l.b16 %v57
  %v330 = vunpack.c.l.b16 %v58
  %v331 = vunpack.c.l.b16 %v59
  %v332 = vunpack.c.l.b16 %v60
  %v333 = vunpack.c.l.b16 %v61
  %v334 = vunpack.c.l.b16 %v62
  %v335 = vunpack.c.l.b16 %v63
  %v336 = vunpack.c.l.b16 %v64
  %v337 = vunpack.c.l.b16 %v65
  %v338 = vunpack.c.l.b16 %v66
  %v339 = vunpack.c.l.b16 %v67
  %v340 = vunpack.c.l.b16 %v68
  %v341 = vunpack.c.l.b16 %v69
  %v342 = vunpack.c.l.b16 %v70
  %v343 = vunpack.c.l.b16 %v71
  %v344 = vunpack.c.l.b16 %v72
  %v345 = vunpack.c.l.b16 %v73
  %v346 = vunpack.c.l.b16 %v74
  %v347 = vunpack.c.l.b16 %v75
  %v348 = vunpack.c.l.b16 %v76
  %v349 = vunpack.c.l.b16 %v77
  %v350 = vunpack.c.l.b16 %v78
  %v351 = vunpack.c.l.b16 %v79
  %v352 = vunpack.c.l.b16 %v80
  %v353 = vunpack.c.l.b16 %v81
  %v354 = vunpack.c.l.b16 %v82
  %v355 = vunpack.c.l.b16 %v83
  %v356 = vunpack.c.l.b16 %v84
  %v357 = vunpack.c.l.b16 %v85
  %v358 = vunpack.c.l.b16 %v86
  %v359 = vunpack.c.l.b16 %v87
  %v360 = vunpack.c.l.b16 %v88
  %v361 = vunpack.c.l.b16 %v89
  %v362 = vunpack.c.l.b16 %v90
  %v363 = vunpack.c.l.b16 %v91
  %v364 = vunpack.c.l.b16 %v92
  %v365 = vunpack.c.l.b16 %v93
  %v366 = vunpack.c.l.b16 %v94
  %v367 = vunpack.c.l.b16 %v95
  %v368 = vunpack.c.l.b16 %v96
  %v369 = vunpack.c.l.b16 %v97
  %v370 = vunpack.c.l.b16 %v98
  %v371 = vunpack.c.l.b16 %v99
  %v372 = vunpack.c.l.b16 %v100
  %v373 = vunpack.c.l.b16 %v101
  %v374 = vunpack.c.l.b16 %v102
  %v375 = vunpack.c.l.b16 %v103
  %v376 = vunpack.c.l.b16 %v104
  %v377 = vunpack.c.l.b16 %v105
  %v378 = vpack.c.b16 %v315, %v314
  %v379 = vpack.c.b16 %v317, %v316
  %v380 = vpack.c.b16 %v319, %v318
  %v381 = vpack.c.b16 %v321, %v320
  %v382 = vpack.c.b16 %v323, %v322
  %v383 = vpack.c.b16 %v325, %v324
  %v384 = vpack.c.b16 %v327, %v326
  %v385 = vpack.c.b16 %v329, %v328
  %v386 = vpack.c.b16 %v331, %v330
  %v387 = vpack.c.b16 %v333, %v332
  %v388 = vpack.c.b16 %v335, %v334
  %v389 = vpack.c.b16 %v337, %v336
  %v390 = vpack.c.b16 %v339, %v338
  %v391 = vpack.c.b16 %v341, %v340
  %v392 = vpack.c.b16 %v343, %v342
  %v393 = vpack.c.b16 %v345, %v344
  %v394 = vpack.c.b16 %v347, %v346
  %v395 = vpack.c.b16 %v349, %v348
  %v396 = vpack.c.b16 %v351, %v350
  %v397 = vpack.c.b16 %v353, %v352
  %v398 = vpack.c.b16 %v355, %v354
  %v399 = vpack.c.b16 %v357, %v356
  %v400 = vpack.c.b16 %v359, %v358
  %v401 = vpack.c.b16 %v361, %v360
  %v402 = vpack.c.b16 %v363, %v362
  %v403 = vpack.c.b16 %v365, %v364
  %v404 = vpack.c.b16 %v367, %v366
  %v405 = vpack.c.b16 %v369, %v368
  %v406 = vpack.c.b16 %v371, %v370
  %v407 = vpack.c.b16 %v373, %v372
  %v408 = vpack.c.b16 %v375, %v374
  %v409 = vpack.c.b16 %v377, %v376
  %442 = vmatpush.bf16.msra.mxu0 %v385
  %443 = vmatpush.bf16.msra.mxu0 %v384
  %444 = vmatpush.bf16.msra.mxu0 %v383
  %445 = vmatpush.bf16.msra.mxu0 %v382
  %446 = vmatpush.bf16.msra.mxu0 %v381
  %447 = vmatpush.bf16.msra.mxu0 %v380
  %448 = vmatpush.bf16.msra.mxu0 %v379
  %449 = vmatpush.bf16.msra.mxu0 %v378
  %450 = vmatmul.bf16.gmra.mxu0 %v194
  %v451 = vpop.f32.mrf.mxu0
  %v452 = vadd.f32 %v108, %v451
  %v453 = vpop.f32.mrf.mxu0
  %v454 = vadd.f32 %v108, %v453
  %455 = vmatmul.bf16.gmra.mxu0 %v198
  %v456 = vpop.f32.mrf.mxu0
  %v457 = vadd.f32 %v108, %v456
  %v458 = vpop.f32.mrf.mxu0
  %v459 = vadd.f32 %v108, %v458
  %460 = vmatmul.bf16.gmra.mxu0 %v202
  %v461 = vpop.f32.mrf.mxu0
  %v462 = vadd.f32 %v108, %v461
  %v463 = vpop.f32.mrf.mxu0
  %v464 = vadd.f32 %v108, %v463
  %465 = vmatmul.bf16.gmra.mxu0 %v206
  %v466 = vpop.f32.mrf.mxu0
  %v467 = vadd.f32 %v108, %v466
  %v468 = vpop.f32.mrf.mxu0
  %v469 = vadd.f32 %v108, %v468
  %470 = vmatmul.bf16.gmra.mxu0 %v210
  %v471 = vpop.f32.mrf.mxu0
  %v472 = vadd.f32 %v108, %v471
  %v473 = vpop.f32.mrf.mxu0
  %v474 = vadd.f32 %v108, %v473
  %475 = vmatmul.bf16.gmra.mxu0 %v214
  %v476 = vpop.f32.mrf.mxu0
  %v477 = vadd.f32 %v108, %v476
  %v478 = vpop.f32.mrf.mxu0
  %v479 = vadd.f32 %v108, %v478
  %480 = vmatmul.bf16.gmra.mxu0 %v218
  %v481 = vpop.f32.mrf.mxu0
  %v482 = vadd.f32 %v108, %v481
  %v483 = vpop.f32.mrf.mxu0
  %v484 = vadd.f32 %v108, %v483
  %485 = vdwg.mxu0
  %486 = vmatpush.bf16.msra.mxu0 %v393
  %487 = vmatpush.bf16.msra.mxu0 %v392
  %488 = vmatpush.bf16.msra.mxu0 %v391
  %489 = vmatpush.bf16.msra.mxu0 %v390
  %490 = vmatpush.bf16.msra.mxu0 %v389
  %491 = vmatpush.bf16.msra.mxu0 %v388
  %492 = vmatpush.bf16.msra.mxu0 %v387
  %493 = vmatpush.bf16.msra.mxu0 %v386
  %494 = vmatmul.bf16.gmra.mxu0 %v195
  %v495 = vpop.f32.mrf.mxu0
  %v496 = vadd.f32 %v452, %v495
  %v497 = vpop.f32.mrf.mxu0
  %v498 = vadd.f32 %v454, %v497
  %499 = vmatmul.bf16.gmra.mxu0 %v199
  %v500 = vpop.f32.mrf.mxu0
  %v501 = vadd.f32 %v457, %v500
  %v502 = vpop.f32.mrf.mxu0
  %v503 = vadd.f32 %v459, %v502
  %504 = vmatmul.bf16.gmra.mxu0 %v203
  %v505 = vpop.f32.mrf.mxu0
  %v506 = vadd.f32 %v462, %v505
  %v507 = vpop.f32.mrf.mxu0
  %v508 = vadd.f32 %v464, %v507
  %509 = vmatmul.bf16.gmra.mxu0 %v207
  %v510 = vpop.f32.mrf.mxu0
  %v511 = vadd.f32 %v467, %v510
  %v512 = vpop.f32.mrf.mxu0
  %v513 = vadd.f32 %v469, %v512
  %514 = vmatmul.bf16.gmra.mxu0 %v211
  %v515 = vpop.f32.mrf.mxu0
  %v516 = vadd.f32 %v472, %v515
  %v517 = vpop.f32.mrf.mxu0
  %v518 = vadd.f32 %v474, %v517
  %519 = vmatmul.bf16.gmra.mxu0 %v215
  %v520 = vpop.f32.mrf.mxu0
  %v521 = vadd.f32 %v477, %v520
  %v522 = vpop.f32.mrf.mxu0
  %v523 = vadd.f32 %v479, %v522
  %524 = vmatmul.bf16.gmra.mxu0 %v219
  %v525 = vpop.f32.mrf.mxu0
  %v526 = vadd.f32 %v482, %v525
  %v527 = vpop.f32.mrf.mxu0
  %v528 = vadd.f32 %v484, %v527
  %529 = vdwg.mxu0
  %530 = vmatpush.bf16.msra.mxu0 %v401
  %531 = vmatpush.bf16.msra.mxu0 %v400
  %532 = vmatpush.bf16.msra.mxu0 %v399
  %533 = vmatpush.bf16.msra.mxu0 %v398
  %534 = vmatpush.bf16.msra.mxu0 %v397
  %535 = vmatpush.bf16.msra.mxu0 %v396
  %536 = vmatpush.bf16.msra.mxu0 %v395
  %537 = vmatpush.bf16.msra.mxu0 %v394
  %538 = vmatmul.bf16.gmra.mxu0 %v196
  %v539 = vpop.f32.mrf.mxu0
  %v540 = vadd.f32 %v496, %v539
  %v541 = vpop.f32.mrf.mxu0
  %v542 = vadd.f32 %v498, %v541
  %543 = vmatmul.bf16.gmra.mxu0 %v200
  %v544 = vpop.f32.mrf.mxu0
  %v545 = vadd.f32 %v501, %v544
  %v546 = vpop.f32.mrf.mxu0
  %v547 = vadd.f32 %v503, %v546
  %548 = vmatmul.bf16.gmra.mxu0 %v204
  %v549 = vpop.f32.mrf.mxu0
  %v550 = vadd.f32 %v506, %v549
  %v551 = vpop.f32.mrf.mxu0
  %v552 = vadd.f32 %v508, %v551
  %553 = vmatmul.bf16.gmra.mxu0 %v208
  %v554 = vpop.f32.mrf.mxu0
  %v555 = vadd.f32 %v511, %v554
  %v556 = vpop.f32.mrf.mxu0
  %v557 = vadd.f32 %v513, %v556
  %558 = vmatmul.bf16.gmra.mxu0 %v212
  %v559 = vpop.f32.mrf.mxu0
  %v560 = vadd.f32 %v516, %v559
  %v561 = vpop.f32.mrf.mxu0
  %v562 = vadd.f32 %v518, %v561
  %563 = vmatmul.bf16.gmra.mxu0 %v216
  %v564 = vpop.f32.mrf.mxu0
  %v565 = vadd.f32 %v521, %v564
  %v566 = vpop.f32.mrf.mxu0
  %v567 = vadd.f32 %v523, %v566
  %568 = vmatmul.bf16.gmra.mxu0 %v220
  %v569 = vpop.f32.mrf.mxu0
  %v570 = vadd.f32 %v526, %v569
  %v571 = vpop.f32.mrf.mxu0
  %v572 = vadd.f32 %v528, %v571
  %573 = vdwg.mxu0
  %574 = vmatpush.bf16.msra.mxu0 %v409
  %575 = vmatpush.bf16.msra.mxu0 %v408
  %576 = vmatpush.bf16.msra.mxu0 %v407
  %577 = vmatpush.bf16.msra.mxu0 %v406
  %578 = vmatpush.bf16.msra.mxu0 %v405
  %579 = vmatpush.bf16.msra.mxu0 %v404
  %580 = vmatpush.bf16.msra.mxu0 %v403
  %581 = vmatpush.bf16.msra.mxu0 %v402
  %582 = vmatmul.bf16.gmra.mxu0 %v197
  %v583 = vpop.f32.mrf.mxu0
  %v584 = vadd.f32 %v540, %v583
  %v585 = vpop.f32.mrf.mxu0
  %v586 = vadd.f32 %v542, %v585
  %587 = vmatmul.bf16.gmra.mxu0 %v201
  %v588 = vpop.f32.mrf.mxu0
  %v589 = vadd.f32 %v545, %v588
  %v590 = vpop.f32.mrf.mxu0
  %v591 = vadd.f32 %v547, %v590
  %592 = vmatmul.bf16.gmra.mxu0 %v205
  %v593 = vpop.f32.mrf.mxu0
  %v594 = vadd.f32 %v550, %v593
  %v595 = vpop.f32.mrf.mxu0
  %v596 = vadd.f32 %v552, %v595
  %597 = vmatmul.bf16.gmra.mxu0 %v209
  %v598 = vpop.f32.mrf.mxu0
  %v599 = vadd.f32 %v555, %v598
  %v600 = vpop.f32.mrf.mxu0
  %v601 = vadd.f32 %v557, %v600
  %602 = vmatmul.bf16.gmra.mxu0 %v213
  %v603 = vpop.f32.mrf.mxu0
  %v604 = vadd.f32 %v560, %v603
  %v605 = vpop.f32.mrf.mxu0
  %v606 = vadd.f32 %v562, %v605
  %607 = vmatmul.bf16.gmra.mxu0 %v217
  %v608 = vpop.f32.mrf.mxu0
  %v609 = vadd.f32 %v565, %v608
  %v610 = vpop.f32.mrf.mxu0
  %v611 = vadd.f32 %v567, %v610
  %612 = vmatmul.bf16.gmra.mxu0 %v221
  %v613 = vpop.f32.mrf.mxu0
  %v614 = vadd.f32 %v570, %v613
  %v615 = vpop.f32.mrf.mxu0
  %v616 = vadd.f32 %v572, %v615
  %617 = vdwg.mxu0
  %v618 = vsub.f32 0.0, %v584
  %v619 = vsub.f32 0.0, %v586
  %v620 = vsub.f32 0.0, %v589
  %v621 = vsub.f32 0.0, %v591
  %v622 = vsub.f32 0.0, %v594
  %v623 = vsub.f32 0.0, %v596
  %v624 = vsub.f32 0.0, %v599
  %v625 = vsub.f32 0.0, %v601
  %v626 = vsub.f32 0.0, %v604
  %v627 = vsub.f32 0.0, %v606
  %v628 = vsub.f32 0.0, %v609
  %v629 = vsub.f32 0.0, %v611
  %v630 = vsub.f32 0.0, %v614
  %v631 = vsub.f32 0.0, %v616
  %v632 = vmul.f32 %v618, 1.442695
  %v633 = vpow.pop %v632
  %v634 = vmul.f32 %v619, 1.442695
  %v635 = vpow.pop %v634
  %v636 = vmul.f32 %v620, 1.442695
  %v637 = vpow.pop %v636
  %v638 = vmul.f32 %v621, 1.442695
  %v639 = vpow.pop %v638
  %v640 = vmul.f32 %v622, 1.442695
  %v641 = vpow.pop %v640
  %v642 = vmul.f32 %v623, 1.442695
  %v643 = vpow.pop %v642
  %v644 = vmul.f32 %v624, 1.442695
  %v645 = vpow.pop %v644
  %v646 = vmul.f32 %v625, 1.442695
  %v647 = vpow.pop %v646
  %v648 = vmul.f32 %v626, 1.442695
  %v649 = vpow.pop %v648
  %v650 = vmul.f32 %v627, 1.442695
  %v651 = vpow.pop %v650
  %v652 = vmul.f32 %v628, 1.442695
  %v653 = vpow.pop %v652
  %v654 = vmul.f32 %v629, 1.442695
  %v655 = vpow.pop %v654
  %v656 = vmul.f32 %v630, 1.442695
  %v657 = vpow.pop %v656
  %v658 = vmul.f32 %v631, 1.442695
  %v659 = vpow.pop %v658
  %v660 = vadd.f32 %v633, 1.0
  %v661 = vadd.f32 %v635, 1.0
  %v662 = vadd.f32 %v637, 1.0
  %v663 = vadd.f32 %v639, 1.0
  %v664 = vadd.f32 %v641, 1.0
  %v665 = vadd.f32 %v643, 1.0
  %v666 = vadd.f32 %v645, 1.0
  %v667 = vadd.f32 %v647, 1.0
  %v668 = vadd.f32 %v649, 1.0
  %v669 = vadd.f32 %v651, 1.0
  %v670 = vadd.f32 %v653, 1.0
  %v671 = vadd.f32 %v655, 1.0
  %v672 = vadd.f32 %v657, 1.0
  %v673 = vadd.f32 %v659, 1.0
  %v674 = vrcp.pop %v660
  %v675 = vrcp.pop %v661
  %v676 = vrcp.pop %v662
  %v677 = vrcp.pop %v663
  %v678 = vrcp.pop %v664
  %v679 = vrcp.pop %v665
  %v680 = vrcp.pop %v666
  %v681 = vrcp.pop %v667
  %v682 = vrcp.pop %v668
  %v683 = vrcp.pop %v669
  %v684 = vrcp.pop %v670
  %v685 = vrcp.pop %v671
  %v686 = vrcp.pop %v672
  %v687 = vrcp.pop %v673
  %v688 = vmul.f32 %v584, %v674
  %v689 = vmul.f32 %v586, %v675
  %v690 = vmul.f32 %v589, %v676
  %v691 = vmul.f32 %v591, %v677
  %v692 = vmul.f32 %v594, %v678
  %v693 = vmul.f32 %v596, %v679
  %v694 = vmul.f32 %v599, %v680
  %v695 = vmul.f32 %v601, %v681
  %v696 = vmul.f32 %v604, %v682
  %v697 = vmul.f32 %v606, %v683
  %v698 = vmul.f32 %v609, %v684
  %v699 = vmul.f32 %v611, %v685
  %v700 = vmul.f32 %v614, %v686
  %v701 = vmul.f32 %v616, %v687
  %702 = vst [vmem:[%s3] sm:$0xff] %v688
  %703 = vst [vmem:[%s3 + $0x8] sm:$0xff] %v689
  %704 = vst [vmem:[%s3 + $0x10] sm:$0xff] %v690
  %705 = vst [vmem:[%s3 + $0x18] sm:$0xff] %v691
  %706 = vst [vmem:[%s3 + $0x20] sm:$0xff] %v692
  %707 = vst [vmem:[%s3 + $0x28] sm:$0xff] %v693
  %708 = vst [vmem:[%s3 + $0x30] sm:$0xff] %v694
  %709 = vst [vmem:[%s3 + $0x38] sm:$0xff] %v695
  %710 = vst [vmem:[%s3 + $0x40] sm:$0xff] %v696
  %711 = vst [vmem:[%s3 + $0x48] sm:$0xff] %v697
  %712 = vst [vmem:[%s3 + $0x50] sm:$0xff] %v698
  %713 = vst [vmem:[%s3 + $0x58] sm:$0xff] %v699
  %714 = vst [vmem:[%s3 + $0x60] sm:$0xff] %v700
  %715 = vst [vmem:[%s3 + $0x68] sm:$0xff] %v701
  // Predicated region
  $region14: #{netg_forward.18} parent=0 // pred_check
    _
  $region15: #{netg_forward.18} parent=0 // pred_check_branch
    %717 = sbr.rel (0) target = $region17
  $region16: #{netg_forward.18} parent=0 // pred_region
    _
  $region17: #{netg_forward.18} parent=0 // pred_fallthru
    _
  // Predicated region
  $region18: #{netg_forward.18} parent=0 // pred_check
    _
  $region19: #{netg_forward.18} parent=0 // pred_check_branch
    %719 = sbr.rel (0) target = $region21
  $region20: #{netg_forward.18} parent=0 // pred_region
    _
  $region21: #{netg_forward.18} parent=0 // pred_fallthru
    _

// kernel: netg_forward.19
$region0: #{netg_forward.19}
  #allocation0 [shape = 'u32[]', space=smem, size = 0x4, offset = 0x4, fixed_abs, tag = 'smem constant byte address 0x4 - core index']
  #allocation1 [shape = 'u32[72,128]{1,0:T(1,128)}', space=vmem, size = 0x9000, scoped, tag = 'internal scratch']
  %s0 = inlined_call_operand.vmem [shape: bf16[400,128], index: 0, kind: input, shape index: {}]
  %s1 = inlined_call_operand.vmem [shape: bf16[128,128], index: 1, kind: input, shape index: {}]
  %s2 = inlined_call_operand.vmem [shape: f32[1,128], index: 2, kind: input, shape index: {}]
  %s3 = inlined_call_operand.vmem [shape: f32[400,128], index: 3, kind: output, shape index: {}]
  %s4 = sld [smem:[#allocation0]]
  $region22: #{netg_forward.19} parent=0
    _
  %s6 = ssub.s32 1, %s4
  %s7 = scalar_select 0, %s6, %s4
  // Predicated region
  $region2: #{netg_forward.19} parent=0 // pred_check
    _
  $region3: #{netg_forward.19} parent=0 // pred_check_branch
    %9 = sbr.rel (0) target = $region5
  $region4: #{netg_forward.19} parent=0 // pred_region
    _
  $region5: #{netg_forward.19} parent=0 // pred_fallthru
    _
  // Predicated region
  $region6: #{netg_forward.19} parent=0 // pred_check
    _
  $region7: #{netg_forward.19} parent=0 // pred_check_branch
    %11 = sbr.rel (0) target = $region9
  $region8: #{netg_forward.19} parent=0 // pred_region
    _
  $region9: #{netg_forward.19} parent=0 // pred_fallthru
    _
  // Predicated region
  $region10: #{netg_forward.19} parent=0 // pred_check
    _
  $region11: #{netg_forward.19} parent=0 // pred_check_branch
    %13 = sbr.rel (0) target = $region13
  $region12: #{netg_forward.19} parent=0 // pred_region
    _
  $region13: #{netg_forward.19} parent=0 // pred_fallthru
    _
  %v14 = vld [vmem:[%s0] sm:$0xf]
  %v15 = vld [vmem:[%s0 + $0x4] sm:$0xf]
  %v16 = vld [vmem:[%s0 + $0x8] sm:$0xf]
  %v17 = vld [vmem:[%s0 + $0xc] sm:$0xf]
  %v18 = vld [vmem:[%s0 + $0x10] sm:$0xf]
  %v19 = vld [vmem:[%s0 + $0x14] sm:$0xf]
  %v20 = vld [vmem:[%s0 + $0x18] sm:$0xf]
  %v21 = vld [vmem:[%s0 + $0x1c] sm:$0xf]
  %v22 = vld [vmem:[%s0 + $0x20] sm:$0xf]
  %v23 = vld [vmem:[%s0 + $0x24] sm:$0xf]
  %v24 = vld [vmem:[%s0 + $0x28] sm:$0xf]
  %v25 = vld [vmem:[%s0 + $0x2c] sm:$0xf]
  %v26 = vld [vmem:[%s0 + $0x30] sm:$0xf]
  %v27 = vld [vmem:[%s0 + $0x34] sm:$0xf]
  %v28 = vld [vmem:[%s0 + $0x38] sm:$0xf]
  %v29 = vld [vmem:[%s0 + $0x3c] sm:$0xf]
  %v30 = vld [vmem:[%s0 + $0x40] sm:$0xf]
  %v31 = vld [vmem:[%s0 + $0x44] sm:$0xf]
  %v32 = vld [vmem:[%s0 + $0x48] sm:$0xf]
  %v33 = vld [vmem:[%s0 + $0x4c] sm:$0xf]
  %v34 = vld [vmem:[%s0 + $0x50] sm:$0xf]
  %v35 = vld [vmem:[%s0 + $0x54] sm:$0xf]
  %v36 = vld [vmem:[%s0 + $0x58] sm:$0xf]
  %v37 = vld [vmem:[%s0 + $0x5c] sm:$0xf]
  %v38 = vld [vmem:[%s0 + $0x60] sm:$0xf]
  %v39 = vld [vmem:[%s0 + $0x64] sm:$0xf]
  %v40 = vld [vmem:[%s0 + $0x68] sm:$0xf]
  %v41 = vld [vmem:[%s0 + $0x6c] sm:$0xf]
  %v42 = vld [vmem:[%s0 + $0x70] sm:$0xf]
  %v43 = vld [vmem:[%s0 + $0x74] sm:$0xf]
  %v44 = vld [vmem:[%s0 + $0x78] sm:$0xf]
  %v45 = vld [vmem:[%s0 + $0x7c] sm:$0xf]
  %v46 = vld [vmem:[%s0 + $0x80] sm:$0xf]
  %v47 = vld [vmem:[%s0 + $0x84] sm:$0xf]
  %v48 = vld [vmem:[%s0 + $0x88] sm:$0xf]
  %v49 = vld [vmem:[%s0 + $0x8c] sm:$0xf]
  %v50 = vld [vmem:[%s0 + $0x90] sm:$0xf]
  %v51 = vld [vmem:[%s0 + $0x94] sm:$0xf]
  %v52 = vld [vmem:[%s0 + $0x98] sm:$0xf]
  %v53 = vld [vmem:[%s0 + $0x9c] sm:$0xf]
  %v54 = vld [vmem:[%s0 + $0xa0] sm:$0xf]
  %v55 = vld [vmem:[%s0 + $0xa4] sm:$0xf]
  %v56 = vld [vmem:[%s0 + $0xa8] sm:$0xf]
  %v57 = vld [vmem:[%s0 + $0xac] sm:$0xf]
  %v58 = vld [vmem:[%s0 + $0xb0] sm:$0xf]
  %v59 = vld [vmem:[%s0 + $0xb4] sm:$0xf]
  %v60 = vld [vmem:[%s0 + $0xb8] sm:$0xf]
  %v61 = vld [vmem:[%s0 + $0xbc] sm:$0xf]
  %v62 = vld [vmem:[%s0 + $0xc0] sm:$0xf]
  %v63 = vld [vmem:[%s0 + $0xc4] sm:$0xf]
  %v64 = vld [vmem:[%s1] sm:$0xf]
  %v65 = vld [vmem:[%s1 + $0x4] sm:$0xf]
  %v66 = vld [vmem:[%s1 + $0x8] sm:$0xf]
  %v67 = vld [vmem:[%s1 + $0xc] sm:$0xf]
  %v68 = vld [vmem:[%s1 + $0x10] sm:$0xf]
  %v69 = vld [vmem:[%s1 + $0x14] sm:$0xf]
  %v70 = vld [vmem:[%s1 + $0x18] sm:$0xf]
  %v71 = vld [vmem:[%s1 + $0x1c] sm:$0xf]
  %v72 = vld [vmem:[%s1 + $0x20] sm:$0xf]
  %v73 = vld [vmem:[%s1 + $0x24] sm:$0xf]
  %v74 = vld [vmem:[%s1 + $0x28] sm:$0xf]
  %v75 = vld [vmem:[%s1 + $0x2c] sm:$0xf]
  %v76 = vld [vmem:[%s1 + $0x30] sm:$0xf]
  %v77 = vld [vmem:[%s1 + $0x34] sm:$0xf]
  %v78 = vld [vmem:[%s1 + $0x38] sm:$0xf]
  %v79 = vld [vmem:[%s1 + $0x3c] sm:$0xf]
  %v80 = vld [vmem:[%s2] sm:$0x1]
  %v82 = vperm.slane %v80, 0
  %v134 = vunpack.c.l.b16 %v14
  %v135 = vunpack.c.l.b16 %v15
  %v136 = vunpack.c.l.b16 %v16
  %v137 = vunpack.c.l.b16 %v17
  %v138 = vunpack.c.l.b16 %v18
  %v139 = vunpack.c.l.b16 %v19
  %v140 = vunpack.c.l.b16 %v20
  %v141 = vunpack.c.l.b16 %v21
  %v142 = vunpack.c.l.b16 %v22
  %v143 = vunpack.c.l.b16 %v23
  %v144 = vunpack.c.l.b16 %v24
  %v145 = vunpack.c.l.b16 %v25
  %v146 = vunpack.c.l.b16 %v26
  %v147 = vunpack.c.l.b16 %v27
  %v148 = vunpack.c.l.b16 %v28
  %v149 = vunpack.c.l.b16 %v29
  %v150 = vunpack.c.l.b16 %v30
  %v151 = vunpack.c.l.b16 %v31
  %v152 = vunpack.c.l.b16 %v32
  %v153 = vunpack.c.l.b16 %v33
  %v154 = vunpack.c.l.b16 %v34
  %v155 = vunpack.c.l.b16 %v35
  %v156 = vunpack.c.l.b16 %v36
  %v157 = vunpack.c.l.b16 %v37
  %v158 = vunpack.c.l.b16 %v38
  %v159 = vunpack.c.l.b16 %v39
  %v160 = vunpack.c.l.b16 %v40
  %v161 = vunpack.c.l.b16 %v41
  %v162 = vunpack.c.l.b16 %v42
  %v163 = vunpack.c.l.b16 %v43
  %v164 = vunpack.c.l.b16 %v44
  %v165 = vunpack.c.l.b16 %v45
  %v166 = vunpack.c.l.b16 %v46
  %v167 = vunpack.c.l.b16 %v47
  %v168 = vunpack.c.l.b16 %v48
  %v169 = vunpack.c.l.b16 %v49
  %v170 = vunpack.c.l.b16 %v50
  %v171 = vunpack.c.l.b16 %v51
  %v172 = vunpack.c.l.b16 %v52
  %v173 = vunpack.c.l.b16 %v53
  %v174 = vunpack.c.l.b16 %v54
  %v175 = vunpack.c.l.b16 %v55
  %v176 = vunpack.c.l.b16 %v56
  %v177 = vunpack.c.l.b16 %v57
  %v178 = vunpack.c.l.b16 %v58
  %v179 = vunpack.c.l.b16 %v59
  %v180 = vunpack.c.l.b16 %v60
  %v181 = vunpack.c.l.b16 %v61
  %v182 = vunpack.c.l.b16 %v62
  %v183 = vunpack.c.l.b16 %v63
  %v184 = vpack.c.b16 %v135, %v134
  %v185 = vpack.c.b16 %v137, %v136
  %v186 = vpack.c.b16 %v139, %v138
  %v187 = vpack.c.b16 %v141, %v140
  %v188 = vpack.c.b16 %v143, %v142
  %v189 = vpack.c.b16 %v145, %v144
  %v190 = vpack.c.b16 %v147, %v146
  %v191 = vpack.c.b16 %v149, %v148
  %v192 = vpack.c.b16 %v151, %v150
  %v193 = vpack.c.b16 %v153, %v152
  %v194 = vpack.c.b16 %v155, %v154
  %v195 = vpack.c.b16 %v157, %v156
  %v196 = vpack.c.b16 %v159, %v158
  %v197 = vpack.c.b16 %v161, %v160
  %v198 = vpack.c.b16 %v163, %v162
  %v199 = vpack.c.b16 %v165, %v164
  %v200 = vpack.c.b16 %v167, %v166
  %v201 = vpack.c.b16 %v169, %v168
  %v202 = vpack.c.b16 %v171, %v170
  %v203 = vpack.c.b16 %v173, %v172
  %v204 = vpack.c.b16 %v175, %v174
  %v205 = vpack.c.b16 %v177, %v176
  %v206 = vpack.c.b16 %v179, %v178
  %v207 = vpack.c.b16 %v181, %v180
  %v208 = vpack.c.b16 %v183, %v182
  %v250 = vunpack.c.l.b16 %v64
  %v251 = vunpack.c.l.b16 %v65
  %v252 = vunpack.c.l.b16 %v66
  %v253 = vunpack.c.l.b16 %v67
  %v254 = vunpack.c.l.b16 %v68
  %v255 = vunpack.c.l.b16 %v69
  %v256 = vunpack.c.l.b16 %v70
  %v257 = vunpack.c.l.b16 %v71
  %v258 = vunpack.c.l.b16 %v72
  %v259 = vunpack.c.l.b16 %v73
  %v260 = vunpack.c.l.b16 %v74
  %v261 = vunpack.c.l.b16 %v75
  %v262 = vunpack.c.l.b16 %v76
  %v263 = vunpack.c.l.b16 %v77
  %v264 = vunpack.c.l.b16 %v78
  %v265 = vunpack.c.l.b16 %v79
  %v266 = vpack.c.b16 %v251, %v250
  %v267 = vpack.c.b16 %v253, %v252
  %v268 = vpack.c.b16 %v255, %v254
  %v269 = vpack.c.b16 %v257, %v256
  %v270 = vpack.c.b16 %v259, %v258
  %v271 = vpack.c.b16 %v261, %v260
  %v272 = vpack.c.b16 %v263, %v262
  %v273 = vpack.c.b16 %v265, %v264
  %282 = vmatpush.bf16.msra.mxu0 %v273
  %283 = vmatpush.bf16.msra.mxu0 %v272
  %284 = vmatpush.bf16.msra.mxu0 %v271
  %285 = vmatpush.bf16.msra.mxu0 %v270
  %286 = vmatpush.bf16.msra.mxu0 %v269
  %287 = vmatpush.bf16.msra.mxu0 %v268
  %288 = vmatpush.bf16.msra.mxu0 %v267
  %289 = vmatpush.bf16.msra.mxu0 %v266
  %290 = vmatmul.bf16.gmra.mxu0 %v184
  %v291 = vpop.f32.mrf.mxu0
  %v292 = vadd.f32 %v82, %v291
  %v293 = vpop.f32.mrf.mxu0
  %v294 = vadd.f32 %v82, %v293
  %295 = vmatmul.bf16.gmra.mxu0 %v185
  %v296 = vpop.f32.mrf.mxu0
  %v297 = vadd.f32 %v82, %v296
  %v298 = vpop.f32.mrf.mxu0
  %v299 = vadd.f32 %v82, %v298
  %300 = vmatmul.bf16.gmra.mxu0 %v186
  %v301 = vpop.f32.mrf.mxu0
  %v302 = vadd.f32 %v82, %v301
  %v303 = vpop.f32.mrf.mxu0
  %v304 = vadd.f32 %v82, %v303
  %305 = vmatmul.bf16.gmra.mxu0 %v187
  %v306 = vpop.f32.mrf.mxu0
  %v307 = vadd.f32 %v82, %v306
  %v308 = vpop.f32.mrf.mxu0
  %v309 = vadd.f32 %v82, %v308
  %310 = vmatmul.bf16.gmra.mxu0 %v188
  %v311 = vpop.f32.mrf.mxu0
  %v312 = vadd.f32 %v82, %v311
  %v313 = vpop.f32.mrf.mxu0
  %v314 = vadd.f32 %v82, %v313
  %315 = vmatmul.bf16.gmra.mxu0 %v189
  %v316 = vpop.f32.mrf.mxu0
  %v317 = vadd.f32 %v82, %v316
  %v318 = vpop.f32.mrf.mxu0
  %v319 = vadd.f32 %v82, %v318
  %320 = vmatmul.bf16.gmra.mxu0 %v190
  %v321 = vpop.f32.mrf.mxu0
  %v322 = vadd.f32 %v82, %v321
  %v323 = vpop.f32.mrf.mxu0
  %v324 = vadd.f32 %v82, %v323
  %325 = vmatmul.bf16.gmra.mxu0 %v191
  %v326 = vpop.f32.mrf.mxu0
  %v327 = vadd.f32 %v82, %v326
  %v328 = vpop.f32.mrf.mxu0
  %v329 = vadd.f32 %v82, %v328
  %330 = vmatmul.bf16.gmra.mxu0 %v192
  %v331 = vpop.f32.mrf.mxu0
  %v332 = vadd.f32 %v82, %v331
  %v333 = vpop.f32.mrf.mxu0
  %v334 = vadd.f32 %v82, %v333
  %335 = vmatmul.bf16.gmra.mxu0 %v193
  %v336 = vpop.f32.mrf.mxu0
  %v337 = vadd.f32 %v82, %v336
  %v338 = vpop.f32.mrf.mxu0
  %v339 = vadd.f32 %v82, %v338
  %340 = vmatmul.bf16.gmra.mxu0 %v194
  %v341 = vpop.f32.mrf.mxu0
  %v342 = vadd.f32 %v82, %v341
  %v343 = vpop.f32.mrf.mxu0
  %v344 = vadd.f32 %v82, %v343
  %345 = vmatmul.bf16.gmra.mxu0 %v195
  %v346 = vpop.f32.mrf.mxu0
  %v347 = vadd.f32 %v82, %v346
  %v348 = vpop.f32.mrf.mxu0
  %v349 = vadd.f32 %v82, %v348
  %350 = vmatmul.bf16.gmra.mxu0 %v196
  %v351 = vpop.f32.mrf.mxu0
  %v352 = vadd.f32 %v82, %v351
  %v353 = vpop.f32.mrf.mxu0
  %v354 = vadd.f32 %v82, %v353
  %355 = vmatmul.bf16.gmra.mxu0 %v197
  %v356 = vpop.f32.mrf.mxu0
  %v357 = vadd.f32 %v82, %v356
  %v358 = vpop.f32.mrf.mxu0
  %v359 = vadd.f32 %v82, %v358
  %360 = vmatmul.bf16.gmra.mxu0 %v198
  %v361 = vpop.f32.mrf.mxu0
  %v362 = vadd.f32 %v82, %v361
  %v363 = vpop.f32.mrf.mxu0
  %v364 = vadd.f32 %v82, %v363
  %365 = vmatmul.bf16.gmra.mxu0 %v199
  %v366 = vpop.f32.mrf.mxu0
  %v367 = vadd.f32 %v82, %v366
  %v368 = vpop.f32.mrf.mxu0
  %v369 = vadd.f32 %v82, %v368
  %370 = vmatmul.bf16.gmra.mxu0 %v200
  %v371 = vpop.f32.mrf.mxu0
  %v372 = vadd.f32 %v82, %v371
  %v373 = vpop.f32.mrf.mxu0
  %v374 = vadd.f32 %v82, %v373
  %375 = vmatmul.bf16.gmra.mxu0 %v201
  %v376 = vpop.f32.mrf.mxu0
  %v377 = vadd.f32 %v82, %v376
  %v378 = vpop.f32.mrf.mxu0
  %v379 = vadd.f32 %v82, %v378
  %380 = vmatmul.bf16.gmra.mxu0 %v202
  %v381 = vpop.f32.mrf.mxu0
  %v382 = vadd.f32 %v82, %v381
  %v383 = vpop.f32.mrf.mxu0
  %v384 = vadd.f32 %v82, %v383
  %385 = vmatmul.bf16.gmra.mxu0 %v203
  %v386 = vpop.f32.mrf.mxu0
  %v387 = vadd.f32 %v82, %v386
  %v388 = vpop.f32.mrf.mxu0
  %v389 = vadd.f32 %v82, %v388
  %390 = vmatmul.bf16.gmra.mxu0 %v204
  %v391 = vpop.f32.mrf.mxu0
  %v392 = vadd.f32 %v82, %v391
  %v393 = vpop.f32.mrf.mxu0
  %v394 = vadd.f32 %v82, %v393
  %395 = vmatmul.bf16.gmra.mxu0 %v205
  %v396 = vpop.f32.mrf.mxu0
  %v397 = vadd.f32 %v82, %v396
  %v398 = vpop.f32.mrf.mxu0
  %v399 = vadd.f32 %v82, %v398
  %400 = vmatmul.bf16.gmra.mxu0 %v206
  %v401 = vpop.f32.mrf.mxu0
  %v402 = vadd.f32 %v82, %v401
  %v403 = vpop.f32.mrf.mxu0
  %v404 = vadd.f32 %v82, %v403
  %405 = vmatmul.bf16.gmra.mxu0 %v207
  %v406 = vpop.f32.mrf.mxu0
  %v407 = vadd.f32 %v82, %v406
  %v408 = vpop.f32.mrf.mxu0
  %v409 = vadd.f32 %v82, %v408
  %410 = vmatmul.bf16.gmra.mxu0 %v208
  %v411 = vpop.f32.mrf.mxu0
  %v412 = vadd.f32 %v82, %v411
  %v413 = vpop.f32.mrf.mxu0
  %v414 = vadd.f32 %v82, %v413
  %415 = vdwg.mxu0
  %v416 = vsub.f32 0.0, %v292
  %v417 = vsub.f32 0.0, %v294
  %v418 = vsub.f32 0.0, %v297
  %v419 = vsub.f32 0.0, %v299
  %v420 = vsub.f32 0.0, %v302
  %v421 = vsub.f32 0.0, %v304
  %v422 = vsub.f32 0.0, %v307
  %v423 = vsub.f32 0.0, %v309
  %v424 = vsub.f32 0.0, %v312
  %v425 = vsub.f32 0.0, %v314
  %v426 = vsub.f32 0.0, %v317
  %v427 = vsub.f32 0.0, %v319
  %v428 = vsub.f32 0.0, %v322
  %v429 = vsub.f32 0.0, %v324
  %v430 = vsub.f32 0.0, %v327
  %v431 = vsub.f32 0.0, %v329
  %v432 = vsub.f32 0.0, %v332
  %v433 = vsub.f32 0.0, %v334
  %v434 = vsub.f32 0.0, %v337
  %v435 = vsub.f32 0.0, %v339
  %v436 = vsub.f32 0.0, %v342
  %v437 = vsub.f32 0.0, %v344
  %v438 = vsub.f32 0.0, %v347
  %v439 = vsub.f32 0.0, %v349
  %v440 = vsub.f32 0.0, %v352
  %v441 = vsub.f32 0.0, %v354
  %v442 = vsub.f32 0.0, %v357
  %v443 = vsub.f32 0.0, %v359
  %v444 = vsub.f32 0.0, %v362
  %v445 = vsub.f32 0.0, %v364
  %v446 = vsub.f32 0.0, %v367
  %v447 = vsub.f32 0.0, %v369
  %v448 = vsub.f32 0.0, %v372
  %v449 = vsub.f32 0.0, %v374
  %v450 = vsub.f32 0.0, %v377
  %v451 = vsub.f32 0.0, %v379
  %v452 = vsub.f32 0.0, %v382
  %v453 = vsub.f32 0.0, %v384
  %v454 = vsub.f32 0.0, %v387
  %v455 = vsub.f32 0.0, %v389
  %v456 = vsub.f32 0.0, %v392
  %v457 = vsub.f32 0.0, %v394
  %v458 = vsub.f32 0.0, %v397
  %v459 = vsub.f32 0.0, %v399
  %v460 = vsub.f32 0.0, %v402
  %v461 = vsub.f32 0.0, %v404
  %v462 = vsub.f32 0.0, %v407
  %v463 = vsub.f32 0.0, %v409
  %v464 = vsub.f32 0.0, %v412
  %v465 = vsub.f32 0.0, %v414
  %v466 = vmul.f32 %v416, 1.442695
  %v467 = vpow.pop %v466
  %v468 = vmul.f32 %v417, 1.442695
  %v469 = vpow.pop %v468
  %v470 = vmul.f32 %v418, 1.442695
  %v471 = vpow.pop %v470
  %v472 = vmul.f32 %v419, 1.442695
  %v473 = vpow.pop %v472
  %v474 = vmul.f32 %v420, 1.442695
  %v475 = vpow.pop %v474
  %v476 = vmul.f32 %v421, 1.442695
  %v477 = vpow.pop %v476
  %v478 = vmul.f32 %v422, 1.442695
  %v479 = vpow.pop %v478
  %v480 = vmul.f32 %v423, 1.442695
  %v481 = vpow.pop %v480
  %v482 = vmul.f32 %v424, 1.442695
  %v483 = vpow.pop %v482
  %v484 = vmul.f32 %v425, 1.442695
  %v485 = vpow.pop %v484
  %v486 = vmul.f32 %v426, 1.442695
  %v487 = vpow.pop %v486
  %v488 = vmul.f32 %v427, 1.442695
  %v489 = vpow.pop %v488
  %v490 = vmul.f32 %v428, 1.442695
  %v491 = vpow.pop %v490
  %v492 = vmul.f32 %v429, 1.442695
  %v493 = vpow.pop %v492
  %v494 = vmul.f32 %v430, 1.442695
  %v495 = vpow.pop %v494
  %v496 = vmul.f32 %v431, 1.442695
  %v497 = vpow.pop %v496
  %v498 = vmul.f32 %v432, 1.442695
  %v499 = vpow.pop %v498
  %v500 = vmul.f32 %v433, 1.442695
  %v501 = vpow.pop %v500
  %v502 = vmul.f32 %v434, 1.442695
  %v503 = vpow.pop %v502
  %v504 = vmul.f32 %v435, 1.442695
  %v505 = vpow.pop %v504
  %v506 = vmul.f32 %v436, 1.442695
  %v507 = vpow.pop %v506
  %v508 = vmul.f32 %v437, 1.442695
  %v509 = vpow.pop %v508
  %v510 = vmul.f32 %v438, 1.442695
  %v511 = vpow.pop %v510
  %v512 = vmul.f32 %v439, 1.442695
  %v513 = vpow.pop %v512
  %v514 = vmul.f32 %v440, 1.442695
  %v515 = vpow.pop %v514
  %v516 = vmul.f32 %v441, 1.442695
  %v517 = vpow.pop %v516
  %v518 = vmul.f32 %v442, 1.442695
  %v519 = vpow.pop %v518
  %v520 = vmul.f32 %v443, 1.442695
  %v521 = vpow.pop %v520
  %v522 = vmul.f32 %v444, 1.442695
  %v523 = vpow.pop %v522
  %v524 = vmul.f32 %v445, 1.442695
  %v525 = vpow.pop %v524
  %v526 = vmul.f32 %v446, 1.442695
  %v527 = vpow.pop %v526
  %v528 = vmul.f32 %v447, 1.442695
  %v529 = vpow.pop %v528
  %v530 = vmul.f32 %v448, 1.442695
  %v531 = vpow.pop %v530
  %v532 = vmul.f32 %v449, 1.442695
  %v533 = vpow.pop %v532
  %v534 = vmul.f32 %v450, 1.442695
  %v535 = vpow.pop %v534
  %v536 = vmul.f32 %v451, 1.442695
  %v537 = vpow.pop %v536
  %v538 = vmul.f32 %v452, 1.442695
  %v539 = vpow.pop %v538
  %v540 = vmul.f32 %v453, 1.442695
  %v541 = vpow.pop %v540
  %v542 = vmul.f32 %v454, 1.442695
  %v543 = vpow.pop %v542
  %v544 = vmul.f32 %v455, 1.442695
  %v545 = vpow.pop %v544
  %v546 = vmul.f32 %v456, 1.442695
  %v547 = vpow.pop %v546
  %v548 = vmul.f32 %v457, 1.442695
  %v549 = vpow.pop %v548
  %v550 = vmul.f32 %v458, 1.442695
  %v551 = vpow.pop %v550
  %v552 = vmul.f32 %v459, 1.442695
  %v553 = vpow.pop %v552
  %v554 = vmul.f32 %v460, 1.442695
  %v555 = vpow.pop %v554
  %v556 = vmul.f32 %v461, 1.442695
  %v557 = vpow.pop %v556
  %v558 = vmul.f32 %v462, 1.442695
  %v559 = vpow.pop %v558
  %v560 = vmul.f32 %v463, 1.442695
  %v561 = vpow.pop %v560
  %v562 = vmul.f32 %v464, 1.442695
  %v563 = vpow.pop %v562
  %v564 = vmul.f32 %v465, 1.442695
  %v565 = vpow.pop %v564
  %v566 = vadd.f32 %v467, 1.0
  %v567 = vadd.f32 %v469, 1.0
  %v568 = vadd.f32 %v471, 1.0
  %v569 = vadd.f32 %v473, 1.0
  %v570 = vadd.f32 %v475, 1.0
  %v571 = vadd.f32 %v477, 1.0
  %v572 = vadd.f32 %v479, 1.0
  %v573 = vadd.f32 %v481, 1.0
  %v574 = vadd.f32 %v483, 1.0
  %v575 = vadd.f32 %v485, 1.0
  %v576 = vadd.f32 %v487, 1.0
  %v577 = vadd.f32 %v489, 1.0
  %v578 = vadd.f32 %v491, 1.0
  %v579 = vadd.f32 %v493, 1.0
  %v580 = vadd.f32 %v495, 1.0
  %v581 = vadd.f32 %v497, 1.0
  %v582 = vadd.f32 %v499, 1.0
  %v583 = vadd.f32 %v501, 1.0
  %v584 = vadd.f32 %v503, 1.0
  %v585 = vadd.f32 %v505, 1.0
  %v586 = vadd.f32 %v507, 1.0
  %v587 = vadd.f32 %v509, 1.0
  %v588 = vadd.f32 %v511, 1.0
  %v589 = vadd.f32 %v513, 1.0
  %v590 = vadd.f32 %v515, 1.0
  %v591 = vadd.f32 %v517, 1.0
  %v592 = vadd.f32 %v519, 1.0
  %v593 = vadd.f32 %v521, 1.0
  %v594 = vadd.f32 %v523, 1.0
  %v595 = vadd.f32 %v525, 1.0
  %v596 = vadd.f32 %v527, 1.0
  %v597 = vadd.f32 %v529, 1.0
  %v598 = vadd.f32 %v531, 1.0
  %v599 = vadd.f32 %v533, 1.0
  %v600 = vadd.f32 %v535, 1.0
  %v601 = vadd.f32 %v537, 1.0
  %v602 = vadd.f32 %v539, 1.0
  %v603 = vadd.f32 %v541, 1.0
  %v604 = vadd.f32 %v543, 1.0
  %v605 = vadd.f32 %v545, 1.0
  %v606 = vadd.f32 %v547, 1.0
  %v607 = vadd.f32 %v549, 1.0
  %v608 = vadd.f32 %v551, 1.0
  %v609 = vadd.f32 %v553, 1.0
  %v610 = vadd.f32 %v555, 1.0
  %v611 = vadd.f32 %v557, 1.0
  %v612 = vadd.f32 %v559, 1.0
  %v613 = vadd.f32 %v561, 1.0
  %v614 = vadd.f32 %v563, 1.0
  %v615 = vadd.f32 %v565, 1.0
  %v616 = vrcp.pop %v566
  %v617 = vrcp.pop %v567
  %v618 = vrcp.pop %v568
  %v619 = vrcp.pop %v569
  %v620 = vrcp.pop %v570
  %v621 = vrcp.pop %v571
  %v622 = vrcp.pop %v572
  %v623 = vrcp.pop %v573
  %v624 = vrcp.pop %v574
  %v625 = vrcp.pop %v575
  %v626 = vrcp.pop %v576
  %v627 = vrcp.pop %v577
  %v628 = vrcp.pop %v578
  %v629 = vrcp.pop %v579
  %v630 = vrcp.pop %v580
  %v631 = vrcp.pop %v581
  %v632 = vrcp.pop %v582
  %v633 = vrcp.pop %v583
  %v634 = vrcp.pop %v584
  %v635 = vrcp.pop %v585
  %v636 = vrcp.pop %v586
  %v637 = vrcp.pop %v587
  %v638 = vrcp.pop %v588
  %v639 = vrcp.pop %v589
  %v640 = vrcp.pop %v590
  %v641 = vrcp.pop %v591
  %v642 = vrcp.pop %v592
  %v643 = vrcp.pop %v593
  %v644 = vrcp.pop %v594
  %v645 = vrcp.pop %v595
  %v646 = vrcp.pop %v596
  %v647 = vrcp.pop %v597
  %v648 = vrcp.pop %v598
  %v649 = vrcp.pop %v599
  %v650 = vrcp.pop %v600
  %v651 = vrcp.pop %v601
  %v652 = vrcp.pop %v602
  %v653 = vrcp.pop %v603
  %v654 = vrcp.pop %v604
  %v655 = vrcp.pop %v605
  %v656 = vrcp.pop %v606
  %v657 = vrcp.pop %v607
  %v658 = vrcp.pop %v608
  %v659 = vrcp.pop %v609
  %v660 = vrcp.pop %v610
  %v661 = vrcp.pop %v611
  %v662 = vrcp.pop %v612
  %v663 = vrcp.pop %v613
  %v664 = vrcp.pop %v614
  %v665 = vrcp.pop %v615
  %v666 = vmul.f32 %v292, %v616
  %v667 = vmul.f32 %v294, %v617
  %v668 = vmul.f32 %v297, %v618
  %v669 = vmul.f32 %v299, %v619
  %v670 = vmul.f32 %v302, %v620
  %v671 = vmul.f32 %v304, %v621
  %v672 = vmul.f32 %v307, %v622
  %v673 = vmul.f32 %v309, %v623
  %v674 = vmul.f32 %v312, %v624
  %v675 = vmul.f32 %v314, %v625
  %v676 = vmul.f32 %v317, %v626
  %v677 = vmul.f32 %v319, %v627
  %v678 = vmul.f32 %v322, %v628
  %v679 = vmul.f32 %v324, %v629
  %v680 = vmul.f32 %v327, %v630
  %v681 = vmul.f32 %v329, %v631
  %v682 = vmul.f32 %v332, %v632
  %v683 = vmul.f32 %v334, %v633
  %v684 = vmul.f32 %v337, %v634
  %v685 = vmul.f32 %v339, %v635
  %v686 = vmul.f32 %v342, %v636
  %v687 = vmul.f32 %v344, %v637
  %v688 = vmul.f32 %v347, %v638
  %v689 = vmul.f32 %v349, %v639
  %v690 = vmul.f32 %v352, %v640
  %v691 = vmul.f32 %v354, %v641
  %v692 = vmul.f32 %v357, %v642
  %v693 = vmul.f32 %v359, %v643
  %v694 = vmul.f32 %v362, %v644
  %v695 = vmul.f32 %v364, %v645
  %v696 = vmul.f32 %v367, %v646
  %v697 = vmul.f32 %v369, %v647
  %v698 = vmul.f32 %v372, %v648
  %v699 = vmul.f32 %v374, %v649
  %v700 = vmul.f32 %v377, %v650
  %v701 = vmul.f32 %v379, %v651
  %v702 = vmul.f32 %v382, %v652
  %v703 = vmul.f32 %v384, %v653
  %v704 = vmul.f32 %v387, %v654
  %v705 = vmul.f32 %v389, %v655
  %v706 = vmul.f32 %v392, %v656
  %v707 = vmul.f32 %v394, %v657
  %v708 = vmul.f32 %v397, %v658
  %v709 = vmul.f32 %v399, %v659
  %v710 = vmul.f32 %v402, %v660
  %v711 = vmul.f32 %v404, %v661
  %v712 = vmul.f32 %v407, %v662
  %v713 = vmul.f32 %v409, %v663
  %v714 = vmul.f32 %v412, %v664
  %v715 = vmul.f32 %v414, %v665
  %716 = vst [vmem:[%s3] sm:$0xff] %v666
  %717 = vst [vmem:[%s3 + $0x8] sm:$0xff] %v667
  %718 = vst [vmem:[%s3 + $0x10] sm:$0xff] %v668
  %719 = vst [vmem:[%s3 + $0x18] sm:$0xff] %v669
  %720 = vst [vmem:[%s3 + $0x20] sm:$0xff] %v670
  %721 = vst [vmem:[%s3 + $0x28] sm:$0xff] %v671
  %722 = vst [vmem:[%s3 + $0x30] sm:$0xff] %v672
  %723 = vst [vmem:[%s3 + $0x38] sm:$0xff] %v673
  %724 = vst [vmem:[%s3 + $0x40] sm:$0xff] %v674
  %725 = vst [vmem:[%s3 + $0x48] sm:$0xff] %v675
  %726 = vst [vmem:[%s3 + $0x50] sm:$0xff] %v676
  %727 = vst [vmem:[%s3 + $0x58] sm:$0xff] %v677
  %728 = vst [vmem:[%s3 + $0x60] sm:$0xff] %v678
  %729 = vst [vmem:[%s3 + $0x68] sm:$0xff] %v679
  %730 = vst [vmem:[%s3 + $0x70] sm:$0xff] %v680
  %731 = vst [vmem:[%s3 + $0x78] sm:$0xff] %v681
  %732 = vst [vmem:[%s3 + $0x80] sm:$0xff] %v682
  %733 = vst [vmem:[%s3 + $0x88] sm:$0xff] %v683
  %734 = vst [vmem:[%s3 + $0x90] sm:$0xff] %v684
  %735 = vst [vmem:[%s3 + $0x98] sm:$0xff] %v685
  %736 = vst [vmem:[%s3 + $0xa0] sm:$0xff] %v686
  %737 = vst [vmem:[%s3 + $0xa8] sm:$0xff] %v687
  %738 = vst [vmem:[%s3 + $0xb0] sm:$0xff] %v688
  %739 = vst [vmem:[%s3 + $0xb8] sm:$0xff] %v689
  %740 = vst [vmem:[%s3 + $0xc0] sm:$0xff] %v690
  %741 = vst [vmem:[%s3 + $0xc8] sm:$0xff] %v691
  %742 = vst [vmem:[%s3 + $0xd0] sm:$0xff] %v692
  %743 = vst [vmem:[%s3 + $0xd8] sm:$0xff] %v693
  %744 = vst [vmem:[%s3 + $0xe0] sm:$0xff] %v694
  %745 = vst [vmem:[%s3 + $0xe8] sm:$0xff] %v695
  %746 = vst [vmem:[%s3 + $0xf0] sm:$0xff] %v696
  %747 = vst [vmem:[%s3 + $0xf8] sm:$0xff] %v697
  %748 = vst [vmem:[%s3 + $0x100] sm:$0xff] %v698
  %749 = vst [vmem:[%s3 + $0x108] sm:$0xff] %v699
  %750 = vst [vmem:[%s3 + $0x110] sm:$0xff] %v700
  %751 = vst [vmem:[%s3 + $0x118] sm:$0xff] %v701
  %752 = vst [vmem:[%s3 + $0x120] sm:$0xff] %v702
  %753 = vst [vmem:[%s3 + $0x128] sm:$0xff] %v703
  %754 = vst [vmem:[%s3 + $0x130] sm:$0xff] %v704
  %755 = vst [vmem:[%s3 + $0x138] sm:$0xff] %v705
  %756 = vst [vmem:[%s3 + $0x140] sm:$0xff] %v706
  %757 = vst [vmem:[%s3 + $0x148] sm:$0xff] %v707
  %758 = vst [vmem:[%s3 + $0x150] sm:$0xff] %v708
  %759 = vst [vmem:[%s3 + $0x158] sm:$0xff] %v709
  %760 = vst [vmem:[%s3 + $0x160] sm:$0xff] %v710
  %761 = vst [vmem:[%s3 + $0x168] sm:$0xff] %v711
  %762 = vst [vmem:[%s3 + $0x170] sm:$0xff] %v712
  %763 = vst [vmem:[%s3 + $0x178] sm:$0xff] %v713
  %764 = vst [vmem:[%s3 + $0x180] sm:$0xff] %v714
  %765 = vst [vmem:[%s3 + $0x188] sm:$0xff] %v715
  // Predicated region
  $region14: #{netg_forward.19} parent=0 // pred_check
    _
  $region15: #{netg_forward.19} parent=0 // pred_check_branch
    %767 = sbr.rel (0) target = $region17
  $region16: #{netg_forward.19} parent=0 // pred_region
    _
  $region17: #{netg_forward.19} parent=0 // pred_fallthru
    _
  // Predicated region
  $region18: #{netg_forward.19} parent=0 // pred_check
    _
  $region19: #{netg_forward.19} parent=0 // pred_check_branch
    %769 = sbr.rel (0) target = $region21
  $region20: #{netg_forward.19} parent=0 // pred_region
    _
  $region21: #{netg_forward.19} parent=0 // pred_fallthru
    _

// kernel: netg_forward.20
$region0: #{netg_forward.20}
  #allocation0 [shape = 'u32[]', space=smem, size = 0x4, offset = 0x4, fixed_abs, tag = 'smem constant byte address 0x4 - core index']
  #allocation1 [shape = 'u32[72,128]{1,0:T(1,128)}', space=vmem, size = 0x9000, scoped, tag = 'internal scratch']
  %s0 = inlined_call_operand.vmem [shape: bf16[464,256], index: 0, kind: input, shape index: {}]
  %s1 = inlined_call_operand.vmem [shape: bf16[256,512], index: 1, kind: input, shape index: {}]
  %s2 = inlined_call_operand.vmem [shape: f32[1,512], index: 2, kind: input, shape index: {}]
  %s3 = inlined_call_operand.vmem [shape: f32[464,512], index: 3, kind: output, shape index: {}]
  %s4 = sld [smem:[#allocation0]]
  $region102: #{netg_forward.20} parent=0
    _
  %s6 = ssub.s32 1, %s4
  %s7 = scalar_select 0, %s6, %s4
  $region1: #{netg_forward.20} parent=0
    #allocation2 [shape = 'u8[262144]{0}', space=vmem, size = 0x40000, scoped, tag = 'input window, operand 1']
    #allocation3 [shape = 'u8[950272]{0}', space=vmem, size = 0xe8000, scoped, tag = 'output window, operand 0']
    loop: start=0, step=1, limit=4
    $region2: #{netg_forward.20} parent=1 // loop_pre_header
      _
    $region3: #{netg_forward.20} parent=1 // loop_header
      %s9 = sphi 0, %s13
      %p10 = scmp.ge.s32.totalorder %s9, 4
      %s16 = sphi 0, %s28
      %s17 = sphi 0, %s24
      %s18 = sphi 0, %s16
      %s19 = sphi 0, %s17
      %s20 = sphi 0, %s18
      %s21 = sphi 0, %s19
      %s31 = sphi 0, %s33
      %s34 = sphi 0, %s31
      %s35 = sphi 0, %s34
      %s51 = sphi 0, %s35
      %s57 = sphi 0, %s59
      %s60 = sphi 0, %s57
      %s61 = sphi 0, %s60
      %s77 = sphi 0, %s61
      %s83 = sphi 0, %s85
      %s86 = sphi 0, %s83
      %s87 = sphi 0, %s86
      %s103 = sphi 0, %s87
      %s111 = sphi 0, %s113
      %s114 = sphi 0, %s111
      %s115 = sphi 0, %s114
      %s131 = sphi 0, %s115
    $region4: #{netg_forward.20} parent=1 // loop_header_branch
      %12 = sbr.rel (%p10) target = $region8
    $region5: #{netg_forward.20} parent=1 // loop_body
      %s14 = ssub.s32 %s9, 1
      %s15 = ssub.s32 %s9, 2
      %s22 = sadd.s32 1, %s17
      %p23 = scmp.ge.s32.totalorder %s22, 2
      %s24 = scalar_select %p23, 0, %s22
      %s25 = sadd.s32 1, %s16
      %s26 = scalar_select %p23, %s25, %s16
      %p27 = scmp.ge.s32.totalorder %s26, 1
      %s28 = scalar_select %p27, 0, %s26
      %s29 = ssub.s32 %s16, %s28
      %p30 = scmp.eq.s32.totalorder %s29, 0
      %s32 = sadd.s32 %s31, 1
      %s33 = scalar_select %p30, %s31, %s32
      %p36 = pneg %p30
      %p37 = scmp.eq.s32.totalorder %s9, 1
      %p38 = por %p36, %p37
      %p39 = scmp.ne.s32.totalorder %s31, %s34
      %p40 = scmp.eq.s32.totalorder %s9, 0
      %p41 = por %p39, %p40
      %p42 = scmp.ne.s32.totalorder %s31, %s34
      %p43 = scmp.eq.s32.totalorder %s14, 1
      %p44 = por %p42, %p43
      %p45 = scmp.ne.s32.totalorder %s34, %s35
      %p46 = scmp.eq.s32.totalorder %s14, 0
      %p47 = por %p45, %p46
      %p48 = scmp.ne.s32.totalorder %s34, %s35
      %p49 = scmp.eq.s32.totalorder %s15, 1
      %p50 = por %p48, %p49
      %p52 = scmp.ne.s32.totalorder %s35, %s51
      %p53 = scmp.eq.s32.totalorder %s15, 0
      %p54 = por %p52, %p53
      %s55 = ssub.s32 %s17, %s24
      %p56 = scmp.eq.s32.totalorder %s55, 0
      %s58 = sadd.s32 %s57, 1
      %s59 = scalar_select %p56, %s57, %s58
      %p62 = pneg %p56
      %p63 = scmp.eq.s32.totalorder %s9, 1
      %p64 = por %p62, %p63
      %p65 = scmp.ne.s32.totalorder %s57, %s60
      %p66 = scmp.eq.s32.totalorder %s9, 0
      %p67 = por %p65, %p66
      %p68 = scmp.ne.s32.totalorder %s57, %s60
      %p69 = scmp.eq.s32.totalorder %s14, 1
      %p70 = por %p68, %p69
      %p71 = scmp.ne.s32.totalorder %s60, %s61
      %p72 = scmp.eq.s32.totalorder %s14, 0
      %p73 = por %p71, %p72
      %p74 = scmp.ne.s32.totalorder %s60, %s61
      %p75 = scmp.eq.s32.totalorder %s15, 1
      %p76 = por %p74, %p75
      %p78 = scmp.ne.s32.totalorder %s61, %s77
      %p79 = scmp.eq.s32.totalorder %s15, 0
      %p80 = por %p78, %p79
      %s81 = ssub.s32 %s17, %s24
      %p82 = scmp.eq.s32.totalorder %s81, 0
      %s84 = sadd.s32 %s83, 1
      %s85 = scalar_select %p82, %s83, %s84
      %p88 = pneg %p82
      %p89 = scmp.eq.s32.totalorder %s9, 1
      %p90 = por %p88, %p89
      %p91 = scmp.ne.s32.totalorder %s83, %s86
      %p92 = scmp.eq.s32.totalorder %s9, 0
      %p93 = por %p91, %p92
      %p94 = scmp.ne.s32.totalorder %s83, %s86
      %p95 = scmp.eq.s32.totalorder %s14, 1
      %p96 = por %p94, %p95
      %p97 = scmp.ne.s32.totalorder %s86, %s87
      %p98 = scmp.eq.s32.totalorder %s14, 0
      %p99 = por %p97, %p98
      %p100 = scmp.ne.s32.totalorder %s86, %s87
      %p101 = scmp.eq.s32.totalorder %s15, 1
      %p102 = por %p100, %p101
      %p104 = scmp.ne.s32.totalorder %s87, %s103
      %p105 = scmp.eq.s32.totalorder %s15, 0
      %p106 = por %p104, %p105
      %s107 = ssub.s32 %s16, %s28
      %s108 = ssub.s32 %s17, %s24
      %s109 = sor.u32 %s107, %s108
      %p110 = scmp.eq.s32.totalorder %s109, 0
      %s112 = sadd.s32 %s111, 1
      %s113 = scalar_select %p110, %s111, %s112
      %p116 = pneg %p110
      %p117 = scmp.eq.s32.totalorder %s9, 1
      %p118 = por %p116, %p117
      %p119 = scmp.ne.s32.totalorder %s111, %s114
      %p120 = scmp.eq.s32.totalorder %s9, 0
      %p121 = por %p119, %p120
      %p122 = scmp.ne.s32.totalorder %s111, %s114
      %p123 = scmp.eq.s32.totalorder %s14, 1
      %p124 = por %p122, %p123
      %p125 = scmp.ne.s32.totalorder %s114, %s115
      %p126 = scmp.eq.s32.totalorder %s14, 0
      %p127 = por %p125, %p126
      %p128 = scmp.ne.s32.totalorder %s114, %s115
      %p129 = scmp.eq.s32.totalorder %s15, 1
      %p130 = por %p128, %p129
      %p132 = scmp.ne.s32.totalorder %s115, %s131
      %p133 = scmp.eq.s32.totalorder %s15, 0
      %p134 = por %p132, %p133
      %p135 = scmp.le.s32.totalorder 1, %s9
      %p136 = scmp.lt.s32.totalorder %s9, 3
      %p137 = pnand %p135, %p136
      %p138 = pneg %p137
      // Predicated region
      $region9: #{netg_forward.20} parent=5 // pred_check
        _
      $region10: #{netg_forward.20} parent=5 // pred_check_branch
        %140 = sbr.rel (%p137) target = $region12
      $region11: #{netg_forward.20} parent=5 // pred_region
        %s141 = ssub.s32 %s9, 1
        // Predicated region
        $region13: #{netg_forward.20} parent=11 // pred_check
          %p142 = pneg %p47
        $region14: #{netg_forward.20} parent=11 // pred_check_branch
          %144 = sbr.rel (%p142) target = $region16
        $region15: #{netg_forward.20} parent=11 // pred_region
          %s145 = smul.u32 58, %s18
          %p146 = scmp.lt.s32.totalorder %s145, 57
          %s147 = scalar_select %p146, %s145, 57
          %s148 = smul.addr %s147, 2
          %s149 = smul.addr %s148, 4
          %s150 = scalar_lea.vmem %s0, %s149
          %s151 = smul.u32 58, %s18
        $region16: #{netg_forward.20} parent=11 // pred_fallthru
          _
      $region12: #{netg_forward.20} parent=5 // pred_fallthru
        _
      %p152 = scmp.lt.s32.totalorder %s9, 2
      // Predicated region
      $region17: #{netg_forward.20} parent=5 // pred_check
        %p153 = pneg %p152
      $region18: #{netg_forward.20} parent=5 // pred_check_branch
        %155 = sbr.rel (%p153) target = $region20
      $region19: #{netg_forward.20} parent=5 // pred_region
        // Predicated region
        $region21: #{netg_forward.20} parent=19 // pred_check
          %p156 = pneg %p67
        $region22: #{netg_forward.20} parent=19 // pred_check_branch
          %158 = sbr.rel (%p156) target = $region24
        $region23: #{netg_forward.20} parent=19 // pred_region
          %s159 = sand.u32 %s57, 1
          %s160 = sand.u32 %s57, 1
          %s161 = smul.addr %s160, 256
          %s162 = scalar_lea.vmem [#allocation2], %s161
          %s163 = smul.u32 2, %s17
          %s164 = smul.addr %s163, 4
          %s165 = scalar_lea.vmem %s1, %s164
          // Predicated region
          $region25: #{netg_forward.20} parent=23 // pred_check
            _
          $region26: #{netg_forward.20} parent=23 // pred_check_branch
            %167 = sbr.rel (0) target = $region28
          $region27: #{netg_forward.20} parent=23 // pred_region
            // Predicated region
            $region29: #{netg_forward.20} parent=27 // pred_check
              _
            $region30: #{netg_forward.20} parent=27 // pred_check_branch
              %169 = sbr.rel (0) target = $region32
            $region31: #{netg_forward.20} parent=27 // pred_region
              // Predicated region
              $region44: #{netg_forward.20} parent=31 // pred_check
                _
              $region45: #{netg_forward.20} parent=31 // pred_check_branch
                %247 = sbr.rel (0) target = $region47
              $region46: #{netg_forward.20} parent=31 // pred_region
                loop: start=0, step=1, limit=1
                $region48: #{netg_forward.20} parent=46 // loop_pre_header
                  _
                $region49: #{netg_forward.20} parent=46 // loop_header
                  %s249 = sphi 0, %s253
                  %p250 = scmp.ge.s32.totalorder %s249, 1
                  %s254 = sphi %s165, %s165
                  %s255 = sphi %s162, %s162
                $region50: #{netg_forward.20} parent=46 // loop_header_branch
                  %252 = sbr.rel (%p250) target = $region54
                $region51: #{netg_forward.20} parent=46 // loop_body
                  %v256 = vld [vmem:[%s254] sm:$0xff]
                  %257 = vst [vmem:[%s255] sm:$0xff] %v256
                  %v258 = vld [vmem:[%s254 + $0x10] sm:$0xff]
                  %259 = vst [vmem:[%s255 + $0x8] sm:$0xff] %v258
                  %v260 = vld [vmem:[%s254 + $0x20] sm:$0xff]
                  %261 = vst [vmem:[%s255 + $0x10] sm:$0xff] %v260
                  %v262 = vld [vmem:[%s254 + $0x30] sm:$0xff]
                  %263 = vst [vmem:[%s255 + $0x18] sm:$0xff] %v262
                  %v264 = vld [vmem:[%s254 + $0x40] sm:$0xff]
                  %265 = vst [vmem:[%s255 + $0x20] sm:$0xff] %v264
                  %v266 = vld [vmem:[%s254 + $0x50] sm:$0xff]
                  %267 = vst [vmem:[%s255 + $0x28] sm:$0xff] %v266
                  %v268 = vld [vmem:[%s254 + $0x60] sm:$0xff]
                  %269 = vst [vmem:[%s255 + $0x30] sm:$0xff] %v268
                  %v270 = vld [vmem:[%s254 + $0x70] sm:$0xff]
                  %271 = vst [vmem:[%s255 + $0x38] sm:$0xff] %v270
                  %v272 = vld [vmem:[%s254 + $0x80] sm:$0xff]
                  %273 = vst [vmem:[%s255 + $0x40] sm:$0xff] %v272
                  %v274 = vld [vmem:[%s254 + $0x90] sm:$0xff]
                  %275 = vst [vmem:[%s255 + $0x48] sm:$0xff] %v274
                  %v276 = vld [vmem:[%s254 + $0xa0] sm:$0xff]
                  %277 = vst [vmem:[%s255 + $0x50] sm:$0xff] %v276
                  %v278 = vld [vmem:[%s254 + $0xb0] sm:$0xff]
                  %279 = vst [vmem:[%s255 + $0x58] sm:$0xff] %v278
                  %v280 = vld [vmem:[%s254 + $0xc0] sm:$0xff]
                  %281 = vst [vmem:[%s255 + $0x60] sm:$0xff] %v280
                  %v282 = vld [vmem:[%s254 + $0xd0] sm:$0xff]
                  %283 = vst [vmem:[%s255 + $0x68] sm:$0xff] %v282
                  %v284 = vld [vmem:[%s254 + $0xe0] sm:$0xff]
                  %285 = vst [vmem:[%s255 + $0x70] sm:$0xff] %v284
                  %v286 = vld [vmem:[%s254 + $0xf0] sm:$0xff]
                  %287 = vst [vmem:[%s255 + $0x78] sm:$0xff] %v286
                  %v288 = vld [vmem:[%s254 + $0x100] sm:$0xff]
                  %289 = vst [vmem:[%s255 + $0x80] sm:$0xff] %v288
                  %v290 = vld [vmem:[%s254 + $0x110] sm:$0xff]
                  %291 = vst [vmem:[%s255 + $0x88] sm:$0xff] %v290
                  %v292 = vld [vmem:[%s254 + $0x120] sm:$0xff]
                  %293 = vst [vmem:[%s255 + $0x90] sm:$0xff] %v292
                  %v294 = vld [vmem:[%s254 + $0x130] sm:$0xff]
                  %295 = vst [vmem:[%s255 + $0x98] sm:$0xff] %v294
                  %v296 = vld [vmem:[%s254 + $0x140] sm:$0xff]
                  %297 = vst [vmem:[%s255 + $0xa0] sm:$0xff] %v296
                  %v298 = vld [vmem:[%s254 + $0x150] sm:$0xff]
                  %299 = vst [vmem:[%s255 + $0xa8] sm:$0xff] %v298
                  %v300 = vld [vmem:[%s254 + $0x160] sm:$0xff]
                  %301 = vst [vmem:[%s255 + $0xb0] sm:$0xff] %v300
                  %v302 = vld [vmem:[%s254 + $0x170] sm:$0xff]
                  %303 = vst [vmem:[%s255 + $0xb8] sm:$0xff] %v302
                  %v304 = vld [vmem:[%s254 + $0x180] sm:$0xff]
                  %305 = vst [vmem:[%s255 + $0xc0] sm:$0xff] %v304
                  %v306 = vld [vmem:[%s254 + $0x190] sm:$0xff]
                  %307 = vst [vmem:[%s255 + $0xc8] sm:$0xff] %v306
                  %v308 = vld [vmem:[%s254 + $0x1a0] sm:$0xff]
                  %309 = vst [vmem:[%s255 + $0xd0] sm:$0xff] %v308
                  %v310 = vld [vmem:[%s254 + $0x1b0] sm:$0xff]
                  %311 = vst [vmem:[%s255 + $0xd8] sm:$0xff] %v310
                  %v312 = vld [vmem:[%s254 + $0x1c0] sm:$0xff]
                  %313 = vst [vmem:[%s255 + $0xe0] sm:$0xff] %v312
                  %v314 = vld [vmem:[%s254 + $0x1d0] sm:$0xff]
                  %315 = vst [vmem:[%s255 + $0xe8] sm:$0xff] %v314
                  %v316 = vld [vmem:[%s254 + $0x1e0] sm:$0xff]
                  %317 = vst [vmem:[%s255 + $0xf0] sm:$0xff] %v316
                  %v318 = vld [vmem:[%s254 + $0x1f0] sm:$0xff]
                  %319 = vst [vmem:[%s255 + $0xf8] sm:$0xff] %v318
                $region52: #{netg_forward.20} parent=46 // loop_footer
                  %s253 = sadd.s32 1, %s249
                $region53: #{netg_forward.20} parent=46 // loop_footer_branch
                  %248 = sbr.rel target = $region49
                $region54: #{netg_forward.20} parent=46 // loop_exit
                  _
              $region47: #{netg_forward.20} parent=31 // pred_fallthru
                _
              // Predicated region
              $region55: #{netg_forward.20} parent=31 // pred_check
                _
              $region56: #{netg_forward.20} parent=31 // pred_check_branch
                %321 = sbr.rel target = $region58
              $region57: #{netg_forward.20} parent=31 // pred_region
                _
              $region58: #{netg_forward.20} parent=31 // pred_fallthru
                _
            $region32: #{netg_forward.20} parent=27 // pred_fallthru
              _
            // Predicated region
            $region33: #{netg_forward.20} parent=27 // pred_check
              _
            $region34: #{netg_forward.20} parent=27 // pred_check_branch
              %171 = sbr.rel target = $region36
            $region35: #{netg_forward.20} parent=27 // pred_region
              %s173 = ssub.s32 256, 1
              loop: start=0, step=1, limit=1
              $region37: #{netg_forward.20} parent=35 // loop_pre_header
                _
              $region38: #{netg_forward.20} parent=35 // loop_header
                %s175 = sphi 0, %s179
                %p176 = scmp.ge.s32.totalorder %s175, 1
                %s180 = sphi %s165, %s165
                %s181 = sphi %s162, %s162
              $region39: #{netg_forward.20} parent=35 // loop_header_branch
                %178 = sbr.rel (%p176) target = $region43
              $region40: #{netg_forward.20} parent=35 // loop_body
                %v182 = vld [vmem:[%s180] sm:%s173]
                %183 = vst [vmem:[%s181] sm:%s173] %v182
                %v184 = vld [vmem:[%s180 + $0x10] sm:%s173]
                %185 = vst [vmem:[%s181 + $0x8] sm:%s173] %v184
                %v186 = vld [vmem:[%s180 + $0x20] sm:%s173]
                %187 = vst [vmem:[%s181 + $0x10] sm:%s173] %v186
                %v188 = vld [vmem:[%s180 + $0x30] sm:%s173]
                %189 = vst [vmem:[%s181 + $0x18] sm:%s173] %v188
                %v190 = vld [vmem:[%s180 + $0x40] sm:%s173]
                %191 = vst [vmem:[%s181 + $0x20] sm:%s173] %v190
                %v192 = vld [vmem:[%s180 + $0x50] sm:%s173]
                %193 = vst [vmem:[%s181 + $0x28] sm:%s173] %v192
                %v194 = vld [vmem:[%s180 + $0x60] sm:%s173]
                %195 = vst [vmem:[%s181 + $0x30] sm:%s173] %v194
                %v196 = vld [vmem:[%s180 + $0x70] sm:%s173]
                %197 = vst [vmem:[%s181 + $0x38] sm:%s173] %v196
                %v198 = vld [vmem:[%s180 + $0x80] sm:%s173]
                %199 = vst [vmem:[%s181 + $0x40] sm:%s173] %v198
                %v200 = vld [vmem:[%s180 + $0x90] sm:%s173]
                %201 = vst [vmem:[%s181 + $0x48] sm:%s173] %v200
                %v202 = vld [vmem:[%s180 + $0xa0] sm:%s173]
                %203 = vst [vmem:[%s181 + $0x50] sm:%s173] %v202
                %v204 = vld [vmem:[%s180 + $0xb0] sm:%s173]
                %205 = vst [vmem:[%s181 + $0x58] sm:%s173] %v204
                %v206 = vld [vmem:[%s180 + $0xc0] sm:%s173]
                %207 = vst [vmem:[%s181 + $0x60] sm:%s173] %v206
                %v208 = vld [vmem:[%s180 + $0xd0] sm:%s173]
                %209 = vst [vmem:[%s181 + $0x68] sm:%s173] %v208
                %v210 = vld [vmem:[%s180 + $0xe0] sm:%s173]
                %211 = vst [vmem:[%s181 + $0x70] sm:%s173] %v210
                %v212 = vld [vmem:[%s180 + $0xf0] sm:%s173]
                %213 = vst [vmem:[%s181 + $0x78] sm:%s173] %v212
                %v214 = vld [vmem:[%s180 + $0x100] sm:%s173]
                %215 = vst [vmem:[%s181 + $0x80] sm:%s173] %v214
                %v216 = vld [vmem:[%s180 + $0x110] sm:%s173]
                %217 = vst [vmem:[%s181 + $0x88] sm:%s173] %v216
                %v218 = vld [vmem:[%s180 + $0x120] sm:%s173]
                %219 = vst [vmem:[%s181 + $0x90] sm:%s173] %v218
                %v220 = vld [vmem:[%s180 + $0x130] sm:%s173]
                %221 = vst [vmem:[%s181 + $0x98] sm:%s173] %v220
                %v222 = vld [vmem:[%s180 + $0x140] sm:%s173]
                %223 = vst [vmem:[%s181 + $0xa0] sm:%s173] %v222
                %v224 = vld [vmem:[%s180 + $0x150] sm:%s173]
                %225 = vst [vmem:[%s181 + $0xa8] sm:%s173] %v224
                %v226 = vld [vmem:[%s180 + $0x160] sm:%s173]
                %227 = vst [vmem:[%s181 + $0xb0] sm:%s173] %v226
                %v228 = vld [vmem:[%s180 + $0x170] sm:%s173]
                %229 = vst [vmem:[%s181 + $0xb8] sm:%s173] %v228
                %v230 = vld [vmem:[%s180 + $0x180] sm:%s173]
                %231 = vst [vmem:[%s181 + $0xc0] sm:%s173] %v230
                %v232 = vld [vmem:[%s180 + $0x190] sm:%s173]
                %233 = vst [vmem:[%s181 + $0xc8] sm:%s173] %v232
                %v234 = vld [vmem:[%s180 + $0x1a0] sm:%s173]
                %235 = vst [vmem:[%s181 + $0xd0] sm:%s173] %v234
                %v236 = vld [vmem:[%s180 + $0x1b0] sm:%s173]
                %237 = vst [vmem:[%s181 + $0xd8] sm:%s173] %v236
                %v238 = vld [vmem:[%s180 + $0x1c0] sm:%s173]
                %239 = vst [vmem:[%s181 + $0xe0] sm:%s173] %v238
                %v240 = vld [vmem:[%s180 + $0x1d0] sm:%s173]
                %241 = vst [vmem:[%s181 + $0xe8] sm:%s173] %v240
                %v242 = vld [vmem:[%s180 + $0x1e0] sm:%s173]
                %243 = vst [vmem:[%s181 + $0xf0] sm:%s173] %v242
                %v244 = vld [vmem:[%s180 + $0x1f0] sm:%s173]
                %245 = vst [vmem:[%s181 + $0xf8] sm:%s173] %v244
              $region41: #{netg_forward.20} parent=35 // loop_footer
                %s179 = sadd.s32 1, %s175
              $region42: #{netg_forward.20} parent=35 // loop_footer_branch
                %174 = sbr.rel target = $region38
              $region43: #{netg_forward.20} parent=35 // loop_exit
                _
            $region36: #{netg_forward.20} parent=27 // pred_fallthru
              _
          $region28: #{netg_forward.20} parent=23 // pred_fallthru
            _
          %322 = vnop
        $region24: #{netg_forward.20} parent=19 // pred_fallthru
          _
        // Predicated region
        $region59: #{netg_forward.20} parent=19 // pred_check
          %p323 = pneg %p93
        $region60: #{netg_forward.20} parent=19 // pred_check_branch
          %325 = sbr.rel (%p323) target = $region62
        $region61: #{netg_forward.20} parent=19 // pred_region
          %s326 = smul.u32 2, %s17
          %p327 = scmp.lt.s32.totalorder %s326, 3
          %s328 = scalar_select %p327, %s326, 3
          %s329 = scalar_lea.vmem %s2, %s328
          %s330 = smul.u32 2, %s17
        $region62: #{netg_forward.20} parent=19 // pred_fallthru
          _
      $region20: #{netg_forward.20} parent=5 // pred_fallthru
        _
      %p331 = scmp.le.s32.totalorder 1, %s9
      %p332 = scmp.lt.s32.totalorder %s9, 3
      %p333 = pnand %p331, %p332
      %p334 = pneg %p333
      // Predicated region
      $region63: #{netg_forward.20} parent=5 // pred_check
        _
      $region64: #{netg_forward.20} parent=5 // pred_check_branch
        %336 = sbr.rel (%p333) target = $region66
      $region65: #{netg_forward.20} parent=5 // pred_region
        %s337 = ssub.s32 %s9, 1
        %s338 = sand.u32 %s60, 1
        %s339 = sand.u32 %s60, 1
        %s340 = smul.addr %s339, 256
        %s341 = scalar_lea.vmem [#allocation2], %s340
        // Predicated region
        $region67: #{netg_forward.20} parent=65 // pred_check
          %p342 = pneg %p73
        $region68: #{netg_forward.20} parent=65 // pred_check_branch
          %344 = sbr.rel (%p342) target = $region70
        $region69: #{netg_forward.20} parent=65 // pred_region
          _
        $region70: #{netg_forward.20} parent=65 // pred_fallthru
          _
        %s345 = smul.u32 58, %s18
        %p346 = scmp.lt.s32.totalorder %s345, 57
        %s347 = scalar_select %p346, %s345, 57
        %s348 = smul.addr %s347, 2
        %s349 = smul.addr %s348, 4
        %s350 = scalar_lea.vmem %s0, %s349
        %p351 = pneg %p47
        %p352 = pneg %p44
        %s353 = sand.u32 %s60, 1
        %s354 = sand.u32 %s60, 1
        %s355 = smul.addr %s354, 256
        %s356 = scalar_lea.vmem [#allocation2], %s355
        %p357 = pneg %p73
        %p358 = pneg %p70
        %s359 = smul.u32 2, %s19
        %p360 = scmp.lt.s32.totalorder %s359, 3
        %s361 = scalar_select %p360, %s359, 3
        %s362 = scalar_lea.vmem %s2, %s361
        %p363 = pneg %p99
        %p364 = pneg %p96
        %p365 = pneg %p127
        %p366 = pneg %p124
        %s367 = sand.u32 %s114, 1
        %s368 = sand.u32 %s114, 1
        %s369 = smul.addr %s368, 928
        %s370 = scalar_lea.vmem [#allocation3], %s369
        %s371 = smul.u32 58, %s18
        %p372 = scmp.lt.s32.totalorder %s371, 57
        %s373 = scalar_select %p372, %s371, 57
        %s374 = smul.addr %s373, 2
        %s375 = smul.addr %s374, 4
        %s376 = scalar_lea.vmem %s0, %s375
        %s377 = smul.u32 58, %s18
        %s378 = smul.u32 2, %s19
        %s379 = smul.u32 2, %s19
        %p380 = scmp.lt.s32.totalorder %s379, 3
        %s381 = scalar_select %p380, %s379, 3
        %s382 = scalar_lea.vmem %s2, %s381
        %s383 = smul.u32 2, %s19
        %s384 = smul.u32 58, %s18
        %s385 = smul.u32 2, %s19
        %v386 = vld [vmem:[%s376] sm:$0xff]
        %v387 = vld [vmem:[%s376 + $0x8] sm:$0xff]
        %v388 = vld [vmem:[%s376 + $0x10] sm:$0xff]
        %v389 = vld [vmem:[%s376 + $0x18] sm:$0xff]
        %v390 = vld [vmem:[%s376 + $0x20] sm:$0xff]
        %v391 = vld [vmem:[%s376 + $0x28] sm:$0xff]
        %v392 = vld [vmem:[%s376 + $0x30] sm:$0xff]
        %v393 = vld [vmem:[%s376 + $0x38] sm:$0xff]
        %v394 = vld [vmem:[%s376 + $0x40] sm:$0xff]
        %v395 = vld [vmem:[%s376 + $0x48] sm:$0xff]
        %v396 = vld [vmem:[%s376 + $0x50] sm:$0xff]
        %v397 = vld [vmem:[%s376 + $0x58] sm:$0xff]
        %v398 = vld [vmem:[%s376 + $0x60] sm:$0xff]
        %v399 = vld [vmem:[%s376 + $0x68] sm:$0xff]
        %v400 = vld [vmem:[%s376 + $0x70] sm:$0xff]
        %v401 = vld [vmem:[%s376 + $0x78] sm:$0xff]
        %v402 = vld [vmem:[%s376 + $0x80] sm:$0xff]
        %v403 = vld [vmem:[%s376 + $0x88] sm:$0xff]
        %v404 = vld [vmem:[%s376 + $0x90] sm:$0xff]
        %v405 = vld [vmem:[%s376 + $0x98] sm:$0xff]
        %v406 = vld [vmem:[%s376 + $0xa0] sm:$0xff]
        %v407 = vld [vmem:[%s376 + $0xa8] sm:$0xff]
        %v408 = vld [vmem:[%s376 + $0xb0] sm:$0xff]
        %v409 = vld [vmem:[%s376 + $0xb8] sm:$0xff]
        %v410 = vld [vmem:[%s376 + $0xc0] sm:$0xff]
        %v411 = vld [vmem:[%s376 + $0xc8] sm:$0xff]
        %v412 = vld [vmem:[%s376 + $0xd0] sm:$0xff]
        %v413 = vld [vmem:[%s376 + $0xd8] sm:$0xff]
        %v414 = vld [vmem:[%s376 + $0xe0] sm:$0xff]
        %v415 = vld [vmem:[%s376 + $0xe8] sm:$0xff]
        %v416 = vld [vmem:[%s376 + $0xf0] sm:$0xff]
        %v417 = vld [vmem:[%s376 + $0xf8] sm:$0xff]
        %v418 = vld [vmem:[%s376 + $0x100] sm:$0xff]
        %v419 = vld [vmem:[%s376 + $0x108] sm:$0xff]
        %v420 = vld [vmem:[%s376 + $0x110] sm:$0xff]
        %v421 = vld [vmem:[%s376 + $0x118] sm:$0xff]
        %v422 = vld [vmem:[%s376 + $0x120] sm:$0xff]
        %v423 = vld [vmem:[%s376 + $0x128] sm:$0xff]
        %v424 = vld [vmem:[%s376 + $0x130] sm:$0xff]
        %v425 = vld [vmem:[%s376 + $0x138] sm:$0xff]
        %v426 = vld [vmem:[%s376 + $0x140] sm:$0xff]
        %v427 = vld [vmem:[%s376 + $0x148] sm:$0xff]
        %v428 = vld [vmem:[%s376 + $0x150] sm:$0xff]
        %v429 = vld [vmem:[%s376 + $0x158] sm:$0xff]
        %v430 = vld [vmem:[%s376 + $0x160] sm:$0xff]
        %v431 = vld [vmem:[%s376 + $0x168] sm:$0xff]
        %v432 = vld [vmem:[%s376 + $0x170] sm:$0xff]
        %v433 = vld [vmem:[%s376 + $0x178] sm:$0xff]
        %v434 = vld [vmem:[%s376 + $0x180] sm:$0xff]
        %v435 = vld [vmem:[%s376 + $0x188] sm:$0xff]
        %v436 = vld [vmem:[%s376 + $0x190] sm:$0xff]
        %v437 = vld [vmem:[%s376 + $0x198] sm:$0xff]
        %v438 = vld [vmem:[%s376 + $0x1a0] sm:$0xff]
        %v439 = vld [vmem:[%s376 + $0x1a8] sm:$0xff]
        %v440 = vld [vmem:[%s376 + $0x1b0] sm:$0xff]
        %v441 = vld [vmem:[%s376 + $0x1b8] sm:$0xff]
        %v442 = vld [vmem:[%s376 + $0x1c0] sm:$0xff]
        %v443 = vld [vmem:[%s376 + $0x1c8] sm:$0xff]
        %v444 = vld [vmem:[%s341] sm:$0xff]
        %v445 = vld [vmem:[%s341 + $0x8] sm:$0xff]
        %v446 = vld [vmem:[%s341 + $0x10] sm:$0xff]
        %v447 = vld [vmem:[%s341 + $0x18] sm:$0xff]
        %v448 = vld [vmem:[%s341 + $0x20] sm:$0xff]
        %v449 = vld [vmem:[%s341 + $0x28] sm:$0xff]
        %v450 = vld [vmem:[%s341 + $0x30] sm:$0xff]
        %v451 = vld [vmem:[%s341 + $0x38] sm:$0xff]
        %v452 = vld [vmem:[%s341 + $0x40] sm:$0xff]
        %v453 = vld [vmem:[%s341 + $0x48] sm:$0xff]
        %v454 = vld [vmem:[%s341 + $0x50] sm:$0xff]
        %v455 = vld [vmem:[%s341 + $0x58] sm:$0xff]
        %v456 = vld [vmem:[%s341 + $0x60] sm:$0xff]
        %v457 = vld [vmem:[%s341 + $0x68] sm:$0xff]
        %v458 = vld [vmem:[%s341 + $0x70] sm:$0xff]
        %v459 = vld [vmem:[%s341 + $0x78] sm:$0xff]
        %v460 = vld [vmem:[%s341 + $0x80] sm:$0xff]
        %v461 = vld [vmem:[%s341 + $0x88] sm:$0xff]
        %v462 = vld [vmem:[%s341 + $0x90] sm:$0xff]
        %v463 = vld [vmem:[%s341 + $0x98] sm:$0xff]
        %v464 = vld [vmem:[%s341 + $0xa0] sm:$0xff]
        %v465 = vld [vmem:[%s341 + $0xa8] sm:$0xff]
        %v466 = vld [vmem:[%s341 + $0xb0] sm:$0xff]
        %v467 = vld [vmem:[%s341 + $0xb8] sm:$0xff]
        %v468 = vld [vmem:[%s341 + $0xc0] sm:$0xff]
        %v469 = vld [vmem:[%s341 + $0xc8] sm:$0xff]
        %v470 = vld [vmem:[%s341 + $0xd0] sm:$0xff]
        %v471 = vld [vmem:[%s341 + $0xd8] sm:$0xff]
        %v472 = vld [vmem:[%s341 + $0xe0] sm:$0xff]
        %v473 = vld [vmem:[%s341 + $0xe8] sm:$0xff]
        %v474 = vld [vmem:[%s341 + $0xf0] sm:$0xff]
        %v475 = vld [vmem:[%s341 + $0xf8] sm:$0xff]
        %v476 = vld [vmem:[%s382] sm:$0x3]
        %v478 = vperm.slane %v476, 0
        %v479 = vperm.slane %v476, 1
        %v540 = vunpack.c.l.b16 %v386
        %v541 = vunpack.c.h.b16 %v386
        %v542 = vunpack.c.l.b16 %v387
        %v543 = vunpack.c.h.b16 %v387
        %v544 = vunpack.c.l.b16 %v388
        %v545 = vunpack.c.h.b16 %v388
        %v546 = vunpack.c.l.b16 %v389
        %v547 = vunpack.c.h.b16 %v389
        %v548 = vunpack.c.l.b16 %v390
        %v549 = vunpack.c.h.b16 %v390
        %v550 = vunpack.c.l.b16 %v391
        %v551 = vunpack.c.h.b16 %v391
        %v552 = vunpack.c.l.b16 %v392
        %v553 = vunpack.c.h.b16 %v392
        %v554 = vunpack.c.l.b16 %v393
        %v555 = vunpack.c.h.b16 %v393
        %v556 = vunpack.c.l.b16 %v394
        %v557 = vunpack.c.h.b16 %v394
        %v558 = vunpack.c.l.b16 %v395
        %v559 = vunpack.c.h.b16 %v395
        %v560 = vunpack.c.l.b16 %v396
        %v561 = vunpack.c.h.b16 %v396
        %v562 = vunpack.c.l.b16 %v397
        %v563 = vunpack.c.h.b16 %v397
        %v564 = vunpack.c.l.b16 %v398
        %v565 = vunpack.c.h.b16 %v398
        %v566 = vunpack.c.l.b16 %v399
        %v567 = vunpack.c.h.b16 %v399
        %v568 = vunpack.c.l.b16 %v400
        %v569 = vunpack.c.h.b16 %v400
        %v570 = vunpack.c.l.b16 %v401
        %v571 = vunpack.c.h.b16 %v401
        %v572 = vunpack.c.l.b16 %v402
        %v573 = vunpack.c.h.b16 %v402
        %v574 = vunpack.c.l.b16 %v403
        %v575 = vunpack.c.h.b16 %v403
        %v576 = vunpack.c.l.b16 %v404
        %v577 = vunpack.c.h.b16 %v404
        %v578 = vunpack.c.l.b16 %v405
        %v579 = vunpack.c.h.b16 %v405
        %v580 = vunpack.c.l.b16 %v406
        %v581 = vunpack.c.h.b16 %v406
        %v582 = vunpack.c.l.b16 %v407
        %v583 = vunpack.c.h.b16 %v407
        %v584 = vunpack.c.l.b16 %v408
        %v585 = vunpack.c.h.b16 %v408
        %v586 = vunpack.c.l.b16 %v409
        %v587 = vunpack.c.h.b16 %v409
        %v588 = vunpack.c.l.b16 %v410
        %v589 = vunpack.c.h.b16 %v410
        %v590 = vunpack.c.l.b16 %v411
        %v591 = vunpack.c.h.b16 %v411
        %v592 = vunpack.c.l.b16 %v412
        %v593 = vunpack.c.h.b16 %v412
        %v594 = vunpack.c.l.b16 %v413
        %v595 = vunpack.c.h.b16 %v413
        %v596 = vunpack.c.l.b16 %v414
        %v597 = vunpack.c.h.b16 %v414
        %v598 = vunpack.c.l.b16 %v415
        %v599 = vunpack.c.h.b16 %v415
        %v600 = vunpack.c.l.b16 %v416
        %v601 = vunpack.c.h.b16 %v416
        %v602 = vunpack.c.l.b16 %v417
        %v603 = vunpack.c.h.b16 %v417
        %v604 = vunpack.c.l.b16 %v418
        %v605 = vunpack.c.h.b16 %v418
        %v606 = vunpack.c.l.b16 %v419
        %v607 = vunpack.c.h.b16 %v419
        %v608 = vunpack.c.l.b16 %v420
        %v609 = vunpack.c.h.b16 %v420
        %v610 = vunpack.c.l.b16 %v421
        %v611 = vunpack.c.h.b16 %v421
        %v612 = vunpack.c.l.b16 %v422
        %v613 = vunpack.c.h.b16 %v422
        %v614 = vunpack.c.l.b16 %v423
        %v615 = vunpack.c.h.b16 %v423
        %v616 = vunpack.c.l.b16 %v424
        %v617 = vunpack.c.h.b16 %v424
        %v618 = vunpack.c.l.b16 %v425
        %v619 = vunpack.c.h.b16 %v425
        %v620 = vunpack.c.l.b16 %v426
        %v621 = vunpack.c.h.b16 %v426
        %v622 = vunpack.c.l.b16 %v427
        %v623 = vunpack.c.h.b16 %v427
        %v624 = vunpack.c.l.b16 %v428
        %v625 = vunpack.c.h.b16 %v428
        %v626 = vunpack.c.l.b16 %v429
        %v627 = vunpack.c.h.b16 %v429
        %v628 = vunpack.c.l.b16 %v430
        %v629 = vunpack.c.h.b16 %v430
        %v630 = vunpack.c.l.b16 %v431
        %v631 = vunpack.c.h.b16 %v431
        %v632 = vunpack.c.l.b16 %v432
        %v633 = vunpack.c.h.b16 %v432
        %v634 = vunpack.c.l.b16 %v433
        %v635 = vunpack.c.h.b16 %v433
        %v636 = vunpack.c.l.b16 %v434
        %v637 = vunpack.c.h.b16 %v434
        %v638 = vunpack.c.l.b16 %v435
        %v639 = vunpack.c.h.b16 %v435
        %v640 = vunpack.c.l.b16 %v436
        %v641 = vunpack.c.h.b16 %v436
        %v642 = vunpack.c.l.b16 %v437
        %v643 = vunpack.c.h.b16 %v437
        %v644 = vunpack.c.l.b16 %v438
        %v645 = vunpack.c.h.b16 %v438
        %v646 = vunpack.c.l.b16 %v439
        %v647 = vunpack.c.h.b16 %v439
        %v648 = vunpack.c.l.b16 %v440
        %v649 = vunpack.c.h.b16 %v440
        %v650 = vunpack.c.l.b16 %v441
        %v651 = vunpack.c.h.b16 %v441
        %v652 = vunpack.c.l.b16 %v442
        %v653 = vunpack.c.h.b16 %v442
        %v654 = vunpack.c.l.b16 %v443
        %v655 = vunpack.c.h.b16 %v443
        %v656 = vpack.c.b16 %v542, %v540
        %v657 = vpack.c.b16 %v543, %v541
        %v658 = vpack.c.b16 %v546, %v544
        %v659 = vpack.c.b16 %v547, %v545
        %v660 = vpack.c.b16 %v550, %v548
        %v661 = vpack.c.b16 %v551, %v549
        %v662 = vpack.c.b16 %v554, %v552
        %v663 = vpack.c.b16 %v555, %v553
        %v664 = vpack.c.b16 %v558, %v556
        %v665 = vpack.c.b16 %v559, %v557
        %v666 = vpack.c.b16 %v562, %v560
        %v667 = vpack.c.b16 %v563, %v561
        %v668 = vpack.c.b16 %v566, %v564
        %v669 = vpack.c.b16 %v567, %v565
        %v670 = vpack.c.b16 %v570, %v568
        %v671 = vpack.c.b16 %v571, %v569
        %v672 = vpack.c.b16 %v574, %v572
        %v673 = vpack.c.b16 %v575, %v573
        %v674 = vpack.c.b16 %v578, %v576
        %v675 = vpack.c.b16 %v579, %v577
        %v676 = vpack.c.b16 %v582, %v580
        %v677 = vpack.c.b16 %v583, %v581
        %v678 = vpack.c.b16 %v586, %v584
        %v679 = vpack.c.b16 %v587, %v585
        %v680 = vpack.c.b16 %v590, %v588
        %v681 = vpack.c.b16 %v591, %v589
        %v682 = vpack.c.b16 %v594, %v592
        %v683 = vpack.c.b16 %v595, %v593
        %v684 = vpack.c.b16 %v598, %v596
        %v685 = vpack.c.b16 %v599, %v597
        %v686 = vpack.c.b16 %v602, %v600
        %v687 = vpack.c.b16 %v603, %v601
        %v688 = vpack.c.b16 %v606, %v604
        %v689 = vpack.c.b16 %v607, %v605
        %v690 = vpack.c.b16 %v610, %v608
        %v691 = vpack.c.b16 %v611, %v609
        %v692 = vpack.c.b16 %v614, %v612
        %v693 = vpack.c.b16 %v615, %v613
        %v694 = vpack.c.b16 %v618, %v616
        %v695 = vpack.c.b16 %v619, %v617
        %v696 = vpack.c.b16 %v622, %v620
        %v697 = vpack.c.b16 %v623, %v621
        %v698 = vpack.c.b16 %v626, %v624
        %v699 = vpack.c.b16 %v627, %v625
        %v700 = vpack.c.b16 %v630, %v628
        %v701 = vpack.c.b16 %v631, %v629
        %v702 = vpack.c.b16 %v634, %v632
        %v703 = vpack.c.b16 %v635, %v633
        %v704 = vpack.c.b16 %v638, %v636
        %v705 = vpack.c.b16 %v639, %v637
        %v706 = vpack.c.b16 %v642, %v640
        %v707 = vpack.c.b16 %v643, %v641
        %v708 = vpack.c.b16 %v646, %v644
        %v709 = vpack.c.b16 %v647, %v645
        %v710 = vpack.c.b16 %v650, %v648
        %v711 = vpack.c.b16 %v651, %v649
        %v712 = vpack.c.b16 %v654, %v652
        %v713 = vpack.c.b16 %v655, %v653
        %v804 = vunpack.c.l.b16 %v444
        %v805 = vunpack.c.h.b16 %v444
        %v806 = vunpack.c.l.b16 %v445
        %v807 = vunpack.c.h.b16 %v445
        %v808 = vunpack.c.l.b16 %v446
        %v809 = vunpack.c.h.b16 %v446
        %v810 = vunpack.c.l.b16 %v447
        %v811 = vunpack.c.h.b16 %v447
        %v812 = vunpack.c.l.b16 %v448
        %v813 = vunpack.c.h.b16 %v448
        %v814 = vunpack.c.l.b16 %v449
        %v815 = vunpack.c.h.b16 %v449
        %v816 = vunpack.c.l.b16 %v450
        %v817 = vunpack.c.h.b16 %v450
        %v818 = vunpack.c.l.b16 %v451
        %v819 = vunpack.c.h.b16 %v451
        %v820 = vunpack.c.l.b16 %v452
        %v821 = vunpack.c.h.b16 %v452
        %v822 = vunpack.c.l.b16 %v453
        %v823 = vunpack.c.h.b16 %v453
        %v824 = vunpack.c.l.b16 %v454
        %v825 = vunpack.c.h.b16 %v454
        %v826 = vunpack.c.l.b16 %v455
        %v827 = vunpack.c.h.b16 %v455
        %v828 = vunpack.c.l.b16 %v456
        %v829 = vunpack.c.h.b16 %v456
        %v830 = vunpack.c.l.b16 %v457
        %v831 = vunpack.c.h.b16 %v457
        %v832 = vunpack.c.l.b16 %v458
        %v833 = vunpack.c.h.b16 %v458
        %v834 = vunpack.c.l.b16 %v459
        %v835 = vunpack.c.h.b16 %v459
        %v836 = vunpack.c.l.b16 %v460
        %v837 = vunpack.c.h.b16 %v460
        %v838 = vunpack.c.l.b16 %v461
        %v839 = vunpack.c.h.b16 %v461
        %v840 = vunpack.c.l.b16 %v462
        %v841 = vunpack.c.h.b16 %v462
        %v842 = vunpack.c.l.b16 %v463
        %v843 = vunpack.c.h.b16 %v463
        %v844 = vunpack.c.l.b16 %v464
        %v845 = vunpack.c.h.b16 %v464
        %v846 = vunpack.c.l.b16 %v465
        %v847 = vunpack.c.h.b16 %v465
        %v848 = vunpack.c.l.b16 %v466
        %v849 = vunpack.c.h.b16 %v466
        %v850 = vunpack.c.l.b16 %v467
        %v851 = vunpack.c.h.b16 %v467
        %v852 = vunpack.c.l.b16 %v468
        %v853 = vunpack.c.h.b16 %v468
        %v854 = vunpack.c.l.b16 %v469
        %v855 = vunpack.c.h.b16 %v469
        %v856 = vunpack.c.l.b16 %v470
        %v857 = vunpack.c.h.b16 %v470
        %v858 = vunpack.c.l.b16 %v471
        %v859 = vunpack.c.h.b16 %v471
        %v860 = vunpack.c.l.b16 %v472
        %v861 = vunpack.c.h.b16 %v472
        %v862 = vunpack.c.l.b16 %v473
        %v863 = vunpack.c.h.b16 %v473
        %v864 = vunpack.c.l.b16 %v474
        %v865 = vunpack.c.h.b16 %v474
        %v866 = vunpack.c.l.b16 %v475
        %v867 = vunpack.c.h.b16 %v475
        %v868 = vpack.c.b16 %v806, %v804
        %v869 = vpack.c.b16 %v807, %v805
        %v870 = vpack.c.b16 %v810, %v808
        %v871 = vpack.c.b16 %v811, %v809
        %v872 = vpack.c.b16 %v814, %v812
        %v873 = vpack.c.b16 %v815, %v813
        %v874 = vpack.c.b16 %v818, %v816
        %v875 = vpack.c.b16 %v819, %v817
        %v876 = vpack.c.b16 %v822, %v820
        %v877 = vpack.c.b16 %v823, %v821
        %v878 = vpack.c.b16 %v826, %v824
        %v879 = vpack.c.b16 %v827, %v825
        %v880 = vpack.c.b16 %v830, %v828
        %v881 = vpack.c.b16 %v831, %v829
        %v882 = vpack.c.b16 %v834, %v832
        %v883 = vpack.c.b16 %v835, %v833
        %v884 = vpack.c.b16 %v838, %v836
        %v885 = vpack.c.b16 %v839, %v837
        %v886 = vpack.c.b16 %v842, %v840
        %v887 = vpack.c.b16 %v843, %v841
        %v888 = vpack.c.b16 %v846, %v844
        %v889 = vpack.c.b16 %v847, %v845
        %v890 = vpack.c.b16 %v850, %v848
        %v891 = vpack.c.b16 %v851, %v849
        %v892 = vpack.c.b16 %v854, %v852
        %v893 = vpack.c.b16 %v855, %v853
        %v894 = vpack.c.b16 %v858, %v856
        %v895 = vpack.c.b16 %v859, %v857
        %v896 = vpack.c.b16 %v862, %v860
        %v897 = vpack.c.b16 %v863, %v861
        %v898 = vpack.c.b16 %v866, %v864
        %v899 = vpack.c.b16 %v867, %v865
        %932 = vmatpush.bf16.msra.mxu0 %v882
        %933 = vmatpush.bf16.msra.mxu0 %v880
        %934 = vmatpush.bf16.msra.mxu0 %v878
        %935 = vmatpush.bf16.msra.mxu0 %v876
        %936 = vmatpush.bf16.msra.mxu0 %v874
        %937 = vmatpush.bf16.msra.mxu0 %v872
        %938 = vmatpush.bf16.msra.mxu0 %v870
        %939 = vmatpush.bf16.msra.mxu0 %v868
        %940 = vmatmul.bf16.gmra.mxu0 %v656
        %v941 = vpop.f32.mrf.mxu0
        %v942 = vadd.f32 %v478, %v941
        %v943 = vpop.f32.mrf.mxu0
        %v944 = vadd.f32 %v478, %v943
        %945 = vmatmul.bf16.gmra.mxu0 %v658
        %v946 = vpop.f32.mrf.mxu0
        %v947 = vadd.f32 %v478, %v946
        %v948 = vpop.f32.mrf.mxu0
        %v949 = vadd.f32 %v478, %v948
        %950 = vmatmul.bf16.gmra.mxu0 %v660
        %v951 = vpop.f32.mrf.mxu0
        %v952 = vadd.f32 %v478, %v951
        %v953 = vpop.f32.mrf.mxu0
        %v954 = vadd.f32 %v478, %v953
        %955 = vmatmul.bf16.gmra.mxu0 %v662
        %v956 = vpop.f32.mrf.mxu0
        %v957 = vadd.f32 %v478, %v956
        %v958 = vpop.f32.mrf.mxu0
        %v959 = vadd.f32 %v478, %v958
        %960 = vmatmul.bf16.gmra.mxu0 %v664
        %v961 = vpop.f32.mrf.mxu0
        %v962 = vadd.f32 %v478, %v961
        %v963 = vpop.f32.mrf.mxu0
        %v964 = vadd.f32 %v478, %v963
        %965 = vmatmul.bf16.gmra.mxu0 %v666
        %v966 = vpop.f32.mrf.mxu0
        %v967 = vadd.f32 %v478, %v966
        %v968 = vpop.f32.mrf.mxu0
        %v969 = vadd.f32 %v478, %v968
        %970 = vmatmul.bf16.gmra.mxu0 %v668
        %v971 = vpop.f32.mrf.mxu0
        %v972 = vadd.f32 %v478, %v971
        %v973 = vpop.f32.mrf.mxu0
        %v974 = vadd.f32 %v478, %v973
        %975 = vmatmul.bf16.gmra.mxu0 %v670
        %v976 = vpop.f32.mrf.mxu0
        %v977 = vadd.f32 %v478, %v976
        %v978 = vpop.f32.mrf.mxu0
        %v979 = vadd.f32 %v478, %v978
        %980 = vmatmul.bf16.gmra.mxu0 %v672
        %v981 = vpop.f32.mrf.mxu0
        %v982 = vadd.f32 %v478, %v981
        %v983 = vpop.f32.mrf.mxu0
        %v984 = vadd.f32 %v478, %v983
        %985 = vmatmul.bf16.gmra.mxu0 %v674
        %v986 = vpop.f32.mrf.mxu0
        %v987 = vadd.f32 %v478, %v986
        %v988 = vpop.f32.mrf.mxu0
        %v989 = vadd.f32 %v478, %v988
        %990 = vmatmul.bf16.gmra.mxu0 %v676
        %v991 = vpop.f32.mrf.mxu0
        %v992 = vadd.f32 %v478, %v991
        %v993 = vpop.f32.mrf.mxu0
        %v994 = vadd.f32 %v478, %v993
        %995 = vmatmul.bf16.gmra.mxu0 %v678
        %v996 = vpop.f32.mrf.mxu0
        %v997 = vadd.f32 %v478, %v996
        %v998 = vpop.f32.mrf.mxu0
        %v999 = vadd.f32 %v478, %v998
        %1000 = vmatmul.bf16.gmra.mxu0 %v680
        %v1001 = vpop.f32.mrf.mxu0
        %v1002 = vadd.f32 %v478, %v1001
        %v1003 = vpop.f32.mrf.mxu0
        %v1004 = vadd.f32 %v478, %v1003
        %1005 = vmatmul.bf16.gmra.mxu0 %v682
        %v1006 = vpop.f32.mrf.mxu0
        %v1007 = vadd.f32 %v478, %v1006
        %v1008 = vpop.f32.mrf.mxu0
        %v1009 = vadd.f32 %v478, %v1008
        %1010 = vmatmul.bf16.gmra.mxu0 %v684
        %v1011 = vpop.f32.mrf.mxu0
        %v1012 = vadd.f32 %v478, %v1011
        %v1013 = vpop.f32.mrf.mxu0
        %v1014 = vadd.f32 %v478, %v1013
        %1015 = vmatmul.bf16.gmra.mxu0 %v686
        %v1016 = vpop.f32.mrf.mxu0
        %v1017 = vadd.f32 %v478, %v1016
        %v1018 = vpop.f32.mrf.mxu0
        %v1019 = vadd.f32 %v478, %v1018
        %1020 = vmatmul.bf16.gmra.mxu0 %v688
        %v1021 = vpop.f32.mrf.mxu0
        %v1022 = vadd.f32 %v478, %v1021
        %v1023 = vpop.f32.mrf.mxu0
        %v1024 = vadd.f32 %v478, %v1023
        %1025 = vmatmul.bf16.gmra.mxu0 %v690
        %v1026 = vpop.f32.mrf.mxu0
        %v1027 = vadd.f32 %v478, %v1026
        %v1028 = vpop.f32.mrf.mxu0
        %v1029 = vadd.f32 %v478, %v1028
        %1030 = vmatmul.bf16.gmra.mxu0 %v692
        %v1031 = vpop.f32.mrf.mxu0
        %v1032 = vadd.f32 %v478, %v1031
        %v1033 = vpop.f32.mrf.mxu0
        %v1034 = vadd.f32 %v478, %v1033
        %1035 = vmatmul.bf16.gmra.mxu0 %v694
        %v1036 = vpop.f32.mrf.mxu0
        %v1037 = vadd.f32 %v478, %v1036
        %v1038 = vpop.f32.mrf.mxu0
        %v1039 = vadd.f32 %v478, %v1038
        %1040 = vmatmul.bf16.gmra.mxu0 %v696
        %v1041 = vpop.f32.mrf.mxu0
        %v1042 = vadd.f32 %v478, %v1041
        %v1043 = vpop.f32.mrf.mxu0
        %v1044 = vadd.f32 %v478, %v1043
        %1045 = vmatmul.bf16.gmra.mxu0 %v698
        %v1046 = vpop.f32.mrf.mxu0
        %v1047 = vadd.f32 %v478, %v1046
        %v1048 = vpop.f32.mrf.mxu0
        %v1049 = vadd.f32 %v478, %v1048
        %1050 = vmatmul.bf16.gmra.mxu0 %v700
        %v1051 = vpop.f32.mrf.mxu0
        %v1052 = vadd.f32 %v478, %v1051
        %v1053 = vpop.f32.mrf.mxu0
        %v1054 = vadd.f32 %v478, %v1053
        %1055 = vmatmul.bf16.gmra.mxu0 %v702
        %v1056 = vpop.f32.mrf.mxu0
        %v1057 = vadd.f32 %v478, %v1056
        %v1058 = vpop.f32.mrf.mxu0
        %v1059 = vadd.f32 %v478, %v1058
        %1060 = vmatmul.bf16.gmra.mxu0 %v704
        %v1061 = vpop.f32.mrf.mxu0
        %v1062 = vadd.f32 %v478, %v1061
        %v1063 = vpop.f32.mrf.mxu0
        %v1064 = vadd.f32 %v478, %v1063
        %1065 = vmatmul.bf16.gmra.mxu0 %v706
        %v1066 = vpop.f32.mrf.mxu0
        %v1067 = vadd.f32 %v478, %v1066
        %v1068 = vpop.f32.mrf.mxu0
        %v1069 = vadd.f32 %v478, %v1068
        %1070 = vmatmul.bf16.gmra.mxu0 %v708
        %v1071 = vpop.f32.mrf.mxu0
        %v1072 = vadd.f32 %v478, %v1071
        %v1073 = vpop.f32.mrf.mxu0
        %v1074 = vadd.f32 %v478, %v1073
        %1075 = vmatmul.bf16.gmra.mxu0 %v710
        %v1076 = vpop.f32.mrf.mxu0
        %v1077 = vadd.f32 %v478, %v1076
        %v1078 = vpop.f32.mrf.mxu0
        %v1079 = vadd.f32 %v478, %v1078
        %1080 = vmatmul.bf16.gmra.mxu0 %v712
        %v1081 = vpop.f32.mrf.mxu0
        %v1082 = vadd.f32 %v478, %v1081
        %v1083 = vpop.f32.mrf.mxu0
        %v1084 = vadd.f32 %v478, %v1083
        %1085 = vdwg.mxu0
        %1086 = vmatpush.bf16.msra.mxu0 %v898
        %1087 = vmatpush.bf16.msra.mxu0 %v896
        %1088 = vmatpush.bf16.msra.mxu0 %v894
        %1089 = vmatpush.bf16.msra.mxu0 %v892
        %1090 = vmatpush.bf16.msra.mxu0 %v890
        %1091 = vmatpush.bf16.msra.mxu0 %v888
        %1092 = vmatpush.bf16.msra.mxu0 %v886
        %1093 = vmatpush.bf16.msra.mxu0 %v884
        %1094 = vmatmul.bf16.gmra.mxu0 %v657
        %v1095 = vpop.f32.mrf.mxu0
        %v1096 = vadd.f32 %v942, %v1095
        %v1097 = vpop.f32.mrf.mxu0
        %v1098 = vadd.f32 %v944, %v1097
        %1099 = vmatmul.bf16.gmra.mxu0 %v659
        %v1100 = vpop.f32.mrf.mxu0
        %v1101 = vadd.f32 %v947, %v1100
        %v1102 = vpop.f32.mrf.mxu0
        %v1103 = vadd.f32 %v949, %v1102
        %1104 = vmatmul.bf16.gmra.mxu0 %v661
        %v1105 = vpop.f32.mrf.mxu0
        %v1106 = vadd.f32 %v952, %v1105
        %v1107 = vpop.f32.mrf.mxu0
        %v1108 = vadd.f32 %v954, %v1107
        %1109 = vmatmul.bf16.gmra.mxu0 %v663
        %v1110 = vpop.f32.mrf.mxu0
        %v1111 = vadd.f32 %v957, %v1110
        %v1112 = vpop.f32.mrf.mxu0
        %v1113 = vadd.f32 %v959, %v1112
        %1114 = vmatmul.bf16.gmra.mxu0 %v665
        %v1115 = vpop.f32.mrf.mxu0
        %v1116 = vadd.f32 %v962, %v1115
        %v1117 = vpop.f32.mrf.mxu0
        %v1118 = vadd.f32 %v964, %v1117
        %1119 = vmatmul.bf16.gmra.mxu0 %v667
        %v1120 = vpop.f32.mrf.mxu0
        %v1121 = vadd.f32 %v967, %v1120
        %v1122 = vpop.f32.mrf.mxu0
        %v1123 = vadd.f32 %v969, %v1122
        %1124 = vmatmul.bf16.gmra.mxu0 %v669
        %v1125 = vpop.f32.mrf.mxu0
        %v1126 = vadd.f32 %v972, %v1125
        %v1127 = vpop.f32.mrf.mxu0
        %v1128 = vadd.f32 %v974, %v1127
        %1129 = vmatmul.bf16.gmra.mxu0 %v671
        %v1130 = vpop.f32.mrf.mxu0
        %v1131 = vadd.f32 %v977, %v1130
        %v1132 = vpop.f32.mrf.mxu0
        %v1133 = vadd.f32 %v979, %v1132
        %1134 = vmatmul.bf16.gmra.mxu0 %v673
        %v1135 = vpop.f32.mrf.mxu0
        %v1136 = vadd.f32 %v982, %v1135
        %v1137 = vpop.f32.mrf.mxu0
        %v1138 = vadd.f32 %v984, %v1137
        %1139 = vmatmul.bf16.gmra.mxu0 %v675
        %v1140 = vpop.f32.mrf.mxu0
        %v1141 = vadd.f32 %v987, %v1140
        %v1142 = vpop.f32.mrf.mxu0
        %v1143 = vadd.f32 %v989, %v1142
        %1144 = vmatmul.bf16.gmra.mxu0 %v677
        %v1145 = vpop.f32.mrf.mxu0
        %v1146 = vadd.f32 %v992, %v1145
        %v1147 = vpop.f32.mrf.mxu0
        %v1148 = vadd.f32 %v994, %v1147
        %1149 = vmatmul.bf16.gmra.mxu0 %v679
        %v1150 = vpop.f32.mrf.mxu0
        %v1151 = vadd.f32 %v997, %v1150
        %v1152 = vpop.f32.mrf.mxu0
        %v1153 = vadd.f32 %v999, %v1152
        %1154 = vmatmul.bf16.gmra.mxu0 %v681
        %v1155 = vpop.f32.mrf.mxu0
        %v1156 = vadd.f32 %v1002, %v1155
        %v1157 = vpop.f32.mrf.mxu0
        %v1158 = vadd.f32 %v1004, %v1157
        %1159 = vmatmul.bf16.gmra.mxu0 %v683
        %v1160 = vpop.f32.mrf.mxu0
        %v1161 = vadd.f32 %v1007, %v1160
        %v1162 = vpop.f32.mrf.mxu0
        %v1163 = vadd.f32 %v1009, %v1162
        %1164 = vmatmul.bf16.gmra.mxu0 %v685
        %v1165 = vpop.f32.mrf.mxu0
        %v1166 = vadd.f32 %v1012, %v1165
        %v1167 = vpop.f32.mrf.mxu0
        %v1168 = vadd.f32 %v1014, %v1167
        %1169 = vmatmul.bf16.gmra.mxu0 %v687
        %v1170 = vpop.f32.mrf.mxu0
        %v1171 = vadd.f32 %v1017, %v1170
        %v1172 = vpop.f32.mrf.mxu0
        %v1173 = vadd.f32 %v1019, %v1172
        %1174 = vmatmul.bf16.gmra.mxu0 %v689
        %v1175 = vpop.f32.mrf.mxu0
        %v1176 = vadd.f32 %v1022, %v1175
        %v1177 = vpop.f32.mrf.mxu0
        %v1178 = vadd.f32 %v1024, %v1177
        %1179 = vmatmul.bf16.gmra.mxu0 %v691
        %v1180 = vpop.f32.mrf.mxu0
        %v1181 = vadd.f32 %v1027, %v1180
        %v1182 = vpop.f32.mrf.mxu0
        %v1183 = vadd.f32 %v1029, %v1182
        %1184 = vmatmul.bf16.gmra.mxu0 %v693
        %v1185 = vpop.f32.mrf.mxu0
        %v1186 = vadd.f32 %v1032, %v1185
        %v1187 = vpop.f32.mrf.mxu0
        %v1188 = vadd.f32 %v1034, %v1187
        %1189 = vmatmul.bf16.gmra.mxu0 %v695
        %v1190 = vpop.f32.mrf.mxu0
        %v1191 = vadd.f32 %v1037, %v1190
        %v1192 = vpop.f32.mrf.mxu0
        %v1193 = vadd.f32 %v1039, %v1192
        %1194 = vmatmul.bf16.gmra.mxu0 %v697
        %v1195 = vpop.f32.mrf.mxu0
        %v1196 = vadd.f32 %v1042, %v1195
        %v1197 = vpop.f32.mrf.mxu0
        %v1198 = vadd.f32 %v1044, %v1197
        %1199 = vmatmul.bf16.gmra.mxu0 %v699
        %v1200 = vpop.f32.mrf.mxu0
        %v1201 = vadd.f32 %v1047, %v1200
        %v1202 = vpop.f32.mrf.mxu0
        %v1203 = vadd.f32 %v1049, %v1202
        %1204 = vmatmul.bf16.gmra.mxu0 %v701
        %v1205 = vpop.f32.mrf.mxu0
        %v1206 = vadd.f32 %v1052, %v1205
        %v1207 = vpop.f32.mrf.mxu0
        %v1208 = vadd.f32 %v1054, %v1207
        %1209 = vmatmul.bf16.gmra.mxu0 %v703
        %v1210 = vpop.f32.mrf.mxu0
        %v1211 = vadd.f32 %v1057, %v1210
        %v1212 = vpop.f32.mrf.mxu0
        %v1213 = vadd.f32 %v1059, %v1212
        %1214 = vmatmul.bf16.gmra.mxu0 %v705
        %v1215 = vpop.f32.mrf.mxu0
        %v1216 = vadd.f32 %v1062, %v1215
        %v1217 = vpop.f32.mrf.mxu0
        %v1218 = vadd.f32 %v1064, %v1217
        %1219 = vmatmul.bf16.gmra.mxu0 %v707
        %v1220 = vpop.f32.mrf.mxu0
        %v1221 = vadd.f32 %v1067, %v1220
        %v1222 = vpop.f32.mrf.mxu0
        %v1223 = vadd.f32 %v1069, %v1222
        %1224 = vmatmul.bf16.gmra.mxu0 %v709
        %v1225 = vpop.f32.mrf.mxu0
        %v1226 = vadd.f32 %v1072, %v1225
        %v1227 = vpop.f32.mrf.mxu0
        %v1228 = vadd.f32 %v1074, %v1227
        %1229 = vmatmul.bf16.gmra.mxu0 %v711
        %v1230 = vpop.f32.mrf.mxu0
        %v1231 = vadd.f32 %v1077, %v1230
        %v1232 = vpop.f32.mrf.mxu0
        %v1233 = vadd.f32 %v1079, %v1232
        %1234 = vmatmul.bf16.gmra.mxu0 %v713
        %v1235 = vpop.f32.mrf.mxu0
        %v1236 = vadd.f32 %v1082, %v1235
        %v1237 = vpop.f32.mrf.mxu0
        %v1238 = vadd.f32 %v1084, %v1237
        %1239 = vdwg.mxu0
        %1240 = vmatpush.bf16.msra.mxu0 %v883
        %1241 = vmatpush.bf16.msra.mxu0 %v881
        %1242 = vmatpush.bf16.msra.mxu0 %v879
        %1243 = vmatpush.bf16.msra.mxu0 %v877
        %1244 = vmatpush.bf16.msra.mxu0 %v875
        %1245 = vmatpush.bf16.msra.mxu0 %v873
        %1246 = vmatpush.bf16.msra.mxu0 %v871
        %1247 = vmatpush.bf16.msra.mxu0 %v869
        %1248 = vmatmul.bf16.gmra.mxu0 %v656
        %v1249 = vpop.f32.mrf.mxu0
        %v1250 = vadd.f32 %v479, %v1249
        %v1251 = vpop.f32.mrf.mxu0
        %v1252 = vadd.f32 %v479, %v1251
        %1253 = vmatmul.bf16.gmra.mxu0 %v658
        %v1254 = vpop.f32.mrf.mxu0
        %v1255 = vadd.f32 %v479, %v1254
        %v1256 = vpop.f32.mrf.mxu0
        %v1257 = vadd.f32 %v479, %v1256
        %1258 = vmatmul.bf16.gmra.mxu0 %v660
        %v1259 = vpop.f32.mrf.mxu0
        %v1260 = vadd.f32 %v479, %v1259
        %v1261 = vpop.f32.mrf.mxu0
        %v1262 = vadd.f32 %v479, %v1261
        %1263 = vmatmul.bf16.gmra.mxu0 %v662
        %v1264 = vpop.f32.mrf.mxu0
        %v1265 = vadd.f32 %v479, %v1264
        %v1266 = vpop.f32.mrf.mxu0
        %v1267 = vadd.f32 %v479, %v1266
        %1268 = vmatmul.bf16.gmra.mxu0 %v664
        %v1269 = vpop.f32.mrf.mxu0
        %v1270 = vadd.f32 %v479, %v1269
        %v1271 = vpop.f32.mrf.mxu0
        %v1272 = vadd.f32 %v479, %v1271
        %1273 = vmatmul.bf16.gmra.mxu0 %v666
        %v1274 = vpop.f32.mrf.mxu0
        %v1275 = vadd.f32 %v479, %v1274
        %v1276 = vpop.f32.mrf.mxu0
        %v1277 = vadd.f32 %v479, %v1276
        %1278 = vmatmul.bf16.gmra.mxu0 %v668
        %v1279 = vpop.f32.mrf.mxu0
        %v1280 = vadd.f32 %v479, %v1279
        %v1281 = vpop.f32.mrf.mxu0
        %v1282 = vadd.f32 %v479, %v1281
        %1283 = vmatmul.bf16.gmra.mxu0 %v670
        %v1284 = vpop.f32.mrf.mxu0
        %v1285 = vadd.f32 %v479, %v1284
        %v1286 = vpop.f32.mrf.mxu0
        %v1287 = vadd.f32 %v479, %v1286
        %1288 = vmatmul.bf16.gmra.mxu0 %v672
        %v1289 = vpop.f32.mrf.mxu0
        %v1290 = vadd.f32 %v479, %v1289
        %v1291 = vpop.f32.mrf.mxu0
        %v1292 = vadd.f32 %v479, %v1291
        %1293 = vmatmul.bf16.gmra.mxu0 %v674
        %v1294 = vpop.f32.mrf.mxu0
        %v1295 = vadd.f32 %v479, %v1294
        %v1296 = vpop.f32.mrf.mxu0
        %v1297 = vadd.f32 %v479, %v1296
        %1298 = vmatmul.bf16.gmra.mxu0 %v676
        %v1299 = vpop.f32.mrf.mxu0
        %v1300 = vadd.f32 %v479, %v1299
        %v1301 = vpop.f32.mrf.mxu0
        %v1302 = vadd.f32 %v479, %v1301
        %1303 = vmatmul.bf16.gmra.mxu0 %v678
        %v1304 = vpop.f32.mrf.mxu0
        %v1305 = vadd.f32 %v479, %v1304
        %v1306 = vpop.f32.mrf.mxu0
        %v1307 = vadd.f32 %v479, %v1306
        %1308 = vmatmul.bf16.gmra.mxu0 %v680
        %v1309 = vpop.f32.mrf.mxu0
        %v1310 = vadd.f32 %v479, %v1309
        %v1311 = vpop.f32.mrf.mxu0
        %v1312 = vadd.f32 %v479, %v1311
        %1313 = vmatmul.bf16.gmra.mxu0 %v682
        %v1314 = vpop.f32.mrf.mxu0
        %v1315 = vadd.f32 %v479, %v1314
        %v1316 = vpop.f32.mrf.mxu0
        %v1317 = vadd.f32 %v479, %v1316
        %1318 = vmatmul.bf16.gmra.mxu0 %v684
        %v1319 = vpop.f32.mrf.mxu0
        %v1320 = vadd.f32 %v479, %v1319
        %v1321 = vpop.f32.mrf.mxu0
        %v1322 = vadd.f32 %v479, %v1321
        %1323 = vmatmul.bf16.gmra.mxu0 %v686
        %v1324 = vpop.f32.mrf.mxu0
        %v1325 = vadd.f32 %v479, %v1324
        %v1326 = vpop.f32.mrf.mxu0
        %v1327 = vadd.f32 %v479, %v1326
        %1328 = vmatmul.bf16.gmra.mxu0 %v688
        %v1329 = vpop.f32.mrf.mxu0
        %v1330 = vadd.f32 %v479, %v1329
        %v1331 = vpop.f32.mrf.mxu0
        %v1332 = vadd.f32 %v479, %v1331
        %1333 = vmatmul.bf16.gmra.mxu0 %v690
        %v1334 = vpop.f32.mrf.mxu0
        %v1335 = vadd.f32 %v479, %v1334
        %v1336 = vpop.f32.mrf.mxu0
        %v1337 = vadd.f32 %v479, %v1336
        %1338 = vmatmul.bf16.gmra.mxu0 %v692
        %v1339 = vpop.f32.mrf.mxu0
        %v1340 = vadd.f32 %v479, %v1339
        %v1341 = vpop.f32.mrf.mxu0
        %v1342 = vadd.f32 %v479, %v1341
        %1343 = vmatmul.bf16.gmra.mxu0 %v694
        %v1344 = vpop.f32.mrf.mxu0
        %v1345 = vadd.f32 %v479, %v1344
        %v1346 = vpop.f32.mrf.mxu0
        %v1347 = vadd.f32 %v479, %v1346
        %1348 = vmatmul.bf16.gmra.mxu0 %v696
        %v1349 = vpop.f32.mrf.mxu0
        %v1350 = vadd.f32 %v479, %v1349
        %v1351 = vpop.f32.mrf.mxu0
        %v1352 = vadd.f32 %v479, %v1351
        %1353 = vmatmul.bf16.gmra.mxu0 %v698
        %v1354 = vpop.f32.mrf.mxu0
        %v1355 = vadd.f32 %v479, %v1354
        %v1356 = vpop.f32.mrf.mxu0
        %v1357 = vadd.f32 %v479, %v1356
        %1358 = vmatmul.bf16.gmra.mxu0 %v700
        %v1359 = vpop.f32.mrf.mxu0
        %v1360 = vadd.f32 %v479, %v1359
        %v1361 = vpop.f32.mrf.mxu0
        %v1362 = vadd.f32 %v479, %v1361
        %1363 = vmatmul.bf16.gmra.mxu0 %v702
        %v1364 = vpop.f32.mrf.mxu0
        %v1365 = vadd.f32 %v479, %v1364
        %v1366 = vpop.f32.mrf.mxu0
        %v1367 = vadd.f32 %v479, %v1366
        %1368 = vmatmul.bf16.gmra.mxu0 %v704
        %v1369 = vpop.f32.mrf.mxu0
        %v1370 = vadd.f32 %v479, %v1369
        %v1371 = vpop.f32.mrf.mxu0
        %v1372 = vadd.f32 %v479, %v1371
        %1373 = vmatmul.bf16.gmra.mxu0 %v706
        %v1374 = vpop.f32.mrf.mxu0
        %v1375 = vadd.f32 %v479, %v1374
        %v1376 = vpop.f32.mrf.mxu0
        %v1377 = vadd.f32 %v479, %v1376
        %1378 = vmatmul.bf16.gmra.mxu0 %v708
        %v1379 = vpop.f32.mrf.mxu0
        %v1380 = vadd.f32 %v479, %v1379
        %v1381 = vpop.f32.mrf.mxu0
        %v1382 = vadd.f32 %v479, %v1381
        %1383 = vmatmul.bf16.gmra.mxu0 %v710
        %v1384 = vpop.f32.mrf.mxu0
        %v1385 = vadd.f32 %v479, %v1384
        %v1386 = vpop.f32.mrf.mxu0
        %v1387 = vadd.f32 %v479, %v1386
        %1388 = vmatmul.bf16.gmra.mxu0 %v712
        %v1389 = vpop.f32.mrf.mxu0
        %v1390 = vadd.f32 %v479, %v1389
        %v1391 = vpop.f32.mrf.mxu0
        %v1392 = vadd.f32 %v479, %v1391
        %1393 = vdwg.mxu0
        %1394 = vmatpush.bf16.msra.mxu0 %v899
        %1395 = vmatpush.bf16.msra.mxu0 %v897
        %1396 = vmatpush.bf16.msra.mxu0 %v895
        %1397 = vmatpush.bf16.msra.mxu0 %v893
        %1398 = vmatpush.bf16.msra.mxu0 %v891
        %1399 = vmatpush.bf16.msra.mxu0 %v889
        %1400 = vmatpush.bf16.msra.mxu0 %v887
        %1401 = vmatpush.bf16.msra.mxu0 %v885
        %1402 = vmatmul.bf16.gmra.mxu0 %v657
        %v1403 = vpop.f32.mrf.mxu0
        %v1404 = vadd.f32 %v1250, %v1403
        %v1405 = vpop.f32.mrf.mxu0
        %v1406 = vadd.f32 %v1252, %v1405
        %1407 = vmatmul.bf16.gmra.mxu0 %v659
        %v1408 = vpop.f32.mrf.mxu0
        %v1409 = vadd.f32 %v1255, %v1408
        %v1410 = vpop.f32.mrf.mxu0
        %v1411 = vadd.f32 %v1257, %v1410
        %1412 = vmatmul.bf16.gmra.mxu0 %v661
        %v1413 = vpop.f32.mrf.mxu0
        %v1414 = vadd.f32 %v1260, %v1413
        %v1415 = vpop.f32.mrf.mxu0
        %v1416 = vadd.f32 %v1262, %v1415
        %1417 = vmatmul.bf16.gmra.mxu0 %v663
        %v1418 = vpop.f32.mrf.mxu0
        %v1419 = vadd.f32 %v1265, %v1418
        %v1420 = vpop.f32.mrf.mxu0
        %v1421 = vadd.f32 %v1267, %v1420
        %1422 = vmatmul.bf16.gmra.mxu0 %v665
        %v1423 = vpop.f32.mrf.mxu0
        %v1424 = vadd.f32 %v1270, %v1423
        %v1425 = vpop.f32.mrf.mxu0
        %v1426 = vadd.f32 %v1272, %v1425
        %1427 = vmatmul.bf16.gmra.mxu0 %v667
        %v1428 = vpop.f32.mrf.mxu0
        %v1429 = vadd.f32 %v1275, %v1428
        %v1430 = vpop.f32.mrf.mxu0
        %v1431 = vadd.f32 %v1277, %v1430
        %1432 = vmatmul.bf16.gmra.mxu0 %v669
        %v1433 = vpop.f32.mrf.mxu0
        %v1434 = vadd.f32 %v1280, %v1433
        %v1435 = vpop.f32.mrf.mxu0
        %v1436 = vadd.f32 %v1282, %v1435
        %1437 = vmatmul.bf16.gmra.mxu0 %v671
        %v1438 = vpop.f32.mrf.mxu0
        %v1439 = vadd.f32 %v1285, %v1438
        %v1440 = vpop.f32.mrf.mxu0
        %v1441 = vadd.f32 %v1287, %v1440
        %1442 = vmatmul.bf16.gmra.mxu0 %v673
        %v1443 = vpop.f32.mrf.mxu0
        %v1444 = vadd.f32 %v1290, %v1443
        %v1445 = vpop.f32.mrf.mxu0
        %v1446 = vadd.f32 %v1292, %v1445
        %1447 = vmatmul.bf16.gmra.mxu0 %v675
        %v1448 = vpop.f32.mrf.mxu0
        %v1449 = vadd.f32 %v1295, %v1448
        %v1450 = vpop.f32.mrf.mxu0
        %v1451 = vadd.f32 %v1297, %v1450
        %1452 = vmatmul.bf16.gmra.mxu0 %v677
        %v1453 = vpop.f32.mrf.mxu0
        %v1454 = vadd.f32 %v1300, %v1453
        %v1455 = vpop.f32.mrf.mxu0
        %v1456 = vadd.f32 %v1302, %v1455
        %1457 = vmatmul.bf16.gmra.mxu0 %v679
        %v1458 = vpop.f32.mrf.mxu0
        %v1459 = vadd.f32 %v1305, %v1458
        %v1460 = vpop.f32.mrf.mxu0
        %v1461 = vadd.f32 %v1307, %v1460
        %1462 = vmatmul.bf16.gmra.mxu0 %v681
        %v1463 = vpop.f32.mrf.mxu0
        %v1464 = vadd.f32 %v1310, %v1463
        %v1465 = vpop.f32.mrf.mxu0
        %v1466 = vadd.f32 %v1312, %v1465
        %1467 = vmatmul.bf16.gmra.mxu0 %v683
        %v1468 = vpop.f32.mrf.mxu0
        %v1469 = vadd.f32 %v1315, %v1468
        %v1470 = vpop.f32.mrf.mxu0
        %v1471 = vadd.f32 %v1317, %v1470
        %1472 = vmatmul.bf16.gmra.mxu0 %v685
        %v1473 = vpop.f32.mrf.mxu0
        %v1474 = vadd.f32 %v1320, %v1473
        %v1475 = vpop.f32.mrf.mxu0
        %v1476 = vadd.f32 %v1322, %v1475
        %1477 = vmatmul.bf16.gmra.mxu0 %v687
        %v1478 = vpop.f32.mrf.mxu0
        %v1479 = vadd.f32 %v1325, %v1478
        %v1480 = vpop.f32.mrf.mxu0
        %v1481 = vadd.f32 %v1327, %v1480
        %1482 = vmatmul.bf16.gmra.mxu0 %v689
        %v1483 = vpop.f32.mrf.mxu0
        %v1484 = vadd.f32 %v1330, %v1483
        %v1485 = vpop.f32.mrf.mxu0
        %v1486 = vadd.f32 %v1332, %v1485
        %1487 = vmatmul.bf16.gmra.mxu0 %v691
        %v1488 = vpop.f32.mrf.mxu0
        %v1489 = vadd.f32 %v1335, %v1488
        %v1490 = vpop.f32.mrf.mxu0
        %v1491 = vadd.f32 %v1337, %v1490
        %1492 = vmatmul.bf16.gmra.mxu0 %v693
        %v1493 = vpop.f32.mrf.mxu0
        %v1494 = vadd.f32 %v1340, %v1493
        %v1495 = vpop.f32.mrf.mxu0
        %v1496 = vadd.f32 %v1342, %v1495
        %1497 = vmatmul.bf16.gmra.mxu0 %v695
        %v1498 = vpop.f32.mrf.mxu0
        %v1499 = vadd.f32 %v1345, %v1498
        %v1500 = vpop.f32.mrf.mxu0
        %v1501 = vadd.f32 %v1347, %v1500
        %1502 = vmatmul.bf16.gmra.mxu0 %v697
        %v1503 = vpop.f32.mrf.mxu0
        %v1504 = vadd.f32 %v1350, %v1503
        %v1505 = vpop.f32.mrf.mxu0
        %v1506 = vadd.f32 %v1352, %v1505
        %1507 = vmatmul.bf16.gmra.mxu0 %v699
        %v1508 = vpop.f32.mrf.mxu0
        %v1509 = vadd.f32 %v1355, %v1508
        %v1510 = vpop.f32.mrf.mxu0
        %v1511 = vadd.f32 %v1357, %v1510
        %1512 = vmatmul.bf16.gmra.mxu0 %v701
        %v1513 = vpop.f32.mrf.mxu0
        %v1514 = vadd.f32 %v1360, %v1513
        %v1515 = vpop.f32.mrf.mxu0
        %v1516 = vadd.f32 %v1362, %v1515
        %1517 = vmatmul.bf16.gmra.mxu0 %v703
        %v1518 = vpop.f32.mrf.mxu0
        %v1519 = vadd.f32 %v1365, %v1518
        %v1520 = vpop.f32.mrf.mxu0
        %v1521 = vadd.f32 %v1367, %v1520
        %1522 = vmatmul.bf16.gmra.mxu0 %v705
        %v1523 = vpop.f32.mrf.mxu0
        %v1524 = vadd.f32 %v1370, %v1523
        %v1525 = vpop.f32.mrf.mxu0
        %v1526 = vadd.f32 %v1372, %v1525
        %1527 = vmatmul.bf16.gmra.mxu0 %v707
        %v1528 = vpop.f32.mrf.mxu0
        %v1529 = vadd.f32 %v1375, %v1528
        %v1530 = vpop.f32.mrf.mxu0
        %v1531 = vadd.f32 %v1377, %v1530
        %1532 = vmatmul.bf16.gmra.mxu0 %v709
        %v1533 = vpop.f32.mrf.mxu0
        %v1534 = vadd.f32 %v1380, %v1533
        %v1535 = vpop.f32.mrf.mxu0
        %v1536 = vadd.f32 %v1382, %v1535
        %1537 = vmatmul.bf16.gmra.mxu0 %v711
        %v1538 = vpop.f32.mrf.mxu0
        %v1539 = vadd.f32 %v1385, %v1538
        %v1540 = vpop.f32.mrf.mxu0
        %v1541 = vadd.f32 %v1387, %v1540
        %1542 = vmatmul.bf16.gmra.mxu0 %v713
        %v1543 = vpop.f32.mrf.mxu0
        %v1544 = vadd.f32 %v1390, %v1543
        %v1545 = vpop.f32.mrf.mxu0
        %v1546 = vadd.f32 %v1392, %v1545
        %1547 = vdwg.mxu0
        %v1548 = vsub.f32 0.0, %v1096
        %v1549 = vsub.f32 0.0, %v1404
        %v1550 = vsub.f32 0.0, %v1098
        %v1551 = vsub.f32 0.0, %v1406
        %v1552 = vsub.f32 0.0, %v1101
        %v1553 = vsub.f32 0.0, %v1409
        %v1554 = vsub.f32 0.0, %v1103
        %v1555 = vsub.f32 0.0, %v1411
        %v1556 = vsub.f32 0.0, %v1106
        %v1557 = vsub.f32 0.0, %v1414
        %v1558 = vsub.f32 0.0, %v1108
        %v1559 = vsub.f32 0.0, %v1416
        %v1560 = vsub.f32 0.0, %v1111
        %v1561 = vsub.f32 0.0, %v1419
        %v1562 = vsub.f32 0.0, %v1113
        %v1563 = vsub.f32 0.0, %v1421
        %v1564 = vsub.f32 0.0, %v1116
        %v1565 = vsub.f32 0.0, %v1424
        %v1566 = vsub.f32 0.0, %v1118
        %v1567 = vsub.f32 0.0, %v1426
        %v1568 = vsub.f32 0.0, %v1121
        %v1569 = vsub.f32 0.0, %v1429
        %v1570 = vsub.f32 0.0, %v1123
        %v1571 = vsub.f32 0.0, %v1431
        %v1572 = vsub.f32 0.0, %v1126
        %v1573 = vsub.f32 0.0, %v1434
        %v1574 = vsub.f32 0.0, %v1128
        %v1575 = vsub.f32 0.0, %v1436
        %v1576 = vsub.f32 0.0, %v1131
        %v1577 = vsub.f32 0.0, %v1439
        %v1578 = vsub.f32 0.0, %v1133
        %v1579 = vsub.f32 0.0, %v1441
        %v1580 = vsub.f32 0.0, %v1136
        %v1581 = vsub.f32 0.0, %v1444
        %v1582 = vsub.f32 0.0, %v1138
        %v1583 = vsub.f32 0.0, %v1446
        %v1584 = vsub.f32 0.0, %v1141
        %v1585 = vsub.f32 0.0, %v1449
        %v1586 = vsub.f32 0.0, %v1143
        %v1587 = vsub.f32 0.0, %v1451
        %v1588 = vsub.f32 0.0, %v1146
        %v1589 = vsub.f32 0.0, %v1454
        %v1590 = vsub.f32 0.0, %v1148
        %v1591 = vsub.f32 0.0, %v1456
        %v1592 = vsub.f32 0.0, %v1151
        %v1593 = vsub.f32 0.0, %v1459
        %v1594 = vsub.f32 0.0, %v1153
        %v1595 = vsub.f32 0.0, %v1461
        %v1596 = vsub.f32 0.0, %v1156
        %v1597 = vsub.f32 0.0, %v1464
        %v1598 = vsub.f32 0.0, %v1158
        %v1599 = vsub.f32 0.0, %v1466
        %v1600 = vsub.f32 0.0, %v1161
        %v1601 = vsub.f32 0.0, %v1469
        %v1602 = vsub.f32 0.0, %v1163
        %v1603 = vsub.f32 0.0, %v1471
        %v1604 = vsub.f32 0.0, %v1166
        %v1605 = vsub.f32 0.0, %v1474
        %v1606 = vsub.f32 0.0, %v1168
        %v1607 = vsub.f32 0.0, %v1476
        %v1608 = vsub.f32 0.0, %v1171
        %v1609 = vsub.f32 0.0, %v1479
        %v1610 = vsub.f32 0.0, %v1173
        %v1611 = vsub.f32 0.0, %v1481
        %v1612 = vsub.f32 0.0, %v1176
        %v1613 = vsub.f32 0.0, %v1484
        %v1614 = vsub.f32 0.0, %v1178
        %v1615 = vsub.f32 0.0, %v1486
        %v1616 = vsub.f32 0.0, %v1181
        %v1617 = vsub.f32 0.0, %v1489
        %v1618 = vsub.f32 0.0, %v1183
        %v1619 = vsub.f32 0.0, %v1491
        %v1620 = vsub.f32 0.0, %v1186
        %v1621 = vsub.f32 0.0, %v1494
        %v1622 = vsub.f32 0.0, %v1188
        %v1623 = vsub.f32 0.0, %v1496
        %v1624 = vsub.f32 0.0, %v1191
        %v1625 = vsub.f32 0.0, %v1499
        %v1626 = vsub.f32 0.0, %v1193
        %v1627 = vsub.f32 0.0, %v1501
        %v1628 = vsub.f32 0.0, %v1196
        %v1629 = vsub.f32 0.0, %v1504
        %v1630 = vsub.f32 0.0, %v1198
        %v1631 = vsub.f32 0.0, %v1506
        %v1632 = vsub.f32 0.0, %v1201
        %v1633 = vsub.f32 0.0, %v1509
        %v1634 = vsub.f32 0.0, %v1203
        %v1635 = vsub.f32 0.0, %v1511
        %v1636 = vsub.f32 0.0, %v1206
        %v1637 = vsub.f32 0.0, %v1514
        %v1638 = vsub.f32 0.0, %v1208
        %v1639 = vsub.f32 0.0, %v1516
        %v1640 = vsub.f32 0.0, %v1211
        %v1641 = vsub.f32 0.0, %v1519
        %v1642 = vsub.f32 0.0, %v1213
        %v1643 = vsub.f32 0.0, %v1521
        %v1644 = vsub.f32 0.0, %v1216
        %v1645 = vsub.f32 0.0, %v1524
        %v1646 = vsub.f32 0.0, %v1218
        %v1647 = vsub.f32 0.0, %v1526
        %v1648 = vsub.f32 0.0, %v1221
        %v1649 = vsub.f32 0.0, %v1529
        %v1650 = vsub.f32 0.0, %v1223
        %v1651 = vsub.f32 0.0, %v1531
        %v1652 = vsub.f32 0.0, %v1226
        %v1653 = vsub.f32 0.0, %v1534
        %v1654 = vsub.f32 0.0, %v1228
        %v1655 = vsub.f32 0.0, %v1536
        %v1656 = vsub.f32 0.0, %v1231
        %v1657 = vsub.f32 0.0, %v1539
        %v1658 = vsub.f32 0.0, %v1233
        %v1659 = vsub.f32 0.0, %v1541
        %v1660 = vsub.f32 0.0, %v1236
        %v1661 = vsub.f32 0.0, %v1544
        %v1662 = vsub.f32 0.0, %v1238
        %v1663 = vsub.f32 0.0, %v1546
        %v1664 = vmul.f32 %v1548, 1.442695
        %v1665 = vpow.pop %v1664
        %v1666 = vmul.f32 %v1549, 1.442695
        %v1667 = vpow.pop %v1666
        %v1668 = vmul.f32 %v1550, 1.442695
        %v1669 = vpow.pop %v1668
        %v1670 = vmul.f32 %v1551, 1.442695
        %v1671 = vpow.pop %v1670
        %v1672 = vmul.f32 %v1552, 1.442695
        %v1673 = vpow.pop %v1672
        %v1674 = vmul.f32 %v1553, 1.442695
        %v1675 = vpow.pop %v1674
        %v1676 = vmul.f32 %v1554, 1.442695
        %v1677 = vpow.pop %v1676
        %v1678 = vmul.f32 %v1555, 1.442695
        %v1679 = vpow.pop %v1678
        %v1680 = vmul.f32 %v1556, 1.442695
        %v1681 = vpow.pop %v1680
        %v1682 = vmul.f32 %v1557, 1.442695
        %v1683 = vpow.pop %v1682
        %v1684 = vmul.f32 %v1558, 1.442695
        %v1685 = vpow.pop %v1684
        %v1686 = vmul.f32 %v1559, 1.442695
        %v1687 = vpow.pop %v1686
        %v1688 = vmul.f32 %v1560, 1.442695
        %v1689 = vpow.pop %v1688
        %v1690 = vmul.f32 %v1561, 1.442695
        %v1691 = vpow.pop %v1690
        %v1692 = vmul.f32 %v1562, 1.442695
        %v1693 = vpow.pop %v1692
        %v1694 = vmul.f32 %v1563, 1.442695
        %v1695 = vpow.pop %v1694
        %v1696 = vmul.f32 %v1564, 1.442695
        %v1697 = vpow.pop %v1696
        %v1698 = vmul.f32 %v1565, 1.442695
        %v1699 = vpow.pop %v1698
        %v1700 = vmul.f32 %v1566, 1.442695
        %v1701 = vpow.pop %v1700
        %v1702 = vmul.f32 %v1567, 1.442695
        %v1703 = vpow.pop %v1702
        %v1704 = vmul.f32 %v1568, 1.442695
        %v1705 = vpow.pop %v1704
        %v1706 = vmul.f32 %v1569, 1.442695
        %v1707 = vpow.pop %v1706
        %v1708 = vmul.f32 %v1570, 1.442695
        %v1709 = vpow.pop %v1708
        %v1710 = vmul.f32 %v1571, 1.442695
        %v1711 = vpow.pop %v1710
        %v1712 = vmul.f32 %v1572, 1.442695
        %v1713 = vpow.pop %v1712
        %v1714 = vmul.f32 %v1573, 1.442695
        %v1715 = vpow.pop %v1714
        %v1716 = vmul.f32 %v1574, 1.442695
        %v1717 = vpow.pop %v1716
        %v1718 = vmul.f32 %v1575, 1.442695
        %v1719 = vpow.pop %v1718
        %v1720 = vmul.f32 %v1576, 1.442695
        %v1721 = vpow.pop %v1720
        %v1722 = vmul.f32 %v1577, 1.442695
        %v1723 = vpow.pop %v1722
        %v1724 = vmul.f32 %v1578, 1.442695
        %v1725 = vpow.pop %v1724
        %v1726 = vmul.f32 %v1579, 1.442695
        %v1727 = vpow.pop %v1726
        %v1728 = vmul.f32 %v1580, 1.442695
        %v1729 = vpow.pop %v1728
        %v1730 = vmul.f32 %v1581, 1.442695
        %v1731 = vpow.pop %v1730
        %v1732 = vmul.f32 %v1582, 1.442695
        %v1733 = vpow.pop %v1732
        %v1734 = vmul.f32 %v1583, 1.442695
        %v1735 = vpow.pop %v1734
        %v1736 = vmul.f32 %v1584, 1.442695
        %v1737 = vpow.pop %v1736
        %v1738 = vmul.f32 %v1585, 1.442695
        %v1739 = vpow.pop %v1738
        %v1740 = vmul.f32 %v1586, 1.442695
        %v1741 = vpow.pop %v1740
        %v1742 = vmul.f32 %v1587, 1.442695
        %v1743 = vpow.pop %v1742
        %v1744 = vmul.f32 %v1588, 1.442695
        %v1745 = vpow.pop %v1744
        %v1746 = vmul.f32 %v1589, 1.442695
        %v1747 = vpow.pop %v1746
        %v1748 = vmul.f32 %v1590, 1.442695
        %v1749 = vpow.pop %v1748
        %v1750 = vmul.f32 %v1591, 1.442695
        %v1751 = vpow.pop %v1750
        %v1752 = vmul.f32 %v1592, 1.442695
        %v1753 = vpow.pop %v1752
        %v1754 = vmul.f32 %v1593, 1.442695
        %v1755 = vpow.pop %v1754
        %v1756 = vmul.f32 %v1594, 1.442695
        %v1757 = vpow.pop %v1756
        %v1758 = vmul.f32 %v1595, 1.442695
        %v1759 = vpow.pop %v1758
        %v1760 = vmul.f32 %v1596, 1.442695
        %v1761 = vpow.pop %v1760
        %v1762 = vmul.f32 %v1597, 1.442695
        %v1763 = vpow.pop %v1762
        %v1764 = vmul.f32 %v1598, 1.442695
        %v1765 = vpow.pop %v1764
        %v1766 = vmul.f32 %v1599, 1.442695
        %v1767 = vpow.pop %v1766
        %v1768 = vmul.f32 %v1600, 1.442695
        %v1769 = vpow.pop %v1768
        %v1770 = vmul.f32 %v1601, 1.442695
        %v1771 = vpow.pop %v1770
        %v1772 = vmul.f32 %v1602, 1.442695
        %v1773 = vpow.pop %v1772
        %v1774 = vmul.f32 %v1603, 1.442695
        %v1775 = vpow.pop %v1774
        %v1776 = vmul.f32 %v1604, 1.442695
        %v1777 = vpow.pop %v1776
        %v1778 = vmul.f32 %v1605, 1.442695
        %v1779 = vpow.pop %v1778
        %v1780 = vmul.f32 %v1606, 1.442695
        %v1781 = vpow.pop %v1780
        %v1782 = vmul.f32 %v1607, 1.442695
        %v1783 = vpow.pop %v1782
        %v1784 = vmul.f32 %v1608, 1.442695
        %v1785 = vpow.pop %v1784
        %v1786 = vmul.f32 %v1609, 1.442695
        %v1787 = vpow.pop %v1786
        %v1788 = vmul.f32 %v1610, 1.442695
        %v1789 = vpow.pop %v1788
        %v1790 = vmul.f32 %v1611, 1.442695
        %v1791 = vpow.pop %v1790
        %v1792 = vmul.f32 %v1612, 1.442695
        %v1793 = vpow.pop %v1792
        %v1794 = vmul.f32 %v1613, 1.442695
        %v1795 = vpow.pop %v1794
        %v1796 = vmul.f32 %v1614, 1.442695
        %v1797 = vpow.pop %v1796
        %v1798 = vmul.f32 %v1615, 1.442695
        %v1799 = vpow.pop %v1798
        %v1800 = vmul.f32 %v1616, 1.442695
        %v1801 = vpow.pop %v1800
        %v1802 = vmul.f32 %v1617, 1.442695
        %v1803 = vpow.pop %v1802
        %v1804 = vmul.f32 %v1618, 1.442695
        %v1805 = vpow.pop %v1804
        %v1806 = vmul.f32 %v1619, 1.442695
        %v1807 = vpow.pop %v1806
        %v1808 = vmul.f32 %v1620, 1.442695
        %v1809 = vpow.pop %v1808
        %v1810 = vmul.f32 %v1621, 1.442695
        %v1811 = vpow.pop %v1810
        %v1812 = vmul.f32 %v1622, 1.442695
        %v1813 = vpow.pop %v1812
        %v1814 = vmul.f32 %v1623, 1.442695
        %v1815 = vpow.pop %v1814
        %v1816 = vmul.f32 %v1624, 1.442695
        %v1817 = vpow.pop %v1816
        %v1818 = vmul.f32 %v1625, 1.442695
        %v1819 = vpow.pop %v1818
        %v1820 = vmul.f32 %v1626, 1.442695
        %v1821 = vpow.pop %v1820
        %v1822 = vmul.f32 %v1627, 1.442695
        %v1823 = vpow.pop %v1822
        %v1824 = vmul.f32 %v1628, 1.442695
        %v1825 = vpow.pop %v1824
        %v1826 = vmul.f32 %v1629, 1.442695
        %v1827 = vpow.pop %v1826
        %v1828 = vmul.f32 %v1630, 1.442695
        %v1829 = vpow.pop %v1828
        %v1830 = vmul.f32 %v1631, 1.442695
        %v1831 = vpow.pop %v1830
        %v1832 = vmul.f32 %v1632, 1.442695
        %v1833 = vpow.pop %v1832
        %v1834 = vmul.f32 %v1633, 1.442695
        %v1835 = vpow.pop %v1834
        %v1836 = vmul.f32 %v1634, 1.442695
        %v1837 = vpow.pop %v1836
        %v1838 = vmul.f32 %v1635, 1.442695
        %v1839 = vpow.pop %v1838
        %v1840 = vmul.f32 %v1636, 1.442695
        %v1841 = vpow.pop %v1840
        %v1842 = vmul.f32 %v1637, 1.442695
        %v1843 = vpow.pop %v1842
        %v1844 = vmul.f32 %v1638, 1.442695
        %v1845 = vpow.pop %v1844
        %v1846 = vmul.f32 %v1639, 1.442695
        %v1847 = vpow.pop %v1846
        %v1848 = vmul.f32 %v1640, 1.442695
        %v1849 = vpow.pop %v1848
        %v1850 = vmul.f32 %v1641, 1.442695
        %v1851 = vpow.pop %v1850
        %v1852 = vmul.f32 %v1642, 1.442695
        %v1853 = vpow.pop %v1852
        %v1854 = vmul.f32 %v1643, 1.442695
        %v1855 = vpow.pop %v1854
        %v1856 = vmul.f32 %v1644, 1.442695
        %v1857 = vpow.pop %v1856
        %v1858 = vmul.f32 %v1645, 1.442695
        %v1859 = vpow.pop %v1858
        %v1860 = vmul.f32 %v1646, 1.442695
        %v1861 = vpow.pop %v1860
        %v1862 = vmul.f32 %v1647, 1.442695
        %v1863 = vpow.pop %v1862
        %v1864 = vmul.f32 %v1648, 1.442695
        %v1865 = vpow.pop %v1864
        %v1866 = vmul.f32 %v1649, 1.442695
        %v1867 = vpow.pop %v1866
        %v1868 = vmul.f32 %v1650, 1.442695
        %v1869 = vpow.pop %v1868
        %v1870 = vmul.f32 %v1651, 1.442695
        %v1871 = vpow.pop %v1870
        %v1872 = vmul.f32 %v1652, 1.442695
        %v1873 = vpow.pop %v1872
        %v1874 = vmul.f32 %v1653, 1.442695
        %v1875 = vpow.pop %v1874
        %v1876 = vmul.f32 %v1654, 1.442695
        %v1877 = vpow.pop %v1876
        %v1878 = vmul.f32 %v1655, 1.442695
        %v1879 = vpow.pop %v1878
        %v1880 = vmul.f32 %v1656, 1.442695
        %v1881 = vpow.pop %v1880
        %v1882 = vmul.f32 %v1657, 1.442695
        %v1883 = vpow.pop %v1882
        %v1884 = vmul.f32 %v1658, 1.442695
        %v1885 = vpow.pop %v1884
        %v1886 = vmul.f32 %v1659, 1.442695
        %v1887 = vpow.pop %v1886
        %v1888 = vmul.f32 %v1660, 1.442695
        %v1889 = vpow.pop %v1888
        %v1890 = vmul.f32 %v1661, 1.442695
        %v1891 = vpow.pop %v1890
        %v1892 = vmul.f32 %v1662, 1.442695
        %v1893 = vpow.pop %v1892
        %v1894 = vmul.f32 %v1663, 1.442695
        %v1895 = vpow.pop %v1894
        %v1896 = vadd.f32 %v1665, 1.0
        %v1897 = vadd.f32 %v1667, 1.0
        %v1898 = vadd.f32 %v1669, 1.0
        %v1899 = vadd.f32 %v1671, 1.0
        %v1900 = vadd.f32 %v1673, 1.0
        %v1901 = vadd.f32 %v1675, 1.0
        %v1902 = vadd.f32 %v1677, 1.0
        %v1903 = vadd.f32 %v1679, 1.0
        %v1904 = vadd.f32 %v1681, 1.0
        %v1905 = vadd.f32 %v1683, 1.0
        %v1906 = vadd.f32 %v1685, 1.0
        %v1907 = vadd.f32 %v1687, 1.0
        %v1908 = vadd.f32 %v1689, 1.0
        %v1909 = vadd.f32 %v1691, 1.0
        %v1910 = vadd.f32 %v1693, 1.0
        %v1911 = vadd.f32 %v1695, 1.0
        %v1912 = vadd.f32 %v1697, 1.0
        %v1913 = vadd.f32 %v1699, 1.0
        %v1914 = vadd.f32 %v1701, 1.0
        %v1915 = vadd.f32 %v1703, 1.0
        %v1916 = vadd.f32 %v1705, 1.0
        %v1917 = vadd.f32 %v1707, 1.0
        %v1918 = vadd.f32 %v1709, 1.0
        %v1919 = vadd.f32 %v1711, 1.0
        %v1920 = vadd.f32 %v1713, 1.0
        %v1921 = vadd.f32 %v1715, 1.0
        %v1922 = vadd.f32 %v1717, 1.0
        %v1923 = vadd.f32 %v1719, 1.0
        %v1924 = vadd.f32 %v1721, 1.0
        %v1925 = vadd.f32 %v1723, 1.0
        %v1926 = vadd.f32 %v1725, 1.0
        %v1927 = vadd.f32 %v1727, 1.0
        %v1928 = vadd.f32 %v1729, 1.0
        %v1929 = vadd.f32 %v1731, 1.0
        %v1930 = vadd.f32 %v1733, 1.0
        %v1931 = vadd.f32 %v1735, 1.0
        %v1932 = vadd.f32 %v1737, 1.0
        %v1933 = vadd.f32 %v1739, 1.0
        %v1934 = vadd.f32 %v1741, 1.0
        %v1935 = vadd.f32 %v1743, 1.0
        %v1936 = vadd.f32 %v1745, 1.0
        %v1937 = vadd.f32 %v1747, 1.0
        %v1938 = vadd.f32 %v1749, 1.0
        %v1939 = vadd.f32 %v1751, 1.0
        %v1940 = vadd.f32 %v1753, 1.0
        %v1941 = vadd.f32 %v1755, 1.0
        %v1942 = vadd.f32 %v1757, 1.0
        %v1943 = vadd.f32 %v1759, 1.0
        %v1944 = vadd.f32 %v1761, 1.0
        %v1945 = vadd.f32 %v1763, 1.0
        %v1946 = vadd.f32 %v1765, 1.0
        %v1947 = vadd.f32 %v1767, 1.0
        %v1948 = vadd.f32 %v1769, 1.0
        %v1949 = vadd.f32 %v1771, 1.0
        %v1950 = vadd.f32 %v1773, 1.0
        %v1951 = vadd.f32 %v1775, 1.0
        %v1952 = vadd.f32 %v1777, 1.0
        %v1953 = vadd.f32 %v1779, 1.0
        %v1954 = vadd.f32 %v1781, 1.0
        %v1955 = vadd.f32 %v1783, 1.0
        %v1956 = vadd.f32 %v1785, 1.0
        %v1957 = vadd.f32 %v1787, 1.0
        %v1958 = vadd.f32 %v1789, 1.0
        %v1959 = vadd.f32 %v1791, 1.0
        %v1960 = vadd.f32 %v1793, 1.0
        %v1961 = vadd.f32 %v1795, 1.0
        %v1962 = vadd.f32 %v1797, 1.0
        %v1963 = vadd.f32 %v1799, 1.0
        %v1964 = vadd.f32 %v1801, 1.0
        %v1965 = vadd.f32 %v1803, 1.0
        %v1966 = vadd.f32 %v1805, 1.0
        %v1967 = vadd.f32 %v1807, 1.0
        %v1968 = vadd.f32 %v1809, 1.0
        %v1969 = vadd.f32 %v1811, 1.0
        %v1970 = vadd.f32 %v1813, 1.0
        %v1971 = vadd.f32 %v1815, 1.0
        %v1972 = vadd.f32 %v1817, 1.0
        %v1973 = vadd.f32 %v1819, 1.0
        %v1974 = vadd.f32 %v1821, 1.0
        %v1975 = vadd.f32 %v1823, 1.0
        %v1976 = vadd.f32 %v1825, 1.0
        %v1977 = vadd.f32 %v1827, 1.0
        %v1978 = vadd.f32 %v1829, 1.0
        %v1979 = vadd.f32 %v1831, 1.0
        %v1980 = vadd.f32 %v1833, 1.0
        %v1981 = vadd.f32 %v1835, 1.0
        %v1982 = vadd.f32 %v1837, 1.0
        %v1983 = vadd.f32 %v1839, 1.0
        %v1984 = vadd.f32 %v1841, 1.0
        %v1985 = vadd.f32 %v1843, 1.0
        %v1986 = vadd.f32 %v1845, 1.0
        %v1987 = vadd.f32 %v1847, 1.0
        %v1988 = vadd.f32 %v1849, 1.0
        %v1989 = vadd.f32 %v1851, 1.0
        %v1990 = vadd.f32 %v1853, 1.0
        %v1991 = vadd.f32 %v1855, 1.0
        %v1992 = vadd.f32 %v1857, 1.0
        %v1993 = vadd.f32 %v1859, 1.0
        %v1994 = vadd.f32 %v1861, 1.0
        %v1995 = vadd.f32 %v1863, 1.0
        %v1996 = vadd.f32 %v1865, 1.0
        %v1997 = vadd.f32 %v1867, 1.0
        %v1998 = vadd.f32 %v1869, 1.0
        %v1999 = vadd.f32 %v1871, 1.0
        %v2000 = vadd.f32 %v1873, 1.0
        %v2001 = vadd.f32 %v1875, 1.0
        %v2002 = vadd.f32 %v1877, 1.0
        %v2003 = vadd.f32 %v1879, 1.0
        %v2004 = vadd.f32 %v1881, 1.0
        %v2005 = vadd.f32 %v1883, 1.0
        %v2006 = vadd.f32 %v1885, 1.0
        %v2007 = vadd.f32 %v1887, 1.0
        %v2008 = vadd.f32 %v1889, 1.0
        %v2009 = vadd.f32 %v1891, 1.0
        %v2010 = vadd.f32 %v1893, 1.0
        %v2011 = vadd.f32 %v1895, 1.0
        %v2012 = vrcp.pop %v1896
        %v2013 = vrcp.pop %v1897
        %v2014 = vrcp.pop %v1898
        %v2015 = vrcp.pop %v1899
        %v2016 = vrcp.pop %v1900
        %v2017 = vrcp.pop %v1901
        %v2018 = vrcp.pop %v1902
        %v2019 = vrcp.pop %v1903
        %v2020 = vrcp.pop %v1904
        %v2021 = vrcp.pop %v1905
        %v2022 = vrcp.pop %v1906
        %v2023 = vrcp.pop %v1907
        %v2024 = vrcp.pop %v1908
        %v2025 = vrcp.pop %v1909
        %v2026 = vrcp.pop %v1910
        %v2027 = vrcp.pop %v1911
        %v2028 = vrcp.pop %v1912
        %v2029 = vrcp.pop %v1913
        %v2030 = vrcp.pop %v1914
        %v2031 = vrcp.pop %v1915
        %v2032 = vrcp.pop %v1916
        %v2033 = vrcp.pop %v1917
        %v2034 = vrcp.pop %v1918
        %v2035 = vrcp.pop %v1919
        %v2036 = vrcp.pop %v1920
        %v2037 = vrcp.pop %v1921
        %v2038 = vrcp.pop %v1922
        %v2039 = vrcp.pop %v1923
        %v2040 = vrcp.pop %v1924
        %v2041 = vrcp.pop %v1925
        %v2042 = vrcp.pop %v1926
        %v2043 = vrcp.pop %v1927
        %v2044 = vrcp.pop %v1928
        %v2045 = vrcp.pop %v1929
        %v2046 = vrcp.pop %v1930
        %v2047 = vrcp.pop %v1931
        %v2048 = vrcp.pop %v1932
        %v2049 = vrcp.pop %v1933
        %v2050 = vrcp.pop %v1934
        %v2051 = vrcp.pop %v1935
        %v2052 = vrcp.pop %v1936
        %v2053 = vrcp.pop %v1937
        %v2054 = vrcp.pop %v1938
        %v2055 = vrcp.pop %v1939
        %v2056 = vrcp.pop %v1940
        %v2057 = vrcp.pop %v1941
        %v2058 = vrcp.pop %v1942
        %v2059 = vrcp.pop %v1943
        %v2060 = vrcp.pop %v1944
        %v2061 = vrcp.pop %v1945
        %v2062 = vrcp.pop %v1946
        %v2063 = vrcp.pop %v1947
        %v2064 = vrcp.pop %v1948
        %v2065 = vrcp.pop %v1949
        %v2066 = vrcp.pop %v1950
        %v2067 = vrcp.pop %v1951
        %v2068 = vrcp.pop %v1952
        %v2069 = vrcp.pop %v1953
        %v2070 = vrcp.pop %v1954
        %v2071 = vrcp.pop %v1955
        %v2072 = vrcp.pop %v1956
        %v2073 = vrcp.pop %v1957
        %v2074 = vrcp.pop %v1958
        %v2075 = vrcp.pop %v1959
        %v2076 = vrcp.pop %v1960
        %v2077 = vrcp.pop %v1961
        %v2078 = vrcp.pop %v1962
        %v2079 = vrcp.pop %v1963
        %v2080 = vrcp.pop %v1964
        %v2081 = vrcp.pop %v1965
        %v2082 = vrcp.pop %v1966
        %v2083 = vrcp.pop %v1967
        %v2084 = vrcp.pop %v1968
        %v2085 = vrcp.pop %v1969
        %v2086 = vrcp.pop %v1970
        %v2087 = vrcp.pop %v1971
        %v2088 = vrcp.pop %v1972
        %v2089 = vrcp.pop %v1973
        %v2090 = vrcp.pop %v1974
        %v2091 = vrcp.pop %v1975
        %v2092 = vrcp.pop %v1976
        %v2093 = vrcp.pop %v1977
        %v2094 = vrcp.pop %v1978
        %v2095 = vrcp.pop %v1979
        %v2096 = vrcp.pop %v1980
        %v2097 = vrcp.pop %v1981
        %v2098 = vrcp.pop %v1982
        %v2099 = vrcp.pop %v1983
        %v2100 = vrcp.pop %v1984
        %v2101 = vrcp.pop %v1985
        %v2102 = vrcp.pop %v1986
        %v2103 = vrcp.pop %v1987
        %v2104 = vrcp.pop %v1988
        %v2105 = vrcp.pop %v1989
        %v2106 = vrcp.pop %v1990
        %v2107 = vrcp.pop %v1991
        %v2108 = vrcp.pop %v1992
        %v2109 = vrcp.pop %v1993
        %v2110 = vrcp.pop %v1994
        %v2111 = vrcp.pop %v1995
        %v2112 = vrcp.pop %v1996
        %v2113 = vrcp.pop %v1997
        %v2114 = vrcp.pop %v1998
        %v2115 = vrcp.pop %v1999
        %v2116 = vrcp.pop %v2000
        %v2117 = vrcp.pop %v2001
        %v2118 = vrcp.pop %v2002
        %v2119 = vrcp.pop %v2003
        %v2120 = vrcp.pop %v2004
        %v2121 = vrcp.pop %v2005
        %v2122 = vrcp.pop %v2006
        %v2123 = vrcp.pop %v2007
        %v2124 = vrcp.pop %v2008
        %v2125 = vrcp.pop %v2009
        %v2126 = vrcp.pop %v2010
        %v2127 = vrcp.pop %v2011
        %v2128 = vmul.f32 %v1096, %v2012
        %v2129 = vmul.f32 %v1404, %v2013
        %v2130 = vmul.f32 %v1098, %v2014
        %v2131 = vmul.f32 %v1406, %v2015
        %v2132 = vmul.f32 %v1101, %v2016
        %v2133 = vmul.f32 %v1409, %v2017
        %v2134 = vmul.f32 %v1103, %v2018
        %v2135 = vmul.f32 %v1411, %v2019
        %v2136 = vmul.f32 %v1106, %v2020
        %v2137 = vmul.f32 %v1414, %v2021
        %v2138 = vmul.f32 %v1108, %v2022
        %v2139 = vmul.f32 %v1416, %v2023
        %v2140 = vmul.f32 %v1111, %v2024
        %v2141 = vmul.f32 %v1419, %v2025
        %v2142 = vmul.f32 %v1113, %v2026
        %v2143 = vmul.f32 %v1421, %v2027
        %v2144 = vmul.f32 %v1116, %v2028
        %v2145 = vmul.f32 %v1424, %v2029
        %v2146 = vmul.f32 %v1118, %v2030
        %v2147 = vmul.f32 %v1426, %v2031
        %v2148 = vmul.f32 %v1121, %v2032
        %v2149 = vmul.f32 %v1429, %v2033
        %v2150 = vmul.f32 %v1123, %v2034
        %v2151 = vmul.f32 %v1431, %v2035
        %v2152 = vmul.f32 %v1126, %v2036
        %v2153 = vmul.f32 %v1434, %v2037
        %v2154 = vmul.f32 %v1128, %v2038
        %v2155 = vmul.f32 %v1436, %v2039
        %v2156 = vmul.f32 %v1131, %v2040
        %v2157 = vmul.f32 %v1439, %v2041
        %v2158 = vmul.f32 %v1133, %v2042
        %v2159 = vmul.f32 %v1441, %v2043
        %v2160 = vmul.f32 %v1136, %v2044
        %v2161 = vmul.f32 %v1444, %v2045
        %v2162 = vmul.f32 %v1138, %v2046
        %v2163 = vmul.f32 %v1446, %v2047
        %v2164 = vmul.f32 %v1141, %v2048
        %v2165 = vmul.f32 %v1449, %v2049
        %v2166 = vmul.f32 %v1143, %v2050
        %v2167 = vmul.f32 %v1451, %v2051
        %v2168 = vmul.f32 %v1146, %v2052
        %v2169 = vmul.f32 %v1454, %v2053
        %v2170 = vmul.f32 %v1148, %v2054
        %v2171 = vmul.f32 %v1456, %v2055
        %v2172 = vmul.f32 %v1151, %v2056
        %v2173 = vmul.f32 %v1459, %v2057
        %v2174 = vmul.f32 %v1153, %v2058
        %v2175 = vmul.f32 %v1461, %v2059
        %v2176 = vmul.f32 %v1156, %v2060
        %v2177 = vmul.f32 %v1464, %v2061
        %v2178 = vmul.f32 %v1158, %v2062
        %v2179 = vmul.f32 %v1466, %v2063
        %v2180 = vmul.f32 %v1161, %v2064
        %v2181 = vmul.f32 %v1469, %v2065
        %v2182 = vmul.f32 %v1163, %v2066
        %v2183 = vmul.f32 %v1471, %v2067
        %v2184 = vmul.f32 %v1166, %v2068
        %v2185 = vmul.f32 %v1474, %v2069
        %v2186 = vmul.f32 %v1168, %v2070
        %v2187 = vmul.f32 %v1476, %v2071
        %v2188 = vmul.f32 %v1171, %v2072
        %v2189 = vmul.f32 %v1479, %v2073
        %v2190 = vmul.f32 %v1173, %v2074
        %v2191 = vmul.f32 %v1481, %v2075
        %v2192 = vmul.f32 %v1176, %v2076
        %v2193 = vmul.f32 %v1484, %v2077
        %v2194 = vmul.f32 %v1178, %v2078
        %v2195 = vmul.f32 %v1486, %v2079
        %v2196 = vmul.f32 %v1181, %v2080
        %v2197 = vmul.f32 %v1489, %v2081
        %v2198 = vmul.f32 %v1183, %v2082
        %v2199 = vmul.f32 %v1491, %v2083
        %v2200 = vmul.f32 %v1186, %v2084
        %v2201 = vmul.f32 %v1494, %v2085
        %v2202 = vmul.f32 %v1188, %v2086
        %v2203 = vmul.f32 %v1496, %v2087
        %v2204 = vmul.f32 %v1191, %v2088
        %v2205 = vmul.f32 %v1499, %v2089
        %v2206 = vmul.f32 %v1193, %v2090
        %v2207 = vmul.f32 %v1501, %v2091
        %v2208 = vmul.f32 %v1196, %v2092
        %v2209 = vmul.f32 %v1504, %v2093
        %v2210 = vmul.f32 %v1198, %v2094
        %v2211 = vmul.f32 %v1506, %v2095
        %v2212 = vmul.f32 %v1201, %v2096
        %v2213 = vmul.f32 %v1509, %v2097
        %v2214 = vmul.f32 %v1203, %v2098
        %v2215 = vmul.f32 %v1511, %v2099
        %v2216 = vmul.f32 %v1206, %v2100
        %v2217 = vmul.f32 %v1514, %v2101
        %v2218 = vmul.f32 %v1208, %v2102
        %v2219 = vmul.f32 %v1516, %v2103
        %v2220 = vmul.f32 %v1211, %v2104
        %v2221 = vmul.f32 %v1519, %v2105
        %v2222 = vmul.f32 %v1213, %v2106
        %v2223 = vmul.f32 %v1521, %v2107
        %v2224 = vmul.f32 %v1216, %v2108
        %v2225 = vmul.f32 %v1524, %v2109
        %v2226 = vmul.f32 %v1218, %v2110
        %v2227 = vmul.f32 %v1526, %v2111
        %v2228 = vmul.f32 %v1221, %v2112
        %v2229 = vmul.f32 %v1529, %v2113
        %v2230 = vmul.f32 %v1223, %v2114
        %v2231 = vmul.f32 %v1531, %v2115
        %v2232 = vmul.f32 %v1226, %v2116
        %v2233 = vmul.f32 %v1534, %v2117
        %v2234 = vmul.f32 %v1228, %v2118
        %v2235 = vmul.f32 %v1536, %v2119
        %v2236 = vmul.f32 %v1231, %v2120
        %v2237 = vmul.f32 %v1539, %v2121
        %v2238 = vmul.f32 %v1233, %v2122
        %v2239 = vmul.f32 %v1541, %v2123
        %v2240 = vmul.f32 %v1236, %v2124
        %v2241 = vmul.f32 %v1544, %v2125
        %v2242 = vmul.f32 %v1238, %v2126
        %v2243 = vmul.f32 %v1546, %v2127
        %2244 = vst [vmem:[%s370] sm:$0xff] %v2128
        %2245 = vst [vmem:[%s370 + $0x8] sm:$0xff] %v2129
        %2246 = vst [vmem:[%s370 + $0x10] sm:$0xff] %v2130
        %2247 = vst [vmem:[%s370 + $0x18] sm:$0xff] %v2131
        %2248 = vst [vmem:[%s370 + $0x20] sm:$0xff] %v2132
        %2249 = vst [vmem:[%s370 + $0x28] sm:$0xff] %v2133
        %2250 = vst [vmem:[%s370 + $0x30] sm:$0xff] %v2134
        %2251 = vst [vmem:[%s370 + $0x38] sm:$0xff] %v2135
        %2252 = vst [vmem:[%s370 + $0x40] sm:$0xff] %v2136
        %2253 = vst [vmem:[%s370 + $0x48] sm:$0xff] %v2137
        %2254 = vst [vmem:[%s370 + $0x50] sm:$0xff] %v2138
        %2255 = vst [vmem:[%s370 + $0x58] sm:$0xff] %v2139
        %2256 = vst [vmem:[%s370 + $0x60] sm:$0xff] %v2140
        %2257 = vst [vmem:[%s370 + $0x68] sm:$0xff] %v2141
        %2258 = vst [vmem:[%s370 + $0x70] sm:$0xff] %v2142
        %2259 = vst [vmem:[%s370 + $0x78] sm:$0xff] %v2143
        %2260 = vst [vmem:[%s370 + $0x80] sm:$0xff] %v2144
        %2261 = vst [vmem:[%s370 + $0x88] sm:$0xff] %v2145
        %2262 = vst [vmem:[%s370 + $0x90] sm:$0xff] %v2146
        %2263 = vst [vmem:[%s370 + $0x98] sm:$0xff] %v2147
        %2264 = vst [vmem:[%s370 + $0xa0] sm:$0xff] %v2148
        %2265 = vst [vmem:[%s370 + $0xa8] sm:$0xff] %v2149
        %2266 = vst [vmem:[%s370 + $0xb0] sm:$0xff] %v2150
        %2267 = vst [vmem:[%s370 + $0xb8] sm:$0xff] %v2151
        %2268 = vst [vmem:[%s370 + $0xc0] sm:$0xff] %v2152
        %2269 = vst [vmem:[%s370 + $0xc8] sm:$0xff] %v2153
        %2270 = vst [vmem:[%s370 + $0xd0] sm:$0xff] %v2154
        %2271 = vst [vmem:[%s370 + $0xd8] sm:$0xff] %v2155
        %2272 = vst [vmem:[%s370 + $0xe0] sm:$0xff] %v2156
        %2273 = vst [vmem:[%s370 + $0xe8] sm:$0xff] %v2157
        %2274 = vst [vmem:[%s370 + $0xf0] sm:$0xff] %v2158
        %2275 = vst [vmem:[%s370 + $0xf8] sm:$0xff] %v2159
        %2276 = vst [vmem:[%s370 + $0x100] sm:$0xff] %v2160
        %2277 = vst [vmem:[%s370 + $0x108] sm:$0xff] %v2161
        %2278 = vst [vmem:[%s370 + $0x110] sm:$0xff] %v2162
        %2279 = vst [vmem:[%s370 + $0x118] sm:$0xff] %v2163
        %2280 = vst [vmem:[%s370 + $0x120] sm:$0xff] %v2164
        %2281 = vst [vmem:[%s370 + $0x128] sm:$0xff] %v2165
        %2282 = vst [vmem:[%s370 + $0x130] sm:$0xff] %v2166
        %2283 = vst [vmem:[%s370 + $0x138] sm:$0xff] %v2167
        %2284 = vst [vmem:[%s370 + $0x140] sm:$0xff] %v2168
        %2285 = vst [vmem:[%s370 + $0x148] sm:$0xff] %v2169
        %2286 = vst [vmem:[%s370 + $0x150] sm:$0xff] %v2170
        %2287 = vst [vmem:[%s370 + $0x158] sm:$0xff] %v2171
        %2288 = vst [vmem:[%s370 + $0x160] sm:$0xff] %v2172
        %2289 = vst [vmem:[%s370 + $0x168] sm:$0xff] %v2173
        %2290 = vst [vmem:[%s370 + $0x170] sm:$0xff] %v2174
        %2291 = vst [vmem:[%s370 + $0x178] sm:$0xff] %v2175
        %2292 = vst [vmem:[%s370 + $0x180] sm:$0xff] %v2176
        %2293 = vst [vmem:[%s370 + $0x188] sm:$0xff] %v2177
        %2294 = vst [vmem:[%s370 + $0x190] sm:$0xff] %v2178
        %2295 = vst [vmem:[%s370 + $0x198] sm:$0xff] %v2179
        %2296 = vst [vmem:[%s370 + $0x1a0] sm:$0xff] %v2180
        %2297 = vst [vmem:[%s370 + $0x1a8] sm:$0xff] %v2181
        %2298 = vst [vmem:[%s370 + $0x1b0] sm:$0xff] %v2182
        %2299 = vst [vmem:[%s370 + $0x1b8] sm:$0xff] %v2183
        %2300 = vst [vmem:[%s370 + $0x1c0] sm:$0xff] %v2184
        %2301 = vst [vmem:[%s370 + $0x1c8] sm:$0xff] %v2185
        %2302 = vst [vmem:[%s370 + $0x1d0] sm:$0xff] %v2186
        %2303 = vst [vmem:[%s370 + $0x1d8] sm:$0xff] %v2187
        %2304 = vst [vmem:[%s370 + $0x1e0] sm:$0xff] %v2188
        %2305 = vst [vmem:[%s370 + $0x1e8] sm:$0xff] %v2189
        %2306 = vst [vmem:[%s370 + $0x1f0] sm:$0xff] %v2190
        %2307 = vst [vmem:[%s370 + $0x1f8] sm:$0xff] %v2191
        %2308 = vst [vmem:[%s370 + $0x200] sm:$0xff] %v2192
        %2309 = vst [vmem:[%s370 + $0x208] sm:$0xff] %v2193
        %2310 = vst [vmem:[%s370 + $0x210] sm:$0xff] %v2194
        %2311 = vst [vmem:[%s370 + $0x218] sm:$0xff] %v2195
        %2312 = vst [vmem:[%s370 + $0x220] sm:$0xff] %v2196
        %2313 = vst [vmem:[%s370 + $0x228] sm:$0xff] %v2197
        %2314 = vst [vmem:[%s370 + $0x230] sm:$0xff] %v2198
        %2315 = vst [vmem:[%s370 + $0x238] sm:$0xff] %v2199
        %2316 = vst [vmem:[%s370 + $0x240] sm:$0xff] %v2200
        %2317 = vst [vmem:[%s370 + $0x248] sm:$0xff] %v2201
        %2318 = vst [vmem:[%s370 + $0x250] sm:$0xff] %v2202
        %2319 = vst [vmem:[%s370 + $0x258] sm:$0xff] %v2203
        %2320 = vst [vmem:[%s370 + $0x260] sm:$0xff] %v2204
        %2321 = vst [vmem:[%s370 + $0x268] sm:$0xff] %v2205
        %2322 = vst [vmem:[%s370 + $0x270] sm:$0xff] %v2206
        %2323 = vst [vmem:[%s370 + $0x278] sm:$0xff] %v2207
        %2324 = vst [vmem:[%s370 + $0x280] sm:$0xff] %v2208
        %2325 = vst [vmem:[%s370 + $0x288] sm:$0xff] %v2209
        %2326 = vst [vmem:[%s370 + $0x290] sm:$0xff] %v2210
        %2327 = vst [vmem:[%s370 + $0x298] sm:$0xff] %v2211
        %2328 = vst [vmem:[%s370 + $0x2a0] sm:$0xff] %v2212
        %2329 = vst [vmem:[%s370 + $0x2a8] sm:$0xff] %v2213
        %2330 = vst [vmem:[%s370 + $0x2b0] sm:$0xff] %v2214
        %2331 = vst [vmem:[%s370 + $0x2b8] sm:$0xff] %v2215
        %2332 = vst [vmem:[%s370 + $0x2c0] sm:$0xff] %v2216
        %2333 = vst [vmem:[%s370 + $0x2c8] sm:$0xff] %v2217
        %2334 = vst [vmem:[%s370 + $0x2d0] sm:$0xff] %v2218
        %2335 = vst [vmem:[%s370 + $0x2d8] sm:$0xff] %v2219
        %2336 = vst [vmem:[%s370 + $0x2e0] sm:$0xff] %v2220
        %2337 = vst [vmem:[%s370 + $0x2e8] sm:$0xff] %v2221
        %2338 = vst [vmem:[%s370 + $0x2f0] sm:$0xff] %v2222
        %2339 = vst [vmem:[%s370 + $0x2f8] sm:$0xff] %v2223
        %2340 = vst [vmem:[%s370 + $0x300] sm:$0xff] %v2224
        %2341 = vst [vmem:[%s370 + $0x308] sm:$0xff] %v2225
        %2342 = vst [vmem:[%s370 + $0x310] sm:$0xff] %v2226
        %2343 = vst [vmem:[%s370 + $0x318] sm:$0xff] %v2227
        %2344 = vst [vmem:[%s370 + $0x320] sm:$0xff] %v2228
        %2345 = vst [vmem:[%s370 + $0x328] sm:$0xff] %v2229
        %2346 = vst [vmem:[%s370 + $0x330] sm:$0xff] %v2230
        %2347 = vst [vmem:[%s370 + $0x338] sm:$0xff] %v2231
        %2348 = vst [vmem:[%s370 + $0x340] sm:$0xff] %v2232
        %2349 = vst [vmem:[%s370 + $0x348] sm:$0xff] %v2233
        %2350 = vst [vmem:[%s370 + $0x350] sm:$0xff] %v2234
        %2351 = vst [vmem:[%s370 + $0x358] sm:$0xff] %v2235
        %2352 = vst [vmem:[%s370 + $0x360] sm:$0xff] %v2236
        %2353 = vst [vmem:[%s370 + $0x368] sm:$0xff] %v2237
        %2354 = vst [vmem:[%s370 + $0x370] sm:$0xff] %v2238
        %2355 = vst [vmem:[%s370 + $0x378] sm:$0xff] %v2239
        %2356 = vst [vmem:[%s370 + $0x380] sm:$0xff] %v2240
        %2357 = vst [vmem:[%s370 + $0x388] sm:$0xff] %v2241
        %2358 = vst [vmem:[%s370 + $0x390] sm:$0xff] %v2242
        %2359 = vst [vmem:[%s370 + $0x398] sm:$0xff] %v2243
        %s2360 = sand.u32 %s114, 1
        %s2361 = sand.u32 %s114, 1
        %s2362 = smul.addr %s2361, 928
        %s2363 = scalar_lea.vmem [#allocation3], %s2362
        // Predicated region
        $region71: #{netg_forward.20} parent=65 // pred_check
          %p2364 = pneg %p124
        $region72: #{netg_forward.20} parent=65 // pred_check_branch
          %2366 = sbr.rel (%p2364) target = $region74
        $region73: #{netg_forward.20} parent=65 // pred_region
          %s2367 = smul.u32 58, %s18
          %s2368 = smul.u32 2, %s19
          %s2369 = smul.addr %s2367, 4
          %s2370 = sadd.s32 %s2368, %s2369
          %s2371 = smul.addr %s2370, 8
          %s2372 = scalar_lea.vmem %s3, %s2371
          // Predicated region
          $region75: #{netg_forward.20} parent=73 // pred_check
            _
          $region76: #{netg_forward.20} parent=73 // pred_check_branch
            %2374 = sbr.rel (0) target = $region78
          $region77: #{netg_forward.20} parent=73 // pred_region
            // Predicated region
            $region79: #{netg_forward.20} parent=77 // pred_check
              _
            $region80: #{netg_forward.20} parent=77 // pred_check_branch
              %2376 = sbr.rel (0) target = $region82
            $region81: #{netg_forward.20} parent=77 // pred_region
              loop: start=0, step=1, limit=1
              $region83: #{netg_forward.20} parent=81 // loop_pre_header
                _
              $region84: #{netg_forward.20} parent=81 // loop_header
                %s2378 = sphi 0, %s2382
                %p2379 = scmp.ge.s32.totalorder %s2378, 1
                %s2383 = sphi %s2363, %s2363
                %s2384 = sphi %s2372, %s2372
              $region85: #{netg_forward.20} parent=81 // loop_header_branch
                %2381 = sbr.rel (%p2379) target = $region89
              $region86: #{netg_forward.20} parent=81 // loop_body
                %v2385 = vld [vmem:[%s2383] sm:$0xff]
                %2386 = vst [vmem:[%s2384] sm:$0xff] %v2385
                %v2387 = vld [vmem:[%s2383 + $0x8] sm:$0xff]
                %2388 = vst [vmem:[%s2384 + $0x8] sm:$0xff] %v2387
                %v2389 = vld [vmem:[%s2383 + $0x10] sm:$0xff]
                %2390 = vst [vmem:[%s2384 + $0x20] sm:$0xff] %v2389
                %v2391 = vld [vmem:[%s2383 + $0x18] sm:$0xff]
                %2392 = vst [vmem:[%s2384 + $0x28] sm:$0xff] %v2391
                %v2393 = vld [vmem:[%s2383 + $0x20] sm:$0xff]
                %2394 = vst [vmem:[%s2384 + $0x40] sm:$0xff] %v2393
                %v2395 = vld [vmem:[%s2383 + $0x28] sm:$0xff]
                %2396 = vst [vmem:[%s2384 + $0x48] sm:$0xff] %v2395
                %v2397 = vld [vmem:[%s2383 + $0x30] sm:$0xff]
                %2398 = vst [vmem:[%s2384 + $0x60] sm:$0xff] %v2397
                %v2399 = vld [vmem:[%s2383 + $0x38] sm:$0xff]
                %2400 = vst [vmem:[%s2384 + $0x68] sm:$0xff] %v2399
                %v2401 = vld [vmem:[%s2383 + $0x40] sm:$0xff]
                %2402 = vst [vmem:[%s2384 + $0x80] sm:$0xff] %v2401
                %v2403 = vld [vmem:[%s2383 + $0x48] sm:$0xff]
                %2404 = vst [vmem:[%s2384 + $0x88] sm:$0xff] %v2403
                %v2405 = vld [vmem:[%s2383 + $0x50] sm:$0xff]
                %2406 = vst [vmem:[%s2384 + $0xa0] sm:$0xff] %v2405
                %v2407 = vld [vmem:[%s2383 + $0x58] sm:$0xff]
                %2408 = vst [vmem:[%s2384 + $0xa8] sm:$0xff] %v2407
                %v2409 = vld [vmem:[%s2383 + $0x60] sm:$0xff]
                %2410 = vst [vmem:[%s2384 + $0xc0] sm:$0xff] %v2409
                %v2411 = vld [vmem:[%s2383 + $0x68] sm:$0xff]
                %2412 = vst [vmem:[%s2384 + $0xc8] sm:$0xff] %v2411
                %v2413 = vld [vmem:[%s2383 + $0x70] sm:$0xff]
                %2414 = vst [vmem:[%s2384 + $0xe0] sm:$0xff] %v2413
                %v2415 = vld [vmem:[%s2383 + $0x78] sm:$0xff]
                %2416 = vst [vmem:[%s2384 + $0xe8] sm:$0xff] %v2415
                %v2417 = vld [vmem:[%s2383 + $0x80] sm:$0xff]
                %2418 = vst [vmem:[%s2384 + $0x100] sm:$0xff] %v2417
                %v2419 = vld [vmem:[%s2383 + $0x88] sm:$0xff]
                %2420 = vst [vmem:[%s2384 + $0x108] sm:$0xff] %v2419
                %v2421 = vld [vmem:[%s2383 + $0x90] sm:$0xff]
                %2422 = vst [vmem:[%s2384 + $0x120] sm:$0xff] %v2421
                %v2423 = vld [vmem:[%s2383 + $0x98] sm:$0xff]
                %2424 = vst [vmem:[%s2384 + $0x128] sm:$0xff] %v2423
                %v2425 = vld [vmem:[%s2383 + $0xa0] sm:$0xff]
                %2426 = vst [vmem:[%s2384 + $0x140] sm:$0xff] %v2425
                %v2427 = vld [vmem:[%s2383 + $0xa8] sm:$0xff]
                %2428 = vst [vmem:[%s2384 + $0x148] sm:$0xff] %v2427
                %v2429 = vld [vmem:[%s2383 + $0xb0] sm:$0xff]
                %2430 = vst [vmem:[%s2384 + $0x160] sm:$0xff] %v2429
                %v2431 = vld [vmem:[%s2383 + $0xb8] sm:$0xff]
                %2432 = vst [vmem:[%s2384 + $0x168] sm:$0xff] %v2431
                %v2433 = vld [vmem:[%s2383 + $0xc0] sm:$0xff]
                %2434 = vst [vmem:[%s2384 + $0x180] sm:$0xff] %v2433
                %v2435 = vld [vmem:[%s2383 + $0xc8] sm:$0xff]
                %2436 = vst [vmem:[%s2384 + $0x188] sm:$0xff] %v2435
                %v2437 = vld [vmem:[%s2383 + $0xd0] sm:$0xff]
                %2438 = vst [vmem:[%s2384 + $0x1a0] sm:$0xff] %v2437
                %v2439 = vld [vmem:[%s2383 + $0xd8] sm:$0xff]
                %2440 = vst [vmem:[%s2384 + $0x1a8] sm:$0xff] %v2439
                %v2441 = vld [vmem:[%s2383 + $0xe0] sm:$0xff]
                %2442 = vst [vmem:[%s2384 + $0x1c0] sm:$0xff] %v2441
                %v2443 = vld [vmem:[%s2383 + $0xe8] sm:$0xff]
                %2444 = vst [vmem:[%s2384 + $0x1c8] sm:$0xff] %v2443
                %v2445 = vld [vmem:[%s2383 + $0xf0] sm:$0xff]
                %2446 = vst [vmem:[%s2384 + $0x1e0] sm:$0xff] %v2445
                %v2447 = vld [vmem:[%s2383 + $0xf8] sm:$0xff]
                %2448 = vst [vmem:[%s2384 + $0x1e8] sm:$0xff] %v2447
                %v2449 = vld [vmem:[%s2383 + $0x100] sm:$0xff]
                %2450 = vst [vmem:[%s2384 + $0x200] sm:$0xff] %v2449
                %v2451 = vld [vmem:[%s2383 + $0x108] sm:$0xff]
                %2452 = vst [vmem:[%s2384 + $0x208] sm:$0xff] %v2451
                %v2453 = vld [vmem:[%s2383 + $0x110] sm:$0xff]
                %2454 = vst [vmem:[%s2384 + $0x220] sm:$0xff] %v2453
                %v2455 = vld [vmem:[%s2383 + $0x118] sm:$0xff]
                %2456 = vst [vmem:[%s2384 + $0x228] sm:$0xff] %v2455
                %v2457 = vld [vmem:[%s2383 + $0x120] sm:$0xff]
                %2458 = vst [vmem:[%s2384 + $0x240] sm:$0xff] %v2457
                %v2459 = vld [vmem:[%s2383 + $0x128] sm:$0xff]
                %2460 = vst [vmem:[%s2384 + $0x248] sm:$0xff] %v2459
                %v2461 = vld [vmem:[%s2383 + $0x130] sm:$0xff]
                %2462 = vst [vmem:[%s2384 + $0x260] sm:$0xff] %v2461
                %v2463 = vld [vmem:[%s2383 + $0x138] sm:$0xff]
                %2464 = vst [vmem:[%s2384 + $0x268] sm:$0xff] %v2463
                %v2465 = vld [vmem:[%s2383 + $0x140] sm:$0xff]
                %2466 = vst [vmem:[%s2384 + $0x280] sm:$0xff] %v2465
                %v2467 = vld [vmem:[%s2383 + $0x148] sm:$0xff]
                %2468 = vst [vmem:[%s2384 + $0x288] sm:$0xff] %v2467
                %v2469 = vld [vmem:[%s2383 + $0x150] sm:$0xff]
                %2470 = vst [vmem:[%s2384 + $0x2a0] sm:$0xff] %v2469
                %v2471 = vld [vmem:[%s2383 + $0x158] sm:$0xff]
                %2472 = vst [vmem:[%s2384 + $0x2a8] sm:$0xff] %v2471
                %v2473 = vld [vmem:[%s2383 + $0x160] sm:$0xff]
                %2474 = vst [vmem:[%s2384 + $0x2c0] sm:$0xff] %v2473
                %v2475 = vld [vmem:[%s2383 + $0x168] sm:$0xff]
                %2476 = vst [vmem:[%s2384 + $0x2c8] sm:$0xff] %v2475
                %v2477 = vld [vmem:[%s2383 + $0x170] sm:$0xff]
                %2478 = vst [vmem:[%s2384 + $0x2e0] sm:$0xff] %v2477
                %v2479 = vld [vmem:[%s2383 + $0x178] sm:$0xff]
                %2480 = vst [vmem:[%s2384 + $0x2e8] sm:$0xff] %v2479
                %v2481 = vld [vmem:[%s2383 + $0x180] sm:$0xff]
                %2482 = vst [vmem:[%s2384 + $0x300] sm:$0xff] %v2481
                %v2483 = vld [vmem:[%s2383 + $0x188] sm:$0xff]
                %2484 = vst [vmem:[%s2384 + $0x308] sm:$0xff] %v2483
                %v2485 = vld [vmem:[%s2383 + $0x190] sm:$0xff]
                %2486 = vst [vmem:[%s2384 + $0x320] sm:$0xff] %v2485
                %v2487 = vld [vmem:[%s2383 + $0x198] sm:$0xff]
                %2488 = vst [vmem:[%s2384 + $0x328] sm:$0xff] %v2487
                %v2489 = vld [vmem:[%s2383 + $0x1a0] sm:$0xff]
                %2490 = vst [vmem:[%s2384 + $0x340] sm:$0xff] %v2489
                %v2491 = vld [vmem:[%s2383 + $0x1a8] sm:$0xff]
                %2492 = vst [vmem:[%s2384 + $0x348] sm:$0xff] %v2491
                %v2493 = vld [vmem:[%s2383 + $0x1b0] sm:$0xff]
                %2494 = vst [vmem:[%s2384 + $0x360] sm:$0xff] %v2493
                %v2495 = vld [vmem:[%s2383 + $0x1b8] sm:$0xff]
                %2496 = vst [vmem:[%s2384 + $0x368] sm:$0xff] %v2495
                %v2497 = vld [vmem:[%s2383 + $0x1c0] sm:$0xff]
                %2498 = vst [vmem:[%s2384 + $0x380] sm:$0xff] %v2497
                %v2499 = vld [vmem:[%s2383 + $0x1c8] sm:$0xff]
                %2500 = vst [vmem:[%s2384 + $0x388] sm:$0xff] %v2499
                %v2501 = vld [vmem:[%s2383 + $0x1d0] sm:$0xff]
                %2502 = vst [vmem:[%s2384 + $0x3a0] sm:$0xff] %v2501
                %v2503 = vld [vmem:[%s2383 + $0x1d8] sm:$0xff]
                %2504 = vst [vmem:[%s2384 + $0x3a8] sm:$0xff] %v2503
                %v2505 = vld [vmem:[%s2383 + $0x1e0] sm:$0xff]
                %2506 = vst [vmem:[%s2384 + $0x3c0] sm:$0xff] %v2505
                %v2507 = vld [vmem:[%s2383 + $0x1e8] sm:$0xff]
                %2508 = vst [vmem:[%s2384 + $0x3c8] sm:$0xff] %v2507
                %v2509 = vld [vmem:[%s2383 + $0x1f0] sm:$0xff]
                %2510 = vst [vmem:[%s2384 + $0x3e0] sm:$0xff] %v2509
                %v2511 = vld [vmem:[%s2383 + $0x1f8] sm:$0xff]
                %2512 = vst [vmem:[%s2384 + $0x3e8] sm:$0xff] %v2511
                %v2513 = vld [vmem:[%s2383 + $0x200] sm:$0xff]
                %2514 = vst [vmem:[%s2384 + $0x400] sm:$0xff] %v2513
                %v2515 = vld [vmem:[%s2383 + $0x208] sm:$0xff]
                %2516 = vst [vmem:[%s2384 + $0x408] sm:$0xff] %v2515
                %v2517 = vld [vmem:[%s2383 + $0x210] sm:$0xff]
                %2518 = vst [vmem:[%s2384 + $0x420] sm:$0xff] %v2517
                %v2519 = vld [vmem:[%s2383 + $0x218] sm:$0xff]
                %2520 = vst [vmem:[%s2384 + $0x428] sm:$0xff] %v2519
                %v2521 = vld [vmem:[%s2383 + $0x220] sm:$0xff]
                %2522 = vst [vmem:[%s2384 + $0x440] sm:$0xff] %v2521
                %v2523 = vld [vmem:[%s2383 + $0x228] sm:$0xff]
                %2524 = vst [vmem:[%s2384 + $0x448] sm:$0xff] %v2523
                %v2525 = vld [vmem:[%s2383 + $0x230] sm:$0xff]
                %2526 = vst [vmem:[%s2384 + $0x460] sm:$0xff] %v2525
                %v2527 = vld [vmem:[%s2383 + $0x238] sm:$0xff]
                %2528 = vst [vmem:[%s2384 + $0x468] sm:$0xff] %v2527
                %v2529 = vld [vmem:[%s2383 + $0x240] sm:$0xff]
                %2530 = vst [vmem:[%s2384 + $0x480] sm:$0xff] %v2529
                %v2531 = vld [vmem:[%s2383 + $0x248] sm:$0xff]
                %2532 = vst [vmem:[%s2384 + $0x488] sm:$0xff] %v2531
                %v2533 = vld [vmem:[%s2383 + $0x250] sm:$0xff]
                %2534 = vst [vmem:[%s2384 + $0x4a0] sm:$0xff] %v2533
                %v2535 = vld [vmem:[%s2383 + $0x258] sm:$0xff]
                %2536 = vst [vmem:[%s2384 + $0x4a8] sm:$0xff] %v2535
                %v2537 = vld [vmem:[%s2383 + $0x260] sm:$0xff]
                %2538 = vst [vmem:[%s2384 + $0x4c0] sm:$0xff] %v2537
                %v2539 = vld [vmem:[%s2383 + $0x268] sm:$0xff]
                %2540 = vst [vmem:[%s2384 + $0x4c8] sm:$0xff] %v2539
                %v2541 = vld [vmem:[%s2383 + $0x270] sm:$0xff]
                %2542 = vst [vmem:[%s2384 + $0x4e0] sm:$0xff] %v2541
                %v2543 = vld [vmem:[%s2383 + $0x278] sm:$0xff]
                %2544 = vst [vmem:[%s2384 + $0x4e8] sm:$0xff] %v2543
                %v2545 = vld [vmem:[%s2383 + $0x280] sm:$0xff]
                %2546 = vst [vmem:[%s2384 + $0x500] sm:$0xff] %v2545
                %v2547 = vld [vmem:[%s2383 + $0x288] sm:$0xff]
                %2548 = vst [vmem:[%s2384 + $0x508] sm:$0xff] %v2547
                %v2549 = vld [vmem:[%s2383 + $0x290] sm:$0xff]
                %2550 = vst [vmem:[%s2384 + $0x520] sm:$0xff] %v2549
                %v2551 = vld [vmem:[%s2383 + $0x298] sm:$0xff]
                %2552 = vst [vmem:[%s2384 + $0x528] sm:$0xff] %v2551
                %v2553 = vld [vmem:[%s2383 + $0x2a0] sm:$0xff]
                %2554 = vst [vmem:[%s2384 + $0x540] sm:$0xff] %v2553
                %v2555 = vld [vmem:[%s2383 + $0x2a8] sm:$0xff]
                %2556 = vst [vmem:[%s2384 + $0x548] sm:$0xff] %v2555
                %v2557 = vld [vmem:[%s2383 + $0x2b0] sm:$0xff]
                %2558 = vst [vmem:[%s2384 + $0x560] sm:$0xff] %v2557
                %v2559 = vld [vmem:[%s2383 + $0x2b8] sm:$0xff]
                %2560 = vst [vmem:[%s2384 + $0x568] sm:$0xff] %v2559
                %v2561 = vld [vmem:[%s2383 + $0x2c0] sm:$0xff]
                %2562 = vst [vmem:[%s2384 + $0x580] sm:$0xff] %v2561
                %v2563 = vld [vmem:[%s2383 + $0x2c8] sm:$0xff]
                %2564 = vst [vmem:[%s2384 + $0x588] sm:$0xff] %v2563
                %v2565 = vld [vmem:[%s2383 + $0x2d0] sm:$0xff]
                %2566 = vst [vmem:[%s2384 + $0x5a0] sm:$0xff] %v2565
                %v2567 = vld [vmem:[%s2383 + $0x2d8] sm:$0xff]
                %2568 = vst [vmem:[%s2384 + $0x5a8] sm:$0xff] %v2567
                %v2569 = vld [vmem:[%s2383 + $0x2e0] sm:$0xff]
                %2570 = vst [vmem:[%s2384 + $0x5c0] sm:$0xff] %v2569
                %v2571 = vld [vmem:[%s2383 + $0x2e8] sm:$0xff]
                %2572 = vst [vmem:[%s2384 + $0x5c8] sm:$0xff] %v2571
                %v2573 = vld [vmem:[%s2383 + $0x2f0] sm:$0xff]
                %2574 = vst [vmem:[%s2384 + $0x5e0] sm:$0xff] %v2573
                %v2575 = vld [vmem:[%s2383 + $0x2f8] sm:$0xff]
                %2576 = vst [vmem:[%s2384 + $0x5e8] sm:$0xff] %v2575
                %v2577 = vld [vmem:[%s2383 + $0x300] sm:$0xff]
                %2578 = vst [vmem:[%s2384 + $0x600] sm:$0xff] %v2577
                %v2579 = vld [vmem:[%s2383 + $0x308] sm:$0xff]
                %2580 = vst [vmem:[%s2384 + $0x608] sm:$0xff] %v2579
                %v2581 = vld [vmem:[%s2383 + $0x310] sm:$0xff]
                %2582 = vst [vmem:[%s2384 + $0x620] sm:$0xff] %v2581
                %v2583 = vld [vmem:[%s2383 + $0x318] sm:$0xff]
                %2584 = vst [vmem:[%s2384 + $0x628] sm:$0xff] %v2583
                %v2585 = vld [vmem:[%s2383 + $0x320] sm:$0xff]
                %2586 = vst [vmem:[%s2384 + $0x640] sm:$0xff] %v2585
                %v2587 = vld [vmem:[%s2383 + $0x328] sm:$0xff]
                %2588 = vst [vmem:[%s2384 + $0x648] sm:$0xff] %v2587
                %v2589 = vld [vmem:[%s2383 + $0x330] sm:$0xff]
                %2590 = vst [vmem:[%s2384 + $0x660] sm:$0xff] %v2589
                %v2591 = vld [vmem:[%s2383 + $0x338] sm:$0xff]
                %2592 = vst [vmem:[%s2384 + $0x668] sm:$0xff] %v2591
                %v2593 = vld [vmem:[%s2383 + $0x340] sm:$0xff]
                %2594 = vst [vmem:[%s2384 + $0x680] sm:$0xff] %v2593
                %v2595 = vld [vmem:[%s2383 + $0x348] sm:$0xff]
                %2596 = vst [vmem:[%s2384 + $0x688] sm:$0xff] %v2595
                %v2597 = vld [vmem:[%s2383 + $0x350] sm:$0xff]
                %2598 = vst [vmem:[%s2384 + $0x6a0] sm:$0xff] %v2597
                %v2599 = vld [vmem:[%s2383 + $0x358] sm:$0xff]
                %2600 = vst [vmem:[%s2384 + $0x6a8] sm:$0xff] %v2599
                %v2601 = vld [vmem:[%s2383 + $0x360] sm:$0xff]
                %2602 = vst [vmem:[%s2384 + $0x6c0] sm:$0xff] %v2601
                %v2603 = vld [vmem:[%s2383 + $0x368] sm:$0xff]
                %2604 = vst [vmem:[%s2384 + $0x6c8] sm:$0xff] %v2603
                %v2605 = vld [vmem:[%s2383 + $0x370] sm:$0xff]
                %2606 = vst [vmem:[%s2384 + $0x6e0] sm:$0xff] %v2605
                %v2607 = vld [vmem:[%s2383 + $0x378] sm:$0xff]
                %2608 = vst [vmem:[%s2384 + $0x6e8] sm:$0xff] %v2607
                %v2609 = vld [vmem:[%s2383 + $0x380] sm:$0xff]
                %2610 = vst [vmem:[%s2384 + $0x700] sm:$0xff] %v2609
                %v2611 = vld [vmem:[%s2383 + $0x388] sm:$0xff]
                %2612 = vst [vmem:[%s2384 + $0x708] sm:$0xff] %v2611
                %v2613 = vld [vmem:[%s2383 + $0x390] sm:$0xff]
                %2614 = vst [vmem:[%s2384 + $0x720] sm:$0xff] %v2613
                %v2615 = vld [vmem:[%s2383 + $0x398] sm:$0xff]
                %2616 = vst [vmem:[%s2384 + $0x728] sm:$0xff] %v2615
              $region87: #{netg_forward.20} parent=81 // loop_footer
                %s2382 = sadd.s32 1, %s2378
              $region88: #{netg_forward.20} parent=81 // loop_footer_branch
                %2377 = sbr.rel target = $region84
              $region89: #{netg_forward.20} parent=81 // loop_exit
                _
            $region82: #{netg_forward.20} parent=77 // pred_fallthru
              _
            // Predicated region
            $region90: #{netg_forward.20} parent=77 // pred_check
              _
            $region91: #{netg_forward.20} parent=77 // pred_check_branch
              %2618 = sbr.rel target = $region93
            $region92: #{netg_forward.20} parent=77 // pred_region
              _
            $region93: #{netg_forward.20} parent=77 // pred_fallthru
              _
          $region78: #{netg_forward.20} parent=73 // pred_fallthru
            _
          %2619 = vnop
        $region74: #{netg_forward.20} parent=65 // pred_fallthru
          _
      $region66: #{netg_forward.20} parent=5 // pred_fallthru
        _
      %p2620 = scmp.le.s32.totalorder 2, %s9
      // Predicated region
      $region94: #{netg_forward.20} parent=5 // pred_check
        %p2621 = pneg %p2620
      $region95: #{netg_forward.20} parent=5 // pred_check_branch
        %2623 = sbr.rel (%p2621) target = $region97
      $region96: #{netg_forward.20} parent=5 // pred_region
        %s2624 = ssub.s32 %s9, 2
        // Predicated region
        $region98: #{netg_forward.20} parent=96 // pred_check
          %p2625 = pneg %p130
        $region99: #{netg_forward.20} parent=96 // pred_check_branch
          %2627 = sbr.rel (%p2625) target = $region101
        $region100: #{netg_forward.20} parent=96 // pred_region
          %s2628 = sand.u32 %s115, 1
          %s2629 = sand.u32 %s115, 1
          %s2630 = smul.addr %s2629, 928
          %s2631 = scalar_lea.vmem [#allocation3], %s2630
        $region101: #{netg_forward.20} parent=96 // pred_fallthru
          _
      $region97: #{netg_forward.20} parent=5 // pred_fallthru
        _
    $region6: #{netg_forward.20} parent=1 // loop_footer
      %s13 = sadd.s32 1, %s9
    $region7: #{netg_forward.20} parent=1 // loop_footer_branch
      %8 = sbr.rel target = $region3
    $region8: #{netg_forward.20} parent=1 // loop_exit
      _

// kernel: netg_forward.21
$region0: #{netg_forward.21}
  #allocation0 [shape = 'u32[]', space=smem, size = 0x4, offset = 0x4, fixed_abs, tag = 'smem constant byte address 0x4 - core index']
  #allocation1 [shape = 'u32[72,128]{1,0:T(1,128)}', space=vmem, size = 0x9000, scoped, tag = 'internal scratch']
  %s0 = inlined_call_operand.vmem [shape: bf16[7680,128], index: 0, kind: input, shape index: {}]
  %s1 = inlined_call_operand.vmem [shape: bf16[128,128], index: 1, kind: input, shape index: {}]
  %s2 = inlined_call_operand.vmem [shape: f32[1,128], index: 2, kind: input, shape index: {}]
  %s3 = inlined_call_operand.vmem [shape: f32[7680,128], index: 3, kind: output, shape index: {}]
  %s4 = sld [smem:[#allocation0]]
  $region45: #{netg_forward.21} parent=0
    _
  %s6 = ssub.s32 1, %s4
  %s7 = scalar_select 0, %s6, %s4
  loop: start=0, step=1, limit=17
  $region2: #{netg_forward.21} parent=0 // loop_pre_header
    _
  $region3: #{netg_forward.21} parent=0 // loop_header
    %s9 = sphi 0, %s13
    %p10 = scmp.ge.s32.totalorder %s9, 17
    %s16 = sphi 0, %s28
    %s17 = sphi 0, %s24
    %s18 = sphi 0, %s16
    %s19 = sphi 0, %s17
    %s20 = sphi 0, %s18
    %s21 = sphi 0, %s19
    %s31 = sphi 0, %s33
    %s34 = sphi 0, %s31
    %s35 = sphi 0, %s34
    %s51 = sphi 0, %s35
    %s57 = sphi 0, %s59
    %s60 = sphi 0, %s57
    %s61 = sphi 0, %s60
    %s77 = sphi 0, %s61
    %s83 = sphi 0, %s85
    %s86 = sphi 0, %s83
    %s87 = sphi 0, %s86
    %s103 = sphi 0, %s87
    %s111 = sphi 0, %s113
    %s114 = sphi 0, %s111
    %s115 = sphi 0, %s114
    %s131 = sphi 0, %s115
  $region4: #{netg_forward.21} parent=0 // loop_header_branch
    %12 = sbr.rel (%p10) target = $region8
  $region5: #{netg_forward.21} parent=0 // loop_body
    %s14 = ssub.s32 %s9, 1
    %s15 = ssub.s32 %s9, 2
    %s22 = sadd.s32 1, %s17
    %p23 = scmp.ge.s32.totalorder %s22, 1
    %s24 = scalar_select %p23, 0, %s22
    %s25 = sadd.s32 1, %s16
    %s26 = scalar_select %p23, %s25, %s16
    %p27 = scmp.ge.s32.totalorder %s26, 15
    %s28 = scalar_select %p27, 0, %s26
    %s29 = ssub.s32 %s16, %s28
    %p30 = scmp.eq.s32.totalorder %s29, 0
    %s32 = sadd.s32 %s31, 1
    %s33 = scalar_select %p30, %s31, %s32
    %p36 = pneg %p30
    %p37 = scmp.eq.s32.totalorder %s9, 14
    %p38 = por %p36, %p37
    %p39 = scmp.ne.s32.totalorder %s31, %s34
    %p40 = scmp.eq.s32.totalorder %s9, 0
    %p41 = por %p39, %p40
    %p42 = scmp.ne.s32.totalorder %s31, %s34
    %p43 = scmp.eq.s32.totalorder %s14, 14
    %p44 = por %p42, %p43
    %p45 = scmp.ne.s32.totalorder %s34, %s35
    %p46 = scmp.eq.s32.totalorder %s14, 0
    %p47 = por %p45, %p46
    %p48 = scmp.ne.s32.totalorder %s34, %s35
    %p49 = scmp.eq.s32.totalorder %s15, 14
    %p50 = por %p48, %p49
    %p52 = scmp.ne.s32.totalorder %s35, %s51
    %p53 = scmp.eq.s32.totalorder %s15, 0
    %p54 = por %p52, %p53
    %s55 = ssub.s32 %s17, %s24
    %p56 = scmp.eq.s32.totalorder %s55, 0
    %s58 = sadd.s32 %s57, 1
    %s59 = scalar_select %p56, %s57, %s58
    %p62 = pneg %p56
    %p63 = scmp.eq.s32.totalorder %s9, 14
    %p64 = por %p62, %p63
    %p65 = scmp.ne.s32.totalorder %s57, %s60
    %p66 = scmp.eq.s32.totalorder %s9, 0
    %p67 = por %p65, %p66
    %p68 = scmp.ne.s32.totalorder %s57, %s60
    %p69 = scmp.eq.s32.totalorder %s14, 14
    %p70 = por %p68, %p69
    %p71 = scmp.ne.s32.totalorder %s60, %s61
    %p72 = scmp.eq.s32.totalorder %s14, 0
    %p73 = por %p71, %p72
    %p74 = scmp.ne.s32.totalorder %s60, %s61
    %p75 = scmp.eq.s32.totalorder %s15, 14
    %p76 = por %p74, %p75
    %p78 = scmp.ne.s32.totalorder %s61, %s77
    %p79 = scmp.eq.s32.totalorder %s15, 0
    %p80 = por %p78, %p79
    %s81 = ssub.s32 %s17, %s24
    %p82 = scmp.eq.s32.totalorder %s81, 0
    %s84 = sadd.s32 %s83, 1
    %s85 = scalar_select %p82, %s83, %s84
    %p88 = pneg %p82
    %p89 = scmp.eq.s32.totalorder %s9, 14
    %p90 = por %p88, %p89
    %p91 = scmp.ne.s32.totalorder %s83, %s86
    %p92 = scmp.eq.s32.totalorder %s9, 0
    %p93 = por %p91, %p92
    %p94 = scmp.ne.s32.totalorder %s83, %s86
    %p95 = scmp.eq.s32.totalorder %s14, 14
    %p96 = por %p94, %p95
    %p97 = scmp.ne.s32.totalorder %s86, %s87
    %p98 = scmp.eq.s32.totalorder %s14, 0
    %p99 = por %p97, %p98
    %p100 = scmp.ne.s32.totalorder %s86, %s87
    %p101 = scmp.eq.s32.totalorder %s15, 14
    %p102 = por %p100, %p101
    %p104 = scmp.ne.s32.totalorder %s87, %s103
    %p105 = scmp.eq.s32.totalorder %s15, 0
    %p106 = por %p104, %p105
    %s107 = ssub.s32 %s16, %s28
    %s108 = ssub.s32 %s17, %s24
    %s109 = sor.u32 %s107, %s108
    %p110 = scmp.eq.s32.totalorder %s109, 0
    %s112 = sadd.s32 %s111, 1
    %s113 = scalar_select %p110, %s111, %s112
    %p116 = pneg %p110
    %p117 = scmp.eq.s32.totalorder %s9, 14
    %p118 = por %p116, %p117
    %p119 = scmp.ne.s32.totalorder %s111, %s114
    %p120 = scmp.eq.s32.totalorder %s9, 0
    %p121 = por %p119, %p120
    %p122 = scmp.ne.s32.totalorder %s111, %s114
    %p123 = scmp.eq.s32.totalorder %s14, 14
    %p124 = por %p122, %p123
    %p125 = scmp.ne.s32.totalorder %s114, %s115
    %p126 = scmp.eq.s32.totalorder %s14, 0
    %p127 = por %p125, %p126
    %p128 = scmp.ne.s32.totalorder %s114, %s115
    %p129 = scmp.eq.s32.totalorder %s15, 14
    %p130 = por %p128, %p129
    %p132 = scmp.ne.s32.totalorder %s115, %s131
    %p133 = scmp.eq.s32.totalorder %s15, 0
    %p134 = por %p132, %p133
    %p135 = scmp.le.s32.totalorder 1, %s9
    %p136 = scmp.lt.s32.totalorder %s9, 16
    %p137 = pnand %p135, %p136
    %p138 = pneg %p137
    // Predicated region
    $region9: #{netg_forward.21} parent=5 // pred_check
      _
    $region10: #{netg_forward.21} parent=5 // pred_check_branch
      %140 = sbr.rel (%p137) target = $region12
    $region11: #{netg_forward.21} parent=5 // pred_region
      %s141 = ssub.s32 %s9, 1
      // Predicated region
      $region13: #{netg_forward.21} parent=11 // pred_check
        %p142 = pneg %p73
      $region14: #{netg_forward.21} parent=11 // pred_check_branch
        %144 = sbr.rel (%p142) target = $region16
      $region15: #{netg_forward.21} parent=11 // pred_region
        %p145 = scmp.lt.s32.totalorder %s19, 0
        %s146 = scalar_select %p145, %s19, 0
        %s147 = smul.addr %s146, 4
        %s148 = scalar_lea.vmem %s1, %s147
      $region16: #{netg_forward.21} parent=11 // pred_fallthru
        _
      // Predicated region
      $region17: #{netg_forward.21} parent=11 // pred_check
        %p149 = pneg %p99
      $region18: #{netg_forward.21} parent=11 // pred_check_branch
        %151 = sbr.rel (%p149) target = $region20
      $region19: #{netg_forward.21} parent=11 // pred_region
        %p152 = scmp.lt.s32.totalorder %s19, 0
        %s153 = scalar_select %p152, %s19, 0
        %s154 = scalar_lea.vmem %s2, %s153
      $region20: #{netg_forward.21} parent=11 // pred_fallthru
        _
    $region12: #{netg_forward.21} parent=5 // pred_fallthru
      _
    %p155 = scmp.lt.s32.totalorder %s9, 15
    // Predicated region
    $region21: #{netg_forward.21} parent=5 // pred_check
      %p156 = pneg %p155
    $region22: #{netg_forward.21} parent=5 // pred_check_branch
      %158 = sbr.rel (%p156) target = $region24
    $region23: #{netg_forward.21} parent=5 // pred_region
      // Predicated region
      $region25: #{netg_forward.21} parent=23 // pred_check
        %p159 = pneg %p41
      $region26: #{netg_forward.21} parent=23 // pred_check_branch
        %161 = sbr.rel (%p159) target = $region28
      $region27: #{netg_forward.21} parent=23 // pred_region
        %s162 = smul.u32 64, %s16
        %p163 = scmp.lt.s32.totalorder %s162, 959
        %s164 = scalar_select %p163, %s162, 959
        %s165 = smul.addr %s164, 4
        %s166 = scalar_lea.vmem %s0, %s165
        %s167 = smul.u32 64, %s16
      $region28: #{netg_forward.21} parent=23 // pred_fallthru
        _
    $region24: #{netg_forward.21} parent=5 // pred_fallthru
      _
    %p168 = scmp.le.s32.totalorder 1, %s9
    %p169 = scmp.lt.s32.totalorder %s9, 16
    %p170 = pnand %p168, %p169
    %p171 = pneg %p170
    // Predicated region
    $region29: #{netg_forward.21} parent=5 // pred_check
      _
    $region30: #{netg_forward.21} parent=5 // pred_check_branch
      %173 = sbr.rel (%p170) target = $region32
    $region31: #{netg_forward.21} parent=5 // pred_region
      %s174 = ssub.s32 %s9, 1
      %s175 = smul.u32 64, %s18
      %p176 = scmp.lt.s32.totalorder %s175, 959
      %s177 = scalar_select %p176, %s175, 959
      %s178 = smul.addr %s177, 4
      %s179 = scalar_lea.vmem %s0, %s178
      %p180 = pneg %p47
      %p181 = pneg %p44
      %p182 = scmp.lt.s32.totalorder %s19, 0
      %s183 = scalar_select %p182, %s19, 0
      %s184 = smul.addr %s183, 4
      %s185 = scalar_lea.vmem %s1, %s184
      %p186 = pneg %p73
      %p187 = pneg %p70
      %p188 = scmp.lt.s32.totalorder %s19, 0
      %s189 = scalar_select %p188, %s19, 0
      %s190 = scalar_lea.vmem %s2, %s189
      %p191 = pneg %p99
      %p192 = pneg %p96
      %p193 = pneg %p127
      %p194 = pneg %p124
      %s195 = smul.u32 64, %s18
      %p196 = scmp.lt.s32.totalorder %s195, 959
      %s197 = scalar_select %p196, %s195, 959
      %p198 = scmp.lt.s32.totalorder %s19, 0
      %s199 = scalar_select %p198, %s19, 0
      %s200 = sadd.s32 %s199, %s197
      %s201 = smul.addr %s200, 8
      %s202 = scalar_lea.vmem %s3, %s201
      %s203 = smul.u32 64, %s18
      %p204 = scmp.lt.s32.totalorder %s203, 959
      %s205 = scalar_select %p204, %s203, 959
      %s206 = smul.addr %s205, 4
      %s207 = scalar_lea.vmem %s0, %s206
      %s208 = smul.u32 64, %s18
      %p209 = scmp.lt.s32.totalorder %s19, 0
      %s210 = scalar_select %p209, %s19, 0
      %s211 = smul.addr %s210, 4
      %s212 = scalar_lea.vmem %s1, %s211
      %p213 = scmp.lt.s32.totalorder %s19, 0
      %s214 = scalar_select %p213, %s19, 0
      %s215 = scalar_lea.vmem %s2, %s214
      %s216 = smul.u32 64, %s18
      %p217 = scmp.lt.s32.totalorder %s216, 959
      %s218 = scalar_select %p217, %s216, 959
      %p219 = scmp.lt.s32.totalorder %s19, 0
      %s220 = scalar_select %p219, %s19, 0
      %s221 = sadd.s32 %s220, %s218
      %s222 = smul.addr %s221, 8
      %s223 = scalar_lea.vmem %s3, %s222
      %s224 = smul.u32 64, %s18
      %v225 = vld [vmem:[%s207] sm:$0xf]
      %v226 = vld [vmem:[%s207 + $0x4] sm:$0xf]
      %v227 = vld [vmem:[%s207 + $0x8] sm:$0xf]
      %v228 = vld [vmem:[%s207 + $0xc] sm:$0xf]
      %v229 = vld [vmem:[%s207 + $0x10] sm:$0xf]
      %v230 = vld [vmem:[%s207 + $0x14] sm:$0xf]
      %v231 = vld [vmem:[%s207 + $0x18] sm:$0xf]
      %v232 = vld [vmem:[%s207 + $0x1c] sm:$0xf]
      %v233 = vld [vmem:[%s207 + $0x20] sm:$0xf]
      %v234 = vld [vmem:[%s207 + $0x24] sm:$0xf]
      %v235 = vld [vmem:[%s207 + $0x28] sm:$0xf]
      %v236 = vld [vmem:[%s207 + $0x2c] sm:$0xf]
      %v237 = vld [vmem:[%s207 + $0x30] sm:$0xf]
      %v238 = vld [vmem:[%s207 + $0x34] sm:$0xf]
      %v239 = vld [vmem:[%s207 + $0x38] sm:$0xf]
      %v240 = vld [vmem:[%s207 + $0x3c] sm:$0xf]
      %v241 = vld [vmem:[%s207 + $0x40] sm:$0xf]
      %v242 = vld [vmem:[%s207 + $0x44] sm:$0xf]
      %v243 = vld [vmem:[%s207 + $0x48] sm:$0xf]
      %v244 = vld [vmem:[%s207 + $0x4c] sm:$0xf]
      %v245 = vld [vmem:[%s207 + $0x50] sm:$0xf]
      %v246 = vld [vmem:[%s207 + $0x54] sm:$0xf]
      %v247 = vld [vmem:[%s207 + $0x58] sm:$0xf]
      %v248 = vld [vmem:[%s207 + $0x5c] sm:$0xf]
      %v249 = vld [vmem:[%s207 + $0x60] sm:$0xf]
      %v250 = vld [vmem:[%s207 + $0x64] sm:$0xf]
      %v251 = vld [vmem:[%s207 + $0x68] sm:$0xf]
      %v252 = vld [vmem:[%s207 + $0x6c] sm:$0xf]
      %v253 = vld [vmem:[%s207 + $0x70] sm:$0xf]
      %v254 = vld [vmem:[%s207 + $0x74] sm:$0xf]
      %v255 = vld [vmem:[%s207 + $0x78] sm:$0xf]
      %v256 = vld [vmem:[%s207 + $0x7c] sm:$0xf]
      %v257 = vld [vmem:[%s207 + $0x80] sm:$0xf]
      %v258 = vld [vmem:[%s207 + $0x84] sm:$0xf]
      %v259 = vld [vmem:[%s207 + $0x88] sm:$0xf]
      %v260 = vld [vmem:[%s207 + $0x8c] sm:$0xf]
      %v261 = vld [vmem:[%s207 + $0x90] sm:$0xf]
      %v262 = vld [vmem:[%s207 + $0x94] sm:$0xf]
      %v263 = vld [vmem:[%s207 + $0x98] sm:$0xf]
      %v264 = vld [vmem:[%s207 + $0x9c] sm:$0xf]
      %v265 = vld [vmem:[%s207 + $0xa0] sm:$0xf]
      %v266 = vld [vmem:[%s207 + $0xa4] sm:$0xf]
      %v267 = vld [vmem:[%s207 + $0xa8] sm:$0xf]
      %v268 = vld [vmem:[%s207 + $0xac] sm:$0xf]
      %v269 = vld [vmem:[%s207 + $0xb0] sm:$0xf]
      %v270 = vld [vmem:[%s207 + $0xb4] sm:$0xf]
      %v271 = vld [vmem:[%s207 + $0xb8] sm:$0xf]
      %v272 = vld [vmem:[%s207 + $0xbc] sm:$0xf]
      %v273 = vld [vmem:[%s207 + $0xc0] sm:$0xf]
      %v274 = vld [vmem:[%s207 + $0xc4] sm:$0xf]
      %v275 = vld [vmem:[%s207 + $0xc8] sm:$0xf]
      %v276 = vld [vmem:[%s207 + $0xcc] sm:$0xf]
      %v277 = vld [vmem:[%s207 + $0xd0] sm:$0xf]
      %v278 = vld [vmem:[%s207 + $0xd4] sm:$0xf]
      %v279 = vld [vmem:[%s207 + $0xd8] sm:$0xf]
      %v280 = vld [vmem:[%s207 + $0xdc] sm:$0xf]
      %v281 = vld [vmem:[%s207 + $0xe0] sm:$0xf]
      %v282 = vld [vmem:[%s207 + $0xe4] sm:$0xf]
      %v283 = vld [vmem:[%s207 + $0xe8] sm:$0xf]
      %v284 = vld [vmem:[%s207 + $0xec] sm:$0xf]
      %v285 = vld [vmem:[%s207 + $0xf0] sm:$0xf]
      %v286 = vld [vmem:[%s207 + $0xf4] sm:$0xf]
      %v287 = vld [vmem:[%s207 + $0xf8] sm:$0xf]
      %v288 = vld [vmem:[%s207 + $0xfc] sm:$0xf]
      %v289 = vld [vmem:[%s212] sm:$0xf]
      %v290 = vld [vmem:[%s212 + $0x4] sm:$0xf]
      %v291 = vld [vmem:[%s212 + $0x8] sm:$0xf]
      %v292 = vld [vmem:[%s212 + $0xc] sm:$0xf]
      %v293 = vld [vmem:[%s212 + $0x10] sm:$0xf]
      %v294 = vld [vmem:[%s212 + $0x14] sm:$0xf]
      %v295 = vld [vmem:[%s212 + $0x18] sm:$0xf]
      %v296 = vld [vmem:[%s212 + $0x1c] sm:$0xf]
      %v297 = vld [vmem:[%s212 + $0x20] sm:$0xf]
      %v298 = vld [vmem:[%s212 + $0x24] sm:$0xf]
      %v299 = vld [vmem:[%s212 + $0x28] sm:$0xf]
      %v300 = vld [vmem:[%s212 + $0x2c] sm:$0xf]
      %v301 = vld [vmem:[%s212 + $0x30] sm:$0xf]
      %v302 = vld [vmem:[%s212 + $0x34] sm:$0xf]
      %v303 = vld [vmem:[%s212 + $0x38] sm:$0xf]
      %v304 = vld [vmem:[%s212 + $0x3c] sm:$0xf]
      %v305 = vld [vmem:[%s215] sm:$0x1]
      %v307 = vperm.slane %v305, 0
      %v373 = vunpack.c.l.b16 %v225
      %v374 = vunpack.c.l.b16 %v226
      %v375 = vunpack.c.l.b16 %v227
      %v376 = vunpack.c.l.b16 %v228
      %v377 = vunpack.c.l.b16 %v229
      %v378 = vunpack.c.l.b16 %v230
      %v379 = vunpack.c.l.b16 %v231
      %v380 = vunpack.c.l.b16 %v232
      %v381 = vunpack.c.l.b16 %v233
      %v382 = vunpack.c.l.b16 %v234
      %v383 = vunpack.c.l.b16 %v235
      %v384 = vunpack.c.l.b16 %v236
      %v385 = vunpack.c.l.b16 %v237
      %v386 = vunpack.c.l.b16 %v238
      %v387 = vunpack.c.l.b16 %v239
      %v388 = vunpack.c.l.b16 %v240
      %v389 = vunpack.c.l.b16 %v241
      %v390 = vunpack.c.l.b16 %v242
      %v391 = vunpack.c.l.b16 %v243
      %v392 = vunpack.c.l.b16 %v244
      %v393 = vunpack.c.l.b16 %v245
      %v394 = vunpack.c.l.b16 %v246
      %v395 = vunpack.c.l.b16 %v247
      %v396 = vunpack.c.l.b16 %v248
      %v397 = vunpack.c.l.b16 %v249
      %v398 = vunpack.c.l.b16 %v250
      %v399 = vunpack.c.l.b16 %v251
      %v400 = vunpack.c.l.b16 %v252
      %v401 = vunpack.c.l.b16 %v253
      %v402 = vunpack.c.l.b16 %v254
      %v403 = vunpack.c.l.b16 %v255
      %v404 = vunpack.c.l.b16 %v256
      %v405 = vunpack.c.l.b16 %v257
      %v406 = vunpack.c.l.b16 %v258
      %v407 = vunpack.c.l.b16 %v259
      %v408 = vunpack.c.l.b16 %v260
      %v409 = vunpack.c.l.b16 %v261
      %v410 = vunpack.c.l.b16 %v262
      %v411 = vunpack.c.l.b16 %v263
      %v412 = vunpack.c.l.b16 %v264
      %v413 = vunpack.c.l.b16 %v265
      %v414 = vunpack.c.l.b16 %v266
      %v415 = vunpack.c.l.b16 %v267
      %v416 = vunpack.c.l.b16 %v268
      %v417 = vunpack.c.l.b16 %v269
      %v418 = vunpack.c.l.b16 %v270
      %v419 = vunpack.c.l.b16 %v271
      %v420 = vunpack.c.l.b16 %v272
      %v421 = vunpack.c.l.b16 %v273
      %v422 = vunpack.c.l.b16 %v274
      %v423 = vunpack.c.l.b16 %v275
      %v424 = vunpack.c.l.b16 %v276
      %v425 = vunpack.c.l.b16 %v277
      %v426 = vunpack.c.l.b16 %v278
      %v427 = vunpack.c.l.b16 %v279
      %v428 = vunpack.c.l.b16 %v280
      %v429 = vunpack.c.l.b16 %v281
      %v430 = vunpack.c.l.b16 %v282
      %v431 = vunpack.c.l.b16 %v283
      %v432 = vunpack.c.l.b16 %v284
      %v433 = vunpack.c.l.b16 %v285
      %v434 = vunpack.c.l.b16 %v286
      %v435 = vunpack.c.l.b16 %v287
      %v436 = vunpack.c.l.b16 %v288
      %v437 = vpack.c.b16 %v374, %v373
      %v438 = vpack.c.b16 %v376, %v375
      %v439 = vpack.c.b16 %v378, %v377
      %v440 = vpack.c.b16 %v380, %v379
      %v441 = vpack.c.b16 %v382, %v381
      %v442 = vpack.c.b16 %v384, %v383
      %v443 = vpack.c.b16 %v386, %v385
      %v444 = vpack.c.b16 %v388, %v387
      %v445 = vpack.c.b16 %v390, %v389
      %v446 = vpack.c.b16 %v392, %v391
      %v447 = vpack.c.b16 %v394, %v393
      %v448 = vpack.c.b16 %v396, %v395
      %v449 = vpack.c.b16 %v398, %v397
      %v450 = vpack.c.b16 %v400, %v399
      %v451 = vpack.c.b16 %v402, %v401
      %v452 = vpack.c.b16 %v404, %v403
      %v453 = vpack.c.b16 %v406, %v405
      %v454 = vpack.c.b16 %v408, %v407
      %v455 = vpack.c.b16 %v410, %v409
      %v456 = vpack.c.b16 %v412, %v411
      %v457 = vpack.c.b16 %v414, %v413
      %v458 = vpack.c.b16 %v416, %v415
      %v459 = vpack.c.b16 %v418, %v417
      %v460 = vpack.c.b16 %v420, %v419
      %v461 = vpack.c.b16 %v422, %v421
      %v462 = vpack.c.b16 %v424, %v423
      %v463 = vpack.c.b16 %v426, %v425
      %v464 = vpack.c.b16 %v428, %v427
      %v465 = vpack.c.b16 %v430, %v429
      %v466 = vpack.c.b16 %v432, %v431
      %v467 = vpack.c.b16 %v434, %v433
      %v468 = vpack.c.b16 %v436, %v435
      %v517 = vunpack.c.l.b16 %v289
      %v518 = vunpack.c.l.b16 %v290
      %v519 = vunpack.c.l.b16 %v291
      %v520 = vunpack.c.l.b16 %v292
      %v521 = vunpack.c.l.b16 %v293
      %v522 = vunpack.c.l.b16 %v294
      %v523 = vunpack.c.l.b16 %v295
      %v524 = vunpack.c.l.b16 %v296
      %v525 = vunpack.c.l.b16 %v297
      %v526 = vunpack.c.l.b16 %v298
      %v527 = vunpack.c.l.b16 %v299
      %v528 = vunpack.c.l.b16 %v300
      %v529 = vunpack.c.l.b16 %v301
      %v530 = vunpack.c.l.b16 %v302
      %v531 = vunpack.c.l.b16 %v303
      %v532 = vunpack.c.l.b16 %v304
      %v533 = vpack.c.b16 %v518, %v517
      %v534 = vpack.c.b16 %v520, %v519
      %v535 = vpack.c.b16 %v522, %v521
      %v536 = vpack.c.b16 %v524, %v523
      %v537 = vpack.c.b16 %v526, %v525
      %v538 = vpack.c.b16 %v528, %v527
      %v539 = vpack.c.b16 %v530, %v529
      %v540 = vpack.c.b16 %v532, %v531
      %549 = vmatpush.bf16.msra.mxu0 %v540
      %550 = vmatpush.bf16.msra.mxu0 %v539
      %551 = vmatpush.bf16.msra.mxu0 %v538
      %552 = vmatpush.bf16.msra.mxu0 %v537
      %553 = vmatpush.bf16.msra.mxu0 %v536
      %554 = vmatpush.bf16.msra.mxu0 %v535
      %555 = vmatpush.bf16.msra.mxu0 %v534
      %556 = vmatpush.bf16.msra.mxu0 %v533
      %557 = vmatmul.bf16.gmra.mxu0 %v437
      %v558 = vpop.f32.mrf.mxu0
      %v559 = vadd.f32 %v307, %v558
      %v560 = vpop.f32.mrf.mxu0
      %v561 = vadd.f32 %v307, %v560
      %562 = vmatmul.bf16.gmra.mxu0 %v438
      %v563 = vpop.f32.mrf.mxu0
      %v564 = vadd.f32 %v307, %v563
      %v565 = vpop.f32.mrf.mxu0
      %v566 = vadd.f32 %v307, %v565
      %567 = vmatmul.bf16.gmra.mxu0 %v439
      %v568 = vpop.f32.mrf.mxu0
      %v569 = vadd.f32 %v307, %v568
      %v570 = vpop.f32.mrf.mxu0
      %v571 = vadd.f32 %v307, %v570
      %572 = vmatmul.bf16.gmra.mxu0 %v440
      %v573 = vpop.f32.mrf.mxu0
      %v574 = vadd.f32 %v307, %v573
      %v575 = vpop.f32.mrf.mxu0
      %v576 = vadd.f32 %v307, %v575
      %577 = vmatmul.bf16.gmra.mxu0 %v441
      %v578 = vpop.f32.mrf.mxu0
      %v579 = vadd.f32 %v307, %v578
      %v580 = vpop.f32.mrf.mxu0
      %v581 = vadd.f32 %v307, %v580
      %582 = vmatmul.bf16.gmra.mxu0 %v442
      %v583 = vpop.f32.mrf.mxu0
      %v584 = vadd.f32 %v307, %v583
      %v585 = vpop.f32.mrf.mxu0
      %v586 = vadd.f32 %v307, %v585
      %587 = vmatmul.bf16.gmra.mxu0 %v443
      %v588 = vpop.f32.mrf.mxu0
      %v589 = vadd.f32 %v307, %v588
      %v590 = vpop.f32.mrf.mxu0
      %v591 = vadd.f32 %v307, %v590
      %592 = vmatmul.bf16.gmra.mxu0 %v444
      %v593 = vpop.f32.mrf.mxu0
      %v594 = vadd.f32 %v307, %v593
      %v595 = vpop.f32.mrf.mxu0
      %v596 = vadd.f32 %v307, %v595
      %597 = vmatmul.bf16.gmra.mxu0 %v445
      %v598 = vpop.f32.mrf.mxu0
      %v599 = vadd.f32 %v307, %v598
      %v600 = vpop.f32.mrf.mxu0
      %v601 = vadd.f32 %v307, %v600
      %602 = vmatmul.bf16.gmra.mxu0 %v446
      %v603 = vpop.f32.mrf.mxu0
      %v604 = vadd.f32 %v307, %v603
      %v605 = vpop.f32.mrf.mxu0
      %v606 = vadd.f32 %v307, %v605
      %607 = vmatmul.bf16.gmra.mxu0 %v447
      %v608 = vpop.f32.mrf.mxu0
      %v609 = vadd.f32 %v307, %v608
      %v610 = vpop.f32.mrf.mxu0
      %v611 = vadd.f32 %v307, %v610
      %612 = vmatmul.bf16.gmra.mxu0 %v448
      %v613 = vpop.f32.mrf.mxu0
      %v614 = vadd.f32 %v307, %v613
      %v615 = vpop.f32.mrf.mxu0
      %v616 = vadd.f32 %v307, %v615
      %617 = vmatmul.bf16.gmra.mxu0 %v449
      %v618 = vpop.f32.mrf.mxu0
      %v619 = vadd.f32 %v307, %v618
      %v620 = vpop.f32.mrf.mxu0
      %v621 = vadd.f32 %v307, %v620
      %622 = vmatmul.bf16.gmra.mxu0 %v450
      %v623 = vpop.f32.mrf.mxu0
      %v624 = vadd.f32 %v307, %v623
      %v625 = vpop.f32.mrf.mxu0
      %v626 = vadd.f32 %v307, %v625
      %627 = vmatmul.bf16.gmra.mxu0 %v451
      %v628 = vpop.f32.mrf.mxu0
      %v629 = vadd.f32 %v307, %v628
      %v630 = vpop.f32.mrf.mxu0
      %v631 = vadd.f32 %v307, %v630
      %632 = vmatmul.bf16.gmra.mxu0 %v452
      %v633 = vpop.f32.mrf.mxu0
      %v634 = vadd.f32 %v307, %v633
      %v635 = vpop.f32.mrf.mxu0
      %v636 = vadd.f32 %v307, %v635
      %637 = vmatmul.bf16.gmra.mxu0 %v453
      %v638 = vpop.f32.mrf.mxu0
      %v639 = vadd.f32 %v307, %v638
      %v640 = vpop.f32.mrf.mxu0
      %v641 = vadd.f32 %v307, %v640
      %642 = vmatmul.bf16.gmra.mxu0 %v454
      %v643 = vpop.f32.mrf.mxu0
      %v644 = vadd.f32 %v307, %v643
      %v645 = vpop.f32.mrf.mxu0
      %v646 = vadd.f32 %v307, %v645
      %647 = vmatmul.bf16.gmra.mxu0 %v455
      %v648 = vpop.f32.mrf.mxu0
      %v649 = vadd.f32 %v307, %v648
      %v650 = vpop.f32.mrf.mxu0
      %v651 = vadd.f32 %v307, %v650
      %652 = vmatmul.bf16.gmra.mxu0 %v456
      %v653 = vpop.f32.mrf.mxu0
      %v654 = vadd.f32 %v307, %v653
      %v655 = vpop.f32.mrf.mxu0
      %v656 = vadd.f32 %v307, %v655
      %657 = vmatmul.bf16.gmra.mxu0 %v457
      %v658 = vpop.f32.mrf.mxu0
      %v659 = vadd.f32 %v307, %v658
      %v660 = vpop.f32.mrf.mxu0
      %v661 = vadd.f32 %v307, %v660
      %662 = vmatmul.bf16.gmra.mxu0 %v458
      %v663 = vpop.f32.mrf.mxu0
      %v664 = vadd.f32 %v307, %v663
      %v665 = vpop.f32.mrf.mxu0
      %v666 = vadd.f32 %v307, %v665
      %667 = vmatmul.bf16.gmra.mxu0 %v459
      %v668 = vpop.f32.mrf.mxu0
      %v669 = vadd.f32 %v307, %v668
      %v670 = vpop.f32.mrf.mxu0
      %v671 = vadd.f32 %v307, %v670
      %672 = vmatmul.bf16.gmra.mxu0 %v460
      %v673 = vpop.f32.mrf.mxu0
      %v674 = vadd.f32 %v307, %v673
      %v675 = vpop.f32.mrf.mxu0
      %v676 = vadd.f32 %v307, %v675
      %677 = vmatmul.bf16.gmra.mxu0 %v461
      %v678 = vpop.f32.mrf.mxu0
      %v679 = vadd.f32 %v307, %v678
      %v680 = vpop.f32.mrf.mxu0
      %v681 = vadd.f32 %v307, %v680
      %682 = vmatmul.bf16.gmra.mxu0 %v462
      %v683 = vpop.f32.mrf.mxu0
      %v684 = vadd.f32 %v307, %v683
      %v685 = vpop.f32.mrf.mxu0
      %v686 = vadd.f32 %v307, %v685
      %687 = vmatmul.bf16.gmra.mxu0 %v463
      %v688 = vpop.f32.mrf.mxu0
      %v689 = vadd.f32 %v307, %v688
      %v690 = vpop.f32.mrf.mxu0
      %v691 = vadd.f32 %v307, %v690
      %692 = vmatmul.bf16.gmra.mxu0 %v464
      %v693 = vpop.f32.mrf.mxu0
      %v694 = vadd.f32 %v307, %v693
      %v695 = vpop.f32.mrf.mxu0
      %v696 = vadd.f32 %v307, %v695
      %697 = vmatmul.bf16.gmra.mxu0 %v465
      %v698 = vpop.f32.mrf.mxu0
      %v699 = vadd.f32 %v307, %v698
      %v700 = vpop.f32.mrf.mxu0
      %v701 = vadd.f32 %v307, %v700
      %702 = vmatmul.bf16.gmra.mxu0 %v466
      %v703 = vpop.f32.mrf.mxu0
      %v704 = vadd.f32 %v307, %v703
      %v705 = vpop.f32.mrf.mxu0
      %v706 = vadd.f32 %v307, %v705
      %707 = vmatmul.bf16.gmra.mxu0 %v467
      %v708 = vpop.f32.mrf.mxu0
      %v709 = vadd.f32 %v307, %v708
      %v710 = vpop.f32.mrf.mxu0
      %v711 = vadd.f32 %v307, %v710
      %712 = vmatmul.bf16.gmra.mxu0 %v468
      %v713 = vpop.f32.mrf.mxu0
      %v714 = vadd.f32 %v307, %v713
      %v715 = vpop.f32.mrf.mxu0
      %v716 = vadd.f32 %v307, %v715
      %717 = vdwg.mxu0
      %v718 = vtanh.pop %v559
      %v719 = vtanh.pop %v561
      %v720 = vtanh.pop %v564
      %v721 = vtanh.pop %v566
      %v722 = vtanh.pop %v569
      %v723 = vtanh.pop %v571
      %v724 = vtanh.pop %v574
      %v725 = vtanh.pop %v576
      %v726 = vtanh.pop %v579
      %v727 = vtanh.pop %v581
      %v728 = vtanh.pop %v584
      %v729 = vtanh.pop %v586
      %v730 = vtanh.pop %v589
      %v731 = vtanh.pop %v591
      %v732 = vtanh.pop %v594
      %v733 = vtanh.pop %v596
      %v734 = vtanh.pop %v599
      %v735 = vtanh.pop %v601
      %v736 = vtanh.pop %v604
      %v737 = vtanh.pop %v606
      %v738 = vtanh.pop %v609
      %v739 = vtanh.pop %v611
      %v740 = vtanh.pop %v614
      %v741 = vtanh.pop %v616
      %v742 = vtanh.pop %v619
      %v743 = vtanh.pop %v621
      %v744 = vtanh.pop %v624
      %v745 = vtanh.pop %v626
      %v746 = vtanh.pop %v629
      %v747 = vtanh.pop %v631
      %v748 = vtanh.pop %v634
      %v749 = vtanh.pop %v636
      %v750 = vtanh.pop %v639
      %v751 = vtanh.pop %v641
      %v752 = vtanh.pop %v644
      %v753 = vtanh.pop %v646
      %v754 = vtanh.pop %v649
      %v755 = vtanh.pop %v651
      %v756 = vtanh.pop %v654
      %v757 = vtanh.pop %v656
      %v758 = vtanh.pop %v659
      %v759 = vtanh.pop %v661
      %v760 = vtanh.pop %v664
      %v761 = vtanh.pop %v666
      %v762 = vtanh.pop %v669
      %v763 = vtanh.pop %v671
      %v764 = vtanh.pop %v674
      %v765 = vtanh.pop %v676
      %v766 = vtanh.pop %v679
      %v767 = vtanh.pop %v681
      %v768 = vtanh.pop %v684
      %v769 = vtanh.pop %v686
      %v770 = vtanh.pop %v689
      %v771 = vtanh.pop %v691
      %v772 = vtanh.pop %v694
      %v773 = vtanh.pop %v696
      %v774 = vtanh.pop %v699
      %v775 = vtanh.pop %v701
      %v776 = vtanh.pop %v704
      %v777 = vtanh.pop %v706
      %v778 = vtanh.pop %v709
      %v779 = vtanh.pop %v711
      %v780 = vtanh.pop %v714
      %v781 = vtanh.pop %v716
      %782 = vst [vmem:[%s223] sm:$0xff] %v718
      %783 = vst [vmem:[%s223 + $0x8] sm:$0xff] %v719
      %784 = vst [vmem:[%s223 + $0x10] sm:$0xff] %v720
      %785 = vst [vmem:[%s223 + $0x18] sm:$0xff] %v721
      %786 = vst [vmem:[%s223 + $0x20] sm:$0xff] %v722
      %787 = vst [vmem:[%s223 + $0x28] sm:$0xff] %v723
      %788 = vst [vmem:[%s223 + $0x30] sm:$0xff] %v724
      %789 = vst [vmem:[%s223 + $0x38] sm:$0xff] %v725
      %790 = vst [vmem:[%s223 + $0x40] sm:$0xff] %v726
      %791 = vst [vmem:[%s223 + $0x48] sm:$0xff] %v727
      %792 = vst [vmem:[%s223 + $0x50] sm:$0xff] %v728
      %793 = vst [vmem:[%s223 + $0x58] sm:$0xff] %v729
      %794 = vst [vmem:[%s223 + $0x60] sm:$0xff] %v730
      %795 = vst [vmem:[%s223 + $0x68] sm:$0xff] %v731
      %796 = vst [vmem:[%s223 + $0x70] sm:$0xff] %v732
      %797 = vst [vmem:[%s223 + $0x78] sm:$0xff] %v733
      %798 = vst [vmem:[%s223 + $0x80] sm:$0xff] %v734
      %799 = vst [vmem:[%s223 + $0x88] sm:$0xff] %v735
      %800 = vst [vmem:[%s223 + $0x90] sm:$0xff] %v736
      %801 = vst [vmem:[%s223 + $0x98] sm:$0xff] %v737
      %802 = vst [vmem:[%s223 + $0xa0] sm:$0xff] %v738
      %803 = vst [vmem:[%s223 + $0xa8] sm:$0xff] %v739
      %804 = vst [vmem:[%s223 + $0xb0] sm:$0xff] %v740
      %805 = vst [vmem:[%s223 + $0xb8] sm:$0xff] %v741
      %806 = vst [vmem:[%s223 + $0xc0] sm:$0xff] %v742
      %807 = vst [vmem:[%s223 + $0xc8] sm:$0xff] %v743
      %808 = vst [vmem:[%s223 + $0xd0] sm:$0xff] %v744
      %809 = vst [vmem:[%s223 + $0xd8] sm:$0xff] %v745
      %810 = vst [vmem:[%s223 + $0xe0] sm:$0xff] %v746
      %811 = vst [vmem:[%s223 + $0xe8] sm:$0xff] %v747
      %812 = vst [vmem:[%s223 + $0xf0] sm:$0xff] %v748
      %813 = vst [vmem:[%s223 + $0xf8] sm:$0xff] %v749
      %814 = vst [vmem:[%s223 + $0x100] sm:$0xff] %v750
      %815 = vst [vmem:[%s223 + $0x108] sm:$0xff] %v751
      %816 = vst [vmem:[%s223 + $0x110] sm:$0xff] %v752
      %817 = vst [vmem:[%s223 + $0x118] sm:$0xff] %v753
      %818 = vst [vmem:[%s223 + $0x120] sm:$0xff] %v754
      %819 = vst [vmem:[%s223 + $0x128] sm:$0xff] %v755
      %820 = vst [vmem:[%s223 + $0x130] sm:$0xff] %v756
      %821 = vst [vmem:[%s223 + $0x138] sm:$0xff] %v757
      %822 = vst [vmem:[%s223 + $0x140] sm:$0xff] %v758
      %823 = vst [vmem:[%s223 + $0x148] sm:$0xff] %v759
      %824 = vst [vmem:[%s223 + $0x150] sm:$0xff] %v760
      %825 = vst [vmem:[%s223 + $0x158] sm:$0xff] %v761
      %826 = vst [vmem:[%s223 + $0x160] sm:$0xff] %v762
      %827 = vst [vmem:[%s223 + $0x168] sm:$0xff] %v763
      %828 = vst [vmem:[%s223 + $0x170] sm:$0xff] %v764
      %829 = vst [vmem:[%s223 + $0x178] sm:$0xff] %v765
      %830 = vst [vmem:[%s223 + $0x180] sm:$0xff] %v766
      %831 = vst [vmem:[%s223 + $0x188] sm:$0xff] %v767
      %832 = vst [vmem:[%s223 + $0x190] sm:$0xff] %v768
      %833 = vst [vmem:[%s223 + $0x198] sm:$0xff] %v769
      %834 = vst [vmem:[%s223 + $0x1a0] sm:$0xff] %v770
      %835 = vst [vmem:[%s223 + $0x1a8] sm:$0xff] %v771
      %836 = vst [vmem:[%s223 + $0x1b0] sm:$0xff] %v772
      %837 = vst [vmem:[%s223 + $0x1b8] sm:$0xff] %v773
      %838 = vst [vmem:[%s223 + $0x1c0] sm:$0xff] %v774
      %839 = vst [vmem:[%s223 + $0x1c8] sm:$0xff] %v775
      %840 = vst [vmem:[%s223 + $0x1d0] sm:$0xff] %v776
      %841 = vst [vmem:[%s223 + $0x1d8] sm:$0xff] %v777
      %842 = vst [vmem:[%s223 + $0x1e0] sm:$0xff] %v778
      %843 = vst [vmem:[%s223 + $0x1e8] sm:$0xff] %v779
      %844 = vst [vmem:[%s223 + $0x1f0] sm:$0xff] %v780
      %845 = vst [vmem:[%s223 + $0x1f8] sm:$0xff] %v781
      %s846 = smul.u32 64, %s18
      %p847 = scmp.lt.s32.totalorder %s846, 959
      %s848 = scalar_select %p847, %s846, 959
      %p849 = scmp.lt.s32.totalorder %s19, 0
      %s850 = scalar_select %p849, %s19, 0
      %s851 = sadd.s32 %s850, %s848
      %s852 = smul.addr %s851, 8
      %s853 = scalar_lea.vmem %s3, %s852
      // Predicated region
      $region33: #{netg_forward.21} parent=31 // pred_check
        %p854 = pneg %p124
      $region34: #{netg_forward.21} parent=31 // pred_check_branch
        %856 = sbr.rel (%p854) target = $region36
      $region35: #{netg_forward.21} parent=31 // pred_region
        %s857 = smul.u32 64, %s18
      $region36: #{netg_forward.21} parent=31 // pred_fallthru
        _
    $region32: #{netg_forward.21} parent=5 // pred_fallthru
      _
    %p858 = scmp.le.s32.totalorder 2, %s9
    // Predicated region
    $region37: #{netg_forward.21} parent=5 // pred_check
      %p859 = pneg %p858
    $region38: #{netg_forward.21} parent=5 // pred_check_branch
      %861 = sbr.rel (%p859) target = $region40
    $region39: #{netg_forward.21} parent=5 // pred_region
      %s862 = ssub.s32 %s9, 2
      // Predicated region
      $region41: #{netg_forward.21} parent=39 // pred_check
        %p863 = pneg %p130
      $region42: #{netg_forward.21} parent=39 // pred_check_branch
        %865 = sbr.rel (%p863) target = $region44
      $region43: #{netg_forward.21} parent=39 // pred_region
        %s866 = smul.u32 64, %s20
        %p867 = scmp.lt.s32.totalorder %s866, 959
        %s868 = scalar_select %p867, %s866, 959
        %p869 = scmp.lt.s32.totalorder %s21, 0
        %s870 = scalar_select %p869, %s21, 0
        %s871 = sadd.s32 %s870, %s868
        %s872 = smul.addr %s871, 8
        %s873 = scalar_lea.vmem %s3, %s872
      $region44: #{netg_forward.21} parent=39 // pred_fallthru
        _
    $region40: #{netg_forward.21} parent=5 // pred_fallthru
      _
  $region6: #{netg_forward.21} parent=0 // loop_footer
    %s13 = sadd.s32 1, %s9
  $region7: #{netg_forward.21} parent=0 // loop_footer_branch
    %8 = sbr.rel target = $region3
  $region8: #{netg_forward.21} parent=0 // loop_exit
    _

</llo_original>
